<compile_context>
chip_gen: v7x
topology: tpu7x:2x2x1
jax: 0.10.0
libtpu: 0.0.40
codegen_flags: <defaults>
</compile_context>

<pallas_src>
import functools

import jax
import jax.numpy as jnp
from jax.experimental import pallas as pl
from jax.experimental.pallas import tpu as pltpu


def upsample_spi_kernel(w_ref, x_ref, up_ref, o_ref, *, factor):
    # w_ref : SMEM (ff*C,)  fused weights, w_ref[k*C + c] = w_eff[k, c], k = di*f + dj
    # x_ref : VMEM (B, C, R, w)   block of R input rows (NCHW, spatial minor)
    # up_ref: VMEM (B, R*f, W)    matching block of the residual image (x_sv_upscale)
    # o_ref : VMEM (B, R*f, W)    block of the final (B, H, W) output
    B, C, R, w = x_ref.shape
    f = factor
    ff = f * f

    # Channel contraction on the VPU: broadcast-FMA chains (C=ff=4 -> MXU would waste
    # 4/256 rows).  Read each channel slab once; keep ff accumulators live.
    planes = [None] * ff
    for c in range(C):
        xc = x_ref[:, c, :, :]                                  # (B, R, w)
        for k in range(ff):
            term = w_ref[k * C + c] * xc
            planes[k] = term if planes[k] is None else planes[k] + term

    # PixelShuffle placement, fused in-kernel.
    # Column (dj) interleave: out col j*f + dj <- plane[di*f + dj] col j.
    rows = []
    for di in range(f):
        cols = jnp.stack([planes[di * f + dj] for dj in range(f)], axis=-1)  # (B,R,w,f)
        rows.append(cols.reshape(B, R, w * f))                               # (B,R,W)
    # Row (di) interleave: out row r*f + di <- rows[di] row r (minor dim untouched).
    blk = jnp.stack(rows, axis=2).reshape(B, R * f, w * f)                   # (B,R*f,W)

    # Fused residual add + one dense lane-major store of the whole block.
    o_ref[...] = (blk + up_ref[...]).astype(o_ref.dtype)


@functools.partial(jax.jit, static_argnames=("factor", "b", "n"))
def upsample_spi_add(x_feat, x_up, w1, w2, *, factor, b, n):
    """Upsample_SPI (1x1 conv -> PixelShuffle -> 1x1 conv) + residual, as one kernel.

    x_feat: (B, C, h, w) with B = b*n;  x_up: (b, n, 1, h*factor, w*factor);
    w1: (C*factor**2, C);  w2: (1, C).  Returns (b, n, 1, H, W).
    """
    B, C, h, w = x_feat.shape
    f = factor
    ff = f * f
    H, W = h * f, w * f

    # Host-side weight fusion (exact: no bias / nonlinearity between the two convs).
    # w_eff[k, c] = sum_c2 w2[0, c2] * w1[c2*ff + k, c].  (If weights are static in a
    # real model, hoist this out of the per-call path.)
    w_eff = jnp.einsum('c,ckd->kd', w2.reshape(C), w1.reshape(C, ff, C))
    w_flat = w_eff.reshape(ff * C).astype(jnp.float32)

    x_up2 = x_up.reshape(B, H, W).astype(jnp.float32)

    # Row-block tiling: 8 input rows per step -> (B, 8*f, W) sublane-aligned output
    # blocks.  Grid marked "parallel" so v7x can shard blocks across its two
    # TensorCores (neutral on v5e/v6e); BlockSpec pipelining double-buffers the DMAs.
    # For production H*W, enlarge the row block (>=512 lane columns of traffic per
    # step) and re-derive the cap against VMEM (64 MiB on v7x vs 128 MiB on v5e/v6e).
    r_in = 8 if h % 8 == 0 else h
    r_out = r_in * f
    grid = (h // r_in,)

    out = pl.pallas_call(
        functools.partial(upsample_spi_kernel, factor=f),
        out_shape=jax.ShapeDtypeStruct((B, H, W), jnp.float32),
        grid=grid,
        in_specs=[
            # Fused scalar weights: whole tiny array in SMEM every step.
            pl.BlockSpec(memory_space=pltpu.MemorySpace.SMEM),
            # (B, C, r_in, w) input row block; w is the full minor dim.
            pl.BlockSpec((B, C, r_in, w), lambda i: (0, 0, i, 0)),
            # Residual block matching the output block (lane-dense, minor dim = W).
            pl.BlockSpec((B, r_out, W), lambda i: (0, i, 0)),
        ],
        out_specs=pl.BlockSpec((B, r_out, W), lambda i: (0, i, 0)),
        compiler_params=pltpu.CompilerParams(
            dimension_semantics=("parallel",),
            vmem_limit_bytes=32 * 1024 * 1024,
        ),
    )(w_flat, x_feat.astype(jnp.float32), x_up2)

    # Free reshape (pure metadata): (B, H, W) -> (b, n, 1, H, W).
    return out.reshape(b, n, 1, H, W)


def reference(x_feat, x_up, w1, w2, factor, b, n):
    """Plain-JAX reference reproducing the PyTorch forward exactly (NCHW)."""
    B, C, h, w = x_feat.shape
    y = jnp.einsum('oc,bchw->bohw', w1, x_feat)                   # Conv2d(C, C*ff, 1)
    ps = y.reshape(B, C, factor, factor, h, w)
    ps = jnp.transpose(ps, (0, 1, 4, 2, 5, 3)).reshape(
        B, C, h * factor, w * factor)                             # PixelShuffle
    z = jnp.einsum('c,bchw->bhw', w2.reshape(C), ps)[:, None]     # Conv2d(C, 1, 1)
    return z.reshape(b, n, 1, h * factor, w * factor) + x_up      # + x_sv_upscale


if __name__ == "__main__":
    # Small shapes consistent with the module: Upsample_SPI input is (b*n, channel, h, w)
    b, n = 2, 2
    channel = 4
    factor = 2
    h = w = 16
    B = b * n
    H, W = h * factor, w * factor

    key = jax.random.PRNGKey(0)
    kx, ku, k1, k2 = jax.random.split(key, 4)
    x = jax.random.normal(kx, (B, channel, h, w), dtype=jnp.float32)
    x_up = jax.random.normal(ku, (b, n, 1, H, W), dtype=jnp.float32)
    # 1x1 Conv2d kernels with bias=False -> plain matrices
    w1 = jax.random.normal(k1, (channel * factor * factor, channel), dtype=jnp.float32) * 0.1
    w2 = jax.random.normal(k2, (1, channel), dtype=jnp.float32) * 0.1

    out = upsample_spi_add(x, x_up, w1, w2, factor=factor, b=b, n=n)
    out = jax.block_until_ready(out)

    ref = reference(x, x_up, w1, w2, factor, b, n)
    assert out.shape == (b, n, 1, H, W), out.shape
    err = float(jnp.max(jnp.abs(out - ref)))
    assert jnp.allclose(out, ref, rtol=1e-5, atol=1e-5), err

    print("KERNEL_OK")
</pallas_src>

<mosaic_0001>
module attributes {stable_mosaic.version = 11 : i64} {
  func.func @upsample_spi_kernel(%arg0: i32, %arg1: memref<16xf32, #tpu.memory_space<smem>>, %arg2: memref<4x4x8x16xf32, #tpu.memory_space<vmem>>, %arg3: memref<4x16x32xf32, #tpu.memory_space<vmem>>, %arg4: memref<4x16x32xf32, #tpu.memory_space<vmem>>) attributes {dimension_semantics = [#tpu.dimension_semantics<parallel>], iteration_bounds = array<i64: 2>, scalar_prefetch = 0 : i64, scratch_operands = 0 : i64, tpu.core_type = #tpu.core_type<tc>, window_params = [{transform_indices = @transform_0, window_bounds = array<i64: 16>}, {transform_indices = @transform_1, window_bounds = array<i64: 4, 4, 8, 16>}, {transform_indices = @transform_2, window_bounds = array<i64: 4, 16, 32>}, {transform_indices = @transform_3, window_bounds = array<i64: 4, 16, 32>}]} {
    %c0 = arith.constant 0 : index
    %c0_0 = arith.constant 0 : index
    %c0_1 = arith.constant 0 : index
    %c0_2 = arith.constant 0 : index
    %0 = vector.load %arg2[%c0, %c0_0, %c0_1, %c0_2] : memref<4x4x8x16xf32, #tpu.memory_space<vmem>>, vector<4x1x8x16xf32>
    %1 = vector.shape_cast %0 : vector<4x1x8x16xf32> to vector<4x8x16xf32>
    %c0_3 = arith.constant 0 : index
    %2 = memref.load %arg1[%c0_3] : memref<16xf32, #tpu.memory_space<smem>>
    %3 = vector.broadcast %2 : f32 to vector<4x8x16xf32>
    %4 = arith.mulf %3, %1 : vector<4x8x16xf32>
    %c4 = arith.constant 4 : index
    %5 = memref.load %arg1[%c4] : memref<16xf32, #tpu.memory_space<smem>>
    %6 = vector.broadcast %5 : f32 to vector<4x8x16xf32>
    %7 = arith.mulf %6, %1 : vector<4x8x16xf32>
    %c8 = arith.constant 8 : index
    %8 = memref.load %arg1[%c8] : memref<16xf32, #tpu.memory_space<smem>>
    %9 = vector.broadcast %8 : f32 to vector<4x8x16xf32>
    %10 = arith.mulf %9, %1 : vector<4x8x16xf32>
    %c12 = arith.constant 12 : index
    %11 = memref.load %arg1[%c12] : memref<16xf32, #tpu.memory_space<smem>>
    %12 = vector.broadcast %11 : f32 to vector<4x8x16xf32>
    %13 = arith.mulf %12, %1 : vector<4x8x16xf32>
    %c0_4 = arith.constant 0 : index
    %c1 = arith.constant 1 : index
    %c0_5 = arith.constant 0 : index
    %c0_6 = arith.constant 0 : index
    %14 = vector.load %arg2[%c0_4, %c1, %c0_5, %c0_6] : memref<4x4x8x16xf32, #tpu.memory_space<vmem>>, vector<4x1x8x16xf32>
    %15 = vector.shape_cast %14 : vector<4x1x8x16xf32> to vector<4x8x16xf32>
    %c1_7 = arith.constant 1 : index
    %16 = memref.load %arg1[%c1_7] : memref<16xf32, #tpu.memory_space<smem>>
    %17 = vector.broadcast %16 : f32 to vector<4x8x16xf32>
    %18 = arith.mulf %17, %15 : vector<4x8x16xf32>
    %19 = arith.addf %4, %18 : vector<4x8x16xf32>
    %c5 = arith.constant 5 : index
    %20 = memref.load %arg1[%c5] : memref<16xf32, #tpu.memory_space<smem>>
    %21 = vector.broadcast %20 : f32 to vector<4x8x16xf32>
    %22 = arith.mulf %21, %15 : vector<4x8x16xf32>
    %23 = arith.addf %7, %22 : vector<4x8x16xf32>
    %c9 = arith.constant 9 : index
    %24 = memref.load %arg1[%c9] : memref<16xf32, #tpu.memory_space<smem>>
    %25 = vector.broadcast %24 : f32 to vector<4x8x16xf32>
    %26 = arith.mulf %25, %15 : vector<4x8x16xf32>
    %27 = arith.addf %10, %26 : vector<4x8x16xf32>
    %c13 = arith.constant 13 : index
    %28 = memref.load %arg1[%c13] : memref<16xf32, #tpu.memory_space<smem>>
    %29 = vector.broadcast %28 : f32 to vector<4x8x16xf32>
    %30 = arith.mulf %29, %15 : vector<4x8x16xf32>
    %31 = arith.addf %13, %30 : vector<4x8x16xf32>
    %c0_8 = arith.constant 0 : index
    %c2 = arith.constant 2 : index
    %c0_9 = arith.constant 0 : index
    %c0_10 = arith.constant 0 : index
    %32 = vector.load %arg2[%c0_8, %c2, %c0_9, %c0_10] : memref<4x4x8x16xf32, #tpu.memory_space<vmem>>, vector<4x1x8x16xf32>
    %33 = vector.shape_cast %32 : vector<4x1x8x16xf32> to vector<4x8x16xf32>
    %c2_11 = arith.constant 2 : index
    %34 = memref.load %arg1[%c2_11] : memref<16xf32, #tpu.memory_space<smem>>
    %35 = vector.broadcast %34 : f32 to vector<4x8x16xf32>
    %36 = arith.mulf %35, %33 : vector<4x8x16xf32>
    %37 = arith.addf %19, %36 : vector<4x8x16xf32>
    %c6 = arith.constant 6 : index
    %38 = memref.load %arg1[%c6] : memref<16xf32, #tpu.memory_space<smem>>
    %39 = vector.broadcast %38 : f32 to vector<4x8x16xf32>
    %40 = arith.mulf %39, %33 : vector<4x8x16xf32>
    %41 = arith.addf %23, %40 : vector<4x8x16xf32>
    %c10 = arith.constant 10 : index
    %42 = memref.load %arg1[%c10] : memref<16xf32, #tpu.memory_space<smem>>
    %43 = vector.broadcast %42 : f32 to vector<4x8x16xf32>
    %44 = arith.mulf %43, %33 : vector<4x8x16xf32>
    %45 = arith.addf %27, %44 : vector<4x8x16xf32>
    %c14 = arith.constant 14 : index
    %46 = memref.load %arg1[%c14] : memref<16xf32, #tpu.memory_space<smem>>
    %47 = vector.broadcast %46 : f32 to vector<4x8x16xf32>
    %48 = arith.mulf %47, %33 : vector<4x8x16xf32>
    %49 = arith.addf %31, %48 : vector<4x8x16xf32>
    %c0_12 = arith.constant 0 : index
    %c3 = arith.constant 3 : index
    %c0_13 = arith.constant 0 : index
    %c0_14 = arith.constant 0 : index
    %50 = vector.load %arg2[%c0_12, %c3, %c0_13, %c0_14] : memref<4x4x8x16xf32, #tpu.memory_space<vmem>>, vector<4x1x8x16xf32>
    %51 = vector.shape_cast %50 : vector<4x1x8x16xf32> to vector<4x8x16xf32>
    %c3_15 = arith.constant 3 : index
    %52 = memref.load %arg1[%c3_15] : memref<16xf32, #tpu.memory_space<smem>>
    %53 = vector.broadcast %52 : f32 to vector<4x8x16xf32>
    %54 = arith.mulf %53, %51 : vector<4x8x16xf32>
    %55 = arith.addf %37, %54 : vector<4x8x16xf32>
    %c7 = arith.constant 7 : index
    %56 = memref.load %arg1[%c7] : memref<16xf32, #tpu.memory_space<smem>>
    %57 = vector.broadcast %56 : f32 to vector<4x8x16xf32>
    %58 = arith.mulf %57, %51 : vector<4x8x16xf32>
    %59 = arith.addf %41, %58 : vector<4x8x16xf32>
    %c11 = arith.constant 11 : index
    %60 = memref.load %arg1[%c11] : memref<16xf32, #tpu.memory_space<smem>>
    %61 = vector.broadcast %60 : f32 to vector<4x8x16xf32>
    %62 = arith.mulf %61, %51 : vector<4x8x16xf32>
    %63 = arith.addf %45, %62 : vector<4x8x16xf32>
    %c15 = arith.constant 15 : index
    %64 = memref.load %arg1[%c15] : memref<16xf32, #tpu.memory_space<smem>>
    %65 = vector.broadcast %64 : f32 to vector<4x8x16xf32>
    %66 = arith.mulf %65, %51 : vector<4x8x16xf32>
    %67 = arith.addf %49, %66 : vector<4x8x16xf32>
    %68 = vector.shape_cast %55 : vector<4x8x16xf32> to vector<4x8x16x1xf32>
    %69 = vector.shape_cast %59 : vector<4x8x16xf32> to vector<4x8x16x1xf32>
    %70 = tpu.concatenate %68, %69 in 3 : vector<4x8x16x1xf32>, vector<4x8x16x1xf32> -> vector<4x8x16x2xf32>
    %71 = vector.shape_cast %70 : vector<4x8x16x2xf32> to vector<4x8x32xf32>
    %72 = vector.shape_cast %63 : vector<4x8x16xf32> to vector<4x8x16x1xf32>
    %73 = vector.shape_cast %67 : vector<4x8x16xf32> to vector<4x8x16x1xf32>
    %74 = tpu.concatenate %72, %73 in 3 : vector<4x8x16x1xf32>, vector<4x8x16x1xf32> -> vector<4x8x16x2xf32>
    %75 = vector.shape_cast %74 : vector<4x8x16x2xf32> to vector<4x8x32xf32>
    %76 = vector.shape_cast %71 : vector<4x8x32xf32> to vector<4x8x1x32xf32>
    %77 = vector.shape_cast %75 : vector<4x8x32xf32> to vector<4x8x1x32xf32>
    %78 = tpu.concatenate %76, %77 in 2 : vector<4x8x1x32xf32>, vector<4x8x1x32xf32> -> vector<4x8x2x32xf32>
    %79 = vector.shape_cast %78 : vector<4x8x2x32xf32> to vector<4x16x32xf32>
    %c0_16 = arith.constant 0 : index
    %c0_17 = arith.constant 0 : index
    %c0_18 = arith.constant 0 : index
    %80 = vector.load %arg3[%c0_16, %c0_17, %c0_18] : memref<4x16x32xf32, #tpu.memory_space<vmem>>, vector<4x16x32xf32>
    %81 = arith.addf %79, %80 : vector<4x16x32xf32>
    %c0_19 = arith.constant 0 : index
    %c0_20 = arith.constant 0 : index
    %c0_21 = arith.constant 0 : index
    %82 = vector.load %arg4[%c0_19, %c0_20, %c0_21] : memref<4x16x32xf32, #tpu.memory_space<vmem>>, vector<4x16x32xf32>
    tpu.vector_store %arg4[%c0_19, %c0_20, %c0_21], %81 {strides = array<i32>} : memref<4x16x32xf32, #tpu.memory_space<vmem>>, vector<4x16x32xf32>,
    return
  }
  func.func @transform_0(%arg0: i32) -> i32 {
    %c0_i32 = arith.constant 0 : i32
    %c0_i32_0 = arith.constant 0 : i32
    return %c0_i32 : i32
  }
  func.func @transform_1(%arg0: i32) -> (i32, i32, i32, i32) {
    %c0_i32 = arith.constant 0 : i32
    %c0_i32_0 = arith.constant 0 : i32
    %c0_i32_1 = arith.constant 0 : i32
    %c0_i32_2 = arith.constant 0 : i32
    return %c0_i32, %c0_i32_0, %arg0, %c0_i32_1 : i32, i32, i32, i32
  }
  func.func @transform_2(%arg0: i32) -> (i32, i32, i32) {
    %c0_i32 = arith.constant 0 : i32
    %c0_i32_0 = arith.constant 0 : i32
    %c0_i32_1 = arith.constant 0 : i32
    return %c0_i32, %arg0, %c0_i32_0 : i32, i32, i32
  }
  func.func @transform_3(%arg0: i32) -> (i32, i32, i32) {
    %c0_i32 = arith.constant 0 : i32
    %c0_i32_0 = arith.constant 0 : i32
    %c0_i32_1 = arith.constant 0 : i32
    return %c0_i32, %arg0, %c0_i32_0 : i32, i32, i32
  }
}

</mosaic_0001>

<llo_original>
// kernel: upsample_spi_add.1
$region0: #{upsample_spi_add.1}
  #allocation0 [shape = 'u32[]', space=smem, size = 0x4, offset = 0x4, fixed_abs, tag = 'smem constant byte address 0x4 - core index']
  #allocation1 [shape = 'u32[144,128]{1,0:T(1,128)}', space=vmem, size = 0x12000, scoped, tag = 'internal scratch']
  #allocation10 [shape = 's32[]', space=sflag, size = 0x4, offset = 0, fixed_abs, tag = 'sflag constant byte address 0x0 - dummy sync flag']
  #allocation12 [shape = 's32[]', space=sflag, size = 0x4, offset = 0, fixed_abs, tag = 'sflag constant byte address 0x0 - dummy sync flag']
  %s0 = inlined_call_operand.vmem [shape: f32[16], index: 0, kind: input, shape index: {}]
  %s1 = inlined_call_operand.hbm [shape: f32[4,4,16,16], index: 1, kind: input, shape index: {}]
  %s2 = inlined_call_operand.hbm [shape: f32[4,32,32], index: 2, kind: input, shape index: {}]
  %s3 = inlined_call_operand.hbm [shape: f32[4,32,32], index: 3, kind: output, shape index: {}]
  %s4 = sld [smem:[#allocation0]]
  $region57: #{upsample_spi_add.1} parent=0
    _
  %s6 = ssub.s32 1, %s4
  %s7 = scalar_select 0, %s6, %s4
  $region1: #{upsample_spi_add.1} parent=0
    #allocation2 [shape = 'u8[512]{0}', space=smem, size = 0x200, scoped, tag = 'input window, operand 0, single buffered']
    #allocation3 [shape = 's32[2]{0}', space=sflag, size = 0x8, scoped, tag = 'scoped memory for upsample_spi_add.1']
    #allocation4 [shape = 's32[2]{0}', space=sflag, size = 0x8, scoped, tag = 'scoped memory for upsample_spi_add.1']
    #allocation5 [shape = 's32[2]{0}', space=sflag, size = 0x8, scoped, tag = 'scoped memory for upsample_spi_add.1']
    #allocation6 [shape = 'u8[131072]{0}', space=vmem, size = 0x20000, scoped, tag = 'input window, operand 1']
    #allocation7 [shape = 'u8[65536]{0}', space=vmem, size = 0x10000, scoped, tag = 'input window, operand 2']
    #allocation8 [shape = 's32[2]{0}', space=sflag, size = 0x8, scoped, tag = 'scoped memory for upsample_spi_add.1']
    #allocation9 [shape = 'u8[65536]{0}', space=vmem, size = 0x10000, scoped, tag = 'output window, operand 0']
    %8 = vsyncpa [#allocation5], 0
    %9 = vsyncpa [#allocation3], 0
    %s10 = scalar_lea.sflag [#allocation3], 1
    %11 = vsyncpa %s10, 0
    %12 = vsyncpa [#allocation8], 0
    %s13 = scalar_lea.sflag [#allocation8], 1
    %14 = vsyncpa %s13, 0
    %15 = vsyncpa [#allocation4], 0
    %s16 = scalar_lea.sflag [#allocation4], 1
    %17 = vsyncpa %s16, 0
    loop: start=0, step=1, limit=4
    $region2: #{upsample_spi_add.1} parent=1 // loop_pre_header
      _
    $region3: #{upsample_spi_add.1} parent=1 // loop_header
      %s19 = sphi 0, %s23
      %p20 = scmp.ge.s32.totalorder %s19, 4
      %s27 = sphi 0, %s27
      %s29 = sphi 0, %s27
      %s30 = sphi 0, %s29
      %s44 = sphi 0, %s30
      %s50 = sphi 0, %s52
      %s53 = sphi 0, %s50
      %s54 = sphi 0, %s53
      %s70 = sphi 0, %s54
      %s76 = sphi 0, %s78
      %s79 = sphi 0, %s76
      %s80 = sphi 0, %s79
      %s96 = sphi 0, %s80
      %s102 = sphi 0, %s104
      %s105 = sphi 0, %s102
      %s106 = sphi 0, %s105
      %s122 = sphi 0, %s106
    $region4: #{upsample_spi_add.1} parent=1 // loop_header_branch
      %22 = sbr.rel (%p20) target = $region8
    $region5: #{upsample_spi_add.1} parent=1 // loop_body
      %s24 = ssub.s32 %s19, 1
      %s25 = ssub.s32 %s19, 2
      %s26 = sadd.s32 %s19, 1
      %s28 = sadd.s32 %s27, 1
      %p31 = scmp.eq.s32.totalorder %s19, 1
      %p32 = scmp.ne.s32.totalorder %s27, %s29
      %p33 = scmp.eq.s32.totalorder %s19, 0
      %p34 = por %p32, %p33
      %p35 = scmp.ne.s32.totalorder %s27, %s29
      %p36 = scmp.eq.s32.totalorder %s24, 1
      %p37 = por %p35, %p36
      %p38 = scmp.ne.s32.totalorder %s29, %s30
      %p39 = scmp.eq.s32.totalorder %s24, 0
      %p40 = por %p38, %p39
      %p41 = scmp.ne.s32.totalorder %s29, %s30
      %p42 = scmp.eq.s32.totalorder %s25, 1
      %p43 = por %p41, %p42
      %p45 = scmp.ne.s32.totalorder %s30, %s44
      %p46 = scmp.eq.s32.totalorder %s25, 0
      %p47 = por %p45, %p46
      %s48 = ssub.s32 %s19, %s26
      %p49 = scmp.eq.s32.totalorder %s48, 0
      %s51 = sadd.s32 %s50, 1
      %s52 = scalar_select %p49, %s50, %s51
      %p55 = pneg %p49
      %p56 = scmp.eq.s32.totalorder %s19, 1
      %p57 = por %p55, %p56
      %p58 = scmp.ne.s32.totalorder %s50, %s53
      %p59 = scmp.eq.s32.totalorder %s19, 0
      %p60 = por %p58, %p59
      %p61 = scmp.ne.s32.totalorder %s50, %s53
      %p62 = scmp.eq.s32.totalorder %s24, 1
      %p63 = por %p61, %p62
      %p64 = scmp.ne.s32.totalorder %s53, %s54
      %p65 = scmp.eq.s32.totalorder %s24, 0
      %p66 = por %p64, %p65
      %p67 = scmp.ne.s32.totalorder %s53, %s54
      %p68 = scmp.eq.s32.totalorder %s25, 1
      %p69 = por %p67, %p68
      %p71 = scmp.ne.s32.totalorder %s54, %s70
      %p72 = scmp.eq.s32.totalorder %s25, 0
      %p73 = por %p71, %p72
      %s74 = ssub.s32 %s19, %s26
      %p75 = scmp.eq.s32.totalorder %s74, 0
      %s77 = sadd.s32 %s76, 1
      %s78 = scalar_select %p75, %s76, %s77
      %p81 = pneg %p75
      %p82 = scmp.eq.s32.totalorder %s19, 1
      %p83 = por %p81, %p82
      %p84 = scmp.ne.s32.totalorder %s76, %s79
      %p85 = scmp.eq.s32.totalorder %s19, 0
      %p86 = por %p84, %p85
      %p87 = scmp.ne.s32.totalorder %s76, %s79
      %p88 = scmp.eq.s32.totalorder %s24, 1
      %p89 = por %p87, %p88
      %p90 = scmp.ne.s32.totalorder %s79, %s80
      %p91 = scmp.eq.s32.totalorder %s24, 0
      %p92 = por %p90, %p91
      %p93 = scmp.ne.s32.totalorder %s79, %s80
      %p94 = scmp.eq.s32.totalorder %s25, 1
      %p95 = por %p93, %p94
      %p97 = scmp.ne.s32.totalorder %s80, %s96
      %p98 = scmp.eq.s32.totalorder %s25, 0
      %p99 = por %p97, %p98
      %s100 = ssub.s32 %s19, %s26
      %p101 = scmp.eq.s32.totalorder %s100, 0
      %s103 = sadd.s32 %s102, 1
      %s104 = scalar_select %p101, %s102, %s103
      %p107 = pneg %p101
      %p108 = scmp.eq.s32.totalorder %s19, 1
      %p109 = por %p107, %p108
      %p110 = scmp.ne.s32.totalorder %s102, %s105
      %p111 = scmp.eq.s32.totalorder %s19, 0
      %p112 = por %p110, %p111
      %p113 = scmp.ne.s32.totalorder %s102, %s105
      %p114 = scmp.eq.s32.totalorder %s24, 1
      %p115 = por %p113, %p114
      %p116 = scmp.ne.s32.totalorder %s105, %s106
      %p117 = scmp.eq.s32.totalorder %s24, 0
      %p118 = por %p116, %p117
      %p119 = scmp.ne.s32.totalorder %s105, %s106
      %p120 = scmp.eq.s32.totalorder %s25, 1
      %p121 = por %p119, %p120
      %p123 = scmp.ne.s32.totalorder %s106, %s122
      %p124 = scmp.eq.s32.totalorder %s25, 0
      %p125 = por %p123, %p124
      %p126 = scmp.le.s32.totalorder 1, %s19
      %p127 = scmp.lt.s32.totalorder %s19, 3
      %p128 = pnand %p126, %p127
      %p129 = pneg %p128
      // Predicated region
      $region9: #{upsample_spi_add.1} parent=5 // pred_check
        _
      $region10: #{upsample_spi_add.1} parent=5 // pred_check_branch
        %131 = sbr.rel (%p128) target = $region12
      $region11: #{upsample_spi_add.1} parent=5 // pred_region
        %s132 = ssub.s32 %s19, 1
        // Predicated region
        $region13: #{upsample_spi_add.1} parent=11 // pred_check
          %p133 = pneg %p40
        $region14: #{upsample_spi_add.1} parent=11 // pred_check_branch
          %135 = sbr.rel (%p133) target = $region16
        $region15: #{upsample_spi_add.1} parent=11 // pred_region
          %s137 = ssub.s32 16, 16
          %138 = vsyncadd [#allocation5], %s137
          %s140 = sshll.u32 %s0, 4
          %s141 = int_to_ptr.vmem [resolvable:$true] %s140
          %143 = dma.vmem_to_smem %s141, 16, [#allocation2], [#allocation5]
        $region16: #{upsample_spi_add.1} parent=11 // pred_fallthru
          _
      $region12: #{upsample_spi_add.1} parent=5 // pred_fallthru
        _
      %p144 = scmp.lt.s32.totalorder %s19, 2
      // Predicated region
      $region17: #{upsample_spi_add.1} parent=5 // pred_check
        %p145 = pneg %p144
      $region18: #{upsample_spi_add.1} parent=5 // pred_check_branch
        %147 = sbr.rel (%p145) target = $region20
      $region19: #{upsample_spi_add.1} parent=5 // pred_region
        // Predicated region
        $region21: #{upsample_spi_add.1} parent=19 // pred_check
          %p148 = pneg %p60
        $region22: #{upsample_spi_add.1} parent=19 // pred_check_branch
          %150 = sbr.rel (%p148) target = $region24
        $region23: #{upsample_spi_add.1} parent=19 // pred_region
          %s151 = sand.u32 %s50, 1
          %s152 = scalar_lea.sflag [#allocation3], %s151
          %s153 = sand.u32 %s50, 1
          %s154 = smul.addr %s153, 128
          %s155 = scalar_lea.vmem [#allocation6], %s154
          %s157 = ssub.s32 2048, 2048
          %158 = vsyncadd %s152, %s157
          %s159 = smul.addr %s19, 128
          %s160 = scalar_lea.hbm %s1, %s159
          %s161 = sshll.u32 %s155, 4
          %s162 = int_to_ptr.vmem [resolvable:$true] %s161
          %167 = dma.hbm_to_vmem [thread:$0]  %s160, 2048, %s162, %s152, 256, 128, 8
        $region24: #{upsample_spi_add.1} parent=19 // pred_fallthru
          _
        // Predicated region
        $region25: #{upsample_spi_add.1} parent=19 // pred_check
          %p168 = pneg %p86
        $region26: #{upsample_spi_add.1} parent=19 // pred_check_branch
          %170 = sbr.rel (%p168) target = $region28
        $region27: #{upsample_spi_add.1} parent=19 // pred_region
          #allocation11 [shape = 'u32[6]{0}', space=smem, size = 0x18, scoped, tag = 'DMA stride descriptor']
          %s171 = sand.u32 %s76, 1
          %s172 = scalar_lea.sflag [#allocation8], %s171
          %s173 = sand.u32 %s76, 1
          %s174 = smul.addr %s173, 64
          %s175 = scalar_lea.vmem [#allocation7], %s174
          %s176 = smul.u32 2, %s19
          %s178 = ssub.s32 1024, 1024
          %179 = vsyncadd %s172, %s178
          %s180 = smul.addr %s176, 128
          %s181 = scalar_lea.hbm %s2, %s180
          %s183 = sshll.u32 1, 14
          %s184 = sxor.u32 4294967295, %s183
          %s186 = sld [smem:[#allocation0]]
          %s187 = sadd.s32 2, %s186
          %s189 = sshll.u32 7, 26
          %s190 = sxor.u32 4294967295, %s189
          %s191 = sand.u32 0, %s190
          %s192 = sshll.u32 %s187, 26
          %s193 = sor.u32 %s191, %s192
          %s194 = sshll.u32 %s175, 4
          %s195 = int_to_ptr.vmem [resolvable:$true] %s194
          %201 = sst [smem:[#allocation11]] 512
          %s202 = scalar_lea.smem [#allocation11], 1
          %203 = sst [smem:[%s202]] 256
          %s204 = scalar_lea.smem [#allocation11], 2
          %205 = sst [smem:[%s204]] 2
          %s206 = scalar_lea.smem [#allocation11], 3
          %207 = sst [smem:[%s206]] 128
          %s208 = scalar_lea.smem [#allocation11], 4
          %209 = sst [smem:[%s208]] 128
          %s210 = scalar_lea.smem [#allocation11], 5
          %211 = sst [smem:[%s210]] 8
          %213 = dma.general %s181, 1024, %s195, %s172, [#allocation10], [#allocation11], %s193, 0
        $region28: #{upsample_spi_add.1} parent=19 // pred_fallthru
          _
      $region20: #{upsample_spi_add.1} parent=5 // pred_fallthru
        _
      %p214 = scmp.le.s32.totalorder 1, %s19
      %p215 = scmp.lt.s32.totalorder %s19, 3
      %p216 = pnand %p214, %p215
      %p217 = pneg %p216
      // Predicated region
      $region29: #{upsample_spi_add.1} parent=5 // pred_check
        _
      $region30: #{upsample_spi_add.1} parent=5 // pred_check_branch
        %219 = sbr.rel (%p216) target = $region32
      $region31: #{upsample_spi_add.1} parent=5 // pred_region
        %s220 = ssub.s32 %s19, 1
        // Predicated region
        $region33: #{upsample_spi_add.1} parent=31 // pred_check
          %p221 = pneg %p40
        $region34: #{upsample_spi_add.1} parent=31 // pred_check_branch
          %223 = sbr.rel (%p221) target = $region36
        $region35: #{upsample_spi_add.1} parent=31 // pred_region
          %224 = dma.done [#allocation5], 16
        $region36: #{upsample_spi_add.1} parent=31 // pred_fallthru
          _
        %s225 = sand.u32 %s53, 1
        %s226 = scalar_lea.sflag [#allocation3], %s225
        %s227 = sand.u32 %s53, 1
        %s228 = smul.addr %s227, 128
        %s229 = scalar_lea.vmem [#allocation6], %s228
        // Predicated region
        $region37: #{upsample_spi_add.1} parent=31 // pred_check
          %p230 = pneg %p66
        $region38: #{upsample_spi_add.1} parent=31 // pred_check_branch
          %232 = sbr.rel (%p230) target = $region40
        $region39: #{upsample_spi_add.1} parent=31 // pred_region
          %233 = dma.done %s226, 2048
        $region40: #{upsample_spi_add.1} parent=31 // pred_fallthru
          _
        %s234 = sand.u32 %s79, 1
        %s235 = scalar_lea.sflag [#allocation8], %s234
        %s236 = sand.u32 %s79, 1
        %s237 = smul.addr %s236, 64
        %s238 = scalar_lea.vmem [#allocation7], %s237
        // Predicated region
        $region41: #{upsample_spi_add.1} parent=31 // pred_check
          %p239 = pneg %p92
        $region42: #{upsample_spi_add.1} parent=31 // pred_check_branch
          %241 = sbr.rel (%p239) target = $region44
        $region43: #{upsample_spi_add.1} parent=31 // pred_region
          %242 = dma.done %s235, 1024
        $region44: #{upsample_spi_add.1} parent=31 // pred_fallthru
          _
        %243 = sfence
        %p244 = pneg %p40
        %p245 = pneg %p37
        %s246 = sand.u32 %s53, 1
        %s247 = scalar_lea.sflag [#allocation3], %s246
        %s248 = sand.u32 %s53, 1
        %s249 = smul.addr %s248, 128
        %s250 = scalar_lea.vmem [#allocation6], %s249
        %p251 = pneg %p66
        %p252 = pneg %p63
        %s253 = sand.u32 %s79, 1
        %s254 = scalar_lea.sflag [#allocation8], %s253
        %s255 = sand.u32 %s79, 1
        %s256 = smul.addr %s255, 64
        %s257 = scalar_lea.vmem [#allocation7], %s256
        %p258 = pneg %p92
        %p259 = pneg %p89
        %p260 = pneg %p118
        %p261 = pneg %p115
        %s262 = sand.u32 %s105, 1
        %s263 = scalar_lea.sflag [#allocation4], %s262
        %s264 = sand.u32 %s105, 1
        %s265 = smul.addr %s264, 64
        %s266 = scalar_lea.vmem [#allocation9], %s265
        %s267 = smul.u32 2, %s24
        %s268 = smul.u32 2, %s24
        %v269 = vld [vmem:[%s229] sm:$0xff]
        %v270 = vld [vmem:[%s229 + $0x20] sm:$0xff]
        %v271 = vld [vmem:[%s229 + $0x40] sm:$0xff]
        %v272 = vld [vmem:[%s229 + $0x60] sm:$0xff]
        %s273 = sld [smem:[#allocation2]]
        %v274 = vstv %s273
        %v275 = vmul.f32 %v274, %v269
        %v276 = vmul.f32 %v274, %v270
        %v277 = vmul.f32 %v274, %v271
        %v278 = vmul.f32 %v274, %v272
        %s279 = sld [smem:[#allocation2 + $0x4]]
        %v280 = vstv %s279
        %v281 = vmul.f32 %v280, %v269
        %v282 = vmul.f32 %v280, %v270
        %v283 = vmul.f32 %v280, %v271
        %v284 = vmul.f32 %v280, %v272
        %s285 = sld [smem:[#allocation2 + $0x8]]
        %v286 = vstv %s285
        %v287 = vmul.f32 %v286, %v269
        %v288 = vmul.f32 %v286, %v270
        %v289 = vmul.f32 %v286, %v271
        %v290 = vmul.f32 %v286, %v272
        %s291 = sld [smem:[#allocation2 + $0xc]]
        %v292 = vstv %s291
        %v293 = vmul.f32 %v292, %v269
        %v294 = vmul.f32 %v292, %v270
        %v295 = vmul.f32 %v292, %v271
        %v296 = vmul.f32 %v292, %v272
        %s297 = scalar_lea.vmem %s229, 8 [#allocation6]
        %v298 = vld [vmem:[%s297] sm:$0xff]
        %v299 = vld [vmem:[%s297 + $0x20] sm:$0xff]
        %v300 = vld [vmem:[%s297 + $0x40] sm:$0xff]
        %v301 = vld [vmem:[%s297 + $0x60] sm:$0xff]
        %s302 = sld [smem:[#allocation2 + $0x1]]
        %v303 = vstv %s302
        %v304 = vmul.f32 %v303, %v298
        %v305 = vmul.f32 %v303, %v299
        %v306 = vmul.f32 %v303, %v300
        %v307 = vmul.f32 %v303, %v301
        %v308 = vadd.f32 %v275, %v304
        %v309 = vadd.f32 %v276, %v305
        %v310 = vadd.f32 %v277, %v306
        %v311 = vadd.f32 %v278, %v307
        %s312 = sld [smem:[#allocation2 + $0x5]]
        %v313 = vstv %s312
        %v314 = vmul.f32 %v313, %v298
        %v315 = vmul.f32 %v313, %v299
        %v316 = vmul.f32 %v313, %v300
        %v317 = vmul.f32 %v313, %v301
        %v318 = vadd.f32 %v281, %v314
        %v319 = vadd.f32 %v282, %v315
        %v320 = vadd.f32 %v283, %v316
        %v321 = vadd.f32 %v284, %v317
        %s322 = sld [smem:[#allocation2 + $0x9]]
        %v323 = vstv %s322
        %v324 = vmul.f32 %v323, %v298
        %v325 = vmul.f32 %v323, %v299
        %v326 = vmul.f32 %v323, %v300
        %v327 = vmul.f32 %v323, %v301
        %v328 = vadd.f32 %v287, %v324
        %v329 = vadd.f32 %v288, %v325
        %v330 = vadd.f32 %v289, %v326
        %v331 = vadd.f32 %v290, %v327
        %s332 = sld [smem:[#allocation2 + $0xd]]
        %v333 = vstv %s332
        %v334 = vmul.f32 %v333, %v298
        %v335 = vmul.f32 %v333, %v299
        %v336 = vmul.f32 %v333, %v300
        %v337 = vmul.f32 %v333, %v301
        %v338 = vadd.f32 %v293, %v334
        %v339 = vadd.f32 %v294, %v335
        %v340 = vadd.f32 %v295, %v336
        %v341 = vadd.f32 %v296, %v337
        %s342 = scalar_lea.vmem %s229, 16 [#allocation6]
        %v343 = vld [vmem:[%s342] sm:$0xff]
        %v344 = vld [vmem:[%s342 + $0x20] sm:$0xff]
        %v345 = vld [vmem:[%s342 + $0x40] sm:$0xff]
        %v346 = vld [vmem:[%s342 + $0x60] sm:$0xff]
        %s347 = sld [smem:[#allocation2 + $0x2]]
        %v348 = vstv %s347
        %v349 = vmul.f32 %v348, %v343
        %v350 = vmul.f32 %v348, %v344
        %v351 = vmul.f32 %v348, %v345
        %v352 = vmul.f32 %v348, %v346
        %v353 = vadd.f32 %v308, %v349
        %v354 = vadd.f32 %v309, %v350
        %v355 = vadd.f32 %v310, %v351
        %v356 = vadd.f32 %v311, %v352
        %s357 = sld [smem:[#allocation2 + $0x6]]
        %v358 = vstv %s357
        %v359 = vmul.f32 %v358, %v343
        %v360 = vmul.f32 %v358, %v344
        %v361 = vmul.f32 %v358, %v345
        %v362 = vmul.f32 %v358, %v346
        %v363 = vadd.f32 %v318, %v359
        %v364 = vadd.f32 %v319, %v360
        %v365 = vadd.f32 %v320, %v361
        %v366 = vadd.f32 %v321, %v362
        %s367 = sld [smem:[#allocation2 + $0xa]]
        %v368 = vstv %s367
        %v369 = vmul.f32 %v368, %v343
        %v370 = vmul.f32 %v368, %v344
        %v371 = vmul.f32 %v368, %v345
        %v372 = vmul.f32 %v368, %v346
        %v373 = vadd.f32 %v328, %v369
        %v374 = vadd.f32 %v329, %v370
        %v375 = vadd.f32 %v330, %v371
        %v376 = vadd.f32 %v331, %v372
        %s377 = sld [smem:[#allocation2 + $0xe]]
        %v378 = vstv %s377
        %v379 = vmul.f32 %v378, %v343
        %v380 = vmul.f32 %v378, %v344
        %v381 = vmul.f32 %v378, %v345
        %v382 = vmul.f32 %v378, %v346
        %v383 = vadd.f32 %v338, %v379
        %v384 = vadd.f32 %v339, %v380
        %v385 = vadd.f32 %v340, %v381
        %v386 = vadd.f32 %v341, %v382
        %s387 = scalar_lea.vmem %s229, 24 [#allocation6]
        %v388 = vld [vmem:[%s387] sm:$0xff]
        %v389 = vld [vmem:[%s387 + $0x20] sm:$0xff]
        %v390 = vld [vmem:[%s387 + $0x40] sm:$0xff]
        %v391 = vld [vmem:[%s387 + $0x60] sm:$0xff]
        %s392 = sld [smem:[#allocation2 + $0x3]]
        %v393 = vstv %s392
        %v394 = vmul.f32 %v393, %v388
        %v395 = vmul.f32 %v393, %v389
        %v396 = vmul.f32 %v393, %v390
        %v397 = vmul.f32 %v393, %v391
        %v398 = vadd.f32 %v353, %v394
        %v399 = vadd.f32 %v354, %v395
        %v400 = vadd.f32 %v355, %v396
        %v401 = vadd.f32 %v356, %v397
        %s402 = sld [smem:[#allocation2 + $0x7]]
        %v403 = vstv %s402
        %v404 = vmul.f32 %v403, %v388
        %v405 = vmul.f32 %v403, %v389
        %v406 = vmul.f32 %v403, %v390
        %v407 = vmul.f32 %v403, %v391
        %v408 = vadd.f32 %v363, %v404
        %v409 = vadd.f32 %v364, %v405
        %v410 = vadd.f32 %v365, %v406
        %v411 = vadd.f32 %v366, %v407
        %s412 = sld [smem:[#allocation2 + $0xb]]
        %v413 = vstv %s412
        %v414 = vmul.f32 %v413, %v388
        %v415 = vmul.f32 %v413, %v389
        %v416 = vmul.f32 %v413, %v390
        %v417 = vmul.f32 %v413, %v391
        %v418 = vadd.f32 %v373, %v414
        %v419 = vadd.f32 %v374, %v415
        %v420 = vadd.f32 %v375, %v416
        %v421 = vadd.f32 %v376, %v417
        %s422 = sld [smem:[#allocation2 + $0xf]]
        %v423 = vstv %s422
        %v424 = vmul.f32 %v423, %v388
        %v425 = vmul.f32 %v423, %v389
        %v426 = vmul.f32 %v423, %v390
        %v427 = vmul.f32 %v423, %v391
        %v428 = vadd.f32 %v383, %v424
        %v429 = vadd.f32 %v384, %v425
        %v430 = vadd.f32 %v385, %v426
        %v431 = vadd.f32 %v386, %v427
        %v432 = vlaneseq
        %v433 = vshrl.u32 %v432, 7
        %v434 = vsub.s32 0, %v433
        %v435 = vrot.slane %v398, %v434
        %437 = vbcast.lane.b32.xlu0 %v435, 256
        %v438 = vpop.permute.xlu0 %437
        %s440 = sor.u32 256, 8
        %441 = vbcast.lane.b32.xlu0 %v435, %s440
        %v442 = vpop.permute.xlu0 %441
        %v443 = vlaneseq
        %v444 = vshrl.u32 %v443, 7
        %v445 = vsub.s32 1, %v444
        %v446 = vrot.slane %v398, %v445
        %448 = vbcast.lane.b32.xlu0 %v446, 256
        %v449 = vpop.permute.xlu0 %448
        %s451 = sor.u32 256, 8
        %452 = vbcast.lane.b32.xlu0 %v446, %s451
        %v453 = vpop.permute.xlu0 %452
        %v454 = vlaneseq
        %v455 = vshrl.u32 %v454, 7
        %v456 = vsub.s32 2, %v455
        %v457 = vrot.slane %v398, %v456
        %459 = vbcast.lane.b32.xlu0 %v457, 256
        %v460 = vpop.permute.xlu0 %459
        %s462 = sor.u32 256, 8
        %463 = vbcast.lane.b32.xlu0 %v457, %s462
        %v464 = vpop.permute.xlu0 %463
        %v465 = vlaneseq
        %v466 = vshrl.u32 %v465, 7
        %v467 = vsub.s32 3, %v466
        %v468 = vrot.slane %v398, %v467
        %470 = vbcast.lane.b32.xlu0 %v468, 256
        %v471 = vpop.permute.xlu0 %470
        %s473 = sor.u32 256, 8
        %474 = vbcast.lane.b32.xlu0 %v468, %s473
        %v475 = vpop.permute.xlu0 %474
        %v476 = vlaneseq
        %v477 = vshrl.u32 %v476, 7
        %v478 = vsub.s32 4, %v477
        %v479 = vrot.slane %v398, %v478
        %481 = vbcast.lane.b32.xlu0 %v479, 256
        %v482 = vpop.permute.xlu0 %481
        %s484 = sor.u32 256, 8
        %485 = vbcast.lane.b32.xlu0 %v479, %s484
        %v486 = vpop.permute.xlu0 %485
        %v487 = vlaneseq
        %v488 = vshrl.u32 %v487, 7
        %v489 = vsub.s32 5, %v488
        %v490 = vrot.slane %v398, %v489
        %492 = vbcast.lane.b32.xlu0 %v490, 256
        %v493 = vpop.permute.xlu0 %492
        %s495 = sor.u32 256, 8
        %496 = vbcast.lane.b32.xlu0 %v490, %s495
        %v497 = vpop.permute.xlu0 %496
        %v498 = vlaneseq
        %v499 = vshrl.u32 %v498, 7
        %v500 = vsub.s32 6, %v499
        %v501 = vrot.slane %v398, %v500
        %503 = vbcast.lane.b32.xlu0 %v501, 256
        %v504 = vpop.permute.xlu0 %503
        %s506 = sor.u32 256, 8
        %507 = vbcast.lane.b32.xlu0 %v501, %s506
        %v508 = vpop.permute.xlu0 %507
        %v509 = vlaneseq
        %v510 = vshrl.u32 %v509, 7
        %v511 = vsub.s32 7, %v510
        %v512 = vrot.slane %v398, %v511
        %514 = vbcast.lane.b32.xlu0 %v512, 256
        %v515 = vpop.permute.xlu0 %514
        %s517 = sor.u32 256, 8
        %518 = vbcast.lane.b32.xlu0 %v512, %s517
        %v519 = vpop.permute.xlu0 %518
        %v520 = vlaneseq
        %v521 = vshrl.u32 %v520, 7
        %v522 = vsub.s32 0, %v521
        %v523 = vrot.slane %v399, %v522
        %525 = vbcast.lane.b32.xlu0 %v523, 256
        %v526 = vpop.permute.xlu0 %525
        %s528 = sor.u32 256, 8
        %529 = vbcast.lane.b32.xlu0 %v523, %s528
        %v530 = vpop.permute.xlu0 %529
        %v531 = vlaneseq
        %v532 = vshrl.u32 %v531, 7
        %v533 = vsub.s32 1, %v532
        %v534 = vrot.slane %v399, %v533
        %536 = vbcast.lane.b32.xlu0 %v534, 256
        %v537 = vpop.permute.xlu0 %536
        %s539 = sor.u32 256, 8
        %540 = vbcast.lane.b32.xlu0 %v534, %s539
        %v541 = vpop.permute.xlu0 %540
        %v542 = vlaneseq
        %v543 = vshrl.u32 %v542, 7
        %v544 = vsub.s32 2, %v543
        %v545 = vrot.slane %v399, %v544
        %547 = vbcast.lane.b32.xlu0 %v545, 256
        %v548 = vpop.permute.xlu0 %547
        %s550 = sor.u32 256, 8
        %551 = vbcast.lane.b32.xlu0 %v545, %s550
        %v552 = vpop.permute.xlu0 %551
        %v553 = vlaneseq
        %v554 = vshrl.u32 %v553, 7
        %v555 = vsub.s32 3, %v554
        %v556 = vrot.slane %v399, %v555
        %558 = vbcast.lane.b32.xlu0 %v556, 256
        %v559 = vpop.permute.xlu0 %558
        %s561 = sor.u32 256, 8
        %562 = vbcast.lane.b32.xlu0 %v556, %s561
        %v563 = vpop.permute.xlu0 %562
        %v564 = vlaneseq
        %v565 = vshrl.u32 %v564, 7
        %v566 = vsub.s32 4, %v565
        %v567 = vrot.slane %v399, %v566
        %569 = vbcast.lane.b32.xlu0 %v567, 256
        %v570 = vpop.permute.xlu0 %569
        %s572 = sor.u32 256, 8
        %573 = vbcast.lane.b32.xlu0 %v567, %s572
        %v574 = vpop.permute.xlu0 %573
        %v575 = vlaneseq
        %v576 = vshrl.u32 %v575, 7
        %v577 = vsub.s32 5, %v576
        %v578 = vrot.slane %v399, %v577
        %580 = vbcast.lane.b32.xlu0 %v578, 256
        %v581 = vpop.permute.xlu0 %580
        %s583 = sor.u32 256, 8
        %584 = vbcast.lane.b32.xlu0 %v578, %s583
        %v585 = vpop.permute.xlu0 %584
        %v586 = vlaneseq
        %v587 = vshrl.u32 %v586, 7
        %v588 = vsub.s32 6, %v587
        %v589 = vrot.slane %v399, %v588
        %591 = vbcast.lane.b32.xlu0 %v589, 256
        %v592 = vpop.permute.xlu0 %591
        %s594 = sor.u32 256, 8
        %595 = vbcast.lane.b32.xlu0 %v589, %s594
        %v596 = vpop.permute.xlu0 %595
        %v597 = vlaneseq
        %v598 = vshrl.u32 %v597, 7
        %v599 = vsub.s32 7, %v598
        %v600 = vrot.slane %v399, %v599
        %602 = vbcast.lane.b32.xlu0 %v600, 256
        %v603 = vpop.permute.xlu0 %602
        %s605 = sor.u32 256, 8
        %606 = vbcast.lane.b32.xlu0 %v600, %s605
        %v607 = vpop.permute.xlu0 %606
        %v608 = vlaneseq
        %v609 = vshrl.u32 %v608, 7
        %v610 = vsub.s32 0, %v609
        %v611 = vrot.slane %v400, %v610
        %613 = vbcast.lane.b32.xlu0 %v611, 256
        %v614 = vpop.permute.xlu0 %613
        %s616 = sor.u32 256, 8
        %617 = vbcast.lane.b32.xlu0 %v611, %s616
        %v618 = vpop.permute.xlu0 %617
        %v619 = vlaneseq
        %v620 = vshrl.u32 %v619, 7
        %v621 = vsub.s32 1, %v620
        %v622 = vrot.slane %v400, %v621
        %624 = vbcast.lane.b32.xlu0 %v622, 256
        %v625 = vpop.permute.xlu0 %624
        %s627 = sor.u32 256, 8
        %628 = vbcast.lane.b32.xlu0 %v622, %s627
        %v629 = vpop.permute.xlu0 %628
        %v630 = vlaneseq
        %v631 = vshrl.u32 %v630, 7
        %v632 = vsub.s32 2, %v631
        %v633 = vrot.slane %v400, %v632
        %635 = vbcast.lane.b32.xlu0 %v633, 256
        %v636 = vpop.permute.xlu0 %635
        %s638 = sor.u32 256, 8
        %639 = vbcast.lane.b32.xlu0 %v633, %s638
        %v640 = vpop.permute.xlu0 %639
        %v641 = vlaneseq
        %v642 = vshrl.u32 %v641, 7
        %v643 = vsub.s32 3, %v642
        %v644 = vrot.slane %v400, %v643
        %646 = vbcast.lane.b32.xlu0 %v644, 256
        %v647 = vpop.permute.xlu0 %646
        %s649 = sor.u32 256, 8
        %650 = vbcast.lane.b32.xlu0 %v644, %s649
        %v651 = vpop.permute.xlu0 %650
        %v652 = vlaneseq
        %v653 = vshrl.u32 %v652, 7
        %v654 = vsub.s32 4, %v653
        %v655 = vrot.slane %v400, %v654
        %657 = vbcast.lane.b32.xlu0 %v655, 256
        %v658 = vpop.permute.xlu0 %657
        %s660 = sor.u32 256, 8
        %661 = vbcast.lane.b32.xlu0 %v655, %s660
        %v662 = vpop.permute.xlu0 %661
        %v663 = vlaneseq
        %v664 = vshrl.u32 %v663, 7
        %v665 = vsub.s32 5, %v664
        %v666 = vrot.slane %v400, %v665
        %668 = vbcast.lane.b32.xlu0 %v666, 256
        %v669 = vpop.permute.xlu0 %668
        %s671 = sor.u32 256, 8
        %672 = vbcast.lane.b32.xlu0 %v666, %s671
        %v673 = vpop.permute.xlu0 %672
        %v674 = vlaneseq
        %v675 = vshrl.u32 %v674, 7
        %v676 = vsub.s32 6, %v675
        %v677 = vrot.slane %v400, %v676
        %679 = vbcast.lane.b32.xlu0 %v677, 256
        %v680 = vpop.permute.xlu0 %679
        %s682 = sor.u32 256, 8
        %683 = vbcast.lane.b32.xlu0 %v677, %s682
        %v684 = vpop.permute.xlu0 %683
        %v685 = vlaneseq
        %v686 = vshrl.u32 %v685, 7
        %v687 = vsub.s32 7, %v686
        %v688 = vrot.slane %v400, %v687
        %690 = vbcast.lane.b32.xlu0 %v688, 256
        %v691 = vpop.permute.xlu0 %690
        %s693 = sor.u32 256, 8
        %694 = vbcast.lane.b32.xlu0 %v688, %s693
        %v695 = vpop.permute.xlu0 %694
        %v696 = vlaneseq
        %v697 = vshrl.u32 %v696, 7
        %v698 = vsub.s32 0, %v697
        %v699 = vrot.slane %v401, %v698
        %701 = vbcast.lane.b32.xlu0 %v699, 256
        %v702 = vpop.permute.xlu0 %701
        %s704 = sor.u32 256, 8
        %705 = vbcast.lane.b32.xlu0 %v699, %s704
        %v706 = vpop.permute.xlu0 %705
        %v707 = vlaneseq
        %v708 = vshrl.u32 %v707, 7
        %v709 = vsub.s32 1, %v708
        %v710 = vrot.slane %v401, %v709
        %712 = vbcast.lane.b32.xlu0 %v710, 256
        %v713 = vpop.permute.xlu0 %712
        %s715 = sor.u32 256, 8
        %716 = vbcast.lane.b32.xlu0 %v710, %s715
        %v717 = vpop.permute.xlu0 %716
        %v718 = vlaneseq
        %v719 = vshrl.u32 %v718, 7
        %v720 = vsub.s32 2, %v719
        %v721 = vrot.slane %v401, %v720
        %723 = vbcast.lane.b32.xlu0 %v721, 256
        %v724 = vpop.permute.xlu0 %723
        %s726 = sor.u32 256, 8
        %727 = vbcast.lane.b32.xlu0 %v721, %s726
        %v728 = vpop.permute.xlu0 %727
        %v729 = vlaneseq
        %v730 = vshrl.u32 %v729, 7
        %v731 = vsub.s32 3, %v730
        %v732 = vrot.slane %v401, %v731
        %734 = vbcast.lane.b32.xlu0 %v732, 256
        %v735 = vpop.permute.xlu0 %734
        %s737 = sor.u32 256, 8
        %738 = vbcast.lane.b32.xlu0 %v732, %s737
        %v739 = vpop.permute.xlu0 %738
        %v740 = vlaneseq
        %v741 = vshrl.u32 %v740, 7
        %v742 = vsub.s32 4, %v741
        %v743 = vrot.slane %v401, %v742
        %745 = vbcast.lane.b32.xlu0 %v743, 256
        %v746 = vpop.permute.xlu0 %745
        %s748 = sor.u32 256, 8
        %749 = vbcast.lane.b32.xlu0 %v743, %s748
        %v750 = vpop.permute.xlu0 %749
        %v751 = vlaneseq
        %v752 = vshrl.u32 %v751, 7
        %v753 = vsub.s32 5, %v752
        %v754 = vrot.slane %v401, %v753
        %756 = vbcast.lane.b32.xlu0 %v754, 256
        %v757 = vpop.permute.xlu0 %756
        %s759 = sor.u32 256, 8
        %760 = vbcast.lane.b32.xlu0 %v754, %s759
        %v761 = vpop.permute.xlu0 %760
        %v762 = vlaneseq
        %v763 = vshrl.u32 %v762, 7
        %v764 = vsub.s32 6, %v763
        %v765 = vrot.slane %v401, %v764
        %767 = vbcast.lane.b32.xlu0 %v765, 256
        %v768 = vpop.permute.xlu0 %767
        %s770 = sor.u32 256, 8
        %771 = vbcast.lane.b32.xlu0 %v765, %s770
        %v772 = vpop.permute.xlu0 %771
        %v773 = vlaneseq
        %v774 = vshrl.u32 %v773, 7
        %v775 = vsub.s32 7, %v774
        %v776 = vrot.slane %v401, %v775
        %778 = vbcast.lane.b32.xlu0 %v776, 256
        %v779 = vpop.permute.xlu0 %778
        %s781 = sor.u32 256, 8
        %782 = vbcast.lane.b32.xlu0 %v776, %s781
        %v783 = vpop.permute.xlu0 %782
        %v784 = vlaneseq
        %v785 = vshrl.u32 %v784, 7
        %v786 = vsub.s32 0, %v785
        %v787 = vrot.slane %v408, %v786
        %789 = vbcast.lane.b32.xlu0 %v787, 256
        %v790 = vpop.permute.xlu0 %789
        %s792 = sor.u32 256, 8
        %793 = vbcast.lane.b32.xlu0 %v787, %s792
        %v794 = vpop.permute.xlu0 %793
        %v795 = vlaneseq
        %v796 = vshrl.u32 %v795, 7
        %v797 = vsub.s32 1, %v796
        %v798 = vrot.slane %v408, %v797
        %800 = vbcast.lane.b32.xlu0 %v798, 256
        %v801 = vpop.permute.xlu0 %800
        %s803 = sor.u32 256, 8
        %804 = vbcast.lane.b32.xlu0 %v798, %s803
        %v805 = vpop.permute.xlu0 %804
        %v806 = vlaneseq
        %v807 = vshrl.u32 %v806, 7
        %v808 = vsub.s32 2, %v807
        %v809 = vrot.slane %v408, %v808
        %811 = vbcast.lane.b32.xlu0 %v809, 256
        %v812 = vpop.permute.xlu0 %811
        %s814 = sor.u32 256, 8
        %815 = vbcast.lane.b32.xlu0 %v809, %s814
        %v816 = vpop.permute.xlu0 %815
        %v817 = vlaneseq
        %v818 = vshrl.u32 %v817, 7
        %v819 = vsub.s32 3, %v818
        %v820 = vrot.slane %v408, %v819
        %822 = vbcast.lane.b32.xlu0 %v820, 256
        %v823 = vpop.permute.xlu0 %822
        %s825 = sor.u32 256, 8
        %826 = vbcast.lane.b32.xlu0 %v820, %s825
        %v827 = vpop.permute.xlu0 %826
        %v828 = vlaneseq
        %v829 = vshrl.u32 %v828, 7
        %v830 = vsub.s32 4, %v829
        %v831 = vrot.slane %v408, %v830
        %833 = vbcast.lane.b32.xlu0 %v831, 256
        %v834 = vpop.permute.xlu0 %833
        %s836 = sor.u32 256, 8
        %837 = vbcast.lane.b32.xlu0 %v831, %s836
        %v838 = vpop.permute.xlu0 %837
        %v839 = vlaneseq
        %v840 = vshrl.u32 %v839, 7
        %v841 = vsub.s32 5, %v840
        %v842 = vrot.slane %v408, %v841
        %844 = vbcast.lane.b32.xlu0 %v842, 256
        %v845 = vpop.permute.xlu0 %844
        %s847 = sor.u32 256, 8
        %848 = vbcast.lane.b32.xlu0 %v842, %s847
        %v849 = vpop.permute.xlu0 %848
        %v850 = vlaneseq
        %v851 = vshrl.u32 %v850, 7
        %v852 = vsub.s32 6, %v851
        %v853 = vrot.slane %v408, %v852
        %855 = vbcast.lane.b32.xlu0 %v853, 256
        %v856 = vpop.permute.xlu0 %855
        %s858 = sor.u32 256, 8
        %859 = vbcast.lane.b32.xlu0 %v853, %s858
        %v860 = vpop.permute.xlu0 %859
        %v861 = vlaneseq
        %v862 = vshrl.u32 %v861, 7
        %v863 = vsub.s32 7, %v862
        %v864 = vrot.slane %v408, %v863
        %866 = vbcast.lane.b32.xlu0 %v864, 256
        %v867 = vpop.permute.xlu0 %866
        %s869 = sor.u32 256, 8
        %870 = vbcast.lane.b32.xlu0 %v864, %s869
        %v871 = vpop.permute.xlu0 %870
        %v872 = vlaneseq
        %v873 = vshrl.u32 %v872, 7
        %v874 = vsub.s32 0, %v873
        %v875 = vrot.slane %v409, %v874
        %877 = vbcast.lane.b32.xlu0 %v875, 256
        %v878 = vpop.permute.xlu0 %877
        %s880 = sor.u32 256, 8
        %881 = vbcast.lane.b32.xlu0 %v875, %s880
        %v882 = vpop.permute.xlu0 %881
        %v883 = vlaneseq
        %v884 = vshrl.u32 %v883, 7
        %v885 = vsub.s32 1, %v884
        %v886 = vrot.slane %v409, %v885
        %888 = vbcast.lane.b32.xlu0 %v886, 256
        %v889 = vpop.permute.xlu0 %888
        %s891 = sor.u32 256, 8
        %892 = vbcast.lane.b32.xlu0 %v886, %s891
        %v893 = vpop.permute.xlu0 %892
        %v894 = vlaneseq
        %v895 = vshrl.u32 %v894, 7
        %v896 = vsub.s32 2, %v895
        %v897 = vrot.slane %v409, %v896
        %899 = vbcast.lane.b32.xlu0 %v897, 256
        %v900 = vpop.permute.xlu0 %899
        %s902 = sor.u32 256, 8
        %903 = vbcast.lane.b32.xlu0 %v897, %s902
        %v904 = vpop.permute.xlu0 %903
        %v905 = vlaneseq
        %v906 = vshrl.u32 %v905, 7
        %v907 = vsub.s32 3, %v906
        %v908 = vrot.slane %v409, %v907
        %910 = vbcast.lane.b32.xlu0 %v908, 256
        %v911 = vpop.permute.xlu0 %910
        %s913 = sor.u32 256, 8
        %914 = vbcast.lane.b32.xlu0 %v908, %s913
        %v915 = vpop.permute.xlu0 %914
        %v916 = vlaneseq
        %v917 = vshrl.u32 %v916, 7
        %v918 = vsub.s32 4, %v917
        %v919 = vrot.slane %v409, %v918
        %921 = vbcast.lane.b32.xlu0 %v919, 256
        %v922 = vpop.permute.xlu0 %921
        %s924 = sor.u32 256, 8
        %925 = vbcast.lane.b32.xlu0 %v919, %s924
        %v926 = vpop.permute.xlu0 %925
        %v927 = vlaneseq
        %v928 = vshrl.u32 %v927, 7
        %v929 = vsub.s32 5, %v928
        %v930 = vrot.slane %v409, %v929
        %932 = vbcast.lane.b32.xlu0 %v930, 256
        %v933 = vpop.permute.xlu0 %932
        %s935 = sor.u32 256, 8
        %936 = vbcast.lane.b32.xlu0 %v930, %s935
        %v937 = vpop.permute.xlu0 %936
        %v938 = vlaneseq
        %v939 = vshrl.u32 %v938, 7
        %v940 = vsub.s32 6, %v939
        %v941 = vrot.slane %v409, %v940
        %943 = vbcast.lane.b32.xlu0 %v941, 256
        %v944 = vpop.permute.xlu0 %943
        %s946 = sor.u32 256, 8
        %947 = vbcast.lane.b32.xlu0 %v941, %s946
        %v948 = vpop.permute.xlu0 %947
        %v949 = vlaneseq
        %v950 = vshrl.u32 %v949, 7
        %v951 = vsub.s32 7, %v950
        %v952 = vrot.slane %v409, %v951
        %954 = vbcast.lane.b32.xlu0 %v952, 256
        %v955 = vpop.permute.xlu0 %954
        %s957 = sor.u32 256, 8
        %958 = vbcast.lane.b32.xlu0 %v952, %s957
        %v959 = vpop.permute.xlu0 %958
        %v960 = vlaneseq
        %v961 = vshrl.u32 %v960, 7
        %v962 = vsub.s32 0, %v961
        %v963 = vrot.slane %v410, %v962
        %965 = vbcast.lane.b32.xlu0 %v963, 256
        %v966 = vpop.permute.xlu0 %965
        %s968 = sor.u32 256, 8
        %969 = vbcast.lane.b32.xlu0 %v963, %s968
        %v970 = vpop.permute.xlu0 %969
        %v971 = vlaneseq
        %v972 = vshrl.u32 %v971, 7
        %v973 = vsub.s32 1, %v972
        %v974 = vrot.slane %v410, %v973
        %976 = vbcast.lane.b32.xlu0 %v974, 256
        %v977 = vpop.permute.xlu0 %976
        %s979 = sor.u32 256, 8
        %980 = vbcast.lane.b32.xlu0 %v974, %s979
        %v981 = vpop.permute.xlu0 %980
        %v982 = vlaneseq
        %v983 = vshrl.u32 %v982, 7
        %v984 = vsub.s32 2, %v983
        %v985 = vrot.slane %v410, %v984
        %987 = vbcast.lane.b32.xlu0 %v985, 256
        %v988 = vpop.permute.xlu0 %987
        %s990 = sor.u32 256, 8
        %991 = vbcast.lane.b32.xlu0 %v985, %s990
        %v992 = vpop.permute.xlu0 %991
        %v993 = vlaneseq
        %v994 = vshrl.u32 %v993, 7
        %v995 = vsub.s32 3, %v994
        %v996 = vrot.slane %v410, %v995
        %998 = vbcast.lane.b32.xlu0 %v996, 256
        %v999 = vpop.permute.xlu0 %998
        %s1001 = sor.u32 256, 8
        %1002 = vbcast.lane.b32.xlu0 %v996, %s1001
        %v1003 = vpop.permute.xlu0 %1002
        %v1004 = vlaneseq
        %v1005 = vshrl.u32 %v1004, 7
        %v1006 = vsub.s32 4, %v1005
        %v1007 = vrot.slane %v410, %v1006
        %1009 = vbcast.lane.b32.xlu0 %v1007, 256
        %v1010 = vpop.permute.xlu0 %1009
        %s1012 = sor.u32 256, 8
        %1013 = vbcast.lane.b32.xlu0 %v1007, %s1012
        %v1014 = vpop.permute.xlu0 %1013
        %v1015 = vlaneseq
        %v1016 = vshrl.u32 %v1015, 7
        %v1017 = vsub.s32 5, %v1016
        %v1018 = vrot.slane %v410, %v1017
        %1020 = vbcast.lane.b32.xlu0 %v1018, 256
        %v1021 = vpop.permute.xlu0 %1020
        %s1023 = sor.u32 256, 8
        %1024 = vbcast.lane.b32.xlu0 %v1018, %s1023
        %v1025 = vpop.permute.xlu0 %1024
        %v1026 = vlaneseq
        %v1027 = vshrl.u32 %v1026, 7
        %v1028 = vsub.s32 6, %v1027
        %v1029 = vrot.slane %v410, %v1028
        %1031 = vbcast.lane.b32.xlu0 %v1029, 256
        %v1032 = vpop.permute.xlu0 %1031
        %s1034 = sor.u32 256, 8
        %1035 = vbcast.lane.b32.xlu0 %v1029, %s1034
        %v1036 = vpop.permute.xlu0 %1035
        %v1037 = vlaneseq
        %v1038 = vshrl.u32 %v1037, 7
        %v1039 = vsub.s32 7, %v1038
        %v1040 = vrot.slane %v410, %v1039
        %1042 = vbcast.lane.b32.xlu0 %v1040, 256
        %v1043 = vpop.permute.xlu0 %1042
        %s1045 = sor.u32 256, 8
        %1046 = vbcast.lane.b32.xlu0 %v1040, %s1045
        %v1047 = vpop.permute.xlu0 %1046
        %v1048 = vlaneseq
        %v1049 = vshrl.u32 %v1048, 7
        %v1050 = vsub.s32 0, %v1049
        %v1051 = vrot.slane %v411, %v1050
        %1053 = vbcast.lane.b32.xlu0 %v1051, 256
        %v1054 = vpop.permute.xlu0 %1053
        %s1056 = sor.u32 256, 8
        %1057 = vbcast.lane.b32.xlu0 %v1051, %s1056
        %v1058 = vpop.permute.xlu0 %1057
        %v1059 = vlaneseq
        %v1060 = vshrl.u32 %v1059, 7
        %v1061 = vsub.s32 1, %v1060
        %v1062 = vrot.slane %v411, %v1061
        %1064 = vbcast.lane.b32.xlu0 %v1062, 256
        %v1065 = vpop.permute.xlu0 %1064
        %s1067 = sor.u32 256, 8
        %1068 = vbcast.lane.b32.xlu0 %v1062, %s1067
        %v1069 = vpop.permute.xlu0 %1068
        %v1070 = vlaneseq
        %v1071 = vshrl.u32 %v1070, 7
        %v1072 = vsub.s32 2, %v1071
        %v1073 = vrot.slane %v411, %v1072
        %1075 = vbcast.lane.b32.xlu0 %v1073, 256
        %v1076 = vpop.permute.xlu0 %1075
        %s1078 = sor.u32 256, 8
        %1079 = vbcast.lane.b32.xlu0 %v1073, %s1078
        %v1080 = vpop.permute.xlu0 %1079
        %v1081 = vlaneseq
        %v1082 = vshrl.u32 %v1081, 7
        %v1083 = vsub.s32 3, %v1082
        %v1084 = vrot.slane %v411, %v1083
        %1086 = vbcast.lane.b32.xlu0 %v1084, 256
        %v1087 = vpop.permute.xlu0 %1086
        %s1089 = sor.u32 256, 8
        %1090 = vbcast.lane.b32.xlu0 %v1084, %s1089
        %v1091 = vpop.permute.xlu0 %1090
        %v1092 = vlaneseq
        %v1093 = vshrl.u32 %v1092, 7
        %v1094 = vsub.s32 4, %v1093
        %v1095 = vrot.slane %v411, %v1094
        %1097 = vbcast.lane.b32.xlu0 %v1095, 256
        %v1098 = vpop.permute.xlu0 %1097
        %s1100 = sor.u32 256, 8
        %1101 = vbcast.lane.b32.xlu0 %v1095, %s1100
        %v1102 = vpop.permute.xlu0 %1101
        %v1103 = vlaneseq
        %v1104 = vshrl.u32 %v1103, 7
        %v1105 = vsub.s32 5, %v1104
        %v1106 = vrot.slane %v411, %v1105
        %1108 = vbcast.lane.b32.xlu0 %v1106, 256
        %v1109 = vpop.permute.xlu0 %1108
        %s1111 = sor.u32 256, 8
        %1112 = vbcast.lane.b32.xlu0 %v1106, %s1111
        %v1113 = vpop.permute.xlu0 %1112
        %v1114 = vlaneseq
        %v1115 = vshrl.u32 %v1114, 7
        %v1116 = vsub.s32 6, %v1115
        %v1117 = vrot.slane %v411, %v1116
        %1119 = vbcast.lane.b32.xlu0 %v1117, 256
        %v1120 = vpop.permute.xlu0 %1119
        %s1122 = sor.u32 256, 8
        %1123 = vbcast.lane.b32.xlu0 %v1117, %s1122
        %v1124 = vpop.permute.xlu0 %1123
        %v1125 = vlaneseq
        %v1126 = vshrl.u32 %v1125, 7
        %v1127 = vsub.s32 7, %v1126
        %v1128 = vrot.slane %v411, %v1127
        %1130 = vbcast.lane.b32.xlu0 %v1128, 256
        %v1131 = vpop.permute.xlu0 %1130
        %s1133 = sor.u32 256, 8
        %1134 = vbcast.lane.b32.xlu0 %v1128, %s1133
        %v1135 = vpop.permute.xlu0 %1134
        %vm1136 = vcmask 7168
        %v1137 = vsel %vm1136, %v438, %v790
        %v1138 = vsel %vm1136, %v442, %v794
        %v1139 = vsel %vm1136, %v449, %v801
        %v1140 = vsel %vm1136, %v453, %v805
        %v1141 = vsel %vm1136, %v460, %v812
        %v1142 = vsel %vm1136, %v464, %v816
        %v1143 = vsel %vm1136, %v471, %v823
        %v1144 = vsel %vm1136, %v475, %v827
        %v1145 = vsel %vm1136, %v482, %v834
        %v1146 = vsel %vm1136, %v486, %v838
        %v1147 = vsel %vm1136, %v493, %v845
        %v1148 = vsel %vm1136, %v497, %v849
        %v1149 = vsel %vm1136, %v504, %v856
        %v1150 = vsel %vm1136, %v508, %v860
        %v1151 = vsel %vm1136, %v515, %v867
        %v1152 = vsel %vm1136, %v519, %v871
        %v1153 = vsel %vm1136, %v526, %v878
        %v1154 = vsel %vm1136, %v530, %v882
        %v1155 = vsel %vm1136, %v537, %v889
        %v1156 = vsel %vm1136, %v541, %v893
        %v1157 = vsel %vm1136, %v548, %v900
        %v1158 = vsel %vm1136, %v552, %v904
        %v1159 = vsel %vm1136, %v559, %v911
        %v1160 = vsel %vm1136, %v563, %v915
        %v1161 = vsel %vm1136, %v570, %v922
        %v1162 = vsel %vm1136, %v574, %v926
        %v1163 = vsel %vm1136, %v581, %v933
        %v1164 = vsel %vm1136, %v585, %v937
        %v1165 = vsel %vm1136, %v592, %v944
        %v1166 = vsel %vm1136, %v596, %v948
        %v1167 = vsel %vm1136, %v603, %v955
        %v1168 = vsel %vm1136, %v607, %v959
        %v1169 = vsel %vm1136, %v614, %v966
        %v1170 = vsel %vm1136, %v618, %v970
        %v1171 = vsel %vm1136, %v625, %v977
        %v1172 = vsel %vm1136, %v629, %v981
        %v1173 = vsel %vm1136, %v636, %v988
        %v1174 = vsel %vm1136, %v640, %v992
        %v1175 = vsel %vm1136, %v647, %v999
        %v1176 = vsel %vm1136, %v651, %v1003
        %v1177 = vsel %vm1136, %v658, %v1010
        %v1178 = vsel %vm1136, %v662, %v1014
        %v1179 = vsel %vm1136, %v669, %v1021
        %v1180 = vsel %vm1136, %v673, %v1025
        %v1181 = vsel %vm1136, %v680, %v1032
        %v1182 = vsel %vm1136, %v684, %v1036
        %v1183 = vsel %vm1136, %v691, %v1043
        %v1184 = vsel %vm1136, %v695, %v1047
        %v1185 = vsel %vm1136, %v702, %v1054
        %v1186 = vsel %vm1136, %v706, %v1058
        %v1187 = vsel %vm1136, %v713, %v1065
        %v1188 = vsel %vm1136, %v717, %v1069
        %v1189 = vsel %vm1136, %v724, %v1076
        %v1190 = vsel %vm1136, %v728, %v1080
        %v1191 = vsel %vm1136, %v735, %v1087
        %v1192 = vsel %vm1136, %v739, %v1091
        %v1193 = vsel %vm1136, %v746, %v1098
        %v1194 = vsel %vm1136, %v750, %v1102
        %v1195 = vsel %vm1136, %v757, %v1109
        %v1196 = vsel %vm1136, %v761, %v1113
        %v1197 = vsel %vm1136, %v768, %v1120
        %v1198 = vsel %vm1136, %v772, %v1124
        %v1199 = vsel %vm1136, %v779, %v1131
        %v1200 = vsel %vm1136, %v783, %v1135
        %v1201 = vlaneseq
        %v1202 = vshrl.u32 %v1201, 7
        %v1203 = vsub.s32 0, %v1202
        %v1204 = vrot.slane %v418, %v1203
        %1206 = vbcast.lane.b32.xlu0 %v1204, 256
        %v1207 = vpop.permute.xlu0 %1206
        %s1209 = sor.u32 256, 8
        %1210 = vbcast.lane.b32.xlu0 %v1204, %s1209
        %v1211 = vpop.permute.xlu0 %1210
        %v1212 = vlaneseq
        %v1213 = vshrl.u32 %v1212, 7
        %v1214 = vsub.s32 1, %v1213
        %v1215 = vrot.slane %v418, %v1214
        %1217 = vbcast.lane.b32.xlu0 %v1215, 256
        %v1218 = vpop.permute.xlu0 %1217
        %s1220 = sor.u32 256, 8
        %1221 = vbcast.lane.b32.xlu0 %v1215, %s1220
        %v1222 = vpop.permute.xlu0 %1221
        %v1223 = vlaneseq
        %v1224 = vshrl.u32 %v1223, 7
        %v1225 = vsub.s32 2, %v1224
        %v1226 = vrot.slane %v418, %v1225
        %1228 = vbcast.lane.b32.xlu0 %v1226, 256
        %v1229 = vpop.permute.xlu0 %1228
        %s1231 = sor.u32 256, 8
        %1232 = vbcast.lane.b32.xlu0 %v1226, %s1231
        %v1233 = vpop.permute.xlu0 %1232
        %v1234 = vlaneseq
        %v1235 = vshrl.u32 %v1234, 7
        %v1236 = vsub.s32 3, %v1235
        %v1237 = vrot.slane %v418, %v1236
        %1239 = vbcast.lane.b32.xlu0 %v1237, 256
        %v1240 = vpop.permute.xlu0 %1239
        %s1242 = sor.u32 256, 8
        %1243 = vbcast.lane.b32.xlu0 %v1237, %s1242
        %v1244 = vpop.permute.xlu0 %1243
        %v1245 = vlaneseq
        %v1246 = vshrl.u32 %v1245, 7
        %v1247 = vsub.s32 4, %v1246
        %v1248 = vrot.slane %v418, %v1247
        %1250 = vbcast.lane.b32.xlu0 %v1248, 256
        %v1251 = vpop.permute.xlu0 %1250
        %s1253 = sor.u32 256, 8
        %1254 = vbcast.lane.b32.xlu0 %v1248, %s1253
        %v1255 = vpop.permute.xlu0 %1254
        %v1256 = vlaneseq
        %v1257 = vshrl.u32 %v1256, 7
        %v1258 = vsub.s32 5, %v1257
        %v1259 = vrot.slane %v418, %v1258
        %1261 = vbcast.lane.b32.xlu0 %v1259, 256
        %v1262 = vpop.permute.xlu0 %1261
        %s1264 = sor.u32 256, 8
        %1265 = vbcast.lane.b32.xlu0 %v1259, %s1264
        %v1266 = vpop.permute.xlu0 %1265
        %v1267 = vlaneseq
        %v1268 = vshrl.u32 %v1267, 7
        %v1269 = vsub.s32 6, %v1268
        %v1270 = vrot.slane %v418, %v1269
        %1272 = vbcast.lane.b32.xlu0 %v1270, 256
        %v1273 = vpop.permute.xlu0 %1272
        %s1275 = sor.u32 256, 8
        %1276 = vbcast.lane.b32.xlu0 %v1270, %s1275
        %v1277 = vpop.permute.xlu0 %1276
        %v1278 = vlaneseq
        %v1279 = vshrl.u32 %v1278, 7
        %v1280 = vsub.s32 7, %v1279
        %v1281 = vrot.slane %v418, %v1280
        %1283 = vbcast.lane.b32.xlu0 %v1281, 256
        %v1284 = vpop.permute.xlu0 %1283
        %s1286 = sor.u32 256, 8
        %1287 = vbcast.lane.b32.xlu0 %v1281, %s1286
        %v1288 = vpop.permute.xlu0 %1287
        %v1289 = vlaneseq
        %v1290 = vshrl.u32 %v1289, 7
        %v1291 = vsub.s32 0, %v1290
        %v1292 = vrot.slane %v419, %v1291
        %1294 = vbcast.lane.b32.xlu0 %v1292, 256
        %v1295 = vpop.permute.xlu0 %1294
        %s1297 = sor.u32 256, 8
        %1298 = vbcast.lane.b32.xlu0 %v1292, %s1297
        %v1299 = vpop.permute.xlu0 %1298
        %v1300 = vlaneseq
        %v1301 = vshrl.u32 %v1300, 7
        %v1302 = vsub.s32 1, %v1301
        %v1303 = vrot.slane %v419, %v1302
        %1305 = vbcast.lane.b32.xlu0 %v1303, 256
        %v1306 = vpop.permute.xlu0 %1305
        %s1308 = sor.u32 256, 8
        %1309 = vbcast.lane.b32.xlu0 %v1303, %s1308
        %v1310 = vpop.permute.xlu0 %1309
        %v1311 = vlaneseq
        %v1312 = vshrl.u32 %v1311, 7
        %v1313 = vsub.s32 2, %v1312
        %v1314 = vrot.slane %v419, %v1313
        %1316 = vbcast.lane.b32.xlu0 %v1314, 256
        %v1317 = vpop.permute.xlu0 %1316
        %s1319 = sor.u32 256, 8
        %1320 = vbcast.lane.b32.xlu0 %v1314, %s1319
        %v1321 = vpop.permute.xlu0 %1320
        %v1322 = vlaneseq
        %v1323 = vshrl.u32 %v1322, 7
        %v1324 = vsub.s32 3, %v1323
        %v1325 = vrot.slane %v419, %v1324
        %1327 = vbcast.lane.b32.xlu0 %v1325, 256
        %v1328 = vpop.permute.xlu0 %1327
        %s1330 = sor.u32 256, 8
        %1331 = vbcast.lane.b32.xlu0 %v1325, %s1330
        %v1332 = vpop.permute.xlu0 %1331
        %v1333 = vlaneseq
        %v1334 = vshrl.u32 %v1333, 7
        %v1335 = vsub.s32 4, %v1334
        %v1336 = vrot.slane %v419, %v1335
        %1338 = vbcast.lane.b32.xlu0 %v1336, 256
        %v1339 = vpop.permute.xlu0 %1338
        %s1341 = sor.u32 256, 8
        %1342 = vbcast.lane.b32.xlu0 %v1336, %s1341
        %v1343 = vpop.permute.xlu0 %1342
        %v1344 = vlaneseq
        %v1345 = vshrl.u32 %v1344, 7
        %v1346 = vsub.s32 5, %v1345
        %v1347 = vrot.slane %v419, %v1346
        %1349 = vbcast.lane.b32.xlu0 %v1347, 256
        %v1350 = vpop.permute.xlu0 %1349
        %s1352 = sor.u32 256, 8
        %1353 = vbcast.lane.b32.xlu0 %v1347, %s1352
        %v1354 = vpop.permute.xlu0 %1353
        %v1355 = vlaneseq
        %v1356 = vshrl.u32 %v1355, 7
        %v1357 = vsub.s32 6, %v1356
        %v1358 = vrot.slane %v419, %v1357
        %1360 = vbcast.lane.b32.xlu0 %v1358, 256
        %v1361 = vpop.permute.xlu0 %1360
        %s1363 = sor.u32 256, 8
        %1364 = vbcast.lane.b32.xlu0 %v1358, %s1363
        %v1365 = vpop.permute.xlu0 %1364
        %v1366 = vlaneseq
        %v1367 = vshrl.u32 %v1366, 7
        %v1368 = vsub.s32 7, %v1367
        %v1369 = vrot.slane %v419, %v1368
        %1371 = vbcast.lane.b32.xlu0 %v1369, 256
        %v1372 = vpop.permute.xlu0 %1371
        %s1374 = sor.u32 256, 8
        %1375 = vbcast.lane.b32.xlu0 %v1369, %s1374
        %v1376 = vpop.permute.xlu0 %1375
        %v1377 = vlaneseq
        %v1378 = vshrl.u32 %v1377, 7
        %v1379 = vsub.s32 0, %v1378
        %v1380 = vrot.slane %v420, %v1379
        %1382 = vbcast.lane.b32.xlu0 %v1380, 256
        %v1383 = vpop.permute.xlu0 %1382
        %s1385 = sor.u32 256, 8
        %1386 = vbcast.lane.b32.xlu0 %v1380, %s1385
        %v1387 = vpop.permute.xlu0 %1386
        %v1388 = vlaneseq
        %v1389 = vshrl.u32 %v1388, 7
        %v1390 = vsub.s32 1, %v1389
        %v1391 = vrot.slane %v420, %v1390
        %1393 = vbcast.lane.b32.xlu0 %v1391, 256
        %v1394 = vpop.permute.xlu0 %1393
        %s1396 = sor.u32 256, 8
        %1397 = vbcast.lane.b32.xlu0 %v1391, %s1396
        %v1398 = vpop.permute.xlu0 %1397
        %v1399 = vlaneseq
        %v1400 = vshrl.u32 %v1399, 7
        %v1401 = vsub.s32 2, %v1400
        %v1402 = vrot.slane %v420, %v1401
        %1404 = vbcast.lane.b32.xlu0 %v1402, 256
        %v1405 = vpop.permute.xlu0 %1404
        %s1407 = sor.u32 256, 8
        %1408 = vbcast.lane.b32.xlu0 %v1402, %s1407
        %v1409 = vpop.permute.xlu0 %1408
        %v1410 = vlaneseq
        %v1411 = vshrl.u32 %v1410, 7
        %v1412 = vsub.s32 3, %v1411
        %v1413 = vrot.slane %v420, %v1412
        %1415 = vbcast.lane.b32.xlu0 %v1413, 256
        %v1416 = vpop.permute.xlu0 %1415
        %s1418 = sor.u32 256, 8
        %1419 = vbcast.lane.b32.xlu0 %v1413, %s1418
        %v1420 = vpop.permute.xlu0 %1419
        %v1421 = vlaneseq
        %v1422 = vshrl.u32 %v1421, 7
        %v1423 = vsub.s32 4, %v1422
        %v1424 = vrot.slane %v420, %v1423
        %1426 = vbcast.lane.b32.xlu0 %v1424, 256
        %v1427 = vpop.permute.xlu0 %1426
        %s1429 = sor.u32 256, 8
        %1430 = vbcast.lane.b32.xlu0 %v1424, %s1429
        %v1431 = vpop.permute.xlu0 %1430
        %v1432 = vlaneseq
        %v1433 = vshrl.u32 %v1432, 7
        %v1434 = vsub.s32 5, %v1433
        %v1435 = vrot.slane %v420, %v1434
        %1437 = vbcast.lane.b32.xlu0 %v1435, 256
        %v1438 = vpop.permute.xlu0 %1437
        %s1440 = sor.u32 256, 8
        %1441 = vbcast.lane.b32.xlu0 %v1435, %s1440
        %v1442 = vpop.permute.xlu0 %1441
        %v1443 = vlaneseq
        %v1444 = vshrl.u32 %v1443, 7
        %v1445 = vsub.s32 6, %v1444
        %v1446 = vrot.slane %v420, %v1445
        %1448 = vbcast.lane.b32.xlu0 %v1446, 256
        %v1449 = vpop.permute.xlu0 %1448
        %s1451 = sor.u32 256, 8
        %1452 = vbcast.lane.b32.xlu0 %v1446, %s1451
        %v1453 = vpop.permute.xlu0 %1452
        %v1454 = vlaneseq
        %v1455 = vshrl.u32 %v1454, 7
        %v1456 = vsub.s32 7, %v1455
        %v1457 = vrot.slane %v420, %v1456
        %1459 = vbcast.lane.b32.xlu0 %v1457, 256
        %v1460 = vpop.permute.xlu0 %1459
        %s1462 = sor.u32 256, 8
        %1463 = vbcast.lane.b32.xlu0 %v1457, %s1462
        %v1464 = vpop.permute.xlu0 %1463
        %v1465 = vlaneseq
        %v1466 = vshrl.u32 %v1465, 7
        %v1467 = vsub.s32 0, %v1466
        %v1468 = vrot.slane %v421, %v1467
        %1470 = vbcast.lane.b32.xlu0 %v1468, 256
        %v1471 = vpop.permute.xlu0 %1470
        %s1473 = sor.u32 256, 8
        %1474 = vbcast.lane.b32.xlu0 %v1468, %s1473
        %v1475 = vpop.permute.xlu0 %1474
        %v1476 = vlaneseq
        %v1477 = vshrl.u32 %v1476, 7
        %v1478 = vsub.s32 1, %v1477
        %v1479 = vrot.slane %v421, %v1478
        %1481 = vbcast.lane.b32.xlu0 %v1479, 256
        %v1482 = vpop.permute.xlu0 %1481
        %s1484 = sor.u32 256, 8
        %1485 = vbcast.lane.b32.xlu0 %v1479, %s1484
        %v1486 = vpop.permute.xlu0 %1485
        %v1487 = vlaneseq
        %v1488 = vshrl.u32 %v1487, 7
        %v1489 = vsub.s32 2, %v1488
        %v1490 = vrot.slane %v421, %v1489
        %1492 = vbcast.lane.b32.xlu0 %v1490, 256
        %v1493 = vpop.permute.xlu0 %1492
        %s1495 = sor.u32 256, 8
        %1496 = vbcast.lane.b32.xlu0 %v1490, %s1495
        %v1497 = vpop.permute.xlu0 %1496
        %v1498 = vlaneseq
        %v1499 = vshrl.u32 %v1498, 7
        %v1500 = vsub.s32 3, %v1499
        %v1501 = vrot.slane %v421, %v1500
        %1503 = vbcast.lane.b32.xlu0 %v1501, 256
        %v1504 = vpop.permute.xlu0 %1503
        %s1506 = sor.u32 256, 8
        %1507 = vbcast.lane.b32.xlu0 %v1501, %s1506
        %v1508 = vpop.permute.xlu0 %1507
        %v1509 = vlaneseq
        %v1510 = vshrl.u32 %v1509, 7
        %v1511 = vsub.s32 4, %v1510
        %v1512 = vrot.slane %v421, %v1511
        %1514 = vbcast.lane.b32.xlu0 %v1512, 256
        %v1515 = vpop.permute.xlu0 %1514
        %s1517 = sor.u32 256, 8
        %1518 = vbcast.lane.b32.xlu0 %v1512, %s1517
        %v1519 = vpop.permute.xlu0 %1518
        %v1520 = vlaneseq
        %v1521 = vshrl.u32 %v1520, 7
        %v1522 = vsub.s32 5, %v1521
        %v1523 = vrot.slane %v421, %v1522
        %1525 = vbcast.lane.b32.xlu0 %v1523, 256
        %v1526 = vpop.permute.xlu0 %1525
        %s1528 = sor.u32 256, 8
        %1529 = vbcast.lane.b32.xlu0 %v1523, %s1528
        %v1530 = vpop.permute.xlu0 %1529
        %v1531 = vlaneseq
        %v1532 = vshrl.u32 %v1531, 7
        %v1533 = vsub.s32 6, %v1532
        %v1534 = vrot.slane %v421, %v1533
        %1536 = vbcast.lane.b32.xlu0 %v1534, 256
        %v1537 = vpop.permute.xlu0 %1536
        %s1539 = sor.u32 256, 8
        %1540 = vbcast.lane.b32.xlu0 %v1534, %s1539
        %v1541 = vpop.permute.xlu0 %1540
        %v1542 = vlaneseq
        %v1543 = vshrl.u32 %v1542, 7
        %v1544 = vsub.s32 7, %v1543
        %v1545 = vrot.slane %v421, %v1544
        %1547 = vbcast.lane.b32.xlu0 %v1545, 256
        %v1548 = vpop.permute.xlu0 %1547
        %s1550 = sor.u32 256, 8
        %1551 = vbcast.lane.b32.xlu0 %v1545, %s1550
        %v1552 = vpop.permute.xlu0 %1551
        %v1553 = vlaneseq
        %v1554 = vshrl.u32 %v1553, 7
        %v1555 = vsub.s32 0, %v1554
        %v1556 = vrot.slane %v428, %v1555
        %1558 = vbcast.lane.b32.xlu0 %v1556, 256
        %v1559 = vpop.permute.xlu0 %1558
        %s1561 = sor.u32 256, 8
        %1562 = vbcast.lane.b32.xlu0 %v1556, %s1561
        %v1563 = vpop.permute.xlu0 %1562
        %v1564 = vlaneseq
        %v1565 = vshrl.u32 %v1564, 7
        %v1566 = vsub.s32 1, %v1565
        %v1567 = vrot.slane %v428, %v1566
        %1569 = vbcast.lane.b32.xlu0 %v1567, 256
        %v1570 = vpop.permute.xlu0 %1569
        %s1572 = sor.u32 256, 8
        %1573 = vbcast.lane.b32.xlu0 %v1567, %s1572
        %v1574 = vpop.permute.xlu0 %1573
        %v1575 = vlaneseq
        %v1576 = vshrl.u32 %v1575, 7
        %v1577 = vsub.s32 2, %v1576
        %v1578 = vrot.slane %v428, %v1577
        %1580 = vbcast.lane.b32.xlu0 %v1578, 256
        %v1581 = vpop.permute.xlu0 %1580
        %s1583 = sor.u32 256, 8
        %1584 = vbcast.lane.b32.xlu0 %v1578, %s1583
        %v1585 = vpop.permute.xlu0 %1584
        %v1586 = vlaneseq
        %v1587 = vshrl.u32 %v1586, 7
        %v1588 = vsub.s32 3, %v1587
        %v1589 = vrot.slane %v428, %v1588
        %1591 = vbcast.lane.b32.xlu0 %v1589, 256
        %v1592 = vpop.permute.xlu0 %1591
        %s1594 = sor.u32 256, 8
        %1595 = vbcast.lane.b32.xlu0 %v1589, %s1594
        %v1596 = vpop.permute.xlu0 %1595
        %v1597 = vlaneseq
        %v1598 = vshrl.u32 %v1597, 7
        %v1599 = vsub.s32 4, %v1598
        %v1600 = vrot.slane %v428, %v1599
        %1602 = vbcast.lane.b32.xlu0 %v1600, 256
        %v1603 = vpop.permute.xlu0 %1602
        %s1605 = sor.u32 256, 8
        %1606 = vbcast.lane.b32.xlu0 %v1600, %s1605
        %v1607 = vpop.permute.xlu0 %1606
        %v1608 = vlaneseq
        %v1609 = vshrl.u32 %v1608, 7
        %v1610 = vsub.s32 5, %v1609
        %v1611 = vrot.slane %v428, %v1610
        %1613 = vbcast.lane.b32.xlu0 %v1611, 256
        %v1614 = vpop.permute.xlu0 %1613
        %s1616 = sor.u32 256, 8
        %1617 = vbcast.lane.b32.xlu0 %v1611, %s1616
        %v1618 = vpop.permute.xlu0 %1617
        %v1619 = vlaneseq
        %v1620 = vshrl.u32 %v1619, 7
        %v1621 = vsub.s32 6, %v1620
        %v1622 = vrot.slane %v428, %v1621
        %1624 = vbcast.lane.b32.xlu0 %v1622, 256
        %v1625 = vpop.permute.xlu0 %1624
        %s1627 = sor.u32 256, 8
        %1628 = vbcast.lane.b32.xlu0 %v1622, %s1627
        %v1629 = vpop.permute.xlu0 %1628
        %v1630 = vlaneseq
        %v1631 = vshrl.u32 %v1630, 7
        %v1632 = vsub.s32 7, %v1631
        %v1633 = vrot.slane %v428, %v1632
        %1635 = vbcast.lane.b32.xlu0 %v1633, 256
        %v1636 = vpop.permute.xlu0 %1635
        %s1638 = sor.u32 256, 8
        %1639 = vbcast.lane.b32.xlu0 %v1633, %s1638
        %v1640 = vpop.permute.xlu0 %1639
        %v1641 = vlaneseq
        %v1642 = vshrl.u32 %v1641, 7
        %v1643 = vsub.s32 0, %v1642
        %v1644 = vrot.slane %v429, %v1643
        %1646 = vbcast.lane.b32.xlu0 %v1644, 256
        %v1647 = vpop.permute.xlu0 %1646
        %s1649 = sor.u32 256, 8
        %1650 = vbcast.lane.b32.xlu0 %v1644, %s1649
        %v1651 = vpop.permute.xlu0 %1650
        %v1652 = vlaneseq
        %v1653 = vshrl.u32 %v1652, 7
        %v1654 = vsub.s32 1, %v1653
        %v1655 = vrot.slane %v429, %v1654
        %1657 = vbcast.lane.b32.xlu0 %v1655, 256
        %v1658 = vpop.permute.xlu0 %1657
        %s1660 = sor.u32 256, 8
        %1661 = vbcast.lane.b32.xlu0 %v1655, %s1660
        %v1662 = vpop.permute.xlu0 %1661
        %v1663 = vlaneseq
        %v1664 = vshrl.u32 %v1663, 7
        %v1665 = vsub.s32 2, %v1664
        %v1666 = vrot.slane %v429, %v1665
        %1668 = vbcast.lane.b32.xlu0 %v1666, 256
        %v1669 = vpop.permute.xlu0 %1668
        %s1671 = sor.u32 256, 8
        %1672 = vbcast.lane.b32.xlu0 %v1666, %s1671
        %v1673 = vpop.permute.xlu0 %1672
        %v1674 = vlaneseq
        %v1675 = vshrl.u32 %v1674, 7
        %v1676 = vsub.s32 3, %v1675
        %v1677 = vrot.slane %v429, %v1676
        %1679 = vbcast.lane.b32.xlu0 %v1677, 256
        %v1680 = vpop.permute.xlu0 %1679
        %s1682 = sor.u32 256, 8
        %1683 = vbcast.lane.b32.xlu0 %v1677, %s1682
        %v1684 = vpop.permute.xlu0 %1683
        %v1685 = vlaneseq
        %v1686 = vshrl.u32 %v1685, 7
        %v1687 = vsub.s32 4, %v1686
        %v1688 = vrot.slane %v429, %v1687
        %1690 = vbcast.lane.b32.xlu0 %v1688, 256
        %v1691 = vpop.permute.xlu0 %1690
        %s1693 = sor.u32 256, 8
        %1694 = vbcast.lane.b32.xlu0 %v1688, %s1693
        %v1695 = vpop.permute.xlu0 %1694
        %v1696 = vlaneseq
        %v1697 = vshrl.u32 %v1696, 7
        %v1698 = vsub.s32 5, %v1697
        %v1699 = vrot.slane %v429, %v1698
        %1701 = vbcast.lane.b32.xlu0 %v1699, 256
        %v1702 = vpop.permute.xlu0 %1701
        %s1704 = sor.u32 256, 8
        %1705 = vbcast.lane.b32.xlu0 %v1699, %s1704
        %v1706 = vpop.permute.xlu0 %1705
        %v1707 = vlaneseq
        %v1708 = vshrl.u32 %v1707, 7
        %v1709 = vsub.s32 6, %v1708
        %v1710 = vrot.slane %v429, %v1709
        %1712 = vbcast.lane.b32.xlu0 %v1710, 256
        %v1713 = vpop.permute.xlu0 %1712
        %s1715 = sor.u32 256, 8
        %1716 = vbcast.lane.b32.xlu0 %v1710, %s1715
        %v1717 = vpop.permute.xlu0 %1716
        %v1718 = vlaneseq
        %v1719 = vshrl.u32 %v1718, 7
        %v1720 = vsub.s32 7, %v1719
        %v1721 = vrot.slane %v429, %v1720
        %1723 = vbcast.lane.b32.xlu0 %v1721, 256
        %v1724 = vpop.permute.xlu0 %1723
        %s1726 = sor.u32 256, 8
        %1727 = vbcast.lane.b32.xlu0 %v1721, %s1726
        %v1728 = vpop.permute.xlu0 %1727
        %v1729 = vlaneseq
        %v1730 = vshrl.u32 %v1729, 7
        %v1731 = vsub.s32 0, %v1730
        %v1732 = vrot.slane %v430, %v1731
        %1734 = vbcast.lane.b32.xlu0 %v1732, 256
        %v1735 = vpop.permute.xlu0 %1734
        %s1737 = sor.u32 256, 8
        %1738 = vbcast.lane.b32.xlu0 %v1732, %s1737
        %v1739 = vpop.permute.xlu0 %1738
        %v1740 = vlaneseq
        %v1741 = vshrl.u32 %v1740, 7
        %v1742 = vsub.s32 1, %v1741
        %v1743 = vrot.slane %v430, %v1742
        %1745 = vbcast.lane.b32.xlu0 %v1743, 256
        %v1746 = vpop.permute.xlu0 %1745
        %s1748 = sor.u32 256, 8
        %1749 = vbcast.lane.b32.xlu0 %v1743, %s1748
        %v1750 = vpop.permute.xlu0 %1749
        %v1751 = vlaneseq
        %v1752 = vshrl.u32 %v1751, 7
        %v1753 = vsub.s32 2, %v1752
        %v1754 = vrot.slane %v430, %v1753
        %1756 = vbcast.lane.b32.xlu0 %v1754, 256
        %v1757 = vpop.permute.xlu0 %1756
        %s1759 = sor.u32 256, 8
        %1760 = vbcast.lane.b32.xlu0 %v1754, %s1759
        %v1761 = vpop.permute.xlu0 %1760
        %v1762 = vlaneseq
        %v1763 = vshrl.u32 %v1762, 7
        %v1764 = vsub.s32 3, %v1763
        %v1765 = vrot.slane %v430, %v1764
        %1767 = vbcast.lane.b32.xlu0 %v1765, 256
        %v1768 = vpop.permute.xlu0 %1767
        %s1770 = sor.u32 256, 8
        %1771 = vbcast.lane.b32.xlu0 %v1765, %s1770
        %v1772 = vpop.permute.xlu0 %1771
        %v1773 = vlaneseq
        %v1774 = vshrl.u32 %v1773, 7
        %v1775 = vsub.s32 4, %v1774
        %v1776 = vrot.slane %v430, %v1775
        %1778 = vbcast.lane.b32.xlu0 %v1776, 256
        %v1779 = vpop.permute.xlu0 %1778
        %s1781 = sor.u32 256, 8
        %1782 = vbcast.lane.b32.xlu0 %v1776, %s1781
        %v1783 = vpop.permute.xlu0 %1782
        %v1784 = vlaneseq
        %v1785 = vshrl.u32 %v1784, 7
        %v1786 = vsub.s32 5, %v1785
        %v1787 = vrot.slane %v430, %v1786
        %1789 = vbcast.lane.b32.xlu0 %v1787, 256
        %v1790 = vpop.permute.xlu0 %1789
        %s1792 = sor.u32 256, 8
        %1793 = vbcast.lane.b32.xlu0 %v1787, %s1792
        %v1794 = vpop.permute.xlu0 %1793
        %v1795 = vlaneseq
        %v1796 = vshrl.u32 %v1795, 7
        %v1797 = vsub.s32 6, %v1796
        %v1798 = vrot.slane %v430, %v1797
        %1800 = vbcast.lane.b32.xlu0 %v1798, 256
        %v1801 = vpop.permute.xlu0 %1800
        %s1803 = sor.u32 256, 8
        %1804 = vbcast.lane.b32.xlu0 %v1798, %s1803
        %v1805 = vpop.permute.xlu0 %1804
        %v1806 = vlaneseq
        %v1807 = vshrl.u32 %v1806, 7
        %v1808 = vsub.s32 7, %v1807
        %v1809 = vrot.slane %v430, %v1808
        %1811 = vbcast.lane.b32.xlu0 %v1809, 256
        %v1812 = vpop.permute.xlu0 %1811
        %s1814 = sor.u32 256, 8
        %1815 = vbcast.lane.b32.xlu0 %v1809, %s1814
        %v1816 = vpop.permute.xlu0 %1815
        %v1817 = vlaneseq
        %v1818 = vshrl.u32 %v1817, 7
        %v1819 = vsub.s32 0, %v1818
        %v1820 = vrot.slane %v431, %v1819
        %1822 = vbcast.lane.b32.xlu0 %v1820, 256
        %v1823 = vpop.permute.xlu0 %1822
        %s1825 = sor.u32 256, 8
        %1826 = vbcast.lane.b32.xlu0 %v1820, %s1825
        %v1827 = vpop.permute.xlu0 %1826
        %v1828 = vlaneseq
        %v1829 = vshrl.u32 %v1828, 7
        %v1830 = vsub.s32 1, %v1829
        %v1831 = vrot.slane %v431, %v1830
        %1833 = vbcast.lane.b32.xlu0 %v1831, 256
        %v1834 = vpop.permute.xlu0 %1833
        %s1836 = sor.u32 256, 8
        %1837 = vbcast.lane.b32.xlu0 %v1831, %s1836
        %v1838 = vpop.permute.xlu0 %1837
        %v1839 = vlaneseq
        %v1840 = vshrl.u32 %v1839, 7
        %v1841 = vsub.s32 2, %v1840
        %v1842 = vrot.slane %v431, %v1841
        %1844 = vbcast.lane.b32.xlu0 %v1842, 256
        %v1845 = vpop.permute.xlu0 %1844
        %s1847 = sor.u32 256, 8
        %1848 = vbcast.lane.b32.xlu0 %v1842, %s1847
        %v1849 = vpop.permute.xlu0 %1848
        %v1850 = vlaneseq
        %v1851 = vshrl.u32 %v1850, 7
        %v1852 = vsub.s32 3, %v1851
        %v1853 = vrot.slane %v431, %v1852
        %1855 = vbcast.lane.b32.xlu0 %v1853, 256
        %v1856 = vpop.permute.xlu0 %1855
        %s1858 = sor.u32 256, 8
        %1859 = vbcast.lane.b32.xlu0 %v1853, %s1858
        %v1860 = vpop.permute.xlu0 %1859
        %v1861 = vlaneseq
        %v1862 = vshrl.u32 %v1861, 7
        %v1863 = vsub.s32 4, %v1862
        %v1864 = vrot.slane %v431, %v1863
        %1866 = vbcast.lane.b32.xlu0 %v1864, 256
        %v1867 = vpop.permute.xlu0 %1866
        %s1869 = sor.u32 256, 8
        %1870 = vbcast.lane.b32.xlu0 %v1864, %s1869
        %v1871 = vpop.permute.xlu0 %1870
        %v1872 = vlaneseq
        %v1873 = vshrl.u32 %v1872, 7
        %v1874 = vsub.s32 5, %v1873
        %v1875 = vrot.slane %v431, %v1874
        %1877 = vbcast.lane.b32.xlu0 %v1875, 256
        %v1878 = vpop.permute.xlu0 %1877
        %s1880 = sor.u32 256, 8
        %1881 = vbcast.lane.b32.xlu0 %v1875, %s1880
        %v1882 = vpop.permute.xlu0 %1881
        %v1883 = vlaneseq
        %v1884 = vshrl.u32 %v1883, 7
        %v1885 = vsub.s32 6, %v1884
        %v1886 = vrot.slane %v431, %v1885
        %1888 = vbcast.lane.b32.xlu0 %v1886, 256
        %v1889 = vpop.permute.xlu0 %1888
        %s1891 = sor.u32 256, 8
        %1892 = vbcast.lane.b32.xlu0 %v1886, %s1891
        %v1893 = vpop.permute.xlu0 %1892
        %v1894 = vlaneseq
        %v1895 = vshrl.u32 %v1894, 7
        %v1896 = vsub.s32 7, %v1895
        %v1897 = vrot.slane %v431, %v1896
        %1899 = vbcast.lane.b32.xlu0 %v1897, 256
        %v1900 = vpop.permute.xlu0 %1899
        %s1902 = sor.u32 256, 8
        %1903 = vbcast.lane.b32.xlu0 %v1897, %s1902
        %v1904 = vpop.permute.xlu0 %1903
        %v1905 = vsel %vm1136, %v1207, %v1559
        %v1906 = vsel %vm1136, %v1211, %v1563
        %v1907 = vsel %vm1136, %v1218, %v1570
        %v1908 = vsel %vm1136, %v1222, %v1574
        %v1909 = vsel %vm1136, %v1229, %v1581
        %v1910 = vsel %vm1136, %v1233, %v1585
        %v1911 = vsel %vm1136, %v1240, %v1592
        %v1912 = vsel %vm1136, %v1244, %v1596
        %v1913 = vsel %vm1136, %v1251, %v1603
        %v1914 = vsel %vm1136, %v1255, %v1607
        %v1915 = vsel %vm1136, %v1262, %v1614
        %v1916 = vsel %vm1136, %v1266, %v1618
        %v1917 = vsel %vm1136, %v1273, %v1625
        %v1918 = vsel %vm1136, %v1277, %v1629
        %v1919 = vsel %vm1136, %v1284, %v1636
        %v1920 = vsel %vm1136, %v1288, %v1640
        %v1921 = vsel %vm1136, %v1295, %v1647
        %v1922 = vsel %vm1136, %v1299, %v1651
        %v1923 = vsel %vm1136, %v1306, %v1658
        %v1924 = vsel %vm1136, %v1310, %v1662
        %v1925 = vsel %vm1136, %v1317, %v1669
        %v1926 = vsel %vm1136, %v1321, %v1673
        %v1927 = vsel %vm1136, %v1328, %v1680
        %v1928 = vsel %vm1136, %v1332, %v1684
        %v1929 = vsel %vm1136, %v1339, %v1691
        %v1930 = vsel %vm1136, %v1343, %v1695
        %v1931 = vsel %vm1136, %v1350, %v1702
        %v1932 = vsel %vm1136, %v1354, %v1706
        %v1933 = vsel %vm1136, %v1361, %v1713
        %v1934 = vsel %vm1136, %v1365, %v1717
        %v1935 = vsel %vm1136, %v1372, %v1724
        %v1936 = vsel %vm1136, %v1376, %v1728
        %v1937 = vsel %vm1136, %v1383, %v1735
        %v1938 = vsel %vm1136, %v1387, %v1739
        %v1939 = vsel %vm1136, %v1394, %v1746
        %v1940 = vsel %vm1136, %v1398, %v1750
        %v1941 = vsel %vm1136, %v1405, %v1757
        %v1942 = vsel %vm1136, %v1409, %v1761
        %v1943 = vsel %vm1136, %v1416, %v1768
        %v1944 = vsel %vm1136, %v1420, %v1772
        %v1945 = vsel %vm1136, %v1427, %v1779
        %v1946 = vsel %vm1136, %v1431, %v1783
        %v1947 = vsel %vm1136, %v1438, %v1790
        %v1948 = vsel %vm1136, %v1442, %v1794
        %v1949 = vsel %vm1136, %v1449, %v1801
        %v1950 = vsel %vm1136, %v1453, %v1805
        %v1951 = vsel %vm1136, %v1460, %v1812
        %v1952 = vsel %vm1136, %v1464, %v1816
        %v1953 = vsel %vm1136, %v1471, %v1823
        %v1954 = vsel %vm1136, %v1475, %v1827
        %v1955 = vsel %vm1136, %v1482, %v1834
        %v1956 = vsel %vm1136, %v1486, %v1838
        %v1957 = vsel %vm1136, %v1493, %v1845
        %v1958 = vsel %vm1136, %v1497, %v1849
        %v1959 = vsel %vm1136, %v1504, %v1856
        %v1960 = vsel %vm1136, %v1508, %v1860
        %v1961 = vsel %vm1136, %v1515, %v1867
        %v1962 = vsel %vm1136, %v1519, %v1871
        %v1963 = vsel %vm1136, %v1526, %v1878
        %v1964 = vsel %vm1136, %v1530, %v1882
        %v1965 = vsel %vm1136, %v1537, %v1889
        %v1966 = vsel %vm1136, %v1541, %v1893
        %v1967 = vsel %vm1136, %v1548, %v1900
        %v1968 = vsel %vm1136, %v1552, %v1904
        %v1969 = vcombine.high %v1137, 0.0
        %v1971 = vunpack.c.l.s4 1983009808
        %v1972 = vunpack.c.0.s8 %v1971
        %v1973 = vlaneseq
        %v1974 = vshrl.u32 %v1973, 7
        %v1975 = vsub.s32 %v1972, %v1974
        %v1976 = vrot.slane %v1137, %v1975
        %v1978 = vunpack.c.l.s4 1983009808
        %v1979 = vunpack.c.0.s8 %v1978
        %v1980 = vlaneseq
        %v1981 = vshrl.u32 %v1980, 7
        %v1982 = vsub.s32 %v1979, %v1981
        %v1983 = vrot.slane %v1969, %v1982
        %v1984 = vcombine.high %v1976, 0.0
        %v1986 = vunpack.c.l.s4 1934713408
        %v1987 = vunpack.c.0.s8 %v1986
        %v1988 = vlaneseq
        %v1989 = vshrl.u32 %v1988, 7
        %v1990 = vsub.s32 %v1987, %v1989
        %v1991 = vrot.slane %v1976, %v1990
        %v1993 = vunpack.c.l.s4 1934713408
        %v1994 = vunpack.c.0.s8 %v1993
        %v1995 = vlaneseq
        %v1996 = vshrl.u32 %v1995, 7
        %v1997 = vsub.s32 %v1994, %v1996
        %v1998 = vrot.slane %v1984, %v1997
        %v1999 = vcombine.high %v1983, 0.0
        %v2001 = vunpack.c.l.s4 1934713408
        %v2002 = vunpack.c.0.s8 %v2001
        %v2003 = vlaneseq
        %v2004 = vshrl.u32 %v2003, 7
        %v2005 = vsub.s32 %v2002, %v2004
        %v2006 = vrot.slane %v1983, %v2005
        %v2008 = vunpack.c.l.s4 1934713408
        %v2009 = vunpack.c.0.s8 %v2008
        %v2010 = vlaneseq
        %v2011 = vshrl.u32 %v2010, 7
        %v2012 = vsub.s32 %v2009, %v2011
        %v2013 = vrot.slane %v1999, %v2012
        %v2014 = vcombine.high %v1991, 0.0
        %v2015 = vcombine.high %v1998, 0.0
        %v2016 = vcombine.high %v2006, 0.0
        %v2017 = vcombine.high %v2013, 0.0
        %v2018 = vcombine.high %v1138, 0.0
        %v2020 = vunpack.c.l.s4 1983009808
        %v2021 = vunpack.c.0.s8 %v2020
        %v2022 = vlaneseq
        %v2023 = vshrl.u32 %v2022, 7
        %v2024 = vsub.s32 %v2021, %v2023
        %v2025 = vrot.slane %v1138, %v2024
        %v2027 = vunpack.c.l.s4 1983009808
        %v2028 = vunpack.c.0.s8 %v2027
        %v2029 = vlaneseq
        %v2030 = vshrl.u32 %v2029, 7
        %v2031 = vsub.s32 %v2028, %v2030
        %v2032 = vrot.slane %v2018, %v2031
        %v2033 = vcombine.high %v2025, 0.0
        %v2035 = vunpack.c.l.s4 1934713408
        %v2036 = vunpack.c.0.s8 %v2035
        %v2037 = vlaneseq
        %v2038 = vshrl.u32 %v2037, 7
        %v2039 = vsub.s32 %v2036, %v2038
        %v2040 = vrot.slane %v2025, %v2039
        %v2042 = vunpack.c.l.s4 1934713408
        %v2043 = vunpack.c.0.s8 %v2042
        %v2044 = vlaneseq
        %v2045 = vshrl.u32 %v2044, 7
        %v2046 = vsub.s32 %v2043, %v2045
        %v2047 = vrot.slane %v2033, %v2046
        %v2048 = vcombine.high %v2032, 0.0
        %v2050 = vunpack.c.l.s4 1934713408
        %v2051 = vunpack.c.0.s8 %v2050
        %v2052 = vlaneseq
        %v2053 = vshrl.u32 %v2052, 7
        %v2054 = vsub.s32 %v2051, %v2053
        %v2055 = vrot.slane %v2032, %v2054
        %v2057 = vunpack.c.l.s4 1934713408
        %v2058 = vunpack.c.0.s8 %v2057
        %v2059 = vlaneseq
        %v2060 = vshrl.u32 %v2059, 7
        %v2061 = vsub.s32 %v2058, %v2060
        %v2062 = vrot.slane %v2048, %v2061
        %v2063 = vcombine.high %v2040, 0.0
        %v2064 = vcombine.high %v2047, 0.0
        %v2065 = vcombine.high %v2055, 0.0
        %v2066 = vcombine.high %v2062, 0.0
        %v2067 = vcombine.high %v1139, 0.0
        %v2069 = vunpack.c.l.s4 1983009808
        %v2070 = vunpack.c.0.s8 %v2069
        %v2071 = vlaneseq
        %v2072 = vshrl.u32 %v2071, 7
        %v2073 = vsub.s32 %v2070, %v2072
        %v2074 = vrot.slane %v1139, %v2073
        %v2076 = vunpack.c.l.s4 1983009808
        %v2077 = vunpack.c.0.s8 %v2076
        %v2078 = vlaneseq
        %v2079 = vshrl.u32 %v2078, 7
        %v2080 = vsub.s32 %v2077, %v2079
        %v2081 = vrot.slane %v2067, %v2080
        %v2082 = vcombine.high %v2074, 0.0
        %v2084 = vunpack.c.l.s4 1934713408
        %v2085 = vunpack.c.0.s8 %v2084
        %v2086 = vlaneseq
        %v2087 = vshrl.u32 %v2086, 7
        %v2088 = vsub.s32 %v2085, %v2087
        %v2089 = vrot.slane %v2074, %v2088
        %v2091 = vunpack.c.l.s4 1934713408
        %v2092 = vunpack.c.0.s8 %v2091
        %v2093 = vlaneseq
        %v2094 = vshrl.u32 %v2093, 7
        %v2095 = vsub.s32 %v2092, %v2094
        %v2096 = vrot.slane %v2082, %v2095
        %v2097 = vcombine.high %v2081, 0.0
        %v2099 = vunpack.c.l.s4 1934713408
        %v2100 = vunpack.c.0.s8 %v2099
        %v2101 = vlaneseq
        %v2102 = vshrl.u32 %v2101, 7
        %v2103 = vsub.s32 %v2100, %v2102
        %v2104 = vrot.slane %v2081, %v2103
        %v2106 = vunpack.c.l.s4 1934713408
        %v2107 = vunpack.c.0.s8 %v2106
        %v2108 = vlaneseq
        %v2109 = vshrl.u32 %v2108, 7
        %v2110 = vsub.s32 %v2107, %v2109
        %v2111 = vrot.slane %v2097, %v2110
        %v2112 = vcombine.high %v2089, 0.0
        %v2113 = vcombine.high %v2096, 0.0
        %v2114 = vcombine.high %v2104, 0.0
        %v2115 = vcombine.high %v2111, 0.0
        %v2116 = vcombine.high %v1140, 0.0
        %v2118 = vunpack.c.l.s4 1983009808
        %v2119 = vunpack.c.0.s8 %v2118
        %v2120 = vlaneseq
        %v2121 = vshrl.u32 %v2120, 7
        %v2122 = vsub.s32 %v2119, %v2121
        %v2123 = vrot.slane %v1140, %v2122
        %v2125 = vunpack.c.l.s4 1983009808
        %v2126 = vunpack.c.0.s8 %v2125
        %v2127 = vlaneseq
        %v2128 = vshrl.u32 %v2127, 7
        %v2129 = vsub.s32 %v2126, %v2128
        %v2130 = vrot.slane %v2116, %v2129
        %v2131 = vcombine.high %v2123, 0.0
        %v2133 = vunpack.c.l.s4 1934713408
        %v2134 = vunpack.c.0.s8 %v2133
        %v2135 = vlaneseq
        %v2136 = vshrl.u32 %v2135, 7
        %v2137 = vsub.s32 %v2134, %v2136
        %v2138 = vrot.slane %v2123, %v2137
        %v2140 = vunpack.c.l.s4 1934713408
        %v2141 = vunpack.c.0.s8 %v2140
        %v2142 = vlaneseq
        %v2143 = vshrl.u32 %v2142, 7
        %v2144 = vsub.s32 %v2141, %v2143
        %v2145 = vrot.slane %v2131, %v2144
        %v2146 = vcombine.high %v2130, 0.0
        %v2148 = vunpack.c.l.s4 1934713408
        %v2149 = vunpack.c.0.s8 %v2148
        %v2150 = vlaneseq
        %v2151 = vshrl.u32 %v2150, 7
        %v2152 = vsub.s32 %v2149, %v2151
        %v2153 = vrot.slane %v2130, %v2152
        %v2155 = vunpack.c.l.s4 1934713408
        %v2156 = vunpack.c.0.s8 %v2155
        %v2157 = vlaneseq
        %v2158 = vshrl.u32 %v2157, 7
        %v2159 = vsub.s32 %v2156, %v2158
        %v2160 = vrot.slane %v2146, %v2159
        %v2161 = vcombine.high %v2138, 0.0
        %v2162 = vcombine.high %v2145, 0.0
        %v2163 = vcombine.high %v2153, 0.0
        %v2164 = vcombine.high %v2160, 0.0
        %v2165 = vcombine.high %v1141, 0.0
        %v2167 = vunpack.c.l.s4 1983009808
        %v2168 = vunpack.c.0.s8 %v2167
        %v2169 = vlaneseq
        %v2170 = vshrl.u32 %v2169, 7
        %v2171 = vsub.s32 %v2168, %v2170
        %v2172 = vrot.slane %v1141, %v2171
        %v2174 = vunpack.c.l.s4 1983009808
        %v2175 = vunpack.c.0.s8 %v2174
        %v2176 = vlaneseq
        %v2177 = vshrl.u32 %v2176, 7
        %v2178 = vsub.s32 %v2175, %v2177
        %v2179 = vrot.slane %v2165, %v2178
        %v2180 = vcombine.high %v2172, 0.0
        %v2182 = vunpack.c.l.s4 1934713408
        %v2183 = vunpack.c.0.s8 %v2182
        %v2184 = vlaneseq
        %v2185 = vshrl.u32 %v2184, 7
        %v2186 = vsub.s32 %v2183, %v2185
        %v2187 = vrot.slane %v2172, %v2186
        %v2189 = vunpack.c.l.s4 1934713408
        %v2190 = vunpack.c.0.s8 %v2189
        %v2191 = vlaneseq
        %v2192 = vshrl.u32 %v2191, 7
        %v2193 = vsub.s32 %v2190, %v2192
        %v2194 = vrot.slane %v2180, %v2193
        %v2195 = vcombine.high %v2179, 0.0
        %v2197 = vunpack.c.l.s4 1934713408
        %v2198 = vunpack.c.0.s8 %v2197
        %v2199 = vlaneseq
        %v2200 = vshrl.u32 %v2199, 7
        %v2201 = vsub.s32 %v2198, %v2200
        %v2202 = vrot.slane %v2179, %v2201
        %v2204 = vunpack.c.l.s4 1934713408
        %v2205 = vunpack.c.0.s8 %v2204
        %v2206 = vlaneseq
        %v2207 = vshrl.u32 %v2206, 7
        %v2208 = vsub.s32 %v2205, %v2207
        %v2209 = vrot.slane %v2195, %v2208
        %v2210 = vcombine.high %v2187, 0.0
        %v2211 = vcombine.high %v2194, 0.0
        %v2212 = vcombine.high %v2202, 0.0
        %v2213 = vcombine.high %v2209, 0.0
        %v2214 = vcombine.high %v1142, 0.0
        %v2216 = vunpack.c.l.s4 1983009808
        %v2217 = vunpack.c.0.s8 %v2216
        %v2218 = vlaneseq
        %v2219 = vshrl.u32 %v2218, 7
        %v2220 = vsub.s32 %v2217, %v2219
        %v2221 = vrot.slane %v1142, %v2220
        %v2223 = vunpack.c.l.s4 1983009808
        %v2224 = vunpack.c.0.s8 %v2223
        %v2225 = vlaneseq
        %v2226 = vshrl.u32 %v2225, 7
        %v2227 = vsub.s32 %v2224, %v2226
        %v2228 = vrot.slane %v2214, %v2227
        %v2229 = vcombine.high %v2221, 0.0
        %v2231 = vunpack.c.l.s4 1934713408
        %v2232 = vunpack.c.0.s8 %v2231
        %v2233 = vlaneseq
        %v2234 = vshrl.u32 %v2233, 7
        %v2235 = vsub.s32 %v2232, %v2234
        %v2236 = vrot.slane %v2221, %v2235
        %v2238 = vunpack.c.l.s4 1934713408
        %v2239 = vunpack.c.0.s8 %v2238
        %v2240 = vlaneseq
        %v2241 = vshrl.u32 %v2240, 7
        %v2242 = vsub.s32 %v2239, %v2241
        %v2243 = vrot.slane %v2229, %v2242
        %v2244 = vcombine.high %v2228, 0.0
        %v2246 = vunpack.c.l.s4 1934713408
        %v2247 = vunpack.c.0.s8 %v2246
        %v2248 = vlaneseq
        %v2249 = vshrl.u32 %v2248, 7
        %v2250 = vsub.s32 %v2247, %v2249
        %v2251 = vrot.slane %v2228, %v2250
        %v2253 = vunpack.c.l.s4 1934713408
        %v2254 = vunpack.c.0.s8 %v2253
        %v2255 = vlaneseq
        %v2256 = vshrl.u32 %v2255, 7
        %v2257 = vsub.s32 %v2254, %v2256
        %v2258 = vrot.slane %v2244, %v2257
        %v2259 = vcombine.high %v2236, 0.0
        %v2260 = vcombine.high %v2243, 0.0
        %v2261 = vcombine.high %v2251, 0.0
        %v2262 = vcombine.high %v2258, 0.0
        %v2263 = vcombine.high %v1143, 0.0
        %v2265 = vunpack.c.l.s4 1983009808
        %v2266 = vunpack.c.0.s8 %v2265
        %v2267 = vlaneseq
        %v2268 = vshrl.u32 %v2267, 7
        %v2269 = vsub.s32 %v2266, %v2268
        %v2270 = vrot.slane %v1143, %v2269
        %v2272 = vunpack.c.l.s4 1983009808
        %v2273 = vunpack.c.0.s8 %v2272
        %v2274 = vlaneseq
        %v2275 = vshrl.u32 %v2274, 7
        %v2276 = vsub.s32 %v2273, %v2275
        %v2277 = vrot.slane %v2263, %v2276
        %v2278 = vcombine.high %v2270, 0.0
        %v2280 = vunpack.c.l.s4 1934713408
        %v2281 = vunpack.c.0.s8 %v2280
        %v2282 = vlaneseq
        %v2283 = vshrl.u32 %v2282, 7
        %v2284 = vsub.s32 %v2281, %v2283
        %v2285 = vrot.slane %v2270, %v2284
        %v2287 = vunpack.c.l.s4 1934713408
        %v2288 = vunpack.c.0.s8 %v2287
        %v2289 = vlaneseq
        %v2290 = vshrl.u32 %v2289, 7
        %v2291 = vsub.s32 %v2288, %v2290
        %v2292 = vrot.slane %v2278, %v2291
        %v2293 = vcombine.high %v2277, 0.0
        %v2295 = vunpack.c.l.s4 1934713408
        %v2296 = vunpack.c.0.s8 %v2295
        %v2297 = vlaneseq
        %v2298 = vshrl.u32 %v2297, 7
        %v2299 = vsub.s32 %v2296, %v2298
        %v2300 = vrot.slane %v2277, %v2299
        %v2302 = vunpack.c.l.s4 1934713408
        %v2303 = vunpack.c.0.s8 %v2302
        %v2304 = vlaneseq
        %v2305 = vshrl.u32 %v2304, 7
        %v2306 = vsub.s32 %v2303, %v2305
        %v2307 = vrot.slane %v2293, %v2306
        %v2308 = vcombine.high %v2285, 0.0
        %v2309 = vcombine.high %v2292, 0.0
        %v2310 = vcombine.high %v2300, 0.0
        %v2311 = vcombine.high %v2307, 0.0
        %v2312 = vcombine.high %v1144, 0.0
        %v2314 = vunpack.c.l.s4 1983009808
        %v2315 = vunpack.c.0.s8 %v2314
        %v2316 = vlaneseq
        %v2317 = vshrl.u32 %v2316, 7
        %v2318 = vsub.s32 %v2315, %v2317
        %v2319 = vrot.slane %v1144, %v2318
        %v2321 = vunpack.c.l.s4 1983009808
        %v2322 = vunpack.c.0.s8 %v2321
        %v2323 = vlaneseq
        %v2324 = vshrl.u32 %v2323, 7
        %v2325 = vsub.s32 %v2322, %v2324
        %v2326 = vrot.slane %v2312, %v2325
        %v2327 = vcombine.high %v2319, 0.0
        %v2329 = vunpack.c.l.s4 1934713408
        %v2330 = vunpack.c.0.s8 %v2329
        %v2331 = vlaneseq
        %v2332 = vshrl.u32 %v2331, 7
        %v2333 = vsub.s32 %v2330, %v2332
        %v2334 = vrot.slane %v2319, %v2333
        %v2336 = vunpack.c.l.s4 1934713408
        %v2337 = vunpack.c.0.s8 %v2336
        %v2338 = vlaneseq
        %v2339 = vshrl.u32 %v2338, 7
        %v2340 = vsub.s32 %v2337, %v2339
        %v2341 = vrot.slane %v2327, %v2340
        %v2342 = vcombine.high %v2326, 0.0
        %v2344 = vunpack.c.l.s4 1934713408
        %v2345 = vunpack.c.0.s8 %v2344
        %v2346 = vlaneseq
        %v2347 = vshrl.u32 %v2346, 7
        %v2348 = vsub.s32 %v2345, %v2347
        %v2349 = vrot.slane %v2326, %v2348
        %v2351 = vunpack.c.l.s4 1934713408
        %v2352 = vunpack.c.0.s8 %v2351
        %v2353 = vlaneseq
        %v2354 = vshrl.u32 %v2353, 7
        %v2355 = vsub.s32 %v2352, %v2354
        %v2356 = vrot.slane %v2342, %v2355
        %v2357 = vcombine.high %v2334, 0.0
        %v2358 = vcombine.high %v2341, 0.0
        %v2359 = vcombine.high %v2349, 0.0
        %v2360 = vcombine.high %v2356, 0.0
        %v2361 = vcombine.high %v1145, 0.0
        %v2363 = vunpack.c.l.s4 1983009808
        %v2364 = vunpack.c.0.s8 %v2363
        %v2365 = vlaneseq
        %v2366 = vshrl.u32 %v2365, 7
        %v2367 = vsub.s32 %v2364, %v2366
        %v2368 = vrot.slane %v1145, %v2367
        %v2370 = vunpack.c.l.s4 1983009808
        %v2371 = vunpack.c.0.s8 %v2370
        %v2372 = vlaneseq
        %v2373 = vshrl.u32 %v2372, 7
        %v2374 = vsub.s32 %v2371, %v2373
        %v2375 = vrot.slane %v2361, %v2374
        %v2376 = vcombine.high %v2368, 0.0
        %v2378 = vunpack.c.l.s4 1934713408
        %v2379 = vunpack.c.0.s8 %v2378
        %v2380 = vlaneseq
        %v2381 = vshrl.u32 %v2380, 7
        %v2382 = vsub.s32 %v2379, %v2381
        %v2383 = vrot.slane %v2368, %v2382
        %v2385 = vunpack.c.l.s4 1934713408
        %v2386 = vunpack.c.0.s8 %v2385
        %v2387 = vlaneseq
        %v2388 = vshrl.u32 %v2387, 7
        %v2389 = vsub.s32 %v2386, %v2388
        %v2390 = vrot.slane %v2376, %v2389
        %v2391 = vcombine.high %v2375, 0.0
        %v2393 = vunpack.c.l.s4 1934713408
        %v2394 = vunpack.c.0.s8 %v2393
        %v2395 = vlaneseq
        %v2396 = vshrl.u32 %v2395, 7
        %v2397 = vsub.s32 %v2394, %v2396
        %v2398 = vrot.slane %v2375, %v2397
        %v2400 = vunpack.c.l.s4 1934713408
        %v2401 = vunpack.c.0.s8 %v2400
        %v2402 = vlaneseq
        %v2403 = vshrl.u32 %v2402, 7
        %v2404 = vsub.s32 %v2401, %v2403
        %v2405 = vrot.slane %v2391, %v2404
        %v2406 = vcombine.high %v2383, 0.0
        %v2407 = vcombine.high %v2390, 0.0
        %v2408 = vcombine.high %v2398, 0.0
        %v2409 = vcombine.high %v2405, 0.0
        %v2410 = vcombine.high %v1146, 0.0
        %v2412 = vunpack.c.l.s4 1983009808
        %v2413 = vunpack.c.0.s8 %v2412
        %v2414 = vlaneseq
        %v2415 = vshrl.u32 %v2414, 7
        %v2416 = vsub.s32 %v2413, %v2415
        %v2417 = vrot.slane %v1146, %v2416
        %v2419 = vunpack.c.l.s4 1983009808
        %v2420 = vunpack.c.0.s8 %v2419
        %v2421 = vlaneseq
        %v2422 = vshrl.u32 %v2421, 7
        %v2423 = vsub.s32 %v2420, %v2422
        %v2424 = vrot.slane %v2410, %v2423
        %v2425 = vcombine.high %v2417, 0.0
        %v2427 = vunpack.c.l.s4 1934713408
        %v2428 = vunpack.c.0.s8 %v2427
        %v2429 = vlaneseq
        %v2430 = vshrl.u32 %v2429, 7
        %v2431 = vsub.s32 %v2428, %v2430
        %v2432 = vrot.slane %v2417, %v2431
        %v2434 = vunpack.c.l.s4 1934713408
        %v2435 = vunpack.c.0.s8 %v2434
        %v2436 = vlaneseq
        %v2437 = vshrl.u32 %v2436, 7
        %v2438 = vsub.s32 %v2435, %v2437
        %v2439 = vrot.slane %v2425, %v2438
        %v2440 = vcombine.high %v2424, 0.0
        %v2442 = vunpack.c.l.s4 1934713408
        %v2443 = vunpack.c.0.s8 %v2442
        %v2444 = vlaneseq
        %v2445 = vshrl.u32 %v2444, 7
        %v2446 = vsub.s32 %v2443, %v2445
        %v2447 = vrot.slane %v2424, %v2446
        %v2449 = vunpack.c.l.s4 1934713408
        %v2450 = vunpack.c.0.s8 %v2449
        %v2451 = vlaneseq
        %v2452 = vshrl.u32 %v2451, 7
        %v2453 = vsub.s32 %v2450, %v2452
        %v2454 = vrot.slane %v2440, %v2453
        %v2455 = vcombine.high %v2432, 0.0
        %v2456 = vcombine.high %v2439, 0.0
        %v2457 = vcombine.high %v2447, 0.0
        %v2458 = vcombine.high %v2454, 0.0
        %v2459 = vcombine.high %v1147, 0.0
        %v2461 = vunpack.c.l.s4 1983009808
        %v2462 = vunpack.c.0.s8 %v2461
        %v2463 = vlaneseq
        %v2464 = vshrl.u32 %v2463, 7
        %v2465 = vsub.s32 %v2462, %v2464
        %v2466 = vrot.slane %v1147, %v2465
        %v2468 = vunpack.c.l.s4 1983009808
        %v2469 = vunpack.c.0.s8 %v2468
        %v2470 = vlaneseq
        %v2471 = vshrl.u32 %v2470, 7
        %v2472 = vsub.s32 %v2469, %v2471
        %v2473 = vrot.slane %v2459, %v2472
        %v2474 = vcombine.high %v2466, 0.0
        %v2476 = vunpack.c.l.s4 1934713408
        %v2477 = vunpack.c.0.s8 %v2476
        %v2478 = vlaneseq
        %v2479 = vshrl.u32 %v2478, 7
        %v2480 = vsub.s32 %v2477, %v2479
        %v2481 = vrot.slane %v2466, %v2480
        %v2483 = vunpack.c.l.s4 1934713408
        %v2484 = vunpack.c.0.s8 %v2483
        %v2485 = vlaneseq
        %v2486 = vshrl.u32 %v2485, 7
        %v2487 = vsub.s32 %v2484, %v2486
        %v2488 = vrot.slane %v2474, %v2487
        %v2489 = vcombine.high %v2473, 0.0
        %v2491 = vunpack.c.l.s4 1934713408
        %v2492 = vunpack.c.0.s8 %v2491
        %v2493 = vlaneseq
        %v2494 = vshrl.u32 %v2493, 7
        %v2495 = vsub.s32 %v2492, %v2494
        %v2496 = vrot.slane %v2473, %v2495
        %v2498 = vunpack.c.l.s4 1934713408
        %v2499 = vunpack.c.0.s8 %v2498
        %v2500 = vlaneseq
        %v2501 = vshrl.u32 %v2500, 7
        %v2502 = vsub.s32 %v2499, %v2501
        %v2503 = vrot.slane %v2489, %v2502
        %v2504 = vcombine.high %v2481, 0.0
        %v2505 = vcombine.high %v2488, 0.0
        %v2506 = vcombine.high %v2496, 0.0
        %v2507 = vcombine.high %v2503, 0.0
        %v2508 = vcombine.high %v1148, 0.0
        %v2510 = vunpack.c.l.s4 1983009808
        %v2511 = vunpack.c.0.s8 %v2510
        %v2512 = vlaneseq
        %v2513 = vshrl.u32 %v2512, 7
        %v2514 = vsub.s32 %v2511, %v2513
        %v2515 = vrot.slane %v1148, %v2514
        %v2517 = vunpack.c.l.s4 1983009808
        %v2518 = vunpack.c.0.s8 %v2517
        %v2519 = vlaneseq
        %v2520 = vshrl.u32 %v2519, 7
        %v2521 = vsub.s32 %v2518, %v2520
        %v2522 = vrot.slane %v2508, %v2521
        %v2523 = vcombine.high %v2515, 0.0
        %v2525 = vunpack.c.l.s4 1934713408
        %v2526 = vunpack.c.0.s8 %v2525
        %v2527 = vlaneseq
        %v2528 = vshrl.u32 %v2527, 7
        %v2529 = vsub.s32 %v2526, %v2528
        %v2530 = vrot.slane %v2515, %v2529
        %v2532 = vunpack.c.l.s4 1934713408
        %v2533 = vunpack.c.0.s8 %v2532
        %v2534 = vlaneseq
        %v2535 = vshrl.u32 %v2534, 7
        %v2536 = vsub.s32 %v2533, %v2535
        %v2537 = vrot.slane %v2523, %v2536
        %v2538 = vcombine.high %v2522, 0.0
        %v2540 = vunpack.c.l.s4 1934713408
        %v2541 = vunpack.c.0.s8 %v2540
        %v2542 = vlaneseq
        %v2543 = vshrl.u32 %v2542, 7
        %v2544 = vsub.s32 %v2541, %v2543
        %v2545 = vrot.slane %v2522, %v2544
        %v2547 = vunpack.c.l.s4 1934713408
        %v2548 = vunpack.c.0.s8 %v2547
        %v2549 = vlaneseq
        %v2550 = vshrl.u32 %v2549, 7
        %v2551 = vsub.s32 %v2548, %v2550
        %v2552 = vrot.slane %v2538, %v2551
        %v2553 = vcombine.high %v2530, 0.0
        %v2554 = vcombine.high %v2537, 0.0
        %v2555 = vcombine.high %v2545, 0.0
        %v2556 = vcombine.high %v2552, 0.0
        %v2557 = vcombine.high %v1149, 0.0
        %v2559 = vunpack.c.l.s4 1983009808
        %v2560 = vunpack.c.0.s8 %v2559
        %v2561 = vlaneseq
        %v2562 = vshrl.u32 %v2561, 7
        %v2563 = vsub.s32 %v2560, %v2562
        %v2564 = vrot.slane %v1149, %v2563
        %v2566 = vunpack.c.l.s4 1983009808
        %v2567 = vunpack.c.0.s8 %v2566
        %v2568 = vlaneseq
        %v2569 = vshrl.u32 %v2568, 7
        %v2570 = vsub.s32 %v2567, %v2569
        %v2571 = vrot.slane %v2557, %v2570
        %v2572 = vcombine.high %v2564, 0.0
        %v2574 = vunpack.c.l.s4 1934713408
        %v2575 = vunpack.c.0.s8 %v2574
        %v2576 = vlaneseq
        %v2577 = vshrl.u32 %v2576, 7
        %v2578 = vsub.s32 %v2575, %v2577
        %v2579 = vrot.slane %v2564, %v2578
        %v2581 = vunpack.c.l.s4 1934713408
        %v2582 = vunpack.c.0.s8 %v2581
        %v2583 = vlaneseq
        %v2584 = vshrl.u32 %v2583, 7
        %v2585 = vsub.s32 %v2582, %v2584
        %v2586 = vrot.slane %v2572, %v2585
        %v2587 = vcombine.high %v2571, 0.0
        %v2589 = vunpack.c.l.s4 1934713408
        %v2590 = vunpack.c.0.s8 %v2589
        %v2591 = vlaneseq
        %v2592 = vshrl.u32 %v2591, 7
        %v2593 = vsub.s32 %v2590, %v2592
        %v2594 = vrot.slane %v2571, %v2593
        %v2596 = vunpack.c.l.s4 1934713408
        %v2597 = vunpack.c.0.s8 %v2596
        %v2598 = vlaneseq
        %v2599 = vshrl.u32 %v2598, 7
        %v2600 = vsub.s32 %v2597, %v2599
        %v2601 = vrot.slane %v2587, %v2600
        %v2602 = vcombine.high %v2579, 0.0
        %v2603 = vcombine.high %v2586, 0.0
        %v2604 = vcombine.high %v2594, 0.0
        %v2605 = vcombine.high %v2601, 0.0
        %v2606 = vcombine.high %v1150, 0.0
        %v2608 = vunpack.c.l.s4 1983009808
        %v2609 = vunpack.c.0.s8 %v2608
        %v2610 = vlaneseq
        %v2611 = vshrl.u32 %v2610, 7
        %v2612 = vsub.s32 %v2609, %v2611
        %v2613 = vrot.slane %v1150, %v2612
        %v2615 = vunpack.c.l.s4 1983009808
        %v2616 = vunpack.c.0.s8 %v2615
        %v2617 = vlaneseq
        %v2618 = vshrl.u32 %v2617, 7
        %v2619 = vsub.s32 %v2616, %v2618
        %v2620 = vrot.slane %v2606, %v2619
        %v2621 = vcombine.high %v2613, 0.0
        %v2623 = vunpack.c.l.s4 1934713408
        %v2624 = vunpack.c.0.s8 %v2623
        %v2625 = vlaneseq
        %v2626 = vshrl.u32 %v2625, 7
        %v2627 = vsub.s32 %v2624, %v2626
        %v2628 = vrot.slane %v2613, %v2627
        %v2630 = vunpack.c.l.s4 1934713408
        %v2631 = vunpack.c.0.s8 %v2630
        %v2632 = vlaneseq
        %v2633 = vshrl.u32 %v2632, 7
        %v2634 = vsub.s32 %v2631, %v2633
        %v2635 = vrot.slane %v2621, %v2634
        %v2636 = vcombine.high %v2620, 0.0
        %v2638 = vunpack.c.l.s4 1934713408
        %v2639 = vunpack.c.0.s8 %v2638
        %v2640 = vlaneseq
        %v2641 = vshrl.u32 %v2640, 7
        %v2642 = vsub.s32 %v2639, %v2641
        %v2643 = vrot.slane %v2620, %v2642
        %v2645 = vunpack.c.l.s4 1934713408
        %v2646 = vunpack.c.0.s8 %v2645
        %v2647 = vlaneseq
        %v2648 = vshrl.u32 %v2647, 7
        %v2649 = vsub.s32 %v2646, %v2648
        %v2650 = vrot.slane %v2636, %v2649
        %v2651 = vcombine.high %v2628, 0.0
        %v2652 = vcombine.high %v2635, 0.0
        %v2653 = vcombine.high %v2643, 0.0
        %v2654 = vcombine.high %v2650, 0.0
        %v2655 = vcombine.high %v1151, 0.0
        %v2657 = vunpack.c.l.s4 1983009808
        %v2658 = vunpack.c.0.s8 %v2657
        %v2659 = vlaneseq
        %v2660 = vshrl.u32 %v2659, 7
        %v2661 = vsub.s32 %v2658, %v2660
        %v2662 = vrot.slane %v1151, %v2661
        %v2664 = vunpack.c.l.s4 1983009808
        %v2665 = vunpack.c.0.s8 %v2664
        %v2666 = vlaneseq
        %v2667 = vshrl.u32 %v2666, 7
        %v2668 = vsub.s32 %v2665, %v2667
        %v2669 = vrot.slane %v2655, %v2668
        %v2670 = vcombine.high %v2662, 0.0
        %v2672 = vunpack.c.l.s4 1934713408
        %v2673 = vunpack.c.0.s8 %v2672
        %v2674 = vlaneseq
        %v2675 = vshrl.u32 %v2674, 7
        %v2676 = vsub.s32 %v2673, %v2675
        %v2677 = vrot.slane %v2662, %v2676
        %v2679 = vunpack.c.l.s4 1934713408
        %v2680 = vunpack.c.0.s8 %v2679
        %v2681 = vlaneseq
        %v2682 = vshrl.u32 %v2681, 7
        %v2683 = vsub.s32 %v2680, %v2682
        %v2684 = vrot.slane %v2670, %v2683
        %v2685 = vcombine.high %v2669, 0.0
        %v2687 = vunpack.c.l.s4 1934713408
        %v2688 = vunpack.c.0.s8 %v2687
        %v2689 = vlaneseq
        %v2690 = vshrl.u32 %v2689, 7
        %v2691 = vsub.s32 %v2688, %v2690
        %v2692 = vrot.slane %v2669, %v2691
        %v2694 = vunpack.c.l.s4 1934713408
        %v2695 = vunpack.c.0.s8 %v2694
        %v2696 = vlaneseq
        %v2697 = vshrl.u32 %v2696, 7
        %v2698 = vsub.s32 %v2695, %v2697
        %v2699 = vrot.slane %v2685, %v2698
        %v2700 = vcombine.high %v2677, 0.0
        %v2701 = vcombine.high %v2684, 0.0
        %v2702 = vcombine.high %v2692, 0.0
        %v2703 = vcombine.high %v2699, 0.0
        %v2704 = vcombine.high %v1152, 0.0
        %v2706 = vunpack.c.l.s4 1983009808
        %v2707 = vunpack.c.0.s8 %v2706
        %v2708 = vlaneseq
        %v2709 = vshrl.u32 %v2708, 7
        %v2710 = vsub.s32 %v2707, %v2709
        %v2711 = vrot.slane %v1152, %v2710
        %v2713 = vunpack.c.l.s4 1983009808
        %v2714 = vunpack.c.0.s8 %v2713
        %v2715 = vlaneseq
        %v2716 = vshrl.u32 %v2715, 7
        %v2717 = vsub.s32 %v2714, %v2716
        %v2718 = vrot.slane %v2704, %v2717
        %v2719 = vcombine.high %v2711, 0.0
        %v2721 = vunpack.c.l.s4 1934713408
        %v2722 = vunpack.c.0.s8 %v2721
        %v2723 = vlaneseq
        %v2724 = vshrl.u32 %v2723, 7
        %v2725 = vsub.s32 %v2722, %v2724
        %v2726 = vrot.slane %v2711, %v2725
        %v2728 = vunpack.c.l.s4 1934713408
        %v2729 = vunpack.c.0.s8 %v2728
        %v2730 = vlaneseq
        %v2731 = vshrl.u32 %v2730, 7
        %v2732 = vsub.s32 %v2729, %v2731
        %v2733 = vrot.slane %v2719, %v2732
        %v2734 = vcombine.high %v2718, 0.0
        %v2736 = vunpack.c.l.s4 1934713408
        %v2737 = vunpack.c.0.s8 %v2736
        %v2738 = vlaneseq
        %v2739 = vshrl.u32 %v2738, 7
        %v2740 = vsub.s32 %v2737, %v2739
        %v2741 = vrot.slane %v2718, %v2740
        %v2743 = vunpack.c.l.s4 1934713408
        %v2744 = vunpack.c.0.s8 %v2743
        %v2745 = vlaneseq
        %v2746 = vshrl.u32 %v2745, 7
        %v2747 = vsub.s32 %v2744, %v2746
        %v2748 = vrot.slane %v2734, %v2747
        %v2749 = vcombine.high %v2726, 0.0
        %v2750 = vcombine.high %v2733, 0.0
        %v2751 = vcombine.high %v2741, 0.0
        %v2752 = vcombine.high %v2748, 0.0
        %v2753 = vcombine.high %v1153, 0.0
        %v2755 = vunpack.c.l.s4 1983009808
        %v2756 = vunpack.c.0.s8 %v2755
        %v2757 = vlaneseq
        %v2758 = vshrl.u32 %v2757, 7
        %v2759 = vsub.s32 %v2756, %v2758
        %v2760 = vrot.slane %v1153, %v2759
        %v2762 = vunpack.c.l.s4 1983009808
        %v2763 = vunpack.c.0.s8 %v2762
        %v2764 = vlaneseq
        %v2765 = vshrl.u32 %v2764, 7
        %v2766 = vsub.s32 %v2763, %v2765
        %v2767 = vrot.slane %v2753, %v2766
        %v2768 = vcombine.high %v2760, 0.0
        %v2770 = vunpack.c.l.s4 1934713408
        %v2771 = vunpack.c.0.s8 %v2770
        %v2772 = vlaneseq
        %v2773 = vshrl.u32 %v2772, 7
        %v2774 = vsub.s32 %v2771, %v2773
        %v2775 = vrot.slane %v2760, %v2774
        %v2777 = vunpack.c.l.s4 1934713408
        %v2778 = vunpack.c.0.s8 %v2777
        %v2779 = vlaneseq
        %v2780 = vshrl.u32 %v2779, 7
        %v2781 = vsub.s32 %v2778, %v2780
        %v2782 = vrot.slane %v2768, %v2781
        %v2783 = vcombine.high %v2767, 0.0
        %v2785 = vunpack.c.l.s4 1934713408
        %v2786 = vunpack.c.0.s8 %v2785
        %v2787 = vlaneseq
        %v2788 = vshrl.u32 %v2787, 7
        %v2789 = vsub.s32 %v2786, %v2788
        %v2790 = vrot.slane %v2767, %v2789
        %v2792 = vunpack.c.l.s4 1934713408
        %v2793 = vunpack.c.0.s8 %v2792
        %v2794 = vlaneseq
        %v2795 = vshrl.u32 %v2794, 7
        %v2796 = vsub.s32 %v2793, %v2795
        %v2797 = vrot.slane %v2783, %v2796
        %v2798 = vcombine.high %v2775, 0.0
        %v2799 = vcombine.high %v2782, 0.0
        %v2800 = vcombine.high %v2790, 0.0
        %v2801 = vcombine.high %v2797, 0.0
        %v2802 = vcombine.high %v1154, 0.0
        %v2804 = vunpack.c.l.s4 1983009808
        %v2805 = vunpack.c.0.s8 %v2804
        %v2806 = vlaneseq
        %v2807 = vshrl.u32 %v2806, 7
        %v2808 = vsub.s32 %v2805, %v2807
        %v2809 = vrot.slane %v1154, %v2808
        %v2811 = vunpack.c.l.s4 1983009808
        %v2812 = vunpack.c.0.s8 %v2811
        %v2813 = vlaneseq
        %v2814 = vshrl.u32 %v2813, 7
        %v2815 = vsub.s32 %v2812, %v2814
        %v2816 = vrot.slane %v2802, %v2815
        %v2817 = vcombine.high %v2809, 0.0
        %v2819 = vunpack.c.l.s4 1934713408
        %v2820 = vunpack.c.0.s8 %v2819
        %v2821 = vlaneseq
        %v2822 = vshrl.u32 %v2821, 7
        %v2823 = vsub.s32 %v2820, %v2822
        %v2824 = vrot.slane %v2809, %v2823
        %v2826 = vunpack.c.l.s4 1934713408
        %v2827 = vunpack.c.0.s8 %v2826
        %v2828 = vlaneseq
        %v2829 = vshrl.u32 %v2828, 7
        %v2830 = vsub.s32 %v2827, %v2829
        %v2831 = vrot.slane %v2817, %v2830
        %v2832 = vcombine.high %v2816, 0.0
        %v2834 = vunpack.c.l.s4 1934713408
        %v2835 = vunpack.c.0.s8 %v2834
        %v2836 = vlaneseq
        %v2837 = vshrl.u32 %v2836, 7
        %v2838 = vsub.s32 %v2835, %v2837
        %v2839 = vrot.slane %v2816, %v2838
        %v2841 = vunpack.c.l.s4 1934713408
        %v2842 = vunpack.c.0.s8 %v2841
        %v2843 = vlaneseq
        %v2844 = vshrl.u32 %v2843, 7
        %v2845 = vsub.s32 %v2842, %v2844
        %v2846 = vrot.slane %v2832, %v2845
        %v2847 = vcombine.high %v2824, 0.0
        %v2848 = vcombine.high %v2831, 0.0
        %v2849 = vcombine.high %v2839, 0.0
        %v2850 = vcombine.high %v2846, 0.0
        %v2851 = vcombine.high %v1155, 0.0
        %v2853 = vunpack.c.l.s4 1983009808
        %v2854 = vunpack.c.0.s8 %v2853
        %v2855 = vlaneseq
        %v2856 = vshrl.u32 %v2855, 7
        %v2857 = vsub.s32 %v2854, %v2856
        %v2858 = vrot.slane %v1155, %v2857
        %v2860 = vunpack.c.l.s4 1983009808
        %v2861 = vunpack.c.0.s8 %v2860
        %v2862 = vlaneseq
        %v2863 = vshrl.u32 %v2862, 7
        %v2864 = vsub.s32 %v2861, %v2863
        %v2865 = vrot.slane %v2851, %v2864
        %v2866 = vcombine.high %v2858, 0.0
        %v2868 = vunpack.c.l.s4 1934713408
        %v2869 = vunpack.c.0.s8 %v2868
        %v2870 = vlaneseq
        %v2871 = vshrl.u32 %v2870, 7
        %v2872 = vsub.s32 %v2869, %v2871
        %v2873 = vrot.slane %v2858, %v2872
        %v2875 = vunpack.c.l.s4 1934713408
        %v2876 = vunpack.c.0.s8 %v2875
        %v2877 = vlaneseq
        %v2878 = vshrl.u32 %v2877, 7
        %v2879 = vsub.s32 %v2876, %v2878
        %v2880 = vrot.slane %v2866, %v2879
        %v2881 = vcombine.high %v2865, 0.0
        %v2883 = vunpack.c.l.s4 1934713408
        %v2884 = vunpack.c.0.s8 %v2883
        %v2885 = vlaneseq
        %v2886 = vshrl.u32 %v2885, 7
        %v2887 = vsub.s32 %v2884, %v2886
        %v2888 = vrot.slane %v2865, %v2887
        %v2890 = vunpack.c.l.s4 1934713408
        %v2891 = vunpack.c.0.s8 %v2890
        %v2892 = vlaneseq
        %v2893 = vshrl.u32 %v2892, 7
        %v2894 = vsub.s32 %v2891, %v2893
        %v2895 = vrot.slane %v2881, %v2894
        %v2896 = vcombine.high %v2873, 0.0
        %v2897 = vcombine.high %v2880, 0.0
        %v2898 = vcombine.high %v2888, 0.0
        %v2899 = vcombine.high %v2895, 0.0
        %v2900 = vcombine.high %v1156, 0.0
        %v2902 = vunpack.c.l.s4 1983009808
        %v2903 = vunpack.c.0.s8 %v2902
        %v2904 = vlaneseq
        %v2905 = vshrl.u32 %v2904, 7
        %v2906 = vsub.s32 %v2903, %v2905
        %v2907 = vrot.slane %v1156, %v2906
        %v2909 = vunpack.c.l.s4 1983009808
        %v2910 = vunpack.c.0.s8 %v2909
        %v2911 = vlaneseq
        %v2912 = vshrl.u32 %v2911, 7
        %v2913 = vsub.s32 %v2910, %v2912
        %v2914 = vrot.slane %v2900, %v2913
        %v2915 = vcombine.high %v2907, 0.0
        %v2917 = vunpack.c.l.s4 1934713408
        %v2918 = vunpack.c.0.s8 %v2917
        %v2919 = vlaneseq
        %v2920 = vshrl.u32 %v2919, 7
        %v2921 = vsub.s32 %v2918, %v2920
        %v2922 = vrot.slane %v2907, %v2921
        %v2924 = vunpack.c.l.s4 1934713408
        %v2925 = vunpack.c.0.s8 %v2924
        %v2926 = vlaneseq
        %v2927 = vshrl.u32 %v2926, 7
        %v2928 = vsub.s32 %v2925, %v2927
        %v2929 = vrot.slane %v2915, %v2928
        %v2930 = vcombine.high %v2914, 0.0
        %v2932 = vunpack.c.l.s4 1934713408
        %v2933 = vunpack.c.0.s8 %v2932
        %v2934 = vlaneseq
        %v2935 = vshrl.u32 %v2934, 7
        %v2936 = vsub.s32 %v2933, %v2935
        %v2937 = vrot.slane %v2914, %v2936
        %v2939 = vunpack.c.l.s4 1934713408
        %v2940 = vunpack.c.0.s8 %v2939
        %v2941 = vlaneseq
        %v2942 = vshrl.u32 %v2941, 7
        %v2943 = vsub.s32 %v2940, %v2942
        %v2944 = vrot.slane %v2930, %v2943
        %v2945 = vcombine.high %v2922, 0.0
        %v2946 = vcombine.high %v2929, 0.0
        %v2947 = vcombine.high %v2937, 0.0
        %v2948 = vcombine.high %v2944, 0.0
        %v2949 = vcombine.high %v1157, 0.0
        %v2951 = vunpack.c.l.s4 1983009808
        %v2952 = vunpack.c.0.s8 %v2951
        %v2953 = vlaneseq
        %v2954 = vshrl.u32 %v2953, 7
        %v2955 = vsub.s32 %v2952, %v2954
        %v2956 = vrot.slane %v1157, %v2955
        %v2958 = vunpack.c.l.s4 1983009808
        %v2959 = vunpack.c.0.s8 %v2958
        %v2960 = vlaneseq
        %v2961 = vshrl.u32 %v2960, 7
        %v2962 = vsub.s32 %v2959, %v2961
        %v2963 = vrot.slane %v2949, %v2962
        %v2964 = vcombine.high %v2956, 0.0
        %v2966 = vunpack.c.l.s4 1934713408
        %v2967 = vunpack.c.0.s8 %v2966
        %v2968 = vlaneseq
        %v2969 = vshrl.u32 %v2968, 7
        %v2970 = vsub.s32 %v2967, %v2969
        %v2971 = vrot.slane %v2956, %v2970
        %v2973 = vunpack.c.l.s4 1934713408
        %v2974 = vunpack.c.0.s8 %v2973
        %v2975 = vlaneseq
        %v2976 = vshrl.u32 %v2975, 7
        %v2977 = vsub.s32 %v2974, %v2976
        %v2978 = vrot.slane %v2964, %v2977
        %v2979 = vcombine.high %v2963, 0.0
        %v2981 = vunpack.c.l.s4 1934713408
        %v2982 = vunpack.c.0.s8 %v2981
        %v2983 = vlaneseq
        %v2984 = vshrl.u32 %v2983, 7
        %v2985 = vsub.s32 %v2982, %v2984
        %v2986 = vrot.slane %v2963, %v2985
        %v2988 = vunpack.c.l.s4 1934713408
        %v2989 = vunpack.c.0.s8 %v2988
        %v2990 = vlaneseq
        %v2991 = vshrl.u32 %v2990, 7
        %v2992 = vsub.s32 %v2989, %v2991
        %v2993 = vrot.slane %v2979, %v2992
        %v2994 = vcombine.high %v2971, 0.0
        %v2995 = vcombine.high %v2978, 0.0
        %v2996 = vcombine.high %v2986, 0.0
        %v2997 = vcombine.high %v2993, 0.0
        %v2998 = vcombine.high %v1158, 0.0
        %v3000 = vunpack.c.l.s4 1983009808
        %v3001 = vunpack.c.0.s8 %v3000
        %v3002 = vlaneseq
        %v3003 = vshrl.u32 %v3002, 7
        %v3004 = vsub.s32 %v3001, %v3003
        %v3005 = vrot.slane %v1158, %v3004
        %v3007 = vunpack.c.l.s4 1983009808
        %v3008 = vunpack.c.0.s8 %v3007
        %v3009 = vlaneseq
        %v3010 = vshrl.u32 %v3009, 7
        %v3011 = vsub.s32 %v3008, %v3010
        %v3012 = vrot.slane %v2998, %v3011
        %v3013 = vcombine.high %v3005, 0.0
        %v3015 = vunpack.c.l.s4 1934713408
        %v3016 = vunpack.c.0.s8 %v3015
        %v3017 = vlaneseq
        %v3018 = vshrl.u32 %v3017, 7
        %v3019 = vsub.s32 %v3016, %v3018
        %v3020 = vrot.slane %v3005, %v3019
        %v3022 = vunpack.c.l.s4 1934713408
        %v3023 = vunpack.c.0.s8 %v3022
        %v3024 = vlaneseq
        %v3025 = vshrl.u32 %v3024, 7
        %v3026 = vsub.s32 %v3023, %v3025
        %v3027 = vrot.slane %v3013, %v3026
        %v3028 = vcombine.high %v3012, 0.0
        %v3030 = vunpack.c.l.s4 1934713408
        %v3031 = vunpack.c.0.s8 %v3030
        %v3032 = vlaneseq
        %v3033 = vshrl.u32 %v3032, 7
        %v3034 = vsub.s32 %v3031, %v3033
        %v3035 = vrot.slane %v3012, %v3034
        %v3037 = vunpack.c.l.s4 1934713408
        %v3038 = vunpack.c.0.s8 %v3037
        %v3039 = vlaneseq
        %v3040 = vshrl.u32 %v3039, 7
        %v3041 = vsub.s32 %v3038, %v3040
        %v3042 = vrot.slane %v3028, %v3041
        %v3043 = vcombine.high %v3020, 0.0
        %v3044 = vcombine.high %v3027, 0.0
        %v3045 = vcombine.high %v3035, 0.0
        %v3046 = vcombine.high %v3042, 0.0
        %v3047 = vcombine.high %v1159, 0.0
        %v3049 = vunpack.c.l.s4 1983009808
        %v3050 = vunpack.c.0.s8 %v3049
        %v3051 = vlaneseq
        %v3052 = vshrl.u32 %v3051, 7
        %v3053 = vsub.s32 %v3050, %v3052
        %v3054 = vrot.slane %v1159, %v3053
        %v3056 = vunpack.c.l.s4 1983009808
        %v3057 = vunpack.c.0.s8 %v3056
        %v3058 = vlaneseq
        %v3059 = vshrl.u32 %v3058, 7
        %v3060 = vsub.s32 %v3057, %v3059
        %v3061 = vrot.slane %v3047, %v3060
        %v3062 = vcombine.high %v3054, 0.0
        %v3064 = vunpack.c.l.s4 1934713408
        %v3065 = vunpack.c.0.s8 %v3064
        %v3066 = vlaneseq
        %v3067 = vshrl.u32 %v3066, 7
        %v3068 = vsub.s32 %v3065, %v3067
        %v3069 = vrot.slane %v3054, %v3068
        %v3071 = vunpack.c.l.s4 1934713408
        %v3072 = vunpack.c.0.s8 %v3071
        %v3073 = vlaneseq
        %v3074 = vshrl.u32 %v3073, 7
        %v3075 = vsub.s32 %v3072, %v3074
        %v3076 = vrot.slane %v3062, %v3075
        %v3077 = vcombine.high %v3061, 0.0
        %v3079 = vunpack.c.l.s4 1934713408
        %v3080 = vunpack.c.0.s8 %v3079
        %v3081 = vlaneseq
        %v3082 = vshrl.u32 %v3081, 7
        %v3083 = vsub.s32 %v3080, %v3082
        %v3084 = vrot.slane %v3061, %v3083
        %v3086 = vunpack.c.l.s4 1934713408
        %v3087 = vunpack.c.0.s8 %v3086
        %v3088 = vlaneseq
        %v3089 = vshrl.u32 %v3088, 7
        %v3090 = vsub.s32 %v3087, %v3089
        %v3091 = vrot.slane %v3077, %v3090
        %v3092 = vcombine.high %v3069, 0.0
        %v3093 = vcombine.high %v3076, 0.0
        %v3094 = vcombine.high %v3084, 0.0
        %v3095 = vcombine.high %v3091, 0.0
        %v3096 = vcombine.high %v1160, 0.0
        %v3098 = vunpack.c.l.s4 1983009808
        %v3099 = vunpack.c.0.s8 %v3098
        %v3100 = vlaneseq
        %v3101 = vshrl.u32 %v3100, 7
        %v3102 = vsub.s32 %v3099, %v3101
        %v3103 = vrot.slane %v1160, %v3102
        %v3105 = vunpack.c.l.s4 1983009808
        %v3106 = vunpack.c.0.s8 %v3105
        %v3107 = vlaneseq
        %v3108 = vshrl.u32 %v3107, 7
        %v3109 = vsub.s32 %v3106, %v3108
        %v3110 = vrot.slane %v3096, %v3109
        %v3111 = vcombine.high %v3103, 0.0
        %v3113 = vunpack.c.l.s4 1934713408
        %v3114 = vunpack.c.0.s8 %v3113
        %v3115 = vlaneseq
        %v3116 = vshrl.u32 %v3115, 7
        %v3117 = vsub.s32 %v3114, %v3116
        %v3118 = vrot.slane %v3103, %v3117
        %v3120 = vunpack.c.l.s4 1934713408
        %v3121 = vunpack.c.0.s8 %v3120
        %v3122 = vlaneseq
        %v3123 = vshrl.u32 %v3122, 7
        %v3124 = vsub.s32 %v3121, %v3123
        %v3125 = vrot.slane %v3111, %v3124
        %v3126 = vcombine.high %v3110, 0.0
        %v3128 = vunpack.c.l.s4 1934713408
        %v3129 = vunpack.c.0.s8 %v3128
        %v3130 = vlaneseq
        %v3131 = vshrl.u32 %v3130, 7
        %v3132 = vsub.s32 %v3129, %v3131
        %v3133 = vrot.slane %v3110, %v3132
        %v3135 = vunpack.c.l.s4 1934713408
        %v3136 = vunpack.c.0.s8 %v3135
        %v3137 = vlaneseq
        %v3138 = vshrl.u32 %v3137, 7
        %v3139 = vsub.s32 %v3136, %v3138
        %v3140 = vrot.slane %v3126, %v3139
        %v3141 = vcombine.high %v3118, 0.0
        %v3142 = vcombine.high %v3125, 0.0
        %v3143 = vcombine.high %v3133, 0.0
        %v3144 = vcombine.high %v3140, 0.0
        %v3145 = vcombine.high %v1161, 0.0
        %v3147 = vunpack.c.l.s4 1983009808
        %v3148 = vunpack.c.0.s8 %v3147
        %v3149 = vlaneseq
        %v3150 = vshrl.u32 %v3149, 7
        %v3151 = vsub.s32 %v3148, %v3150
        %v3152 = vrot.slane %v1161, %v3151
        %v3154 = vunpack.c.l.s4 1983009808
        %v3155 = vunpack.c.0.s8 %v3154
        %v3156 = vlaneseq
        %v3157 = vshrl.u32 %v3156, 7
        %v3158 = vsub.s32 %v3155, %v3157
        %v3159 = vrot.slane %v3145, %v3158
        %v3160 = vcombine.high %v3152, 0.0
        %v3162 = vunpack.c.l.s4 1934713408
        %v3163 = vunpack.c.0.s8 %v3162
        %v3164 = vlaneseq
        %v3165 = vshrl.u32 %v3164, 7
        %v3166 = vsub.s32 %v3163, %v3165
        %v3167 = vrot.slane %v3152, %v3166
        %v3169 = vunpack.c.l.s4 1934713408
        %v3170 = vunpack.c.0.s8 %v3169
        %v3171 = vlaneseq
        %v3172 = vshrl.u32 %v3171, 7
        %v3173 = vsub.s32 %v3170, %v3172
        %v3174 = vrot.slane %v3160, %v3173
        %v3175 = vcombine.high %v3159, 0.0
        %v3177 = vunpack.c.l.s4 1934713408
        %v3178 = vunpack.c.0.s8 %v3177
        %v3179 = vlaneseq
        %v3180 = vshrl.u32 %v3179, 7
        %v3181 = vsub.s32 %v3178, %v3180
        %v3182 = vrot.slane %v3159, %v3181
        %v3184 = vunpack.c.l.s4 1934713408
        %v3185 = vunpack.c.0.s8 %v3184
        %v3186 = vlaneseq
        %v3187 = vshrl.u32 %v3186, 7
        %v3188 = vsub.s32 %v3185, %v3187
        %v3189 = vrot.slane %v3175, %v3188
        %v3190 = vcombine.high %v3167, 0.0
        %v3191 = vcombine.high %v3174, 0.0
        %v3192 = vcombine.high %v3182, 0.0
        %v3193 = vcombine.high %v3189, 0.0
        %v3194 = vcombine.high %v1162, 0.0
        %v3196 = vunpack.c.l.s4 1983009808
        %v3197 = vunpack.c.0.s8 %v3196
        %v3198 = vlaneseq
        %v3199 = vshrl.u32 %v3198, 7
        %v3200 = vsub.s32 %v3197, %v3199
        %v3201 = vrot.slane %v1162, %v3200
        %v3203 = vunpack.c.l.s4 1983009808
        %v3204 = vunpack.c.0.s8 %v3203
        %v3205 = vlaneseq
        %v3206 = vshrl.u32 %v3205, 7
        %v3207 = vsub.s32 %v3204, %v3206
        %v3208 = vrot.slane %v3194, %v3207
        %v3209 = vcombine.high %v3201, 0.0
        %v3211 = vunpack.c.l.s4 1934713408
        %v3212 = vunpack.c.0.s8 %v3211
        %v3213 = vlaneseq
        %v3214 = vshrl.u32 %v3213, 7
        %v3215 = vsub.s32 %v3212, %v3214
        %v3216 = vrot.slane %v3201, %v3215
        %v3218 = vunpack.c.l.s4 1934713408
        %v3219 = vunpack.c.0.s8 %v3218
        %v3220 = vlaneseq
        %v3221 = vshrl.u32 %v3220, 7
        %v3222 = vsub.s32 %v3219, %v3221
        %v3223 = vrot.slane %v3209, %v3222
        %v3224 = vcombine.high %v3208, 0.0
        %v3226 = vunpack.c.l.s4 1934713408
        %v3227 = vunpack.c.0.s8 %v3226
        %v3228 = vlaneseq
        %v3229 = vshrl.u32 %v3228, 7
        %v3230 = vsub.s32 %v3227, %v3229
        %v3231 = vrot.slane %v3208, %v3230
        %v3233 = vunpack.c.l.s4 1934713408
        %v3234 = vunpack.c.0.s8 %v3233
        %v3235 = vlaneseq
        %v3236 = vshrl.u32 %v3235, 7
        %v3237 = vsub.s32 %v3234, %v3236
        %v3238 = vrot.slane %v3224, %v3237
        %v3239 = vcombine.high %v3216, 0.0
        %v3240 = vcombine.high %v3223, 0.0
        %v3241 = vcombine.high %v3231, 0.0
        %v3242 = vcombine.high %v3238, 0.0
        %v3243 = vcombine.high %v1163, 0.0
        %v3245 = vunpack.c.l.s4 1983009808
        %v3246 = vunpack.c.0.s8 %v3245
        %v3247 = vlaneseq
        %v3248 = vshrl.u32 %v3247, 7
        %v3249 = vsub.s32 %v3246, %v3248
        %v3250 = vrot.slane %v1163, %v3249
        %v3252 = vunpack.c.l.s4 1983009808
        %v3253 = vunpack.c.0.s8 %v3252
        %v3254 = vlaneseq
        %v3255 = vshrl.u32 %v3254, 7
        %v3256 = vsub.s32 %v3253, %v3255
        %v3257 = vrot.slane %v3243, %v3256
        %v3258 = vcombine.high %v3250, 0.0
        %v3260 = vunpack.c.l.s4 1934713408
        %v3261 = vunpack.c.0.s8 %v3260
        %v3262 = vlaneseq
        %v3263 = vshrl.u32 %v3262, 7
        %v3264 = vsub.s32 %v3261, %v3263
        %v3265 = vrot.slane %v3250, %v3264
        %v3267 = vunpack.c.l.s4 1934713408
        %v3268 = vunpack.c.0.s8 %v3267
        %v3269 = vlaneseq
        %v3270 = vshrl.u32 %v3269, 7
        %v3271 = vsub.s32 %v3268, %v3270
        %v3272 = vrot.slane %v3258, %v3271
        %v3273 = vcombine.high %v3257, 0.0
        %v3275 = vunpack.c.l.s4 1934713408
        %v3276 = vunpack.c.0.s8 %v3275
        %v3277 = vlaneseq
        %v3278 = vshrl.u32 %v3277, 7
        %v3279 = vsub.s32 %v3276, %v3278
        %v3280 = vrot.slane %v3257, %v3279
        %v3282 = vunpack.c.l.s4 1934713408
        %v3283 = vunpack.c.0.s8 %v3282
        %v3284 = vlaneseq
        %v3285 = vshrl.u32 %v3284, 7
        %v3286 = vsub.s32 %v3283, %v3285
        %v3287 = vrot.slane %v3273, %v3286
        %v3288 = vcombine.high %v3265, 0.0
        %v3289 = vcombine.high %v3272, 0.0
        %v3290 = vcombine.high %v3280, 0.0
        %v3291 = vcombine.high %v3287, 0.0
        %v3292 = vcombine.high %v1164, 0.0
        %v3294 = vunpack.c.l.s4 1983009808
        %v3295 = vunpack.c.0.s8 %v3294
        %v3296 = vlaneseq
        %v3297 = vshrl.u32 %v3296, 7
        %v3298 = vsub.s32 %v3295, %v3297
        %v3299 = vrot.slane %v1164, %v3298
        %v3301 = vunpack.c.l.s4 1983009808
        %v3302 = vunpack.c.0.s8 %v3301
        %v3303 = vlaneseq
        %v3304 = vshrl.u32 %v3303, 7
        %v3305 = vsub.s32 %v3302, %v3304
        %v3306 = vrot.slane %v3292, %v3305
        %v3307 = vcombine.high %v3299, 0.0
        %v3309 = vunpack.c.l.s4 1934713408
        %v3310 = vunpack.c.0.s8 %v3309
        %v3311 = vlaneseq
        %v3312 = vshrl.u32 %v3311, 7
        %v3313 = vsub.s32 %v3310, %v3312
        %v3314 = vrot.slane %v3299, %v3313
        %v3316 = vunpack.c.l.s4 1934713408
        %v3317 = vunpack.c.0.s8 %v3316
        %v3318 = vlaneseq
        %v3319 = vshrl.u32 %v3318, 7
        %v3320 = vsub.s32 %v3317, %v3319
        %v3321 = vrot.slane %v3307, %v3320
        %v3322 = vcombine.high %v3306, 0.0
        %v3324 = vunpack.c.l.s4 1934713408
        %v3325 = vunpack.c.0.s8 %v3324
        %v3326 = vlaneseq
        %v3327 = vshrl.u32 %v3326, 7
        %v3328 = vsub.s32 %v3325, %v3327
        %v3329 = vrot.slane %v3306, %v3328
        %v3331 = vunpack.c.l.s4 1934713408
        %v3332 = vunpack.c.0.s8 %v3331
        %v3333 = vlaneseq
        %v3334 = vshrl.u32 %v3333, 7
        %v3335 = vsub.s32 %v3332, %v3334
        %v3336 = vrot.slane %v3322, %v3335
        %v3337 = vcombine.high %v3314, 0.0
        %v3338 = vcombine.high %v3321, 0.0
        %v3339 = vcombine.high %v3329, 0.0
        %v3340 = vcombine.high %v3336, 0.0
        %v3341 = vcombine.high %v1165, 0.0
        %v3343 = vunpack.c.l.s4 1983009808
        %v3344 = vunpack.c.0.s8 %v3343
        %v3345 = vlaneseq
        %v3346 = vshrl.u32 %v3345, 7
        %v3347 = vsub.s32 %v3344, %v3346
        %v3348 = vrot.slane %v1165, %v3347
        %v3350 = vunpack.c.l.s4 1983009808
        %v3351 = vunpack.c.0.s8 %v3350
        %v3352 = vlaneseq
        %v3353 = vshrl.u32 %v3352, 7
        %v3354 = vsub.s32 %v3351, %v3353
        %v3355 = vrot.slane %v3341, %v3354
        %v3356 = vcombine.high %v3348, 0.0
        %v3358 = vunpack.c.l.s4 1934713408
        %v3359 = vunpack.c.0.s8 %v3358
        %v3360 = vlaneseq
        %v3361 = vshrl.u32 %v3360, 7
        %v3362 = vsub.s32 %v3359, %v3361
        %v3363 = vrot.slane %v3348, %v3362
        %v3365 = vunpack.c.l.s4 1934713408
        %v3366 = vunpack.c.0.s8 %v3365
        %v3367 = vlaneseq
        %v3368 = vshrl.u32 %v3367, 7
        %v3369 = vsub.s32 %v3366, %v3368
        %v3370 = vrot.slane %v3356, %v3369
        %v3371 = vcombine.high %v3355, 0.0
        %v3373 = vunpack.c.l.s4 1934713408
        %v3374 = vunpack.c.0.s8 %v3373
        %v3375 = vlaneseq
        %v3376 = vshrl.u32 %v3375, 7
        %v3377 = vsub.s32 %v3374, %v3376
        %v3378 = vrot.slane %v3355, %v3377
        %v3380 = vunpack.c.l.s4 1934713408
        %v3381 = vunpack.c.0.s8 %v3380
        %v3382 = vlaneseq
        %v3383 = vshrl.u32 %v3382, 7
        %v3384 = vsub.s32 %v3381, %v3383
        %v3385 = vrot.slane %v3371, %v3384
        %v3386 = vcombine.high %v3363, 0.0
        %v3387 = vcombine.high %v3370, 0.0
        %v3388 = vcombine.high %v3378, 0.0
        %v3389 = vcombine.high %v3385, 0.0
        %v3390 = vcombine.high %v1166, 0.0
        %v3392 = vunpack.c.l.s4 1983009808
        %v3393 = vunpack.c.0.s8 %v3392
        %v3394 = vlaneseq
        %v3395 = vshrl.u32 %v3394, 7
        %v3396 = vsub.s32 %v3393, %v3395
        %v3397 = vrot.slane %v1166, %v3396
        %v3399 = vunpack.c.l.s4 1983009808
        %v3400 = vunpack.c.0.s8 %v3399
        %v3401 = vlaneseq
        %v3402 = vshrl.u32 %v3401, 7
        %v3403 = vsub.s32 %v3400, %v3402
        %v3404 = vrot.slane %v3390, %v3403
        %v3405 = vcombine.high %v3397, 0.0
        %v3407 = vunpack.c.l.s4 1934713408
        %v3408 = vunpack.c.0.s8 %v3407
        %v3409 = vlaneseq
        %v3410 = vshrl.u32 %v3409, 7
        %v3411 = vsub.s32 %v3408, %v3410
        %v3412 = vrot.slane %v3397, %v3411
        %v3414 = vunpack.c.l.s4 1934713408
        %v3415 = vunpack.c.0.s8 %v3414
        %v3416 = vlaneseq
        %v3417 = vshrl.u32 %v3416, 7
        %v3418 = vsub.s32 %v3415, %v3417
        %v3419 = vrot.slane %v3405, %v3418
        %v3420 = vcombine.high %v3404, 0.0
        %v3422 = vunpack.c.l.s4 1934713408
        %v3423 = vunpack.c.0.s8 %v3422
        %v3424 = vlaneseq
        %v3425 = vshrl.u32 %v3424, 7
        %v3426 = vsub.s32 %v3423, %v3425
        %v3427 = vrot.slane %v3404, %v3426
        %v3429 = vunpack.c.l.s4 1934713408
        %v3430 = vunpack.c.0.s8 %v3429
        %v3431 = vlaneseq
        %v3432 = vshrl.u32 %v3431, 7
        %v3433 = vsub.s32 %v3430, %v3432
        %v3434 = vrot.slane %v3420, %v3433
        %v3435 = vcombine.high %v3412, 0.0
        %v3436 = vcombine.high %v3419, 0.0
        %v3437 = vcombine.high %v3427, 0.0
        %v3438 = vcombine.high %v3434, 0.0
        %v3439 = vcombine.high %v1167, 0.0
        %v3441 = vunpack.c.l.s4 1983009808
        %v3442 = vunpack.c.0.s8 %v3441
        %v3443 = vlaneseq
        %v3444 = vshrl.u32 %v3443, 7
        %v3445 = vsub.s32 %v3442, %v3444
        %v3446 = vrot.slane %v1167, %v3445
        %v3448 = vunpack.c.l.s4 1983009808
        %v3449 = vunpack.c.0.s8 %v3448
        %v3450 = vlaneseq
        %v3451 = vshrl.u32 %v3450, 7
        %v3452 = vsub.s32 %v3449, %v3451
        %v3453 = vrot.slane %v3439, %v3452
        %v3454 = vcombine.high %v3446, 0.0
        %v3456 = vunpack.c.l.s4 1934713408
        %v3457 = vunpack.c.0.s8 %v3456
        %v3458 = vlaneseq
        %v3459 = vshrl.u32 %v3458, 7
        %v3460 = vsub.s32 %v3457, %v3459
        %v3461 = vrot.slane %v3446, %v3460
        %v3463 = vunpack.c.l.s4 1934713408
        %v3464 = vunpack.c.0.s8 %v3463
        %v3465 = vlaneseq
        %v3466 = vshrl.u32 %v3465, 7
        %v3467 = vsub.s32 %v3464, %v3466
        %v3468 = vrot.slane %v3454, %v3467
        %v3469 = vcombine.high %v3453, 0.0
        %v3471 = vunpack.c.l.s4 1934713408
        %v3472 = vunpack.c.0.s8 %v3471
        %v3473 = vlaneseq
        %v3474 = vshrl.u32 %v3473, 7
        %v3475 = vsub.s32 %v3472, %v3474
        %v3476 = vrot.slane %v3453, %v3475
        %v3478 = vunpack.c.l.s4 1934713408
        %v3479 = vunpack.c.0.s8 %v3478
        %v3480 = vlaneseq
        %v3481 = vshrl.u32 %v3480, 7
        %v3482 = vsub.s32 %v3479, %v3481
        %v3483 = vrot.slane %v3469, %v3482
        %v3484 = vcombine.high %v3461, 0.0
        %v3485 = vcombine.high %v3468, 0.0
        %v3486 = vcombine.high %v3476, 0.0
        %v3487 = vcombine.high %v3483, 0.0
        %v3488 = vcombine.high %v1168, 0.0
        %v3490 = vunpack.c.l.s4 1983009808
        %v3491 = vunpack.c.0.s8 %v3490
        %v3492 = vlaneseq
        %v3493 = vshrl.u32 %v3492, 7
        %v3494 = vsub.s32 %v3491, %v3493
        %v3495 = vrot.slane %v1168, %v3494
        %v3497 = vunpack.c.l.s4 1983009808
        %v3498 = vunpack.c.0.s8 %v3497
        %v3499 = vlaneseq
        %v3500 = vshrl.u32 %v3499, 7
        %v3501 = vsub.s32 %v3498, %v3500
        %v3502 = vrot.slane %v3488, %v3501
        %v3503 = vcombine.high %v3495, 0.0
        %v3505 = vunpack.c.l.s4 1934713408
        %v3506 = vunpack.c.0.s8 %v3505
        %v3507 = vlaneseq
        %v3508 = vshrl.u32 %v3507, 7
        %v3509 = vsub.s32 %v3506, %v3508
        %v3510 = vrot.slane %v3495, %v3509
        %v3512 = vunpack.c.l.s4 1934713408
        %v3513 = vunpack.c.0.s8 %v3512
        %v3514 = vlaneseq
        %v3515 = vshrl.u32 %v3514, 7
        %v3516 = vsub.s32 %v3513, %v3515
        %v3517 = vrot.slane %v3503, %v3516
        %v3518 = vcombine.high %v3502, 0.0
        %v3520 = vunpack.c.l.s4 1934713408
        %v3521 = vunpack.c.0.s8 %v3520
        %v3522 = vlaneseq
        %v3523 = vshrl.u32 %v3522, 7
        %v3524 = vsub.s32 %v3521, %v3523
        %v3525 = vrot.slane %v3502, %v3524
        %v3527 = vunpack.c.l.s4 1934713408
        %v3528 = vunpack.c.0.s8 %v3527
        %v3529 = vlaneseq
        %v3530 = vshrl.u32 %v3529, 7
        %v3531 = vsub.s32 %v3528, %v3530
        %v3532 = vrot.slane %v3518, %v3531
        %v3533 = vcombine.high %v3510, 0.0
        %v3534 = vcombine.high %v3517, 0.0
        %v3535 = vcombine.high %v3525, 0.0
        %v3536 = vcombine.high %v3532, 0.0
        %v3537 = vcombine.high %v1169, 0.0
        %v3539 = vunpack.c.l.s4 1983009808
        %v3540 = vunpack.c.0.s8 %v3539
        %v3541 = vlaneseq
        %v3542 = vshrl.u32 %v3541, 7
        %v3543 = vsub.s32 %v3540, %v3542
        %v3544 = vrot.slane %v1169, %v3543
        %v3546 = vunpack.c.l.s4 1983009808
        %v3547 = vunpack.c.0.s8 %v3546
        %v3548 = vlaneseq
        %v3549 = vshrl.u32 %v3548, 7
        %v3550 = vsub.s32 %v3547, %v3549
        %v3551 = vrot.slane %v3537, %v3550
        %v3552 = vcombine.high %v3544, 0.0
        %v3554 = vunpack.c.l.s4 1934713408
        %v3555 = vunpack.c.0.s8 %v3554
        %v3556 = vlaneseq
        %v3557 = vshrl.u32 %v3556, 7
        %v3558 = vsub.s32 %v3555, %v3557
        %v3559 = vrot.slane %v3544, %v3558
        %v3561 = vunpack.c.l.s4 1934713408
        %v3562 = vunpack.c.0.s8 %v3561
        %v3563 = vlaneseq
        %v3564 = vshrl.u32 %v3563, 7
        %v3565 = vsub.s32 %v3562, %v3564
        %v3566 = vrot.slane %v3552, %v3565
        %v3567 = vcombine.high %v3551, 0.0
        %v3569 = vunpack.c.l.s4 1934713408
        %v3570 = vunpack.c.0.s8 %v3569
        %v3571 = vlaneseq
        %v3572 = vshrl.u32 %v3571, 7
        %v3573 = vsub.s32 %v3570, %v3572
        %v3574 = vrot.slane %v3551, %v3573
        %v3576 = vunpack.c.l.s4 1934713408
        %v3577 = vunpack.c.0.s8 %v3576
        %v3578 = vlaneseq
        %v3579 = vshrl.u32 %v3578, 7
        %v3580 = vsub.s32 %v3577, %v3579
        %v3581 = vrot.slane %v3567, %v3580
        %v3582 = vcombine.high %v3559, 0.0
        %v3583 = vcombine.high %v3566, 0.0
        %v3584 = vcombine.high %v3574, 0.0
        %v3585 = vcombine.high %v3581, 0.0
        %v3586 = vcombine.high %v1170, 0.0
        %v3588 = vunpack.c.l.s4 1983009808
        %v3589 = vunpack.c.0.s8 %v3588
        %v3590 = vlaneseq
        %v3591 = vshrl.u32 %v3590, 7
        %v3592 = vsub.s32 %v3589, %v3591
        %v3593 = vrot.slane %v1170, %v3592
        %v3595 = vunpack.c.l.s4 1983009808
        %v3596 = vunpack.c.0.s8 %v3595
        %v3597 = vlaneseq
        %v3598 = vshrl.u32 %v3597, 7
        %v3599 = vsub.s32 %v3596, %v3598
        %v3600 = vrot.slane %v3586, %v3599
        %v3601 = vcombine.high %v3593, 0.0
        %v3603 = vunpack.c.l.s4 1934713408
        %v3604 = vunpack.c.0.s8 %v3603
        %v3605 = vlaneseq
        %v3606 = vshrl.u32 %v3605, 7
        %v3607 = vsub.s32 %v3604, %v3606
        %v3608 = vrot.slane %v3593, %v3607
        %v3610 = vunpack.c.l.s4 1934713408
        %v3611 = vunpack.c.0.s8 %v3610
        %v3612 = vlaneseq
        %v3613 = vshrl.u32 %v3612, 7
        %v3614 = vsub.s32 %v3611, %v3613
        %v3615 = vrot.slane %v3601, %v3614
        %v3616 = vcombine.high %v3600, 0.0
        %v3618 = vunpack.c.l.s4 1934713408
        %v3619 = vunpack.c.0.s8 %v3618
        %v3620 = vlaneseq
        %v3621 = vshrl.u32 %v3620, 7
        %v3622 = vsub.s32 %v3619, %v3621
        %v3623 = vrot.slane %v3600, %v3622
        %v3625 = vunpack.c.l.s4 1934713408
        %v3626 = vunpack.c.0.s8 %v3625
        %v3627 = vlaneseq
        %v3628 = vshrl.u32 %v3627, 7
        %v3629 = vsub.s32 %v3626, %v3628
        %v3630 = vrot.slane %v3616, %v3629
        %v3631 = vcombine.high %v3608, 0.0
        %v3632 = vcombine.high %v3615, 0.0
        %v3633 = vcombine.high %v3623, 0.0
        %v3634 = vcombine.high %v3630, 0.0
        %v3635 = vcombine.high %v1171, 0.0
        %v3637 = vunpack.c.l.s4 1983009808
        %v3638 = vunpack.c.0.s8 %v3637
        %v3639 = vlaneseq
        %v3640 = vshrl.u32 %v3639, 7
        %v3641 = vsub.s32 %v3638, %v3640
        %v3642 = vrot.slane %v1171, %v3641
        %v3644 = vunpack.c.l.s4 1983009808
        %v3645 = vunpack.c.0.s8 %v3644
        %v3646 = vlaneseq
        %v3647 = vshrl.u32 %v3646, 7
        %v3648 = vsub.s32 %v3645, %v3647
        %v3649 = vrot.slane %v3635, %v3648
        %v3650 = vcombine.high %v3642, 0.0
        %v3652 = vunpack.c.l.s4 1934713408
        %v3653 = vunpack.c.0.s8 %v3652
        %v3654 = vlaneseq
        %v3655 = vshrl.u32 %v3654, 7
        %v3656 = vsub.s32 %v3653, %v3655
        %v3657 = vrot.slane %v3642, %v3656
        %v3659 = vunpack.c.l.s4 1934713408
        %v3660 = vunpack.c.0.s8 %v3659
        %v3661 = vlaneseq
        %v3662 = vshrl.u32 %v3661, 7
        %v3663 = vsub.s32 %v3660, %v3662
        %v3664 = vrot.slane %v3650, %v3663
        %v3665 = vcombine.high %v3649, 0.0
        %v3667 = vunpack.c.l.s4 1934713408
        %v3668 = vunpack.c.0.s8 %v3667
        %v3669 = vlaneseq
        %v3670 = vshrl.u32 %v3669, 7
        %v3671 = vsub.s32 %v3668, %v3670
        %v3672 = vrot.slane %v3649, %v3671
        %v3674 = vunpack.c.l.s4 1934713408
        %v3675 = vunpack.c.0.s8 %v3674
        %v3676 = vlaneseq
        %v3677 = vshrl.u32 %v3676, 7
        %v3678 = vsub.s32 %v3675, %v3677
        %v3679 = vrot.slane %v3665, %v3678
        %v3680 = vcombine.high %v3657, 0.0
        %v3681 = vcombine.high %v3664, 0.0
        %v3682 = vcombine.high %v3672, 0.0
        %v3683 = vcombine.high %v3679, 0.0
        %v3684 = vcombine.high %v1172, 0.0
        %v3686 = vunpack.c.l.s4 1983009808
        %v3687 = vunpack.c.0.s8 %v3686
        %v3688 = vlaneseq
        %v3689 = vshrl.u32 %v3688, 7
        %v3690 = vsub.s32 %v3687, %v3689
        %v3691 = vrot.slane %v1172, %v3690
        %v3693 = vunpack.c.l.s4 1983009808
        %v3694 = vunpack.c.0.s8 %v3693
        %v3695 = vlaneseq
        %v3696 = vshrl.u32 %v3695, 7
        %v3697 = vsub.s32 %v3694, %v3696
        %v3698 = vrot.slane %v3684, %v3697
        %v3699 = vcombine.high %v3691, 0.0
        %v3701 = vunpack.c.l.s4 1934713408
        %v3702 = vunpack.c.0.s8 %v3701
        %v3703 = vlaneseq
        %v3704 = vshrl.u32 %v3703, 7
        %v3705 = vsub.s32 %v3702, %v3704
        %v3706 = vrot.slane %v3691, %v3705
        %v3708 = vunpack.c.l.s4 1934713408
        %v3709 = vunpack.c.0.s8 %v3708
        %v3710 = vlaneseq
        %v3711 = vshrl.u32 %v3710, 7
        %v3712 = vsub.s32 %v3709, %v3711
        %v3713 = vrot.slane %v3699, %v3712
        %v3714 = vcombine.high %v3698, 0.0
        %v3716 = vunpack.c.l.s4 1934713408
        %v3717 = vunpack.c.0.s8 %v3716
        %v3718 = vlaneseq
        %v3719 = vshrl.u32 %v3718, 7
        %v3720 = vsub.s32 %v3717, %v3719
        %v3721 = vrot.slane %v3698, %v3720
        %v3723 = vunpack.c.l.s4 1934713408
        %v3724 = vunpack.c.0.s8 %v3723
        %v3725 = vlaneseq
        %v3726 = vshrl.u32 %v3725, 7
        %v3727 = vsub.s32 %v3724, %v3726
        %v3728 = vrot.slane %v3714, %v3727
        %v3729 = vcombine.high %v3706, 0.0
        %v3730 = vcombine.high %v3713, 0.0
        %v3731 = vcombine.high %v3721, 0.0
        %v3732 = vcombine.high %v3728, 0.0
        %v3733 = vcombine.high %v1173, 0.0
        %v3735 = vunpack.c.l.s4 1983009808
        %v3736 = vunpack.c.0.s8 %v3735
        %v3737 = vlaneseq
        %v3738 = vshrl.u32 %v3737, 7
        %v3739 = vsub.s32 %v3736, %v3738
        %v3740 = vrot.slane %v1173, %v3739
        %v3742 = vunpack.c.l.s4 1983009808
        %v3743 = vunpack.c.0.s8 %v3742
        %v3744 = vlaneseq
        %v3745 = vshrl.u32 %v3744, 7
        %v3746 = vsub.s32 %v3743, %v3745
        %v3747 = vrot.slane %v3733, %v3746
        %v3748 = vcombine.high %v3740, 0.0
        %v3750 = vunpack.c.l.s4 1934713408
        %v3751 = vunpack.c.0.s8 %v3750
        %v3752 = vlaneseq
        %v3753 = vshrl.u32 %v3752, 7
        %v3754 = vsub.s32 %v3751, %v3753
        %v3755 = vrot.slane %v3740, %v3754
        %v3757 = vunpack.c.l.s4 1934713408
        %v3758 = vunpack.c.0.s8 %v3757
        %v3759 = vlaneseq
        %v3760 = vshrl.u32 %v3759, 7
        %v3761 = vsub.s32 %v3758, %v3760
        %v3762 = vrot.slane %v3748, %v3761
        %v3763 = vcombine.high %v3747, 0.0
        %v3765 = vunpack.c.l.s4 1934713408
        %v3766 = vunpack.c.0.s8 %v3765
        %v3767 = vlaneseq
        %v3768 = vshrl.u32 %v3767, 7
        %v3769 = vsub.s32 %v3766, %v3768
        %v3770 = vrot.slane %v3747, %v3769
        %v3772 = vunpack.c.l.s4 1934713408
        %v3773 = vunpack.c.0.s8 %v3772
        %v3774 = vlaneseq
        %v3775 = vshrl.u32 %v3774, 7
        %v3776 = vsub.s32 %v3773, %v3775
        %v3777 = vrot.slane %v3763, %v3776
        %v3778 = vcombine.high %v3755, 0.0
        %v3779 = vcombine.high %v3762, 0.0
        %v3780 = vcombine.high %v3770, 0.0
        %v3781 = vcombine.high %v3777, 0.0
        %v3782 = vcombine.high %v1174, 0.0
        %v3784 = vunpack.c.l.s4 1983009808
        %v3785 = vunpack.c.0.s8 %v3784
        %v3786 = vlaneseq
        %v3787 = vshrl.u32 %v3786, 7
        %v3788 = vsub.s32 %v3785, %v3787
        %v3789 = vrot.slane %v1174, %v3788
        %v3791 = vunpack.c.l.s4 1983009808
        %v3792 = vunpack.c.0.s8 %v3791
        %v3793 = vlaneseq
        %v3794 = vshrl.u32 %v3793, 7
        %v3795 = vsub.s32 %v3792, %v3794
        %v3796 = vrot.slane %v3782, %v3795
        %v3797 = vcombine.high %v3789, 0.0
        %v3799 = vunpack.c.l.s4 1934713408
        %v3800 = vunpack.c.0.s8 %v3799
        %v3801 = vlaneseq
        %v3802 = vshrl.u32 %v3801, 7
        %v3803 = vsub.s32 %v3800, %v3802
        %v3804 = vrot.slane %v3789, %v3803
        %v3806 = vunpack.c.l.s4 1934713408
        %v3807 = vunpack.c.0.s8 %v3806
        %v3808 = vlaneseq
        %v3809 = vshrl.u32 %v3808, 7
        %v3810 = vsub.s32 %v3807, %v3809
        %v3811 = vrot.slane %v3797, %v3810
        %v3812 = vcombine.high %v3796, 0.0
        %v3814 = vunpack.c.l.s4 1934713408
        %v3815 = vunpack.c.0.s8 %v3814
        %v3816 = vlaneseq
        %v3817 = vshrl.u32 %v3816, 7
        %v3818 = vsub.s32 %v3815, %v3817
        %v3819 = vrot.slane %v3796, %v3818
        %v3821 = vunpack.c.l.s4 1934713408
        %v3822 = vunpack.c.0.s8 %v3821
        %v3823 = vlaneseq
        %v3824 = vshrl.u32 %v3823, 7
        %v3825 = vsub.s32 %v3822, %v3824
        %v3826 = vrot.slane %v3812, %v3825
        %v3827 = vcombine.high %v3804, 0.0
        %v3828 = vcombine.high %v3811, 0.0
        %v3829 = vcombine.high %v3819, 0.0
        %v3830 = vcombine.high %v3826, 0.0
        %v3831 = vcombine.high %v1175, 0.0
        %v3833 = vunpack.c.l.s4 1983009808
        %v3834 = vunpack.c.0.s8 %v3833
        %v3835 = vlaneseq
        %v3836 = vshrl.u32 %v3835, 7
        %v3837 = vsub.s32 %v3834, %v3836
        %v3838 = vrot.slane %v1175, %v3837
        %v3840 = vunpack.c.l.s4 1983009808
        %v3841 = vunpack.c.0.s8 %v3840
        %v3842 = vlaneseq
        %v3843 = vshrl.u32 %v3842, 7
        %v3844 = vsub.s32 %v3841, %v3843
        %v3845 = vrot.slane %v3831, %v3844
        %v3846 = vcombine.high %v3838, 0.0
        %v3848 = vunpack.c.l.s4 1934713408
        %v3849 = vunpack.c.0.s8 %v3848
        %v3850 = vlaneseq
        %v3851 = vshrl.u32 %v3850, 7
        %v3852 = vsub.s32 %v3849, %v3851
        %v3853 = vrot.slane %v3838, %v3852
        %v3855 = vunpack.c.l.s4 1934713408
        %v3856 = vunpack.c.0.s8 %v3855
        %v3857 = vlaneseq
        %v3858 = vshrl.u32 %v3857, 7
        %v3859 = vsub.s32 %v3856, %v3858
        %v3860 = vrot.slane %v3846, %v3859
        %v3861 = vcombine.high %v3845, 0.0
        %v3863 = vunpack.c.l.s4 1934713408
        %v3864 = vunpack.c.0.s8 %v3863
        %v3865 = vlaneseq
        %v3866 = vshrl.u32 %v3865, 7
        %v3867 = vsub.s32 %v3864, %v3866
        %v3868 = vrot.slane %v3845, %v3867
        %v3870 = vunpack.c.l.s4 1934713408
        %v3871 = vunpack.c.0.s8 %v3870
        %v3872 = vlaneseq
        %v3873 = vshrl.u32 %v3872, 7
        %v3874 = vsub.s32 %v3871, %v3873
        %v3875 = vrot.slane %v3861, %v3874
        %v3876 = vcombine.high %v3853, 0.0
        %v3877 = vcombine.high %v3860, 0.0
        %v3878 = vcombine.high %v3868, 0.0
        %v3879 = vcombine.high %v3875, 0.0
        %v3880 = vcombine.high %v1176, 0.0
        %v3882 = vunpack.c.l.s4 1983009808
        %v3883 = vunpack.c.0.s8 %v3882
        %v3884 = vlaneseq
        %v3885 = vshrl.u32 %v3884, 7
        %v3886 = vsub.s32 %v3883, %v3885
        %v3887 = vrot.slane %v1176, %v3886
        %v3889 = vunpack.c.l.s4 1983009808
        %v3890 = vunpack.c.0.s8 %v3889
        %v3891 = vlaneseq
        %v3892 = vshrl.u32 %v3891, 7
        %v3893 = vsub.s32 %v3890, %v3892
        %v3894 = vrot.slane %v3880, %v3893
        %v3895 = vcombine.high %v3887, 0.0
        %v3897 = vunpack.c.l.s4 1934713408
        %v3898 = vunpack.c.0.s8 %v3897
        %v3899 = vlaneseq
        %v3900 = vshrl.u32 %v3899, 7
        %v3901 = vsub.s32 %v3898, %v3900
        %v3902 = vrot.slane %v3887, %v3901
        %v3904 = vunpack.c.l.s4 1934713408
        %v3905 = vunpack.c.0.s8 %v3904
        %v3906 = vlaneseq
        %v3907 = vshrl.u32 %v3906, 7
        %v3908 = vsub.s32 %v3905, %v3907
        %v3909 = vrot.slane %v3895, %v3908
        %v3910 = vcombine.high %v3894, 0.0
        %v3912 = vunpack.c.l.s4 1934713408
        %v3913 = vunpack.c.0.s8 %v3912
        %v3914 = vlaneseq
        %v3915 = vshrl.u32 %v3914, 7
        %v3916 = vsub.s32 %v3913, %v3915
        %v3917 = vrot.slane %v3894, %v3916
        %v3919 = vunpack.c.l.s4 1934713408
        %v3920 = vunpack.c.0.s8 %v3919
        %v3921 = vlaneseq
        %v3922 = vshrl.u32 %v3921, 7
        %v3923 = vsub.s32 %v3920, %v3922
        %v3924 = vrot.slane %v3910, %v3923
        %v3925 = vcombine.high %v3902, 0.0
        %v3926 = vcombine.high %v3909, 0.0
        %v3927 = vcombine.high %v3917, 0.0
        %v3928 = vcombine.high %v3924, 0.0
        %v3929 = vcombine.high %v1177, 0.0
        %v3931 = vunpack.c.l.s4 1983009808
        %v3932 = vunpack.c.0.s8 %v3931
        %v3933 = vlaneseq
        %v3934 = vshrl.u32 %v3933, 7
        %v3935 = vsub.s32 %v3932, %v3934
        %v3936 = vrot.slane %v1177, %v3935
        %v3938 = vunpack.c.l.s4 1983009808
        %v3939 = vunpack.c.0.s8 %v3938
        %v3940 = vlaneseq
        %v3941 = vshrl.u32 %v3940, 7
        %v3942 = vsub.s32 %v3939, %v3941
        %v3943 = vrot.slane %v3929, %v3942
        %v3944 = vcombine.high %v3936, 0.0
        %v3946 = vunpack.c.l.s4 1934713408
        %v3947 = vunpack.c.0.s8 %v3946
        %v3948 = vlaneseq
        %v3949 = vshrl.u32 %v3948, 7
        %v3950 = vsub.s32 %v3947, %v3949
        %v3951 = vrot.slane %v3936, %v3950
        %v3953 = vunpack.c.l.s4 1934713408
        %v3954 = vunpack.c.0.s8 %v3953
        %v3955 = vlaneseq
        %v3956 = vshrl.u32 %v3955, 7
        %v3957 = vsub.s32 %v3954, %v3956
        %v3958 = vrot.slane %v3944, %v3957
        %v3959 = vcombine.high %v3943, 0.0
        %v3961 = vunpack.c.l.s4 1934713408
        %v3962 = vunpack.c.0.s8 %v3961
        %v3963 = vlaneseq
        %v3964 = vshrl.u32 %v3963, 7
        %v3965 = vsub.s32 %v3962, %v3964
        %v3966 = vrot.slane %v3943, %v3965
        %v3968 = vunpack.c.l.s4 1934713408
        %v3969 = vunpack.c.0.s8 %v3968
        %v3970 = vlaneseq
        %v3971 = vshrl.u32 %v3970, 7
        %v3972 = vsub.s32 %v3969, %v3971
        %v3973 = vrot.slane %v3959, %v3972
        %v3974 = vcombine.high %v3951, 0.0
        %v3975 = vcombine.high %v3958, 0.0
        %v3976 = vcombine.high %v3966, 0.0
        %v3977 = vcombine.high %v3973, 0.0
        %v3978 = vcombine.high %v1178, 0.0
        %v3980 = vunpack.c.l.s4 1983009808
        %v3981 = vunpack.c.0.s8 %v3980
        %v3982 = vlaneseq
        %v3983 = vshrl.u32 %v3982, 7
        %v3984 = vsub.s32 %v3981, %v3983
        %v3985 = vrot.slane %v1178, %v3984
        %v3987 = vunpack.c.l.s4 1983009808
        %v3988 = vunpack.c.0.s8 %v3987
        %v3989 = vlaneseq
        %v3990 = vshrl.u32 %v3989, 7
        %v3991 = vsub.s32 %v3988, %v3990
        %v3992 = vrot.slane %v3978, %v3991
        %v3993 = vcombine.high %v3985, 0.0
        %v3995 = vunpack.c.l.s4 1934713408
        %v3996 = vunpack.c.0.s8 %v3995
        %v3997 = vlaneseq
        %v3998 = vshrl.u32 %v3997, 7
        %v3999 = vsub.s32 %v3996, %v3998
        %v4000 = vrot.slane %v3985, %v3999
        %v4002 = vunpack.c.l.s4 1934713408
        %v4003 = vunpack.c.0.s8 %v4002
        %v4004 = vlaneseq
        %v4005 = vshrl.u32 %v4004, 7
        %v4006 = vsub.s32 %v4003, %v4005
        %v4007 = vrot.slane %v3993, %v4006
        %v4008 = vcombine.high %v3992, 0.0
        %v4010 = vunpack.c.l.s4 1934713408
        %v4011 = vunpack.c.0.s8 %v4010
        %v4012 = vlaneseq
        %v4013 = vshrl.u32 %v4012, 7
        %v4014 = vsub.s32 %v4011, %v4013
        %v4015 = vrot.slane %v3992, %v4014
        %v4017 = vunpack.c.l.s4 1934713408
        %v4018 = vunpack.c.0.s8 %v4017
        %v4019 = vlaneseq
        %v4020 = vshrl.u32 %v4019, 7
        %v4021 = vsub.s32 %v4018, %v4020
        %v4022 = vrot.slane %v4008, %v4021
        %v4023 = vcombine.high %v4000, 0.0
        %v4024 = vcombine.high %v4007, 0.0
        %v4025 = vcombine.high %v4015, 0.0
        %v4026 = vcombine.high %v4022, 0.0
        %v4027 = vcombine.high %v1179, 0.0
        %v4029 = vunpack.c.l.s4 1983009808
        %v4030 = vunpack.c.0.s8 %v4029
        %v4031 = vlaneseq
        %v4032 = vshrl.u32 %v4031, 7
        %v4033 = vsub.s32 %v4030, %v4032
        %v4034 = vrot.slane %v1179, %v4033
        %v4036 = vunpack.c.l.s4 1983009808
        %v4037 = vunpack.c.0.s8 %v4036
        %v4038 = vlaneseq
        %v4039 = vshrl.u32 %v4038, 7
        %v4040 = vsub.s32 %v4037, %v4039
        %v4041 = vrot.slane %v4027, %v4040
        %v4042 = vcombine.high %v4034, 0.0
        %v4044 = vunpack.c.l.s4 1934713408
        %v4045 = vunpack.c.0.s8 %v4044
        %v4046 = vlaneseq
        %v4047 = vshrl.u32 %v4046, 7
        %v4048 = vsub.s32 %v4045, %v4047
        %v4049 = vrot.slane %v4034, %v4048
        %v4051 = vunpack.c.l.s4 1934713408
        %v4052 = vunpack.c.0.s8 %v4051
        %v4053 = vlaneseq
        %v4054 = vshrl.u32 %v4053, 7
        %v4055 = vsub.s32 %v4052, %v4054
        %v4056 = vrot.slane %v4042, %v4055
        %v4057 = vcombine.high %v4041, 0.0
        %v4059 = vunpack.c.l.s4 1934713408
        %v4060 = vunpack.c.0.s8 %v4059
        %v4061 = vlaneseq
        %v4062 = vshrl.u32 %v4061, 7
        %v4063 = vsub.s32 %v4060, %v4062
        %v4064 = vrot.slane %v4041, %v4063
        %v4066 = vunpack.c.l.s4 1934713408
        %v4067 = vunpack.c.0.s8 %v4066
        %v4068 = vlaneseq
        %v4069 = vshrl.u32 %v4068, 7
        %v4070 = vsub.s32 %v4067, %v4069
        %v4071 = vrot.slane %v4057, %v4070
        %v4072 = vcombine.high %v4049, 0.0
        %v4073 = vcombine.high %v4056, 0.0
        %v4074 = vcombine.high %v4064, 0.0
        %v4075 = vcombine.high %v4071, 0.0
        %v4076 = vcombine.high %v1180, 0.0
        %v4078 = vunpack.c.l.s4 1983009808
        %v4079 = vunpack.c.0.s8 %v4078
        %v4080 = vlaneseq
        %v4081 = vshrl.u32 %v4080, 7
        %v4082 = vsub.s32 %v4079, %v4081
        %v4083 = vrot.slane %v1180, %v4082
        %v4085 = vunpack.c.l.s4 1983009808
        %v4086 = vunpack.c.0.s8 %v4085
        %v4087 = vlaneseq
        %v4088 = vshrl.u32 %v4087, 7
        %v4089 = vsub.s32 %v4086, %v4088
        %v4090 = vrot.slane %v4076, %v4089
        %v4091 = vcombine.high %v4083, 0.0
        %v4093 = vunpack.c.l.s4 1934713408
        %v4094 = vunpack.c.0.s8 %v4093
        %v4095 = vlaneseq
        %v4096 = vshrl.u32 %v4095, 7
        %v4097 = vsub.s32 %v4094, %v4096
        %v4098 = vrot.slane %v4083, %v4097
        %v4100 = vunpack.c.l.s4 1934713408
        %v4101 = vunpack.c.0.s8 %v4100
        %v4102 = vlaneseq
        %v4103 = vshrl.u32 %v4102, 7
        %v4104 = vsub.s32 %v4101, %v4103
        %v4105 = vrot.slane %v4091, %v4104
        %v4106 = vcombine.high %v4090, 0.0
        %v4108 = vunpack.c.l.s4 1934713408
        %v4109 = vunpack.c.0.s8 %v4108
        %v4110 = vlaneseq
        %v4111 = vshrl.u32 %v4110, 7
        %v4112 = vsub.s32 %v4109, %v4111
        %v4113 = vrot.slane %v4090, %v4112
        %v4115 = vunpack.c.l.s4 1934713408
        %v4116 = vunpack.c.0.s8 %v4115
        %v4117 = vlaneseq
        %v4118 = vshrl.u32 %v4117, 7
        %v4119 = vsub.s32 %v4116, %v4118
        %v4120 = vrot.slane %v4106, %v4119
        %v4121 = vcombine.high %v4098, 0.0
        %v4122 = vcombine.high %v4105, 0.0
        %v4123 = vcombine.high %v4113, 0.0
        %v4124 = vcombine.high %v4120, 0.0
        %v4125 = vcombine.high %v1181, 0.0
        %v4127 = vunpack.c.l.s4 1983009808
        %v4128 = vunpack.c.0.s8 %v4127
        %v4129 = vlaneseq
        %v4130 = vshrl.u32 %v4129, 7
        %v4131 = vsub.s32 %v4128, %v4130
        %v4132 = vrot.slane %v1181, %v4131
        %v4134 = vunpack.c.l.s4 1983009808
        %v4135 = vunpack.c.0.s8 %v4134
        %v4136 = vlaneseq
        %v4137 = vshrl.u32 %v4136, 7
        %v4138 = vsub.s32 %v4135, %v4137
        %v4139 = vrot.slane %v4125, %v4138
        %v4140 = vcombine.high %v4132, 0.0
        %v4142 = vunpack.c.l.s4 1934713408
        %v4143 = vunpack.c.0.s8 %v4142
        %v4144 = vlaneseq
        %v4145 = vshrl.u32 %v4144, 7
        %v4146 = vsub.s32 %v4143, %v4145
        %v4147 = vrot.slane %v4132, %v4146
        %v4149 = vunpack.c.l.s4 1934713408
        %v4150 = vunpack.c.0.s8 %v4149
        %v4151 = vlaneseq
        %v4152 = vshrl.u32 %v4151, 7
        %v4153 = vsub.s32 %v4150, %v4152
        %v4154 = vrot.slane %v4140, %v4153
        %v4155 = vcombine.high %v4139, 0.0
        %v4157 = vunpack.c.l.s4 1934713408
        %v4158 = vunpack.c.0.s8 %v4157
        %v4159 = vlaneseq
        %v4160 = vshrl.u32 %v4159, 7
        %v4161 = vsub.s32 %v4158, %v4160
        %v4162 = vrot.slane %v4139, %v4161
        %v4164 = vunpack.c.l.s4 1934713408
        %v4165 = vunpack.c.0.s8 %v4164
        %v4166 = vlaneseq
        %v4167 = vshrl.u32 %v4166, 7
        %v4168 = vsub.s32 %v4165, %v4167
        %v4169 = vrot.slane %v4155, %v4168
        %v4170 = vcombine.high %v4147, 0.0
        %v4171 = vcombine.high %v4154, 0.0
        %v4172 = vcombine.high %v4162, 0.0
        %v4173 = vcombine.high %v4169, 0.0
        %v4174 = vcombine.high %v1182, 0.0
        %v4176 = vunpack.c.l.s4 1983009808
        %v4177 = vunpack.c.0.s8 %v4176
        %v4178 = vlaneseq
        %v4179 = vshrl.u32 %v4178, 7
        %v4180 = vsub.s32 %v4177, %v4179
        %v4181 = vrot.slane %v1182, %v4180
        %v4183 = vunpack.c.l.s4 1983009808
        %v4184 = vunpack.c.0.s8 %v4183
        %v4185 = vlaneseq
        %v4186 = vshrl.u32 %v4185, 7
        %v4187 = vsub.s32 %v4184, %v4186
        %v4188 = vrot.slane %v4174, %v4187
        %v4189 = vcombine.high %v4181, 0.0
        %v4191 = vunpack.c.l.s4 1934713408
        %v4192 = vunpack.c.0.s8 %v4191
        %v4193 = vlaneseq
        %v4194 = vshrl.u32 %v4193, 7
        %v4195 = vsub.s32 %v4192, %v4194
        %v4196 = vrot.slane %v4181, %v4195
        %v4198 = vunpack.c.l.s4 1934713408
        %v4199 = vunpack.c.0.s8 %v4198
        %v4200 = vlaneseq
        %v4201 = vshrl.u32 %v4200, 7
        %v4202 = vsub.s32 %v4199, %v4201
        %v4203 = vrot.slane %v4189, %v4202
        %v4204 = vcombine.high %v4188, 0.0
        %v4206 = vunpack.c.l.s4 1934713408
        %v4207 = vunpack.c.0.s8 %v4206
        %v4208 = vlaneseq
        %v4209 = vshrl.u32 %v4208, 7
        %v4210 = vsub.s32 %v4207, %v4209
        %v4211 = vrot.slane %v4188, %v4210
        %v4213 = vunpack.c.l.s4 1934713408
        %v4214 = vunpack.c.0.s8 %v4213
        %v4215 = vlaneseq
        %v4216 = vshrl.u32 %v4215, 7
        %v4217 = vsub.s32 %v4214, %v4216
        %v4218 = vrot.slane %v4204, %v4217
        %v4219 = vcombine.high %v4196, 0.0
        %v4220 = vcombine.high %v4203, 0.0
        %v4221 = vcombine.high %v4211, 0.0
        %v4222 = vcombine.high %v4218, 0.0
        %v4223 = vcombine.high %v1183, 0.0
        %v4225 = vunpack.c.l.s4 1983009808
        %v4226 = vunpack.c.0.s8 %v4225
        %v4227 = vlaneseq
        %v4228 = vshrl.u32 %v4227, 7
        %v4229 = vsub.s32 %v4226, %v4228
        %v4230 = vrot.slane %v1183, %v4229
        %v4232 = vunpack.c.l.s4 1983009808
        %v4233 = vunpack.c.0.s8 %v4232
        %v4234 = vlaneseq
        %v4235 = vshrl.u32 %v4234, 7
        %v4236 = vsub.s32 %v4233, %v4235
        %v4237 = vrot.slane %v4223, %v4236
        %v4238 = vcombine.high %v4230, 0.0
        %v4240 = vunpack.c.l.s4 1934713408
        %v4241 = vunpack.c.0.s8 %v4240
        %v4242 = vlaneseq
        %v4243 = vshrl.u32 %v4242, 7
        %v4244 = vsub.s32 %v4241, %v4243
        %v4245 = vrot.slane %v4230, %v4244
        %v4247 = vunpack.c.l.s4 1934713408
        %v4248 = vunpack.c.0.s8 %v4247
        %v4249 = vlaneseq
        %v4250 = vshrl.u32 %v4249, 7
        %v4251 = vsub.s32 %v4248, %v4250
        %v4252 = vrot.slane %v4238, %v4251
        %v4253 = vcombine.high %v4237, 0.0
        %v4255 = vunpack.c.l.s4 1934713408
        %v4256 = vunpack.c.0.s8 %v4255
        %v4257 = vlaneseq
        %v4258 = vshrl.u32 %v4257, 7
        %v4259 = vsub.s32 %v4256, %v4258
        %v4260 = vrot.slane %v4237, %v4259
        %v4262 = vunpack.c.l.s4 1934713408
        %v4263 = vunpack.c.0.s8 %v4262
        %v4264 = vlaneseq
        %v4265 = vshrl.u32 %v4264, 7
        %v4266 = vsub.s32 %v4263, %v4265
        %v4267 = vrot.slane %v4253, %v4266
        %v4268 = vcombine.high %v4245, 0.0
        %v4269 = vcombine.high %v4252, 0.0
        %v4270 = vcombine.high %v4260, 0.0
        %v4271 = vcombine.high %v4267, 0.0
        %v4272 = vcombine.high %v1184, 0.0
        %v4274 = vunpack.c.l.s4 1983009808
        %v4275 = vunpack.c.0.s8 %v4274
        %v4276 = vlaneseq
        %v4277 = vshrl.u32 %v4276, 7
        %v4278 = vsub.s32 %v4275, %v4277
        %v4279 = vrot.slane %v1184, %v4278
        %v4281 = vunpack.c.l.s4 1983009808
        %v4282 = vunpack.c.0.s8 %v4281
        %v4283 = vlaneseq
        %v4284 = vshrl.u32 %v4283, 7
        %v4285 = vsub.s32 %v4282, %v4284
        %v4286 = vrot.slane %v4272, %v4285
        %v4287 = vcombine.high %v4279, 0.0
        %v4289 = vunpack.c.l.s4 1934713408
        %v4290 = vunpack.c.0.s8 %v4289
        %v4291 = vlaneseq
        %v4292 = vshrl.u32 %v4291, 7
        %v4293 = vsub.s32 %v4290, %v4292
        %v4294 = vrot.slane %v4279, %v4293
        %v4296 = vunpack.c.l.s4 1934713408
        %v4297 = vunpack.c.0.s8 %v4296
        %v4298 = vlaneseq
        %v4299 = vshrl.u32 %v4298, 7
        %v4300 = vsub.s32 %v4297, %v4299
        %v4301 = vrot.slane %v4287, %v4300
        %v4302 = vcombine.high %v4286, 0.0
        %v4304 = vunpack.c.l.s4 1934713408
        %v4305 = vunpack.c.0.s8 %v4304
        %v4306 = vlaneseq
        %v4307 = vshrl.u32 %v4306, 7
        %v4308 = vsub.s32 %v4305, %v4307
        %v4309 = vrot.slane %v4286, %v4308
        %v4311 = vunpack.c.l.s4 1934713408
        %v4312 = vunpack.c.0.s8 %v4311
        %v4313 = vlaneseq
        %v4314 = vshrl.u32 %v4313, 7
        %v4315 = vsub.s32 %v4312, %v4314
        %v4316 = vrot.slane %v4302, %v4315
        %v4317 = vcombine.high %v4294, 0.0
        %v4318 = vcombine.high %v4301, 0.0
        %v4319 = vcombine.high %v4309, 0.0
        %v4320 = vcombine.high %v4316, 0.0
        %v4321 = vcombine.high %v1185, 0.0
        %v4323 = vunpack.c.l.s4 1983009808
        %v4324 = vunpack.c.0.s8 %v4323
        %v4325 = vlaneseq
        %v4326 = vshrl.u32 %v4325, 7
        %v4327 = vsub.s32 %v4324, %v4326
        %v4328 = vrot.slane %v1185, %v4327
        %v4330 = vunpack.c.l.s4 1983009808
        %v4331 = vunpack.c.0.s8 %v4330
        %v4332 = vlaneseq
        %v4333 = vshrl.u32 %v4332, 7
        %v4334 = vsub.s32 %v4331, %v4333
        %v4335 = vrot.slane %v4321, %v4334
        %v4336 = vcombine.high %v4328, 0.0
        %v4338 = vunpack.c.l.s4 1934713408
        %v4339 = vunpack.c.0.s8 %v4338
        %v4340 = vlaneseq
        %v4341 = vshrl.u32 %v4340, 7
        %v4342 = vsub.s32 %v4339, %v4341
        %v4343 = vrot.slane %v4328, %v4342
        %v4345 = vunpack.c.l.s4 1934713408
        %v4346 = vunpack.c.0.s8 %v4345
        %v4347 = vlaneseq
        %v4348 = vshrl.u32 %v4347, 7
        %v4349 = vsub.s32 %v4346, %v4348
        %v4350 = vrot.slane %v4336, %v4349
        %v4351 = vcombine.high %v4335, 0.0
        %v4353 = vunpack.c.l.s4 1934713408
        %v4354 = vunpack.c.0.s8 %v4353
        %v4355 = vlaneseq
        %v4356 = vshrl.u32 %v4355, 7
        %v4357 = vsub.s32 %v4354, %v4356
        %v4358 = vrot.slane %v4335, %v4357
        %v4360 = vunpack.c.l.s4 1934713408
        %v4361 = vunpack.c.0.s8 %v4360
        %v4362 = vlaneseq
        %v4363 = vshrl.u32 %v4362, 7
        %v4364 = vsub.s32 %v4361, %v4363
        %v4365 = vrot.slane %v4351, %v4364
        %v4366 = vcombine.high %v4343, 0.0
        %v4367 = vcombine.high %v4350, 0.0
        %v4368 = vcombine.high %v4358, 0.0
        %v4369 = vcombine.high %v4365, 0.0
        %v4370 = vcombine.high %v1186, 0.0
        %v4372 = vunpack.c.l.s4 1983009808
        %v4373 = vunpack.c.0.s8 %v4372
        %v4374 = vlaneseq
        %v4375 = vshrl.u32 %v4374, 7
        %v4376 = vsub.s32 %v4373, %v4375
        %v4377 = vrot.slane %v1186, %v4376
        %v4379 = vunpack.c.l.s4 1983009808
        %v4380 = vunpack.c.0.s8 %v4379
        %v4381 = vlaneseq
        %v4382 = vshrl.u32 %v4381, 7
        %v4383 = vsub.s32 %v4380, %v4382
        %v4384 = vrot.slane %v4370, %v4383
        %v4385 = vcombine.high %v4377, 0.0
        %v4387 = vunpack.c.l.s4 1934713408
        %v4388 = vunpack.c.0.s8 %v4387
        %v4389 = vlaneseq
        %v4390 = vshrl.u32 %v4389, 7
        %v4391 = vsub.s32 %v4388, %v4390
        %v4392 = vrot.slane %v4377, %v4391
        %v4394 = vunpack.c.l.s4 1934713408
        %v4395 = vunpack.c.0.s8 %v4394
        %v4396 = vlaneseq
        %v4397 = vshrl.u32 %v4396, 7
        %v4398 = vsub.s32 %v4395, %v4397
        %v4399 = vrot.slane %v4385, %v4398
        %v4400 = vcombine.high %v4384, 0.0
        %v4402 = vunpack.c.l.s4 1934713408
        %v4403 = vunpack.c.0.s8 %v4402
        %v4404 = vlaneseq
        %v4405 = vshrl.u32 %v4404, 7
        %v4406 = vsub.s32 %v4403, %v4405
        %v4407 = vrot.slane %v4384, %v4406
        %v4409 = vunpack.c.l.s4 1934713408
        %v4410 = vunpack.c.0.s8 %v4409
        %v4411 = vlaneseq
        %v4412 = vshrl.u32 %v4411, 7
        %v4413 = vsub.s32 %v4410, %v4412
        %v4414 = vrot.slane %v4400, %v4413
        %v4415 = vcombine.high %v4392, 0.0
        %v4416 = vcombine.high %v4399, 0.0
        %v4417 = vcombine.high %v4407, 0.0
        %v4418 = vcombine.high %v4414, 0.0
        %v4419 = vcombine.high %v1187, 0.0
        %v4421 = vunpack.c.l.s4 1983009808
        %v4422 = vunpack.c.0.s8 %v4421
        %v4423 = vlaneseq
        %v4424 = vshrl.u32 %v4423, 7
        %v4425 = vsub.s32 %v4422, %v4424
        %v4426 = vrot.slane %v1187, %v4425
        %v4428 = vunpack.c.l.s4 1983009808
        %v4429 = vunpack.c.0.s8 %v4428
        %v4430 = vlaneseq
        %v4431 = vshrl.u32 %v4430, 7
        %v4432 = vsub.s32 %v4429, %v4431
        %v4433 = vrot.slane %v4419, %v4432
        %v4434 = vcombine.high %v4426, 0.0
        %v4436 = vunpack.c.l.s4 1934713408
        %v4437 = vunpack.c.0.s8 %v4436
        %v4438 = vlaneseq
        %v4439 = vshrl.u32 %v4438, 7
        %v4440 = vsub.s32 %v4437, %v4439
        %v4441 = vrot.slane %v4426, %v4440
        %v4443 = vunpack.c.l.s4 1934713408
        %v4444 = vunpack.c.0.s8 %v4443
        %v4445 = vlaneseq
        %v4446 = vshrl.u32 %v4445, 7
        %v4447 = vsub.s32 %v4444, %v4446
        %v4448 = vrot.slane %v4434, %v4447
        %v4449 = vcombine.high %v4433, 0.0
        %v4451 = vunpack.c.l.s4 1934713408
        %v4452 = vunpack.c.0.s8 %v4451
        %v4453 = vlaneseq
        %v4454 = vshrl.u32 %v4453, 7
        %v4455 = vsub.s32 %v4452, %v4454
        %v4456 = vrot.slane %v4433, %v4455
        %v4458 = vunpack.c.l.s4 1934713408
        %v4459 = vunpack.c.0.s8 %v4458
        %v4460 = vlaneseq
        %v4461 = vshrl.u32 %v4460, 7
        %v4462 = vsub.s32 %v4459, %v4461
        %v4463 = vrot.slane %v4449, %v4462
        %v4464 = vcombine.high %v4441, 0.0
        %v4465 = vcombine.high %v4448, 0.0
        %v4466 = vcombine.high %v4456, 0.0
        %v4467 = vcombine.high %v4463, 0.0
        %v4468 = vcombine.high %v1188, 0.0
        %v4470 = vunpack.c.l.s4 1983009808
        %v4471 = vunpack.c.0.s8 %v4470
        %v4472 = vlaneseq
        %v4473 = vshrl.u32 %v4472, 7
        %v4474 = vsub.s32 %v4471, %v4473
        %v4475 = vrot.slane %v1188, %v4474
        %v4477 = vunpack.c.l.s4 1983009808
        %v4478 = vunpack.c.0.s8 %v4477
        %v4479 = vlaneseq
        %v4480 = vshrl.u32 %v4479, 7
        %v4481 = vsub.s32 %v4478, %v4480
        %v4482 = vrot.slane %v4468, %v4481
        %v4483 = vcombine.high %v4475, 0.0
        %v4485 = vunpack.c.l.s4 1934713408
        %v4486 = vunpack.c.0.s8 %v4485
        %v4487 = vlaneseq
        %v4488 = vshrl.u32 %v4487, 7
        %v4489 = vsub.s32 %v4486, %v4488
        %v4490 = vrot.slane %v4475, %v4489
        %v4492 = vunpack.c.l.s4 1934713408
        %v4493 = vunpack.c.0.s8 %v4492
        %v4494 = vlaneseq
        %v4495 = vshrl.u32 %v4494, 7
        %v4496 = vsub.s32 %v4493, %v4495
        %v4497 = vrot.slane %v4483, %v4496
        %v4498 = vcombine.high %v4482, 0.0
        %v4500 = vunpack.c.l.s4 1934713408
        %v4501 = vunpack.c.0.s8 %v4500
        %v4502 = vlaneseq
        %v4503 = vshrl.u32 %v4502, 7
        %v4504 = vsub.s32 %v4501, %v4503
        %v4505 = vrot.slane %v4482, %v4504
        %v4507 = vunpack.c.l.s4 1934713408
        %v4508 = vunpack.c.0.s8 %v4507
        %v4509 = vlaneseq
        %v4510 = vshrl.u32 %v4509, 7
        %v4511 = vsub.s32 %v4508, %v4510
        %v4512 = vrot.slane %v4498, %v4511
        %v4513 = vcombine.high %v4490, 0.0
        %v4514 = vcombine.high %v4497, 0.0
        %v4515 = vcombine.high %v4505, 0.0
        %v4516 = vcombine.high %v4512, 0.0
        %v4517 = vcombine.high %v1189, 0.0
        %v4519 = vunpack.c.l.s4 1983009808
        %v4520 = vunpack.c.0.s8 %v4519
        %v4521 = vlaneseq
        %v4522 = vshrl.u32 %v4521, 7
        %v4523 = vsub.s32 %v4520, %v4522
        %v4524 = vrot.slane %v1189, %v4523
        %v4526 = vunpack.c.l.s4 1983009808
        %v4527 = vunpack.c.0.s8 %v4526
        %v4528 = vlaneseq
        %v4529 = vshrl.u32 %v4528, 7
        %v4530 = vsub.s32 %v4527, %v4529
        %v4531 = vrot.slane %v4517, %v4530
        %v4532 = vcombine.high %v4524, 0.0
        %v4534 = vunpack.c.l.s4 1934713408
        %v4535 = vunpack.c.0.s8 %v4534
        %v4536 = vlaneseq
        %v4537 = vshrl.u32 %v4536, 7
        %v4538 = vsub.s32 %v4535, %v4537
        %v4539 = vrot.slane %v4524, %v4538
        %v4541 = vunpack.c.l.s4 1934713408
        %v4542 = vunpack.c.0.s8 %v4541
        %v4543 = vlaneseq
        %v4544 = vshrl.u32 %v4543, 7
        %v4545 = vsub.s32 %v4542, %v4544
        %v4546 = vrot.slane %v4532, %v4545
        %v4547 = vcombine.high %v4531, 0.0
        %v4549 = vunpack.c.l.s4 1934713408
        %v4550 = vunpack.c.0.s8 %v4549
        %v4551 = vlaneseq
        %v4552 = vshrl.u32 %v4551, 7
        %v4553 = vsub.s32 %v4550, %v4552
        %v4554 = vrot.slane %v4531, %v4553
        %v4556 = vunpack.c.l.s4 1934713408
        %v4557 = vunpack.c.0.s8 %v4556
        %v4558 = vlaneseq
        %v4559 = vshrl.u32 %v4558, 7
        %v4560 = vsub.s32 %v4557, %v4559
        %v4561 = vrot.slane %v4547, %v4560
        %v4562 = vcombine.high %v4539, 0.0
        %v4563 = vcombine.high %v4546, 0.0
        %v4564 = vcombine.high %v4554, 0.0
        %v4565 = vcombine.high %v4561, 0.0
        %v4566 = vcombine.high %v1190, 0.0
        %v4568 = vunpack.c.l.s4 1983009808
        %v4569 = vunpack.c.0.s8 %v4568
        %v4570 = vlaneseq
        %v4571 = vshrl.u32 %v4570, 7
        %v4572 = vsub.s32 %v4569, %v4571
        %v4573 = vrot.slane %v1190, %v4572
        %v4575 = vunpack.c.l.s4 1983009808
        %v4576 = vunpack.c.0.s8 %v4575
        %v4577 = vlaneseq
        %v4578 = vshrl.u32 %v4577, 7
        %v4579 = vsub.s32 %v4576, %v4578
        %v4580 = vrot.slane %v4566, %v4579
        %v4581 = vcombine.high %v4573, 0.0
        %v4583 = vunpack.c.l.s4 1934713408
        %v4584 = vunpack.c.0.s8 %v4583
        %v4585 = vlaneseq
        %v4586 = vshrl.u32 %v4585, 7
        %v4587 = vsub.s32 %v4584, %v4586
        %v4588 = vrot.slane %v4573, %v4587
        %v4590 = vunpack.c.l.s4 1934713408
        %v4591 = vunpack.c.0.s8 %v4590
        %v4592 = vlaneseq
        %v4593 = vshrl.u32 %v4592, 7
        %v4594 = vsub.s32 %v4591, %v4593
        %v4595 = vrot.slane %v4581, %v4594
        %v4596 = vcombine.high %v4580, 0.0
        %v4598 = vunpack.c.l.s4 1934713408
        %v4599 = vunpack.c.0.s8 %v4598
        %v4600 = vlaneseq
        %v4601 = vshrl.u32 %v4600, 7
        %v4602 = vsub.s32 %v4599, %v4601
        %v4603 = vrot.slane %v4580, %v4602
        %v4605 = vunpack.c.l.s4 1934713408
        %v4606 = vunpack.c.0.s8 %v4605
        %v4607 = vlaneseq
        %v4608 = vshrl.u32 %v4607, 7
        %v4609 = vsub.s32 %v4606, %v4608
        %v4610 = vrot.slane %v4596, %v4609
        %v4611 = vcombine.high %v4588, 0.0
        %v4612 = vcombine.high %v4595, 0.0
        %v4613 = vcombine.high %v4603, 0.0
        %v4614 = vcombine.high %v4610, 0.0
        %v4615 = vcombine.high %v1191, 0.0
        %v4617 = vunpack.c.l.s4 1983009808
        %v4618 = vunpack.c.0.s8 %v4617
        %v4619 = vlaneseq
        %v4620 = vshrl.u32 %v4619, 7
        %v4621 = vsub.s32 %v4618, %v4620
        %v4622 = vrot.slane %v1191, %v4621
        %v4624 = vunpack.c.l.s4 1983009808
        %v4625 = vunpack.c.0.s8 %v4624
        %v4626 = vlaneseq
        %v4627 = vshrl.u32 %v4626, 7
        %v4628 = vsub.s32 %v4625, %v4627
        %v4629 = vrot.slane %v4615, %v4628
        %v4630 = vcombine.high %v4622, 0.0
        %v4632 = vunpack.c.l.s4 1934713408
        %v4633 = vunpack.c.0.s8 %v4632
        %v4634 = vlaneseq
        %v4635 = vshrl.u32 %v4634, 7
        %v4636 = vsub.s32 %v4633, %v4635
        %v4637 = vrot.slane %v4622, %v4636
        %v4639 = vunpack.c.l.s4 1934713408
        %v4640 = vunpack.c.0.s8 %v4639
        %v4641 = vlaneseq
        %v4642 = vshrl.u32 %v4641, 7
        %v4643 = vsub.s32 %v4640, %v4642
        %v4644 = vrot.slane %v4630, %v4643
        %v4645 = vcombine.high %v4629, 0.0
        %v4647 = vunpack.c.l.s4 1934713408
        %v4648 = vunpack.c.0.s8 %v4647
        %v4649 = vlaneseq
        %v4650 = vshrl.u32 %v4649, 7
        %v4651 = vsub.s32 %v4648, %v4650
        %v4652 = vrot.slane %v4629, %v4651
        %v4654 = vunpack.c.l.s4 1934713408
        %v4655 = vunpack.c.0.s8 %v4654
        %v4656 = vlaneseq
        %v4657 = vshrl.u32 %v4656, 7
        %v4658 = vsub.s32 %v4655, %v4657
        %v4659 = vrot.slane %v4645, %v4658
        %v4660 = vcombine.high %v4637, 0.0
        %v4661 = vcombine.high %v4644, 0.0
        %v4662 = vcombine.high %v4652, 0.0
        %v4663 = vcombine.high %v4659, 0.0
        %v4664 = vcombine.high %v1192, 0.0
        %v4666 = vunpack.c.l.s4 1983009808
        %v4667 = vunpack.c.0.s8 %v4666
        %v4668 = vlaneseq
        %v4669 = vshrl.u32 %v4668, 7
        %v4670 = vsub.s32 %v4667, %v4669
        %v4671 = vrot.slane %v1192, %v4670
        %v4673 = vunpack.c.l.s4 1983009808
        %v4674 = vunpack.c.0.s8 %v4673
        %v4675 = vlaneseq
        %v4676 = vshrl.u32 %v4675, 7
        %v4677 = vsub.s32 %v4674, %v4676
        %v4678 = vrot.slane %v4664, %v4677
        %v4679 = vcombine.high %v4671, 0.0
        %v4681 = vunpack.c.l.s4 1934713408
        %v4682 = vunpack.c.0.s8 %v4681
        %v4683 = vlaneseq
        %v4684 = vshrl.u32 %v4683, 7
        %v4685 = vsub.s32 %v4682, %v4684
        %v4686 = vrot.slane %v4671, %v4685
        %v4688 = vunpack.c.l.s4 1934713408
        %v4689 = vunpack.c.0.s8 %v4688
        %v4690 = vlaneseq
        %v4691 = vshrl.u32 %v4690, 7
        %v4692 = vsub.s32 %v4689, %v4691
        %v4693 = vrot.slane %v4679, %v4692
        %v4694 = vcombine.high %v4678, 0.0
        %v4696 = vunpack.c.l.s4 1934713408
        %v4697 = vunpack.c.0.s8 %v4696
        %v4698 = vlaneseq
        %v4699 = vshrl.u32 %v4698, 7
        %v4700 = vsub.s32 %v4697, %v4699
        %v4701 = vrot.slane %v4678, %v4700
        %v4703 = vunpack.c.l.s4 1934713408
        %v4704 = vunpack.c.0.s8 %v4703
        %v4705 = vlaneseq
        %v4706 = vshrl.u32 %v4705, 7
        %v4707 = vsub.s32 %v4704, %v4706
        %v4708 = vrot.slane %v4694, %v4707
        %v4709 = vcombine.high %v4686, 0.0
        %v4710 = vcombine.high %v4693, 0.0
        %v4711 = vcombine.high %v4701, 0.0
        %v4712 = vcombine.high %v4708, 0.0
        %v4713 = vcombine.high %v1193, 0.0
        %v4715 = vunpack.c.l.s4 1983009808
        %v4716 = vunpack.c.0.s8 %v4715
        %v4717 = vlaneseq
        %v4718 = vshrl.u32 %v4717, 7
        %v4719 = vsub.s32 %v4716, %v4718
        %v4720 = vrot.slane %v1193, %v4719
        %v4722 = vunpack.c.l.s4 1983009808
        %v4723 = vunpack.c.0.s8 %v4722
        %v4724 = vlaneseq
        %v4725 = vshrl.u32 %v4724, 7
        %v4726 = vsub.s32 %v4723, %v4725
        %v4727 = vrot.slane %v4713, %v4726
        %v4728 = vcombine.high %v4720, 0.0
        %v4730 = vunpack.c.l.s4 1934713408
        %v4731 = vunpack.c.0.s8 %v4730
        %v4732 = vlaneseq
        %v4733 = vshrl.u32 %v4732, 7
        %v4734 = vsub.s32 %v4731, %v4733
        %v4735 = vrot.slane %v4720, %v4734
        %v4737 = vunpack.c.l.s4 1934713408
        %v4738 = vunpack.c.0.s8 %v4737
        %v4739 = vlaneseq
        %v4740 = vshrl.u32 %v4739, 7
        %v4741 = vsub.s32 %v4738, %v4740
        %v4742 = vrot.slane %v4728, %v4741
        %v4743 = vcombine.high %v4727, 0.0
        %v4745 = vunpack.c.l.s4 1934713408
        %v4746 = vunpack.c.0.s8 %v4745
        %v4747 = vlaneseq
        %v4748 = vshrl.u32 %v4747, 7
        %v4749 = vsub.s32 %v4746, %v4748
        %v4750 = vrot.slane %v4727, %v4749
        %v4752 = vunpack.c.l.s4 1934713408
        %v4753 = vunpack.c.0.s8 %v4752
        %v4754 = vlaneseq
        %v4755 = vshrl.u32 %v4754, 7
        %v4756 = vsub.s32 %v4753, %v4755
        %v4757 = vrot.slane %v4743, %v4756
        %v4758 = vcombine.high %v4735, 0.0
        %v4759 = vcombine.high %v4742, 0.0
        %v4760 = vcombine.high %v4750, 0.0
        %v4761 = vcombine.high %v4757, 0.0
        %v4762 = vcombine.high %v1194, 0.0
        %v4764 = vunpack.c.l.s4 1983009808
        %v4765 = vunpack.c.0.s8 %v4764
        %v4766 = vlaneseq
        %v4767 = vshrl.u32 %v4766, 7
        %v4768 = vsub.s32 %v4765, %v4767
        %v4769 = vrot.slane %v1194, %v4768
        %v4771 = vunpack.c.l.s4 1983009808
        %v4772 = vunpack.c.0.s8 %v4771
        %v4773 = vlaneseq
        %v4774 = vshrl.u32 %v4773, 7
        %v4775 = vsub.s32 %v4772, %v4774
        %v4776 = vrot.slane %v4762, %v4775
        %v4777 = vcombine.high %v4769, 0.0
        %v4779 = vunpack.c.l.s4 1934713408
        %v4780 = vunpack.c.0.s8 %v4779
        %v4781 = vlaneseq
        %v4782 = vshrl.u32 %v4781, 7
        %v4783 = vsub.s32 %v4780, %v4782
        %v4784 = vrot.slane %v4769, %v4783
        %v4786 = vunpack.c.l.s4 1934713408
        %v4787 = vunpack.c.0.s8 %v4786
        %v4788 = vlaneseq
        %v4789 = vshrl.u32 %v4788, 7
        %v4790 = vsub.s32 %v4787, %v4789
        %v4791 = vrot.slane %v4777, %v4790
        %v4792 = vcombine.high %v4776, 0.0
        %v4794 = vunpack.c.l.s4 1934713408
        %v4795 = vunpack.c.0.s8 %v4794
        %v4796 = vlaneseq
        %v4797 = vshrl.u32 %v4796, 7
        %v4798 = vsub.s32 %v4795, %v4797
        %v4799 = vrot.slane %v4776, %v4798
        %v4801 = vunpack.c.l.s4 1934713408
        %v4802 = vunpack.c.0.s8 %v4801
        %v4803 = vlaneseq
        %v4804 = vshrl.u32 %v4803, 7
        %v4805 = vsub.s32 %v4802, %v4804
        %v4806 = vrot.slane %v4792, %v4805
        %v4807 = vcombine.high %v4784, 0.0
        %v4808 = vcombine.high %v4791, 0.0
        %v4809 = vcombine.high %v4799, 0.0
        %v4810 = vcombine.high %v4806, 0.0
        %v4811 = vcombine.high %v1195, 0.0
        %v4813 = vunpack.c.l.s4 1983009808
        %v4814 = vunpack.c.0.s8 %v4813
        %v4815 = vlaneseq
        %v4816 = vshrl.u32 %v4815, 7
        %v4817 = vsub.s32 %v4814, %v4816
        %v4818 = vrot.slane %v1195, %v4817
        %v4820 = vunpack.c.l.s4 1983009808
        %v4821 = vunpack.c.0.s8 %v4820
        %v4822 = vlaneseq
        %v4823 = vshrl.u32 %v4822, 7
        %v4824 = vsub.s32 %v4821, %v4823
        %v4825 = vrot.slane %v4811, %v4824
        %v4826 = vcombine.high %v4818, 0.0
        %v4828 = vunpack.c.l.s4 1934713408
        %v4829 = vunpack.c.0.s8 %v4828
        %v4830 = vlaneseq
        %v4831 = vshrl.u32 %v4830, 7
        %v4832 = vsub.s32 %v4829, %v4831
        %v4833 = vrot.slane %v4818, %v4832
        %v4835 = vunpack.c.l.s4 1934713408
        %v4836 = vunpack.c.0.s8 %v4835
        %v4837 = vlaneseq
        %v4838 = vshrl.u32 %v4837, 7
        %v4839 = vsub.s32 %v4836, %v4838
        %v4840 = vrot.slane %v4826, %v4839
        %v4841 = vcombine.high %v4825, 0.0
        %v4843 = vunpack.c.l.s4 1934713408
        %v4844 = vunpack.c.0.s8 %v4843
        %v4845 = vlaneseq
        %v4846 = vshrl.u32 %v4845, 7
        %v4847 = vsub.s32 %v4844, %v4846
        %v4848 = vrot.slane %v4825, %v4847
        %v4850 = vunpack.c.l.s4 1934713408
        %v4851 = vunpack.c.0.s8 %v4850
        %v4852 = vlaneseq
        %v4853 = vshrl.u32 %v4852, 7
        %v4854 = vsub.s32 %v4851, %v4853
        %v4855 = vrot.slane %v4841, %v4854
        %v4856 = vcombine.high %v4833, 0.0
        %v4857 = vcombine.high %v4840, 0.0
        %v4858 = vcombine.high %v4848, 0.0
        %v4859 = vcombine.high %v4855, 0.0
        %v4860 = vcombine.high %v1196, 0.0
        %v4862 = vunpack.c.l.s4 1983009808
        %v4863 = vunpack.c.0.s8 %v4862
        %v4864 = vlaneseq
        %v4865 = vshrl.u32 %v4864, 7
        %v4866 = vsub.s32 %v4863, %v4865
        %v4867 = vrot.slane %v1196, %v4866
        %v4869 = vunpack.c.l.s4 1983009808
        %v4870 = vunpack.c.0.s8 %v4869
        %v4871 = vlaneseq
        %v4872 = vshrl.u32 %v4871, 7
        %v4873 = vsub.s32 %v4870, %v4872
        %v4874 = vrot.slane %v4860, %v4873
        %v4875 = vcombine.high %v4867, 0.0
        %v4877 = vunpack.c.l.s4 1934713408
        %v4878 = vunpack.c.0.s8 %v4877
        %v4879 = vlaneseq
        %v4880 = vshrl.u32 %v4879, 7
        %v4881 = vsub.s32 %v4878, %v4880
        %v4882 = vrot.slane %v4867, %v4881
        %v4884 = vunpack.c.l.s4 1934713408
        %v4885 = vunpack.c.0.s8 %v4884
        %v4886 = vlaneseq
        %v4887 = vshrl.u32 %v4886, 7
        %v4888 = vsub.s32 %v4885, %v4887
        %v4889 = vrot.slane %v4875, %v4888
        %v4890 = vcombine.high %v4874, 0.0
        %v4892 = vunpack.c.l.s4 1934713408
        %v4893 = vunpack.c.0.s8 %v4892
        %v4894 = vlaneseq
        %v4895 = vshrl.u32 %v4894, 7
        %v4896 = vsub.s32 %v4893, %v4895
        %v4897 = vrot.slane %v4874, %v4896
        %v4899 = vunpack.c.l.s4 1934713408
        %v4900 = vunpack.c.0.s8 %v4899
        %v4901 = vlaneseq
        %v4902 = vshrl.u32 %v4901, 7
        %v4903 = vsub.s32 %v4900, %v4902
        %v4904 = vrot.slane %v4890, %v4903
        %v4905 = vcombine.high %v4882, 0.0
        %v4906 = vcombine.high %v4889, 0.0
        %v4907 = vcombine.high %v4897, 0.0
        %v4908 = vcombine.high %v4904, 0.0
        %v4909 = vcombine.high %v1197, 0.0
        %v4911 = vunpack.c.l.s4 1983009808
        %v4912 = vunpack.c.0.s8 %v4911
        %v4913 = vlaneseq
        %v4914 = vshrl.u32 %v4913, 7
        %v4915 = vsub.s32 %v4912, %v4914
        %v4916 = vrot.slane %v1197, %v4915
        %v4918 = vunpack.c.l.s4 1983009808
        %v4919 = vunpack.c.0.s8 %v4918
        %v4920 = vlaneseq
        %v4921 = vshrl.u32 %v4920, 7
        %v4922 = vsub.s32 %v4919, %v4921
        %v4923 = vrot.slane %v4909, %v4922
        %v4924 = vcombine.high %v4916, 0.0
        %v4926 = vunpack.c.l.s4 1934713408
        %v4927 = vunpack.c.0.s8 %v4926
        %v4928 = vlaneseq
        %v4929 = vshrl.u32 %v4928, 7
        %v4930 = vsub.s32 %v4927, %v4929
        %v4931 = vrot.slane %v4916, %v4930
        %v4933 = vunpack.c.l.s4 1934713408
        %v4934 = vunpack.c.0.s8 %v4933
        %v4935 = vlaneseq
        %v4936 = vshrl.u32 %v4935, 7
        %v4937 = vsub.s32 %v4934, %v4936
        %v4938 = vrot.slane %v4924, %v4937
        %v4939 = vcombine.high %v4923, 0.0
        %v4941 = vunpack.c.l.s4 1934713408
        %v4942 = vunpack.c.0.s8 %v4941
        %v4943 = vlaneseq
        %v4944 = vshrl.u32 %v4943, 7
        %v4945 = vsub.s32 %v4942, %v4944
        %v4946 = vrot.slane %v4923, %v4945
        %v4948 = vunpack.c.l.s4 1934713408
        %v4949 = vunpack.c.0.s8 %v4948
        %v4950 = vlaneseq
        %v4951 = vshrl.u32 %v4950, 7
        %v4952 = vsub.s32 %v4949, %v4951
        %v4953 = vrot.slane %v4939, %v4952
        %v4954 = vcombine.high %v4931, 0.0
        %v4955 = vcombine.high %v4938, 0.0
        %v4956 = vcombine.high %v4946, 0.0
        %v4957 = vcombine.high %v4953, 0.0
        %v4958 = vcombine.high %v1198, 0.0
        %v4960 = vunpack.c.l.s4 1983009808
        %v4961 = vunpack.c.0.s8 %v4960
        %v4962 = vlaneseq
        %v4963 = vshrl.u32 %v4962, 7
        %v4964 = vsub.s32 %v4961, %v4963
        %v4965 = vrot.slane %v1198, %v4964
        %v4967 = vunpack.c.l.s4 1983009808
        %v4968 = vunpack.c.0.s8 %v4967
        %v4969 = vlaneseq
        %v4970 = vshrl.u32 %v4969, 7
        %v4971 = vsub.s32 %v4968, %v4970
        %v4972 = vrot.slane %v4958, %v4971
        %v4973 = vcombine.high %v4965, 0.0
        %v4975 = vunpack.c.l.s4 1934713408
        %v4976 = vunpack.c.0.s8 %v4975
        %v4977 = vlaneseq
        %v4978 = vshrl.u32 %v4977, 7
        %v4979 = vsub.s32 %v4976, %v4978
        %v4980 = vrot.slane %v4965, %v4979
        %v4982 = vunpack.c.l.s4 1934713408
        %v4983 = vunpack.c.0.s8 %v4982
        %v4984 = vlaneseq
        %v4985 = vshrl.u32 %v4984, 7
        %v4986 = vsub.s32 %v4983, %v4985
        %v4987 = vrot.slane %v4973, %v4986
        %v4988 = vcombine.high %v4972, 0.0
        %v4990 = vunpack.c.l.s4 1934713408
        %v4991 = vunpack.c.0.s8 %v4990
        %v4992 = vlaneseq
        %v4993 = vshrl.u32 %v4992, 7
        %v4994 = vsub.s32 %v4991, %v4993
        %v4995 = vrot.slane %v4972, %v4994
        %v4997 = vunpack.c.l.s4 1934713408
        %v4998 = vunpack.c.0.s8 %v4997
        %v4999 = vlaneseq
        %v5000 = vshrl.u32 %v4999, 7
        %v5001 = vsub.s32 %v4998, %v5000
        %v5002 = vrot.slane %v4988, %v5001
        %v5003 = vcombine.high %v4980, 0.0
        %v5004 = vcombine.high %v4987, 0.0
        %v5005 = vcombine.high %v4995, 0.0
        %v5006 = vcombine.high %v5002, 0.0
        %v5007 = vcombine.high %v1199, 0.0
        %v5009 = vunpack.c.l.s4 1983009808
        %v5010 = vunpack.c.0.s8 %v5009
        %v5011 = vlaneseq
        %v5012 = vshrl.u32 %v5011, 7
        %v5013 = vsub.s32 %v5010, %v5012
        %v5014 = vrot.slane %v1199, %v5013
        %v5016 = vunpack.c.l.s4 1983009808
        %v5017 = vunpack.c.0.s8 %v5016
        %v5018 = vlaneseq
        %v5019 = vshrl.u32 %v5018, 7
        %v5020 = vsub.s32 %v5017, %v5019
        %v5021 = vrot.slane %v5007, %v5020
        %v5022 = vcombine.high %v5014, 0.0
        %v5024 = vunpack.c.l.s4 1934713408
        %v5025 = vunpack.c.0.s8 %v5024
        %v5026 = vlaneseq
        %v5027 = vshrl.u32 %v5026, 7
        %v5028 = vsub.s32 %v5025, %v5027
        %v5029 = vrot.slane %v5014, %v5028
        %v5031 = vunpack.c.l.s4 1934713408
        %v5032 = vunpack.c.0.s8 %v5031
        %v5033 = vlaneseq
        %v5034 = vshrl.u32 %v5033, 7
        %v5035 = vsub.s32 %v5032, %v5034
        %v5036 = vrot.slane %v5022, %v5035
        %v5037 = vcombine.high %v5021, 0.0
        %v5039 = vunpack.c.l.s4 1934713408
        %v5040 = vunpack.c.0.s8 %v5039
        %v5041 = vlaneseq
        %v5042 = vshrl.u32 %v5041, 7
        %v5043 = vsub.s32 %v5040, %v5042
        %v5044 = vrot.slane %v5021, %v5043
        %v5046 = vunpack.c.l.s4 1934713408
        %v5047 = vunpack.c.0.s8 %v5046
        %v5048 = vlaneseq
        %v5049 = vshrl.u32 %v5048, 7
        %v5050 = vsub.s32 %v5047, %v5049
        %v5051 = vrot.slane %v5037, %v5050
        %v5052 = vcombine.high %v5029, 0.0
        %v5053 = vcombine.high %v5036, 0.0
        %v5054 = vcombine.high %v5044, 0.0
        %v5055 = vcombine.high %v5051, 0.0
        %v5056 = vcombine.high %v1200, 0.0
        %v5058 = vunpack.c.l.s4 1983009808
        %v5059 = vunpack.c.0.s8 %v5058
        %v5060 = vlaneseq
        %v5061 = vshrl.u32 %v5060, 7
        %v5062 = vsub.s32 %v5059, %v5061
        %v5063 = vrot.slane %v1200, %v5062
        %v5065 = vunpack.c.l.s4 1983009808
        %v5066 = vunpack.c.0.s8 %v5065
        %v5067 = vlaneseq
        %v5068 = vshrl.u32 %v5067, 7
        %v5069 = vsub.s32 %v5066, %v5068
        %v5070 = vrot.slane %v5056, %v5069
        %v5071 = vcombine.high %v5063, 0.0
        %v5073 = vunpack.c.l.s4 1934713408
        %v5074 = vunpack.c.0.s8 %v5073
        %v5075 = vlaneseq
        %v5076 = vshrl.u32 %v5075, 7
        %v5077 = vsub.s32 %v5074, %v5076
        %v5078 = vrot.slane %v5063, %v5077
        %v5080 = vunpack.c.l.s4 1934713408
        %v5081 = vunpack.c.0.s8 %v5080
        %v5082 = vlaneseq
        %v5083 = vshrl.u32 %v5082, 7
        %v5084 = vsub.s32 %v5081, %v5083
        %v5085 = vrot.slane %v5071, %v5084
        %v5086 = vcombine.high %v5070, 0.0
        %v5088 = vunpack.c.l.s4 1934713408
        %v5089 = vunpack.c.0.s8 %v5088
        %v5090 = vlaneseq
        %v5091 = vshrl.u32 %v5090, 7
        %v5092 = vsub.s32 %v5089, %v5091
        %v5093 = vrot.slane %v5070, %v5092
        %v5095 = vunpack.c.l.s4 1934713408
        %v5096 = vunpack.c.0.s8 %v5095
        %v5097 = vlaneseq
        %v5098 = vshrl.u32 %v5097, 7
        %v5099 = vsub.s32 %v5096, %v5098
        %v5100 = vrot.slane %v5086, %v5099
        %v5101 = vcombine.high %v5078, 0.0
        %v5102 = vcombine.high %v5085, 0.0
        %v5103 = vcombine.high %v5093, 0.0
        %v5104 = vcombine.high %v5100, 0.0
        %5137 = vrot.lane.b32.xlu0 %v2014, 2
        %v5138 = vpop.permute.xlu0 %5137
        %5139 = vrot.lane.b32.xlu0 %v2112, 2
        %v5140 = vpop.permute.xlu0 %5139
        %5141 = vrot.lane.b32.xlu0 %v2210, 2
        %v5142 = vpop.permute.xlu0 %5141
        %5143 = vrot.lane.b32.xlu0 %v2308, 2
        %v5144 = vpop.permute.xlu0 %5143
        %5145 = vrot.lane.b32.xlu0 %v2406, 2
        %v5146 = vpop.permute.xlu0 %5145
        %5147 = vrot.lane.b32.xlu0 %v2504, 2
        %v5148 = vpop.permute.xlu0 %5147
        %5149 = vrot.lane.b32.xlu0 %v2602, 2
        %v5150 = vpop.permute.xlu0 %5149
        %5151 = vrot.lane.b32.xlu0 %v2700, 2
        %v5152 = vpop.permute.xlu0 %5151
        %5153 = vrot.lane.b32.xlu0 %v2798, 2
        %v5154 = vpop.permute.xlu0 %5153
        %5155 = vrot.lane.b32.xlu0 %v2896, 2
        %v5156 = vpop.permute.xlu0 %5155
        %5157 = vrot.lane.b32.xlu0 %v2994, 2
        %v5158 = vpop.permute.xlu0 %5157
        %5159 = vrot.lane.b32.xlu0 %v3092, 2
        %v5160 = vpop.permute.xlu0 %5159
        %5161 = vrot.lane.b32.xlu0 %v3190, 2
        %v5162 = vpop.permute.xlu0 %5161
        %5163 = vrot.lane.b32.xlu0 %v3288, 2
        %v5164 = vpop.permute.xlu0 %5163
        %5165 = vrot.lane.b32.xlu0 %v3386, 2
        %v5166 = vpop.permute.xlu0 %5165
        %5167 = vrot.lane.b32.xlu0 %v3484, 2
        %v5168 = vpop.permute.xlu0 %5167
        %5169 = vrot.lane.b32.xlu0 %v3582, 2
        %v5170 = vpop.permute.xlu0 %5169
        %5171 = vrot.lane.b32.xlu0 %v3680, 2
        %v5172 = vpop.permute.xlu0 %5171
        %5173 = vrot.lane.b32.xlu0 %v3778, 2
        %v5174 = vpop.permute.xlu0 %5173
        %5175 = vrot.lane.b32.xlu0 %v3876, 2
        %v5176 = vpop.permute.xlu0 %5175
        %5177 = vrot.lane.b32.xlu0 %v3974, 2
        %v5178 = vpop.permute.xlu0 %5177
        %5179 = vrot.lane.b32.xlu0 %v4072, 2
        %v5180 = vpop.permute.xlu0 %5179
        %5181 = vrot.lane.b32.xlu0 %v4170, 2
        %v5182 = vpop.permute.xlu0 %5181
        %5183 = vrot.lane.b32.xlu0 %v4268, 2
        %v5184 = vpop.permute.xlu0 %5183
        %5185 = vrot.lane.b32.xlu0 %v4366, 2
        %v5186 = vpop.permute.xlu0 %5185
        %5187 = vrot.lane.b32.xlu0 %v4464, 2
        %v5188 = vpop.permute.xlu0 %5187
        %5189 = vrot.lane.b32.xlu0 %v4562, 2
        %v5190 = vpop.permute.xlu0 %5189
        %5191 = vrot.lane.b32.xlu0 %v4660, 2
        %v5192 = vpop.permute.xlu0 %5191
        %5193 = vrot.lane.b32.xlu0 %v4758, 2
        %v5194 = vpop.permute.xlu0 %5193
        %5195 = vrot.lane.b32.xlu0 %v4856, 2
        %v5196 = vpop.permute.xlu0 %5195
        %5197 = vrot.lane.b32.xlu0 %v4954, 2
        %v5198 = vpop.permute.xlu0 %5197
        %5199 = vrot.lane.b32.xlu0 %v5052, 2
        %v5200 = vpop.permute.xlu0 %5199
        %5265 = vrot.lane.b32.xlu0 %v1998, 4
        %v5266 = vpop.permute.xlu0 %5265
        %5267 = vrot.lane.b32.xlu0 %v2096, 4
        %v5268 = vpop.permute.xlu0 %5267
        %5269 = vrot.lane.b32.xlu0 %v2194, 4
        %v5270 = vpop.permute.xlu0 %5269
        %5271 = vrot.lane.b32.xlu0 %v2292, 4
        %v5272 = vpop.permute.xlu0 %5271
        %5273 = vrot.lane.b32.xlu0 %v2390, 4
        %v5274 = vpop.permute.xlu0 %5273
        %5275 = vrot.lane.b32.xlu0 %v2488, 4
        %v5276 = vpop.permute.xlu0 %5275
        %5277 = vrot.lane.b32.xlu0 %v2586, 4
        %v5278 = vpop.permute.xlu0 %5277
        %5279 = vrot.lane.b32.xlu0 %v2684, 4
        %v5280 = vpop.permute.xlu0 %5279
        %5281 = vrot.lane.b32.xlu0 %v2782, 4
        %v5282 = vpop.permute.xlu0 %5281
        %5283 = vrot.lane.b32.xlu0 %v2880, 4
        %v5284 = vpop.permute.xlu0 %5283
        %5285 = vrot.lane.b32.xlu0 %v2978, 4
        %v5286 = vpop.permute.xlu0 %5285
        %5287 = vrot.lane.b32.xlu0 %v3076, 4
        %v5288 = vpop.permute.xlu0 %5287
        %5289 = vrot.lane.b32.xlu0 %v3174, 4
        %v5290 = vpop.permute.xlu0 %5289
        %5291 = vrot.lane.b32.xlu0 %v3272, 4
        %v5292 = vpop.permute.xlu0 %5291
        %5293 = vrot.lane.b32.xlu0 %v3370, 4
        %v5294 = vpop.permute.xlu0 %5293
        %5295 = vrot.lane.b32.xlu0 %v3468, 4
        %v5296 = vpop.permute.xlu0 %5295
        %5297 = vrot.lane.b32.xlu0 %v3566, 4
        %v5298 = vpop.permute.xlu0 %5297
        %5299 = vrot.lane.b32.xlu0 %v3664, 4
        %v5300 = vpop.permute.xlu0 %5299
        %5301 = vrot.lane.b32.xlu0 %v3762, 4
        %v5302 = vpop.permute.xlu0 %5301
        %5303 = vrot.lane.b32.xlu0 %v3860, 4
        %v5304 = vpop.permute.xlu0 %5303
        %5305 = vrot.lane.b32.xlu0 %v3958, 4
        %v5306 = vpop.permute.xlu0 %5305
        %5307 = vrot.lane.b32.xlu0 %v4056, 4
        %v5308 = vpop.permute.xlu0 %5307
        %5309 = vrot.lane.b32.xlu0 %v4154, 4
        %v5310 = vpop.permute.xlu0 %5309
        %5311 = vrot.lane.b32.xlu0 %v4252, 4
        %v5312 = vpop.permute.xlu0 %5311
        %5313 = vrot.lane.b32.xlu0 %v4350, 4
        %v5314 = vpop.permute.xlu0 %5313
        %5315 = vrot.lane.b32.xlu0 %v4448, 4
        %v5316 = vpop.permute.xlu0 %5315
        %5317 = vrot.lane.b32.xlu0 %v4546, 4
        %v5318 = vpop.permute.xlu0 %5317
        %5319 = vrot.lane.b32.xlu0 %v4644, 4
        %v5320 = vpop.permute.xlu0 %5319
        %5321 = vrot.lane.b32.xlu0 %v4742, 4
        %v5322 = vpop.permute.xlu0 %5321
        %5323 = vrot.lane.b32.xlu0 %v4840, 4
        %v5324 = vpop.permute.xlu0 %5323
        %5325 = vrot.lane.b32.xlu0 %v4938, 4
        %v5326 = vpop.permute.xlu0 %5325
        %5327 = vrot.lane.b32.xlu0 %v5036, 4
        %v5328 = vpop.permute.xlu0 %5327
        %5393 = vrot.lane.b32.xlu0 %v2015, 6
        %v5394 = vpop.permute.xlu0 %5393
        %5395 = vrot.lane.b32.xlu0 %v2113, 6
        %v5396 = vpop.permute.xlu0 %5395
        %5397 = vrot.lane.b32.xlu0 %v2211, 6
        %v5398 = vpop.permute.xlu0 %5397
        %5399 = vrot.lane.b32.xlu0 %v2309, 6
        %v5400 = vpop.permute.xlu0 %5399
        %5401 = vrot.lane.b32.xlu0 %v2407, 6
        %v5402 = vpop.permute.xlu0 %5401
        %5403 = vrot.lane.b32.xlu0 %v2505, 6
        %v5404 = vpop.permute.xlu0 %5403
        %5405 = vrot.lane.b32.xlu0 %v2603, 6
        %v5406 = vpop.permute.xlu0 %5405
        %5407 = vrot.lane.b32.xlu0 %v2701, 6
        %v5408 = vpop.permute.xlu0 %5407
        %5409 = vrot.lane.b32.xlu0 %v2799, 6
        %v5410 = vpop.permute.xlu0 %5409
        %5411 = vrot.lane.b32.xlu0 %v2897, 6
        %v5412 = vpop.permute.xlu0 %5411
        %5413 = vrot.lane.b32.xlu0 %v2995, 6
        %v5414 = vpop.permute.xlu0 %5413
        %5415 = vrot.lane.b32.xlu0 %v3093, 6
        %v5416 = vpop.permute.xlu0 %5415
        %5417 = vrot.lane.b32.xlu0 %v3191, 6
        %v5418 = vpop.permute.xlu0 %5417
        %5419 = vrot.lane.b32.xlu0 %v3289, 6
        %v5420 = vpop.permute.xlu0 %5419
        %5421 = vrot.lane.b32.xlu0 %v3387, 6
        %v5422 = vpop.permute.xlu0 %5421
        %5423 = vrot.lane.b32.xlu0 %v3485, 6
        %v5424 = vpop.permute.xlu0 %5423
        %5425 = vrot.lane.b32.xlu0 %v3583, 6
        %v5426 = vpop.permute.xlu0 %5425
        %5427 = vrot.lane.b32.xlu0 %v3681, 6
        %v5428 = vpop.permute.xlu0 %5427
        %5429 = vrot.lane.b32.xlu0 %v3779, 6
        %v5430 = vpop.permute.xlu0 %5429
        %5431 = vrot.lane.b32.xlu0 %v3877, 6
        %v5432 = vpop.permute.xlu0 %5431
        %5433 = vrot.lane.b32.xlu0 %v3975, 6
        %v5434 = vpop.permute.xlu0 %5433
        %5435 = vrot.lane.b32.xlu0 %v4073, 6
        %v5436 = vpop.permute.xlu0 %5435
        %5437 = vrot.lane.b32.xlu0 %v4171, 6
        %v5438 = vpop.permute.xlu0 %5437
        %5439 = vrot.lane.b32.xlu0 %v4269, 6
        %v5440 = vpop.permute.xlu0 %5439
        %5441 = vrot.lane.b32.xlu0 %v4367, 6
        %v5442 = vpop.permute.xlu0 %5441
        %5443 = vrot.lane.b32.xlu0 %v4465, 6
        %v5444 = vpop.permute.xlu0 %5443
        %5445 = vrot.lane.b32.xlu0 %v4563, 6
        %v5446 = vpop.permute.xlu0 %5445
        %5447 = vrot.lane.b32.xlu0 %v4661, 6
        %v5448 = vpop.permute.xlu0 %5447
        %5449 = vrot.lane.b32.xlu0 %v4759, 6
        %v5450 = vpop.permute.xlu0 %5449
        %5451 = vrot.lane.b32.xlu0 %v4857, 6
        %v5452 = vpop.permute.xlu0 %5451
        %5453 = vrot.lane.b32.xlu0 %v4955, 6
        %v5454 = vpop.permute.xlu0 %5453
        %5455 = vrot.lane.b32.xlu0 %v5053, 6
        %v5456 = vpop.permute.xlu0 %5455
        %5521 = vrot.lane.b32.xlu0 %v2006, 8
        %v5522 = vpop.permute.xlu0 %5521
        %5523 = vrot.lane.b32.xlu0 %v2104, 8
        %v5524 = vpop.permute.xlu0 %5523
        %5525 = vrot.lane.b32.xlu0 %v2202, 8
        %v5526 = vpop.permute.xlu0 %5525
        %5527 = vrot.lane.b32.xlu0 %v2300, 8
        %v5528 = vpop.permute.xlu0 %5527
        %5529 = vrot.lane.b32.xlu0 %v2398, 8
        %v5530 = vpop.permute.xlu0 %5529
        %5531 = vrot.lane.b32.xlu0 %v2496, 8
        %v5532 = vpop.permute.xlu0 %5531
        %5533 = vrot.lane.b32.xlu0 %v2594, 8
        %v5534 = vpop.permute.xlu0 %5533
        %5535 = vrot.lane.b32.xlu0 %v2692, 8
        %v5536 = vpop.permute.xlu0 %5535
        %5537 = vrot.lane.b32.xlu0 %v2790, 8
        %v5538 = vpop.permute.xlu0 %5537
        %5539 = vrot.lane.b32.xlu0 %v2888, 8
        %v5540 = vpop.permute.xlu0 %5539
        %5541 = vrot.lane.b32.xlu0 %v2986, 8
        %v5542 = vpop.permute.xlu0 %5541
        %5543 = vrot.lane.b32.xlu0 %v3084, 8
        %v5544 = vpop.permute.xlu0 %5543
        %5545 = vrot.lane.b32.xlu0 %v3182, 8
        %v5546 = vpop.permute.xlu0 %5545
        %5547 = vrot.lane.b32.xlu0 %v3280, 8
        %v5548 = vpop.permute.xlu0 %5547
        %5549 = vrot.lane.b32.xlu0 %v3378, 8
        %v5550 = vpop.permute.xlu0 %5549
        %5551 = vrot.lane.b32.xlu0 %v3476, 8
        %v5552 = vpop.permute.xlu0 %5551
        %5553 = vrot.lane.b32.xlu0 %v3574, 8
        %v5554 = vpop.permute.xlu0 %5553
        %5555 = vrot.lane.b32.xlu0 %v3672, 8
        %v5556 = vpop.permute.xlu0 %5555
        %5557 = vrot.lane.b32.xlu0 %v3770, 8
        %v5558 = vpop.permute.xlu0 %5557
        %5559 = vrot.lane.b32.xlu0 %v3868, 8
        %v5560 = vpop.permute.xlu0 %5559
        %5561 = vrot.lane.b32.xlu0 %v3966, 8
        %v5562 = vpop.permute.xlu0 %5561
        %5563 = vrot.lane.b32.xlu0 %v4064, 8
        %v5564 = vpop.permute.xlu0 %5563
        %5565 = vrot.lane.b32.xlu0 %v4162, 8
        %v5566 = vpop.permute.xlu0 %5565
        %5567 = vrot.lane.b32.xlu0 %v4260, 8
        %v5568 = vpop.permute.xlu0 %5567
        %5569 = vrot.lane.b32.xlu0 %v4358, 8
        %v5570 = vpop.permute.xlu0 %5569
        %5571 = vrot.lane.b32.xlu0 %v4456, 8
        %v5572 = vpop.permute.xlu0 %5571
        %5573 = vrot.lane.b32.xlu0 %v4554, 8
        %v5574 = vpop.permute.xlu0 %5573
        %5575 = vrot.lane.b32.xlu0 %v4652, 8
        %v5576 = vpop.permute.xlu0 %5575
        %5577 = vrot.lane.b32.xlu0 %v4750, 8
        %v5578 = vpop.permute.xlu0 %5577
        %5579 = vrot.lane.b32.xlu0 %v4848, 8
        %v5580 = vpop.permute.xlu0 %5579
        %5581 = vrot.lane.b32.xlu0 %v4946, 8
        %v5582 = vpop.permute.xlu0 %5581
        %5583 = vrot.lane.b32.xlu0 %v5044, 8
        %v5584 = vpop.permute.xlu0 %5583
        %5649 = vrot.lane.b32.xlu0 %v2016, 10
        %v5650 = vpop.permute.xlu0 %5649
        %5651 = vrot.lane.b32.xlu0 %v2114, 10
        %v5652 = vpop.permute.xlu0 %5651
        %5653 = vrot.lane.b32.xlu0 %v2212, 10
        %v5654 = vpop.permute.xlu0 %5653
        %5655 = vrot.lane.b32.xlu0 %v2310, 10
        %v5656 = vpop.permute.xlu0 %5655
        %5657 = vrot.lane.b32.xlu0 %v2408, 10
        %v5658 = vpop.permute.xlu0 %5657
        %5659 = vrot.lane.b32.xlu0 %v2506, 10
        %v5660 = vpop.permute.xlu0 %5659
        %5661 = vrot.lane.b32.xlu0 %v2604, 10
        %v5662 = vpop.permute.xlu0 %5661
        %5663 = vrot.lane.b32.xlu0 %v2702, 10
        %v5664 = vpop.permute.xlu0 %5663
        %5665 = vrot.lane.b32.xlu0 %v2800, 10
        %v5666 = vpop.permute.xlu0 %5665
        %5667 = vrot.lane.b32.xlu0 %v2898, 10
        %v5668 = vpop.permute.xlu0 %5667
        %5669 = vrot.lane.b32.xlu0 %v2996, 10
        %v5670 = vpop.permute.xlu0 %5669
        %5671 = vrot.lane.b32.xlu0 %v3094, 10
        %v5672 = vpop.permute.xlu0 %5671
        %5673 = vrot.lane.b32.xlu0 %v3192, 10
        %v5674 = vpop.permute.xlu0 %5673
        %5675 = vrot.lane.b32.xlu0 %v3290, 10
        %v5676 = vpop.permute.xlu0 %5675
        %5677 = vrot.lane.b32.xlu0 %v3388, 10
        %v5678 = vpop.permute.xlu0 %5677
        %5679 = vrot.lane.b32.xlu0 %v3486, 10
        %v5680 = vpop.permute.xlu0 %5679
        %5681 = vrot.lane.b32.xlu0 %v3584, 10
        %v5682 = vpop.permute.xlu0 %5681
        %5683 = vrot.lane.b32.xlu0 %v3682, 10
        %v5684 = vpop.permute.xlu0 %5683
        %5685 = vrot.lane.b32.xlu0 %v3780, 10
        %v5686 = vpop.permute.xlu0 %5685
        %5687 = vrot.lane.b32.xlu0 %v3878, 10
        %v5688 = vpop.permute.xlu0 %5687
        %5689 = vrot.lane.b32.xlu0 %v3976, 10
        %v5690 = vpop.permute.xlu0 %5689
        %5691 = vrot.lane.b32.xlu0 %v4074, 10
        %v5692 = vpop.permute.xlu0 %5691
        %5693 = vrot.lane.b32.xlu0 %v4172, 10
        %v5694 = vpop.permute.xlu0 %5693
        %5695 = vrot.lane.b32.xlu0 %v4270, 10
        %v5696 = vpop.permute.xlu0 %5695
        %5697 = vrot.lane.b32.xlu0 %v4368, 10
        %v5698 = vpop.permute.xlu0 %5697
        %5699 = vrot.lane.b32.xlu0 %v4466, 10
        %v5700 = vpop.permute.xlu0 %5699
        %5701 = vrot.lane.b32.xlu0 %v4564, 10
        %v5702 = vpop.permute.xlu0 %5701
        %5703 = vrot.lane.b32.xlu0 %v4662, 10
        %v5704 = vpop.permute.xlu0 %5703
        %5705 = vrot.lane.b32.xlu0 %v4760, 10
        %v5706 = vpop.permute.xlu0 %5705
        %5707 = vrot.lane.b32.xlu0 %v4858, 10
        %v5708 = vpop.permute.xlu0 %5707
        %5709 = vrot.lane.b32.xlu0 %v4956, 10
        %v5710 = vpop.permute.xlu0 %5709
        %5711 = vrot.lane.b32.xlu0 %v5054, 10
        %v5712 = vpop.permute.xlu0 %5711
        %5777 = vrot.lane.b32.xlu0 %v2013, 12
        %v5778 = vpop.permute.xlu0 %5777
        %5779 = vrot.lane.b32.xlu0 %v2111, 12
        %v5780 = vpop.permute.xlu0 %5779
        %5781 = vrot.lane.b32.xlu0 %v2209, 12
        %v5782 = vpop.permute.xlu0 %5781
        %5783 = vrot.lane.b32.xlu0 %v2307, 12
        %v5784 = vpop.permute.xlu0 %5783
        %5785 = vrot.lane.b32.xlu0 %v2405, 12
        %v5786 = vpop.permute.xlu0 %5785
        %5787 = vrot.lane.b32.xlu0 %v2503, 12
        %v5788 = vpop.permute.xlu0 %5787
        %5789 = vrot.lane.b32.xlu0 %v2601, 12
        %v5790 = vpop.permute.xlu0 %5789
        %5791 = vrot.lane.b32.xlu0 %v2699, 12
        %v5792 = vpop.permute.xlu0 %5791
        %5793 = vrot.lane.b32.xlu0 %v2797, 12
        %v5794 = vpop.permute.xlu0 %5793
        %5795 = vrot.lane.b32.xlu0 %v2895, 12
        %v5796 = vpop.permute.xlu0 %5795
        %5797 = vrot.lane.b32.xlu0 %v2993, 12
        %v5798 = vpop.permute.xlu0 %5797
        %5799 = vrot.lane.b32.xlu0 %v3091, 12
        %v5800 = vpop.permute.xlu0 %5799
        %5801 = vrot.lane.b32.xlu0 %v3189, 12
        %v5802 = vpop.permute.xlu0 %5801
        %5803 = vrot.lane.b32.xlu0 %v3287, 12
        %v5804 = vpop.permute.xlu0 %5803
        %5805 = vrot.lane.b32.xlu0 %v3385, 12
        %v5806 = vpop.permute.xlu0 %5805
        %5807 = vrot.lane.b32.xlu0 %v3483, 12
        %v5808 = vpop.permute.xlu0 %5807
        %5809 = vrot.lane.b32.xlu0 %v3581, 12
        %v5810 = vpop.permute.xlu0 %5809
        %5811 = vrot.lane.b32.xlu0 %v3679, 12
        %v5812 = vpop.permute.xlu0 %5811
        %5813 = vrot.lane.b32.xlu0 %v3777, 12
        %v5814 = vpop.permute.xlu0 %5813
        %5815 = vrot.lane.b32.xlu0 %v3875, 12
        %v5816 = vpop.permute.xlu0 %5815
        %5817 = vrot.lane.b32.xlu0 %v3973, 12
        %v5818 = vpop.permute.xlu0 %5817
        %5819 = vrot.lane.b32.xlu0 %v4071, 12
        %v5820 = vpop.permute.xlu0 %5819
        %5821 = vrot.lane.b32.xlu0 %v4169, 12
        %v5822 = vpop.permute.xlu0 %5821
        %5823 = vrot.lane.b32.xlu0 %v4267, 12
        %v5824 = vpop.permute.xlu0 %5823
        %5825 = vrot.lane.b32.xlu0 %v4365, 12
        %v5826 = vpop.permute.xlu0 %5825
        %5827 = vrot.lane.b32.xlu0 %v4463, 12
        %v5828 = vpop.permute.xlu0 %5827
        %5829 = vrot.lane.b32.xlu0 %v4561, 12
        %v5830 = vpop.permute.xlu0 %5829
        %5831 = vrot.lane.b32.xlu0 %v4659, 12
        %v5832 = vpop.permute.xlu0 %5831
        %5833 = vrot.lane.b32.xlu0 %v4757, 12
        %v5834 = vpop.permute.xlu0 %5833
        %5835 = vrot.lane.b32.xlu0 %v4855, 12
        %v5836 = vpop.permute.xlu0 %5835
        %5837 = vrot.lane.b32.xlu0 %v4953, 12
        %v5838 = vpop.permute.xlu0 %5837
        %5839 = vrot.lane.b32.xlu0 %v5051, 12
        %v5840 = vpop.permute.xlu0 %5839
        %5905 = vrot.lane.b32.xlu0 %v2017, 14
        %v5906 = vpop.permute.xlu0 %5905
        %5907 = vrot.lane.b32.xlu0 %v2115, 14
        %v5908 = vpop.permute.xlu0 %5907
        %5909 = vrot.lane.b32.xlu0 %v2213, 14
        %v5910 = vpop.permute.xlu0 %5909
        %5911 = vrot.lane.b32.xlu0 %v2311, 14
        %v5912 = vpop.permute.xlu0 %5911
        %5913 = vrot.lane.b32.xlu0 %v2409, 14
        %v5914 = vpop.permute.xlu0 %5913
        %5915 = vrot.lane.b32.xlu0 %v2507, 14
        %v5916 = vpop.permute.xlu0 %5915
        %5917 = vrot.lane.b32.xlu0 %v2605, 14
        %v5918 = vpop.permute.xlu0 %5917
        %5919 = vrot.lane.b32.xlu0 %v2703, 14
        %v5920 = vpop.permute.xlu0 %5919
        %5921 = vrot.lane.b32.xlu0 %v2801, 14
        %v5922 = vpop.permute.xlu0 %5921
        %5923 = vrot.lane.b32.xlu0 %v2899, 14
        %v5924 = vpop.permute.xlu0 %5923
        %5925 = vrot.lane.b32.xlu0 %v2997, 14
        %v5926 = vpop.permute.xlu0 %5925
        %5927 = vrot.lane.b32.xlu0 %v3095, 14
        %v5928 = vpop.permute.xlu0 %5927
        %5929 = vrot.lane.b32.xlu0 %v3193, 14
        %v5930 = vpop.permute.xlu0 %5929
        %5931 = vrot.lane.b32.xlu0 %v3291, 14
        %v5932 = vpop.permute.xlu0 %5931
        %5933 = vrot.lane.b32.xlu0 %v3389, 14
        %v5934 = vpop.permute.xlu0 %5933
        %5935 = vrot.lane.b32.xlu0 %v3487, 14
        %v5936 = vpop.permute.xlu0 %5935
        %5937 = vrot.lane.b32.xlu0 %v3585, 14
        %v5938 = vpop.permute.xlu0 %5937
        %5939 = vrot.lane.b32.xlu0 %v3683, 14
        %v5940 = vpop.permute.xlu0 %5939
        %5941 = vrot.lane.b32.xlu0 %v3781, 14
        %v5942 = vpop.permute.xlu0 %5941
        %5943 = vrot.lane.b32.xlu0 %v3879, 14
        %v5944 = vpop.permute.xlu0 %5943
        %5945 = vrot.lane.b32.xlu0 %v3977, 14
        %v5946 = vpop.permute.xlu0 %5945
        %5947 = vrot.lane.b32.xlu0 %v4075, 14
        %v5948 = vpop.permute.xlu0 %5947
        %5949 = vrot.lane.b32.xlu0 %v4173, 14
        %v5950 = vpop.permute.xlu0 %5949
        %5951 = vrot.lane.b32.xlu0 %v4271, 14
        %v5952 = vpop.permute.xlu0 %5951
        %5953 = vrot.lane.b32.xlu0 %v4369, 14
        %v5954 = vpop.permute.xlu0 %5953
        %5955 = vrot.lane.b32.xlu0 %v4467, 14
        %v5956 = vpop.permute.xlu0 %5955
        %5957 = vrot.lane.b32.xlu0 %v4565, 14
        %v5958 = vpop.permute.xlu0 %5957
        %5959 = vrot.lane.b32.xlu0 %v4663, 14
        %v5960 = vpop.permute.xlu0 %5959
        %5961 = vrot.lane.b32.xlu0 %v4761, 14
        %v5962 = vpop.permute.xlu0 %5961
        %5963 = vrot.lane.b32.xlu0 %v4859, 14
        %v5964 = vpop.permute.xlu0 %5963
        %5965 = vrot.lane.b32.xlu0 %v4957, 14
        %v5966 = vpop.permute.xlu0 %5965
        %5967 = vrot.lane.b32.xlu0 %v5055, 14
        %v5968 = vpop.permute.xlu0 %5967
        %6033 = vrot.lane.b32.xlu0 %v2040, 16
        %v6034 = vpop.permute.xlu0 %6033
        %6035 = vrot.lane.b32.xlu0 %v2138, 16
        %v6036 = vpop.permute.xlu0 %6035
        %6037 = vrot.lane.b32.xlu0 %v2236, 16
        %v6038 = vpop.permute.xlu0 %6037
        %6039 = vrot.lane.b32.xlu0 %v2334, 16
        %v6040 = vpop.permute.xlu0 %6039
        %6041 = vrot.lane.b32.xlu0 %v2432, 16
        %v6042 = vpop.permute.xlu0 %6041
        %6043 = vrot.lane.b32.xlu0 %v2530, 16
        %v6044 = vpop.permute.xlu0 %6043
        %6045 = vrot.lane.b32.xlu0 %v2628, 16
        %v6046 = vpop.permute.xlu0 %6045
        %6047 = vrot.lane.b32.xlu0 %v2726, 16
        %v6048 = vpop.permute.xlu0 %6047
        %6049 = vrot.lane.b32.xlu0 %v2824, 16
        %v6050 = vpop.permute.xlu0 %6049
        %6051 = vrot.lane.b32.xlu0 %v2922, 16
        %v6052 = vpop.permute.xlu0 %6051
        %6053 = vrot.lane.b32.xlu0 %v3020, 16
        %v6054 = vpop.permute.xlu0 %6053
        %6055 = vrot.lane.b32.xlu0 %v3118, 16
        %v6056 = vpop.permute.xlu0 %6055
        %6057 = vrot.lane.b32.xlu0 %v3216, 16
        %v6058 = vpop.permute.xlu0 %6057
        %6059 = vrot.lane.b32.xlu0 %v3314, 16
        %v6060 = vpop.permute.xlu0 %6059
        %6061 = vrot.lane.b32.xlu0 %v3412, 16
        %v6062 = vpop.permute.xlu0 %6061
        %6063 = vrot.lane.b32.xlu0 %v3510, 16
        %v6064 = vpop.permute.xlu0 %6063
        %6065 = vrot.lane.b32.xlu0 %v3608, 16
        %v6066 = vpop.permute.xlu0 %6065
        %6067 = vrot.lane.b32.xlu0 %v3706, 16
        %v6068 = vpop.permute.xlu0 %6067
        %6069 = vrot.lane.b32.xlu0 %v3804, 16
        %v6070 = vpop.permute.xlu0 %6069
        %6071 = vrot.lane.b32.xlu0 %v3902, 16
        %v6072 = vpop.permute.xlu0 %6071
        %6073 = vrot.lane.b32.xlu0 %v4000, 16
        %v6074 = vpop.permute.xlu0 %6073
        %6075 = vrot.lane.b32.xlu0 %v4098, 16
        %v6076 = vpop.permute.xlu0 %6075
        %6077 = vrot.lane.b32.xlu0 %v4196, 16
        %v6078 = vpop.permute.xlu0 %6077
        %6079 = vrot.lane.b32.xlu0 %v4294, 16
        %v6080 = vpop.permute.xlu0 %6079
        %6081 = vrot.lane.b32.xlu0 %v4392, 16
        %v6082 = vpop.permute.xlu0 %6081
        %6083 = vrot.lane.b32.xlu0 %v4490, 16
        %v6084 = vpop.permute.xlu0 %6083
        %6085 = vrot.lane.b32.xlu0 %v4588, 16
        %v6086 = vpop.permute.xlu0 %6085
        %6087 = vrot.lane.b32.xlu0 %v4686, 16
        %v6088 = vpop.permute.xlu0 %6087
        %6089 = vrot.lane.b32.xlu0 %v4784, 16
        %v6090 = vpop.permute.xlu0 %6089
        %6091 = vrot.lane.b32.xlu0 %v4882, 16
        %v6092 = vpop.permute.xlu0 %6091
        %6093 = vrot.lane.b32.xlu0 %v4980, 16
        %v6094 = vpop.permute.xlu0 %6093
        %6095 = vrot.lane.b32.xlu0 %v5078, 16
        %v6096 = vpop.permute.xlu0 %6095
        %6161 = vrot.lane.b32.xlu0 %v2063, 18
        %v6162 = vpop.permute.xlu0 %6161
        %6163 = vrot.lane.b32.xlu0 %v2161, 18
        %v6164 = vpop.permute.xlu0 %6163
        %6165 = vrot.lane.b32.xlu0 %v2259, 18
        %v6166 = vpop.permute.xlu0 %6165
        %6167 = vrot.lane.b32.xlu0 %v2357, 18
        %v6168 = vpop.permute.xlu0 %6167
        %6169 = vrot.lane.b32.xlu0 %v2455, 18
        %v6170 = vpop.permute.xlu0 %6169
        %6171 = vrot.lane.b32.xlu0 %v2553, 18
        %v6172 = vpop.permute.xlu0 %6171
        %6173 = vrot.lane.b32.xlu0 %v2651, 18
        %v6174 = vpop.permute.xlu0 %6173
        %6175 = vrot.lane.b32.xlu0 %v2749, 18
        %v6176 = vpop.permute.xlu0 %6175
        %6177 = vrot.lane.b32.xlu0 %v2847, 18
        %v6178 = vpop.permute.xlu0 %6177
        %6179 = vrot.lane.b32.xlu0 %v2945, 18
        %v6180 = vpop.permute.xlu0 %6179
        %6181 = vrot.lane.b32.xlu0 %v3043, 18
        %v6182 = vpop.permute.xlu0 %6181
        %6183 = vrot.lane.b32.xlu0 %v3141, 18
        %v6184 = vpop.permute.xlu0 %6183
        %6185 = vrot.lane.b32.xlu0 %v3239, 18
        %v6186 = vpop.permute.xlu0 %6185
        %6187 = vrot.lane.b32.xlu0 %v3337, 18
        %v6188 = vpop.permute.xlu0 %6187
        %6189 = vrot.lane.b32.xlu0 %v3435, 18
        %v6190 = vpop.permute.xlu0 %6189
        %6191 = vrot.lane.b32.xlu0 %v3533, 18
        %v6192 = vpop.permute.xlu0 %6191
        %6193 = vrot.lane.b32.xlu0 %v3631, 18
        %v6194 = vpop.permute.xlu0 %6193
        %6195 = vrot.lane.b32.xlu0 %v3729, 18
        %v6196 = vpop.permute.xlu0 %6195
        %6197 = vrot.lane.b32.xlu0 %v3827, 18
        %v6198 = vpop.permute.xlu0 %6197
        %6199 = vrot.lane.b32.xlu0 %v3925, 18
        %v6200 = vpop.permute.xlu0 %6199
        %6201 = vrot.lane.b32.xlu0 %v4023, 18
        %v6202 = vpop.permute.xlu0 %6201
        %6203 = vrot.lane.b32.xlu0 %v4121, 18
        %v6204 = vpop.permute.xlu0 %6203
        %6205 = vrot.lane.b32.xlu0 %v4219, 18
        %v6206 = vpop.permute.xlu0 %6205
        %6207 = vrot.lane.b32.xlu0 %v4317, 18
        %v6208 = vpop.permute.xlu0 %6207
        %6209 = vrot.lane.b32.xlu0 %v4415, 18
        %v6210 = vpop.permute.xlu0 %6209
        %6211 = vrot.lane.b32.xlu0 %v4513, 18
        %v6212 = vpop.permute.xlu0 %6211
        %6213 = vrot.lane.b32.xlu0 %v4611, 18
        %v6214 = vpop.permute.xlu0 %6213
        %6215 = vrot.lane.b32.xlu0 %v4709, 18
        %v6216 = vpop.permute.xlu0 %6215
        %6217 = vrot.lane.b32.xlu0 %v4807, 18
        %v6218 = vpop.permute.xlu0 %6217
        %6219 = vrot.lane.b32.xlu0 %v4905, 18
        %v6220 = vpop.permute.xlu0 %6219
        %6221 = vrot.lane.b32.xlu0 %v5003, 18
        %v6222 = vpop.permute.xlu0 %6221
        %6223 = vrot.lane.b32.xlu0 %v5101, 18
        %v6224 = vpop.permute.xlu0 %6223
        %6289 = vrot.lane.b32.xlu0 %v2047, 20
        %v6290 = vpop.permute.xlu0 %6289
        %6291 = vrot.lane.b32.xlu0 %v2145, 20
        %v6292 = vpop.permute.xlu0 %6291
        %6293 = vrot.lane.b32.xlu0 %v2243, 20
        %v6294 = vpop.permute.xlu0 %6293
        %6295 = vrot.lane.b32.xlu0 %v2341, 20
        %v6296 = vpop.permute.xlu0 %6295
        %6297 = vrot.lane.b32.xlu0 %v2439, 20
        %v6298 = vpop.permute.xlu0 %6297
        %6299 = vrot.lane.b32.xlu0 %v2537, 20
        %v6300 = vpop.permute.xlu0 %6299
        %6301 = vrot.lane.b32.xlu0 %v2635, 20
        %v6302 = vpop.permute.xlu0 %6301
        %6303 = vrot.lane.b32.xlu0 %v2733, 20
        %v6304 = vpop.permute.xlu0 %6303
        %6305 = vrot.lane.b32.xlu0 %v2831, 20
        %v6306 = vpop.permute.xlu0 %6305
        %6307 = vrot.lane.b32.xlu0 %v2929, 20
        %v6308 = vpop.permute.xlu0 %6307
        %6309 = vrot.lane.b32.xlu0 %v3027, 20
        %v6310 = vpop.permute.xlu0 %6309
        %6311 = vrot.lane.b32.xlu0 %v3125, 20
        %v6312 = vpop.permute.xlu0 %6311
        %6313 = vrot.lane.b32.xlu0 %v3223, 20
        %v6314 = vpop.permute.xlu0 %6313
        %6315 = vrot.lane.b32.xlu0 %v3321, 20
        %v6316 = vpop.permute.xlu0 %6315
        %6317 = vrot.lane.b32.xlu0 %v3419, 20
        %v6318 = vpop.permute.xlu0 %6317
        %6319 = vrot.lane.b32.xlu0 %v3517, 20
        %v6320 = vpop.permute.xlu0 %6319
        %6321 = vrot.lane.b32.xlu0 %v3615, 20
        %v6322 = vpop.permute.xlu0 %6321
        %6323 = vrot.lane.b32.xlu0 %v3713, 20
        %v6324 = vpop.permute.xlu0 %6323
        %6325 = vrot.lane.b32.xlu0 %v3811, 20
        %v6326 = vpop.permute.xlu0 %6325
        %6327 = vrot.lane.b32.xlu0 %v3909, 20
        %v6328 = vpop.permute.xlu0 %6327
        %6329 = vrot.lane.b32.xlu0 %v4007, 20
        %v6330 = vpop.permute.xlu0 %6329
        %6331 = vrot.lane.b32.xlu0 %v4105, 20
        %v6332 = vpop.permute.xlu0 %6331
        %6333 = vrot.lane.b32.xlu0 %v4203, 20
        %v6334 = vpop.permute.xlu0 %6333
        %6335 = vrot.lane.b32.xlu0 %v4301, 20
        %v6336 = vpop.permute.xlu0 %6335
        %6337 = vrot.lane.b32.xlu0 %v4399, 20
        %v6338 = vpop.permute.xlu0 %6337
        %6339 = vrot.lane.b32.xlu0 %v4497, 20
        %v6340 = vpop.permute.xlu0 %6339
        %6341 = vrot.lane.b32.xlu0 %v4595, 20
        %v6342 = vpop.permute.xlu0 %6341
        %6343 = vrot.lane.b32.xlu0 %v4693, 20
        %v6344 = vpop.permute.xlu0 %6343
        %6345 = vrot.lane.b32.xlu0 %v4791, 20
        %v6346 = vpop.permute.xlu0 %6345
        %6347 = vrot.lane.b32.xlu0 %v4889, 20
        %v6348 = vpop.permute.xlu0 %6347
        %6349 = vrot.lane.b32.xlu0 %v4987, 20
        %v6350 = vpop.permute.xlu0 %6349
        %6351 = vrot.lane.b32.xlu0 %v5085, 20
        %v6352 = vpop.permute.xlu0 %6351
        %6417 = vrot.lane.b32.xlu0 %v2064, 22
        %v6418 = vpop.permute.xlu0 %6417
        %6419 = vrot.lane.b32.xlu0 %v2162, 22
        %v6420 = vpop.permute.xlu0 %6419
        %6421 = vrot.lane.b32.xlu0 %v2260, 22
        %v6422 = vpop.permute.xlu0 %6421
        %6423 = vrot.lane.b32.xlu0 %v2358, 22
        %v6424 = vpop.permute.xlu0 %6423
        %6425 = vrot.lane.b32.xlu0 %v2456, 22
        %v6426 = vpop.permute.xlu0 %6425
        %6427 = vrot.lane.b32.xlu0 %v2554, 22
        %v6428 = vpop.permute.xlu0 %6427
        %6429 = vrot.lane.b32.xlu0 %v2652, 22
        %v6430 = vpop.permute.xlu0 %6429
        %6431 = vrot.lane.b32.xlu0 %v2750, 22
        %v6432 = vpop.permute.xlu0 %6431
        %6433 = vrot.lane.b32.xlu0 %v2848, 22
        %v6434 = vpop.permute.xlu0 %6433
        %6435 = vrot.lane.b32.xlu0 %v2946, 22
        %v6436 = vpop.permute.xlu0 %6435
        %6437 = vrot.lane.b32.xlu0 %v3044, 22
        %v6438 = vpop.permute.xlu0 %6437
        %6439 = vrot.lane.b32.xlu0 %v3142, 22
        %v6440 = vpop.permute.xlu0 %6439
        %6441 = vrot.lane.b32.xlu0 %v3240, 22
        %v6442 = vpop.permute.xlu0 %6441
        %6443 = vrot.lane.b32.xlu0 %v3338, 22
        %v6444 = vpop.permute.xlu0 %6443
        %6445 = vrot.lane.b32.xlu0 %v3436, 22
        %v6446 = vpop.permute.xlu0 %6445
        %6447 = vrot.lane.b32.xlu0 %v3534, 22
        %v6448 = vpop.permute.xlu0 %6447
        %6449 = vrot.lane.b32.xlu0 %v3632, 22
        %v6450 = vpop.permute.xlu0 %6449
        %6451 = vrot.lane.b32.xlu0 %v3730, 22
        %v6452 = vpop.permute.xlu0 %6451
        %6453 = vrot.lane.b32.xlu0 %v3828, 22
        %v6454 = vpop.permute.xlu0 %6453
        %6455 = vrot.lane.b32.xlu0 %v3926, 22
        %v6456 = vpop.permute.xlu0 %6455
        %6457 = vrot.lane.b32.xlu0 %v4024, 22
        %v6458 = vpop.permute.xlu0 %6457
        %6459 = vrot.lane.b32.xlu0 %v4122, 22
        %v6460 = vpop.permute.xlu0 %6459
        %6461 = vrot.lane.b32.xlu0 %v4220, 22
        %v6462 = vpop.permute.xlu0 %6461
        %6463 = vrot.lane.b32.xlu0 %v4318, 22
        %v6464 = vpop.permute.xlu0 %6463
        %6465 = vrot.lane.b32.xlu0 %v4416, 22
        %v6466 = vpop.permute.xlu0 %6465
        %6467 = vrot.lane.b32.xlu0 %v4514, 22
        %v6468 = vpop.permute.xlu0 %6467
        %6469 = vrot.lane.b32.xlu0 %v4612, 22
        %v6470 = vpop.permute.xlu0 %6469
        %6471 = vrot.lane.b32.xlu0 %v4710, 22
        %v6472 = vpop.permute.xlu0 %6471
        %6473 = vrot.lane.b32.xlu0 %v4808, 22
        %v6474 = vpop.permute.xlu0 %6473
        %6475 = vrot.lane.b32.xlu0 %v4906, 22
        %v6476 = vpop.permute.xlu0 %6475
        %6477 = vrot.lane.b32.xlu0 %v5004, 22
        %v6478 = vpop.permute.xlu0 %6477
        %6479 = vrot.lane.b32.xlu0 %v5102, 22
        %v6480 = vpop.permute.xlu0 %6479
        %6545 = vrot.lane.b32.xlu0 %v2055, 24
        %v6546 = vpop.permute.xlu0 %6545
        %6547 = vrot.lane.b32.xlu0 %v2153, 24
        %v6548 = vpop.permute.xlu0 %6547
        %6549 = vrot.lane.b32.xlu0 %v2251, 24
        %v6550 = vpop.permute.xlu0 %6549
        %6551 = vrot.lane.b32.xlu0 %v2349, 24
        %v6552 = vpop.permute.xlu0 %6551
        %6553 = vrot.lane.b32.xlu0 %v2447, 24
        %v6554 = vpop.permute.xlu0 %6553
        %6555 = vrot.lane.b32.xlu0 %v2545, 24
        %v6556 = vpop.permute.xlu0 %6555
        %6557 = vrot.lane.b32.xlu0 %v2643, 24
        %v6558 = vpop.permute.xlu0 %6557
        %6559 = vrot.lane.b32.xlu0 %v2741, 24
        %v6560 = vpop.permute.xlu0 %6559
        %6561 = vrot.lane.b32.xlu0 %v2839, 24
        %v6562 = vpop.permute.xlu0 %6561
        %6563 = vrot.lane.b32.xlu0 %v2937, 24
        %v6564 = vpop.permute.xlu0 %6563
        %6565 = vrot.lane.b32.xlu0 %v3035, 24
        %v6566 = vpop.permute.xlu0 %6565
        %6567 = vrot.lane.b32.xlu0 %v3133, 24
        %v6568 = vpop.permute.xlu0 %6567
        %6569 = vrot.lane.b32.xlu0 %v3231, 24
        %v6570 = vpop.permute.xlu0 %6569
        %6571 = vrot.lane.b32.xlu0 %v3329, 24
        %v6572 = vpop.permute.xlu0 %6571
        %6573 = vrot.lane.b32.xlu0 %v3427, 24
        %v6574 = vpop.permute.xlu0 %6573
        %6575 = vrot.lane.b32.xlu0 %v3525, 24
        %v6576 = vpop.permute.xlu0 %6575
        %6577 = vrot.lane.b32.xlu0 %v3623, 24
        %v6578 = vpop.permute.xlu0 %6577
        %6579 = vrot.lane.b32.xlu0 %v3721, 24
        %v6580 = vpop.permute.xlu0 %6579
        %6581 = vrot.lane.b32.xlu0 %v3819, 24
        %v6582 = vpop.permute.xlu0 %6581
        %6583 = vrot.lane.b32.xlu0 %v3917, 24
        %v6584 = vpop.permute.xlu0 %6583
        %6585 = vrot.lane.b32.xlu0 %v4015, 24
        %v6586 = vpop.permute.xlu0 %6585
        %6587 = vrot.lane.b32.xlu0 %v4113, 24
        %v6588 = vpop.permute.xlu0 %6587
        %6589 = vrot.lane.b32.xlu0 %v4211, 24
        %v6590 = vpop.permute.xlu0 %6589
        %6591 = vrot.lane.b32.xlu0 %v4309, 24
        %v6592 = vpop.permute.xlu0 %6591
        %6593 = vrot.lane.b32.xlu0 %v4407, 24
        %v6594 = vpop.permute.xlu0 %6593
        %6595 = vrot.lane.b32.xlu0 %v4505, 24
        %v6596 = vpop.permute.xlu0 %6595
        %6597 = vrot.lane.b32.xlu0 %v4603, 24
        %v6598 = vpop.permute.xlu0 %6597
        %6599 = vrot.lane.b32.xlu0 %v4701, 24
        %v6600 = vpop.permute.xlu0 %6599
        %6601 = vrot.lane.b32.xlu0 %v4799, 24
        %v6602 = vpop.permute.xlu0 %6601
        %6603 = vrot.lane.b32.xlu0 %v4897, 24
        %v6604 = vpop.permute.xlu0 %6603
        %6605 = vrot.lane.b32.xlu0 %v4995, 24
        %v6606 = vpop.permute.xlu0 %6605
        %6607 = vrot.lane.b32.xlu0 %v5093, 24
        %v6608 = vpop.permute.xlu0 %6607
        %6673 = vrot.lane.b32.xlu0 %v2065, 26
        %v6674 = vpop.permute.xlu0 %6673
        %6675 = vrot.lane.b32.xlu0 %v2163, 26
        %v6676 = vpop.permute.xlu0 %6675
        %6677 = vrot.lane.b32.xlu0 %v2261, 26
        %v6678 = vpop.permute.xlu0 %6677
        %6679 = vrot.lane.b32.xlu0 %v2359, 26
        %v6680 = vpop.permute.xlu0 %6679
        %6681 = vrot.lane.b32.xlu0 %v2457, 26
        %v6682 = vpop.permute.xlu0 %6681
        %6683 = vrot.lane.b32.xlu0 %v2555, 26
        %v6684 = vpop.permute.xlu0 %6683
        %6685 = vrot.lane.b32.xlu0 %v2653, 26
        %v6686 = vpop.permute.xlu0 %6685
        %6687 = vrot.lane.b32.xlu0 %v2751, 26
        %v6688 = vpop.permute.xlu0 %6687
        %6689 = vrot.lane.b32.xlu0 %v2849, 26
        %v6690 = vpop.permute.xlu0 %6689
        %6691 = vrot.lane.b32.xlu0 %v2947, 26
        %v6692 = vpop.permute.xlu0 %6691
        %6693 = vrot.lane.b32.xlu0 %v3045, 26
        %v6694 = vpop.permute.xlu0 %6693
        %6695 = vrot.lane.b32.xlu0 %v3143, 26
        %v6696 = vpop.permute.xlu0 %6695
        %6697 = vrot.lane.b32.xlu0 %v3241, 26
        %v6698 = vpop.permute.xlu0 %6697
        %6699 = vrot.lane.b32.xlu0 %v3339, 26
        %v6700 = vpop.permute.xlu0 %6699
        %6701 = vrot.lane.b32.xlu0 %v3437, 26
        %v6702 = vpop.permute.xlu0 %6701
        %6703 = vrot.lane.b32.xlu0 %v3535, 26
        %v6704 = vpop.permute.xlu0 %6703
        %6705 = vrot.lane.b32.xlu0 %v3633, 26
        %v6706 = vpop.permute.xlu0 %6705
        %6707 = vrot.lane.b32.xlu0 %v3731, 26
        %v6708 = vpop.permute.xlu0 %6707
        %6709 = vrot.lane.b32.xlu0 %v3829, 26
        %v6710 = vpop.permute.xlu0 %6709
        %6711 = vrot.lane.b32.xlu0 %v3927, 26
        %v6712 = vpop.permute.xlu0 %6711
        %6713 = vrot.lane.b32.xlu0 %v4025, 26
        %v6714 = vpop.permute.xlu0 %6713
        %6715 = vrot.lane.b32.xlu0 %v4123, 26
        %v6716 = vpop.permute.xlu0 %6715
        %6717 = vrot.lane.b32.xlu0 %v4221, 26
        %v6718 = vpop.permute.xlu0 %6717
        %6719 = vrot.lane.b32.xlu0 %v4319, 26
        %v6720 = vpop.permute.xlu0 %6719
        %6721 = vrot.lane.b32.xlu0 %v4417, 26
        %v6722 = vpop.permute.xlu0 %6721
        %6723 = vrot.lane.b32.xlu0 %v4515, 26
        %v6724 = vpop.permute.xlu0 %6723
        %6725 = vrot.lane.b32.xlu0 %v4613, 26
        %v6726 = vpop.permute.xlu0 %6725
        %6727 = vrot.lane.b32.xlu0 %v4711, 26
        %v6728 = vpop.permute.xlu0 %6727
        %6729 = vrot.lane.b32.xlu0 %v4809, 26
        %v6730 = vpop.permute.xlu0 %6729
        %6731 = vrot.lane.b32.xlu0 %v4907, 26
        %v6732 = vpop.permute.xlu0 %6731
        %6733 = vrot.lane.b32.xlu0 %v5005, 26
        %v6734 = vpop.permute.xlu0 %6733
        %6735 = vrot.lane.b32.xlu0 %v5103, 26
        %v6736 = vpop.permute.xlu0 %6735
        %6801 = vrot.lane.b32.xlu0 %v2062, 28
        %v6802 = vpop.permute.xlu0 %6801
        %6803 = vrot.lane.b32.xlu0 %v2160, 28
        %v6804 = vpop.permute.xlu0 %6803
        %6805 = vrot.lane.b32.xlu0 %v2258, 28
        %v6806 = vpop.permute.xlu0 %6805
        %6807 = vrot.lane.b32.xlu0 %v2356, 28
        %v6808 = vpop.permute.xlu0 %6807
        %6809 = vrot.lane.b32.xlu0 %v2454, 28
        %v6810 = vpop.permute.xlu0 %6809
        %6811 = vrot.lane.b32.xlu0 %v2552, 28
        %v6812 = vpop.permute.xlu0 %6811
        %6813 = vrot.lane.b32.xlu0 %v2650, 28
        %v6814 = vpop.permute.xlu0 %6813
        %6815 = vrot.lane.b32.xlu0 %v2748, 28
        %v6816 = vpop.permute.xlu0 %6815
        %6817 = vrot.lane.b32.xlu0 %v2846, 28
        %v6818 = vpop.permute.xlu0 %6817
        %6819 = vrot.lane.b32.xlu0 %v2944, 28
        %v6820 = vpop.permute.xlu0 %6819
        %6821 = vrot.lane.b32.xlu0 %v3042, 28
        %v6822 = vpop.permute.xlu0 %6821
        %6823 = vrot.lane.b32.xlu0 %v3140, 28
        %v6824 = vpop.permute.xlu0 %6823
        %6825 = vrot.lane.b32.xlu0 %v3238, 28
        %v6826 = vpop.permute.xlu0 %6825
        %6827 = vrot.lane.b32.xlu0 %v3336, 28
        %v6828 = vpop.permute.xlu0 %6827
        %6829 = vrot.lane.b32.xlu0 %v3434, 28
        %v6830 = vpop.permute.xlu0 %6829
        %6831 = vrot.lane.b32.xlu0 %v3532, 28
        %v6832 = vpop.permute.xlu0 %6831
        %6833 = vrot.lane.b32.xlu0 %v3630, 28
        %v6834 = vpop.permute.xlu0 %6833
        %6835 = vrot.lane.b32.xlu0 %v3728, 28
        %v6836 = vpop.permute.xlu0 %6835
        %6837 = vrot.lane.b32.xlu0 %v3826, 28
        %v6838 = vpop.permute.xlu0 %6837
        %6839 = vrot.lane.b32.xlu0 %v3924, 28
        %v6840 = vpop.permute.xlu0 %6839
        %6841 = vrot.lane.b32.xlu0 %v4022, 28
        %v6842 = vpop.permute.xlu0 %6841
        %6843 = vrot.lane.b32.xlu0 %v4120, 28
        %v6844 = vpop.permute.xlu0 %6843
        %6845 = vrot.lane.b32.xlu0 %v4218, 28
        %v6846 = vpop.permute.xlu0 %6845
        %6847 = vrot.lane.b32.xlu0 %v4316, 28
        %v6848 = vpop.permute.xlu0 %6847
        %6849 = vrot.lane.b32.xlu0 %v4414, 28
        %v6850 = vpop.permute.xlu0 %6849
        %6851 = vrot.lane.b32.xlu0 %v4512, 28
        %v6852 = vpop.permute.xlu0 %6851
        %6853 = vrot.lane.b32.xlu0 %v4610, 28
        %v6854 = vpop.permute.xlu0 %6853
        %6855 = vrot.lane.b32.xlu0 %v4708, 28
        %v6856 = vpop.permute.xlu0 %6855
        %6857 = vrot.lane.b32.xlu0 %v4806, 28
        %v6858 = vpop.permute.xlu0 %6857
        %6859 = vrot.lane.b32.xlu0 %v4904, 28
        %v6860 = vpop.permute.xlu0 %6859
        %6861 = vrot.lane.b32.xlu0 %v5002, 28
        %v6862 = vpop.permute.xlu0 %6861
        %6863 = vrot.lane.b32.xlu0 %v5100, 28
        %v6864 = vpop.permute.xlu0 %6863
        %6929 = vrot.lane.b32.xlu0 %v2066, 30
        %v6930 = vpop.permute.xlu0 %6929
        %6931 = vrot.lane.b32.xlu0 %v2164, 30
        %v6932 = vpop.permute.xlu0 %6931
        %6933 = vrot.lane.b32.xlu0 %v2262, 30
        %v6934 = vpop.permute.xlu0 %6933
        %6935 = vrot.lane.b32.xlu0 %v2360, 30
        %v6936 = vpop.permute.xlu0 %6935
        %6937 = vrot.lane.b32.xlu0 %v2458, 30
        %v6938 = vpop.permute.xlu0 %6937
        %6939 = vrot.lane.b32.xlu0 %v2556, 30
        %v6940 = vpop.permute.xlu0 %6939
        %6941 = vrot.lane.b32.xlu0 %v2654, 30
        %v6942 = vpop.permute.xlu0 %6941
        %6943 = vrot.lane.b32.xlu0 %v2752, 30
        %v6944 = vpop.permute.xlu0 %6943
        %6945 = vrot.lane.b32.xlu0 %v2850, 30
        %v6946 = vpop.permute.xlu0 %6945
        %6947 = vrot.lane.b32.xlu0 %v2948, 30
        %v6948 = vpop.permute.xlu0 %6947
        %6949 = vrot.lane.b32.xlu0 %v3046, 30
        %v6950 = vpop.permute.xlu0 %6949
        %6951 = vrot.lane.b32.xlu0 %v3144, 30
        %v6952 = vpop.permute.xlu0 %6951
        %6953 = vrot.lane.b32.xlu0 %v3242, 30
        %v6954 = vpop.permute.xlu0 %6953
        %6955 = vrot.lane.b32.xlu0 %v3340, 30
        %v6956 = vpop.permute.xlu0 %6955
        %6957 = vrot.lane.b32.xlu0 %v3438, 30
        %v6958 = vpop.permute.xlu0 %6957
        %6959 = vrot.lane.b32.xlu0 %v3536, 30
        %v6960 = vpop.permute.xlu0 %6959
        %6961 = vrot.lane.b32.xlu0 %v3634, 30
        %v6962 = vpop.permute.xlu0 %6961
        %6963 = vrot.lane.b32.xlu0 %v3732, 30
        %v6964 = vpop.permute.xlu0 %6963
        %6965 = vrot.lane.b32.xlu0 %v3830, 30
        %v6966 = vpop.permute.xlu0 %6965
        %6967 = vrot.lane.b32.xlu0 %v3928, 30
        %v6968 = vpop.permute.xlu0 %6967
        %6969 = vrot.lane.b32.xlu0 %v4026, 30
        %v6970 = vpop.permute.xlu0 %6969
        %6971 = vrot.lane.b32.xlu0 %v4124, 30
        %v6972 = vpop.permute.xlu0 %6971
        %6973 = vrot.lane.b32.xlu0 %v4222, 30
        %v6974 = vpop.permute.xlu0 %6973
        %6975 = vrot.lane.b32.xlu0 %v4320, 30
        %v6976 = vpop.permute.xlu0 %6975
        %6977 = vrot.lane.b32.xlu0 %v4418, 30
        %v6978 = vpop.permute.xlu0 %6977
        %6979 = vrot.lane.b32.xlu0 %v4516, 30
        %v6980 = vpop.permute.xlu0 %6979
        %6981 = vrot.lane.b32.xlu0 %v4614, 30
        %v6982 = vpop.permute.xlu0 %6981
        %6983 = vrot.lane.b32.xlu0 %v4712, 30
        %v6984 = vpop.permute.xlu0 %6983
        %6985 = vrot.lane.b32.xlu0 %v4810, 30
        %v6986 = vpop.permute.xlu0 %6985
        %6987 = vrot.lane.b32.xlu0 %v4908, 30
        %v6988 = vpop.permute.xlu0 %6987
        %6989 = vrot.lane.b32.xlu0 %v5006, 30
        %v6990 = vpop.permute.xlu0 %6989
        %6991 = vrot.lane.b32.xlu0 %v5104, 30
        %v6992 = vpop.permute.xlu0 %6991
        %vm7025 = vcmask 15360
        %v7026 = vsel %vm7025, %v1991, %v5138
        %v7027 = vsel %vm7025, %v2089, %v5140
        %v7028 = vsel %vm7025, %v2187, %v5142
        %v7029 = vsel %vm7025, %v2285, %v5144
        %v7030 = vsel %vm7025, %v2383, %v5146
        %v7031 = vsel %vm7025, %v2481, %v5148
        %v7032 = vsel %vm7025, %v2579, %v5150
        %v7033 = vsel %vm7025, %v2677, %v5152
        %v7034 = vsel %vm7025, %v2775, %v5154
        %v7035 = vsel %vm7025, %v2873, %v5156
        %v7036 = vsel %vm7025, %v2971, %v5158
        %v7037 = vsel %vm7025, %v3069, %v5160
        %v7038 = vsel %vm7025, %v3167, %v5162
        %v7039 = vsel %vm7025, %v3265, %v5164
        %v7040 = vsel %vm7025, %v3363, %v5166
        %v7041 = vsel %vm7025, %v3461, %v5168
        %v7042 = vsel %vm7025, %v3559, %v5170
        %v7043 = vsel %vm7025, %v3657, %v5172
        %v7044 = vsel %vm7025, %v3755, %v5174
        %v7045 = vsel %vm7025, %v3853, %v5176
        %v7046 = vsel %vm7025, %v3951, %v5178
        %v7047 = vsel %vm7025, %v4049, %v5180
        %v7048 = vsel %vm7025, %v4147, %v5182
        %v7049 = vsel %vm7025, %v4245, %v5184
        %v7050 = vsel %vm7025, %v4343, %v5186
        %v7051 = vsel %vm7025, %v4441, %v5188
        %v7052 = vsel %vm7025, %v4539, %v5190
        %v7053 = vsel %vm7025, %v4637, %v5192
        %v7054 = vsel %vm7025, %v4735, %v5194
        %v7055 = vsel %vm7025, %v4833, %v5196
        %v7056 = vsel %vm7025, %v4931, %v5198
        %v7057 = vsel %vm7025, %v5029, %v5200
        %vm7058 = vcmask 31744
        %v7059 = vsel %vm7058, %v7026, %v5266
        %v7060 = vsel %vm7058, %v7027, %v5268
        %v7061 = vsel %vm7058, %v7028, %v5270
        %v7062 = vsel %vm7058, %v7029, %v5272
        %v7063 = vsel %vm7058, %v7030, %v5274
        %v7064 = vsel %vm7058, %v7031, %v5276
        %v7065 = vsel %vm7058, %v7032, %v5278
        %v7066 = vsel %vm7058, %v7033, %v5280
        %v7067 = vsel %vm7058, %v7034, %v5282
        %v7068 = vsel %vm7058, %v7035, %v5284
        %v7069 = vsel %vm7058, %v7036, %v5286
        %v7070 = vsel %vm7058, %v7037, %v5288
        %v7071 = vsel %vm7058, %v7038, %v5290
        %v7072 = vsel %vm7058, %v7039, %v5292
        %v7073 = vsel %vm7058, %v7040, %v5294
        %v7074 = vsel %vm7058, %v7041, %v5296
        %v7075 = vsel %vm7058, %v7042, %v5298
        %v7076 = vsel %vm7058, %v7043, %v5300
        %v7077 = vsel %vm7058, %v7044, %v5302
        %v7078 = vsel %vm7058, %v7045, %v5304
        %v7079 = vsel %vm7058, %v7046, %v5306
        %v7080 = vsel %vm7058, %v7047, %v5308
        %v7081 = vsel %vm7058, %v7048, %v5310
        %v7082 = vsel %vm7058, %v7049, %v5312
        %v7083 = vsel %vm7058, %v7050, %v5314
        %v7084 = vsel %vm7058, %v7051, %v5316
        %v7085 = vsel %vm7058, %v7052, %v5318
        %v7086 = vsel %vm7058, %v7053, %v5320
        %v7087 = vsel %vm7058, %v7054, %v5322
        %v7088 = vsel %vm7058, %v7055, %v5324
        %v7089 = vsel %vm7058, %v7056, %v5326
        %v7090 = vsel %vm7058, %v7057, %v5328
        %vm7091 = vcmask 48128
        %v7092 = vsel %vm7091, %v7059, %v5394
        %v7093 = vsel %vm7091, %v7060, %v5396
        %v7094 = vsel %vm7091, %v7061, %v5398
        %v7095 = vsel %vm7091, %v7062, %v5400
        %v7096 = vsel %vm7091, %v7063, %v5402
        %v7097 = vsel %vm7091, %v7064, %v5404
        %v7098 = vsel %vm7091, %v7065, %v5406
        %v7099 = vsel %vm7091, %v7066, %v5408
        %v7100 = vsel %vm7091, %v7067, %v5410
        %v7101 = vsel %vm7091, %v7068, %v5412
        %v7102 = vsel %vm7091, %v7069, %v5414
        %v7103 = vsel %vm7091, %v7070, %v5416
        %v7104 = vsel %vm7091, %v7071, %v5418
        %v7105 = vsel %vm7091, %v7072, %v5420
        %v7106 = vsel %vm7091, %v7073, %v5422
        %v7107 = vsel %vm7091, %v7074, %v5424
        %v7108 = vsel %vm7091, %v7075, %v5426
        %v7109 = vsel %vm7091, %v7076, %v5428
        %v7110 = vsel %vm7091, %v7077, %v5430
        %v7111 = vsel %vm7091, %v7078, %v5432
        %v7112 = vsel %vm7091, %v7079, %v5434
        %v7113 = vsel %vm7091, %v7080, %v5436
        %v7114 = vsel %vm7091, %v7081, %v5438
        %v7115 = vsel %vm7091, %v7082, %v5440
        %v7116 = vsel %vm7091, %v7083, %v5442
        %v7117 = vsel %vm7091, %v7084, %v5444
        %v7118 = vsel %vm7091, %v7085, %v5446
        %v7119 = vsel %vm7091, %v7086, %v5448
        %v7120 = vsel %vm7091, %v7087, %v5450
        %v7121 = vsel %vm7091, %v7088, %v5452
        %v7122 = vsel %vm7091, %v7089, %v5454
        %v7123 = vsel %vm7091, %v7090, %v5456
        %vm7124 = vcmask 64512
        %v7125 = vsel %vm7124, %v7092, %v5522
        %v7126 = vsel %vm7124, %v7093, %v5524
        %v7127 = vsel %vm7124, %v7094, %v5526
        %v7128 = vsel %vm7124, %v7095, %v5528
        %v7129 = vsel %vm7124, %v7096, %v5530
        %v7130 = vsel %vm7124, %v7097, %v5532
        %v7131 = vsel %vm7124, %v7098, %v5534
        %v7132 = vsel %vm7124, %v7099, %v5536
        %v7133 = vsel %vm7124, %v7100, %v5538
        %v7134 = vsel %vm7124, %v7101, %v5540
        %v7135 = vsel %vm7124, %v7102, %v5542
        %v7136 = vsel %vm7124, %v7103, %v5544
        %v7137 = vsel %vm7124, %v7104, %v5546
        %v7138 = vsel %vm7124, %v7105, %v5548
        %v7139 = vsel %vm7124, %v7106, %v5550
        %v7140 = vsel %vm7124, %v7107, %v5552
        %v7141 = vsel %vm7124, %v7108, %v5554
        %v7142 = vsel %vm7124, %v7109, %v5556
        %v7143 = vsel %vm7124, %v7110, %v5558
        %v7144 = vsel %vm7124, %v7111, %v5560
        %v7145 = vsel %vm7124, %v7112, %v5562
        %v7146 = vsel %vm7124, %v7113, %v5564
        %v7147 = vsel %vm7124, %v7114, %v5566
        %v7148 = vsel %vm7124, %v7115, %v5568
        %v7149 = vsel %vm7124, %v7116, %v5570
        %v7150 = vsel %vm7124, %v7117, %v5572
        %v7151 = vsel %vm7124, %v7118, %v5574
        %v7152 = vsel %vm7124, %v7119, %v5576
        %v7153 = vsel %vm7124, %v7120, %v5578
        %v7154 = vsel %vm7124, %v7121, %v5580
        %v7155 = vsel %vm7124, %v7122, %v5582
        %v7156 = vsel %vm7124, %v7123, %v5584
        %vm7157 = vcmask 80896
        %v7158 = vsel %vm7157, %v7125, %v5650
        %v7159 = vsel %vm7157, %v7126, %v5652
        %v7160 = vsel %vm7157, %v7127, %v5654
        %v7161 = vsel %vm7157, %v7128, %v5656
        %v7162 = vsel %vm7157, %v7129, %v5658
        %v7163 = vsel %vm7157, %v7130, %v5660
        %v7164 = vsel %vm7157, %v7131, %v5662
        %v7165 = vsel %vm7157, %v7132, %v5664
        %v7166 = vsel %vm7157, %v7133, %v5666
        %v7167 = vsel %vm7157, %v7134, %v5668
        %v7168 = vsel %vm7157, %v7135, %v5670
        %v7169 = vsel %vm7157, %v7136, %v5672
        %v7170 = vsel %vm7157, %v7137, %v5674
        %v7171 = vsel %vm7157, %v7138, %v5676
        %v7172 = vsel %vm7157, %v7139, %v5678
        %v7173 = vsel %vm7157, %v7140, %v5680
        %v7174 = vsel %vm7157, %v7141, %v5682
        %v7175 = vsel %vm7157, %v7142, %v5684
        %v7176 = vsel %vm7157, %v7143, %v5686
        %v7177 = vsel %vm7157, %v7144, %v5688
        %v7178 = vsel %vm7157, %v7145, %v5690
        %v7179 = vsel %vm7157, %v7146, %v5692
        %v7180 = vsel %vm7157, %v7147, %v5694
        %v7181 = vsel %vm7157, %v7148, %v5696
        %v7182 = vsel %vm7157, %v7149, %v5698
        %v7183 = vsel %vm7157, %v7150, %v5700
        %v7184 = vsel %vm7157, %v7151, %v5702
        %v7185 = vsel %vm7157, %v7152, %v5704
        %v7186 = vsel %vm7157, %v7153, %v5706
        %v7187 = vsel %vm7157, %v7154, %v5708
        %v7188 = vsel %vm7157, %v7155, %v5710
        %v7189 = vsel %vm7157, %v7156, %v5712
        %vm7190 = vcmask 97280
        %v7191 = vsel %vm7190, %v7158, %v5778
        %v7192 = vsel %vm7190, %v7159, %v5780
        %v7193 = vsel %vm7190, %v7160, %v5782
        %v7194 = vsel %vm7190, %v7161, %v5784
        %v7195 = vsel %vm7190, %v7162, %v5786
        %v7196 = vsel %vm7190, %v7163, %v5788
        %v7197 = vsel %vm7190, %v7164, %v5790
        %v7198 = vsel %vm7190, %v7165, %v5792
        %v7199 = vsel %vm7190, %v7166, %v5794
        %v7200 = vsel %vm7190, %v7167, %v5796
        %v7201 = vsel %vm7190, %v7168, %v5798
        %v7202 = vsel %vm7190, %v7169, %v5800
        %v7203 = vsel %vm7190, %v7170, %v5802
        %v7204 = vsel %vm7190, %v7171, %v5804
        %v7205 = vsel %vm7190, %v7172, %v5806
        %v7206 = vsel %vm7190, %v7173, %v5808
        %v7207 = vsel %vm7190, %v7174, %v5810
        %v7208 = vsel %vm7190, %v7175, %v5812
        %v7209 = vsel %vm7190, %v7176, %v5814
        %v7210 = vsel %vm7190, %v7177, %v5816
        %v7211 = vsel %vm7190, %v7178, %v5818
        %v7212 = vsel %vm7190, %v7179, %v5820
        %v7213 = vsel %vm7190, %v7180, %v5822
        %v7214 = vsel %vm7190, %v7181, %v5824
        %v7215 = vsel %vm7190, %v7182, %v5826
        %v7216 = vsel %vm7190, %v7183, %v5828
        %v7217 = vsel %vm7190, %v7184, %v5830
        %v7218 = vsel %vm7190, %v7185, %v5832
        %v7219 = vsel %vm7190, %v7186, %v5834
        %v7220 = vsel %vm7190, %v7187, %v5836
        %v7221 = vsel %vm7190, %v7188, %v5838
        %v7222 = vsel %vm7190, %v7189, %v5840
        %vm7223 = vcmask 113664
        %v7224 = vsel %vm7223, %v7191, %v5906
        %v7225 = vsel %vm7223, %v7192, %v5908
        %v7226 = vsel %vm7223, %v7193, %v5910
        %v7227 = vsel %vm7223, %v7194, %v5912
        %v7228 = vsel %vm7223, %v7195, %v5914
        %v7229 = vsel %vm7223, %v7196, %v5916
        %v7230 = vsel %vm7223, %v7197, %v5918
        %v7231 = vsel %vm7223, %v7198, %v5920
        %v7232 = vsel %vm7223, %v7199, %v5922
        %v7233 = vsel %vm7223, %v7200, %v5924
        %v7234 = vsel %vm7223, %v7201, %v5926
        %v7235 = vsel %vm7223, %v7202, %v5928
        %v7236 = vsel %vm7223, %v7203, %v5930
        %v7237 = vsel %vm7223, %v7204, %v5932
        %v7238 = vsel %vm7223, %v7205, %v5934
        %v7239 = vsel %vm7223, %v7206, %v5936
        %v7240 = vsel %vm7223, %v7207, %v5938
        %v7241 = vsel %vm7223, %v7208, %v5940
        %v7242 = vsel %vm7223, %v7209, %v5942
        %v7243 = vsel %vm7223, %v7210, %v5944
        %v7244 = vsel %vm7223, %v7211, %v5946
        %v7245 = vsel %vm7223, %v7212, %v5948
        %v7246 = vsel %vm7223, %v7213, %v5950
        %v7247 = vsel %vm7223, %v7214, %v5952
        %v7248 = vsel %vm7223, %v7215, %v5954
        %v7249 = vsel %vm7223, %v7216, %v5956
        %v7250 = vsel %vm7223, %v7217, %v5958
        %v7251 = vsel %vm7223, %v7218, %v5960
        %v7252 = vsel %vm7223, %v7219, %v5962
        %v7253 = vsel %vm7223, %v7220, %v5964
        %v7254 = vsel %vm7223, %v7221, %v5966
        %v7255 = vsel %vm7223, %v7222, %v5968
        %vm7256 = vcmask 130048
        %v7257 = vsel %vm7256, %v7224, %v6034
        %v7258 = vsel %vm7256, %v7225, %v6036
        %v7259 = vsel %vm7256, %v7226, %v6038
        %v7260 = vsel %vm7256, %v7227, %v6040
        %v7261 = vsel %vm7256, %v7228, %v6042
        %v7262 = vsel %vm7256, %v7229, %v6044
        %v7263 = vsel %vm7256, %v7230, %v6046
        %v7264 = vsel %vm7256, %v7231, %v6048
        %v7265 = vsel %vm7256, %v7232, %v6050
        %v7266 = vsel %vm7256, %v7233, %v6052
        %v7267 = vsel %vm7256, %v7234, %v6054
        %v7268 = vsel %vm7256, %v7235, %v6056
        %v7269 = vsel %vm7256, %v7236, %v6058
        %v7270 = vsel %vm7256, %v7237, %v6060
        %v7271 = vsel %vm7256, %v7238, %v6062
        %v7272 = vsel %vm7256, %v7239, %v6064
        %v7273 = vsel %vm7256, %v7240, %v6066
        %v7274 = vsel %vm7256, %v7241, %v6068
        %v7275 = vsel %vm7256, %v7242, %v6070
        %v7276 = vsel %vm7256, %v7243, %v6072
        %v7277 = vsel %vm7256, %v7244, %v6074
        %v7278 = vsel %vm7256, %v7245, %v6076
        %v7279 = vsel %vm7256, %v7246, %v6078
        %v7280 = vsel %vm7256, %v7247, %v6080
        %v7281 = vsel %vm7256, %v7248, %v6082
        %v7282 = vsel %vm7256, %v7249, %v6084
        %v7283 = vsel %vm7256, %v7250, %v6086
        %v7284 = vsel %vm7256, %v7251, %v6088
        %v7285 = vsel %vm7256, %v7252, %v6090
        %v7286 = vsel %vm7256, %v7253, %v6092
        %v7287 = vsel %vm7256, %v7254, %v6094
        %v7288 = vsel %vm7256, %v7255, %v6096
        %vm7289 = vcmask 146432
        %v7290 = vsel %vm7289, %v7257, %v6162
        %v7291 = vsel %vm7289, %v7258, %v6164
        %v7292 = vsel %vm7289, %v7259, %v6166
        %v7293 = vsel %vm7289, %v7260, %v6168
        %v7294 = vsel %vm7289, %v7261, %v6170
        %v7295 = vsel %vm7289, %v7262, %v6172
        %v7296 = vsel %vm7289, %v7263, %v6174
        %v7297 = vsel %vm7289, %v7264, %v6176
        %v7298 = vsel %vm7289, %v7265, %v6178
        %v7299 = vsel %vm7289, %v7266, %v6180
        %v7300 = vsel %vm7289, %v7267, %v6182
        %v7301 = vsel %vm7289, %v7268, %v6184
        %v7302 = vsel %vm7289, %v7269, %v6186
        %v7303 = vsel %vm7289, %v7270, %v6188
        %v7304 = vsel %vm7289, %v7271, %v6190
        %v7305 = vsel %vm7289, %v7272, %v6192
        %v7306 = vsel %vm7289, %v7273, %v6194
        %v7307 = vsel %vm7289, %v7274, %v6196
        %v7308 = vsel %vm7289, %v7275, %v6198
        %v7309 = vsel %vm7289, %v7276, %v6200
        %v7310 = vsel %vm7289, %v7277, %v6202
        %v7311 = vsel %vm7289, %v7278, %v6204
        %v7312 = vsel %vm7289, %v7279, %v6206
        %v7313 = vsel %vm7289, %v7280, %v6208
        %v7314 = vsel %vm7289, %v7281, %v6210
        %v7315 = vsel %vm7289, %v7282, %v6212
        %v7316 = vsel %vm7289, %v7283, %v6214
        %v7317 = vsel %vm7289, %v7284, %v6216
        %v7318 = vsel %vm7289, %v7285, %v6218
        %v7319 = vsel %vm7289, %v7286, %v6220
        %v7320 = vsel %vm7289, %v7287, %v6222
        %v7321 = vsel %vm7289, %v7288, %v6224
        %vm7322 = vcmask 162816
        %v7323 = vsel %vm7322, %v7290, %v6290
        %v7324 = vsel %vm7322, %v7291, %v6292
        %v7325 = vsel %vm7322, %v7292, %v6294
        %v7326 = vsel %vm7322, %v7293, %v6296
        %v7327 = vsel %vm7322, %v7294, %v6298
        %v7328 = vsel %vm7322, %v7295, %v6300
        %v7329 = vsel %vm7322, %v7296, %v6302
        %v7330 = vsel %vm7322, %v7297, %v6304
        %v7331 = vsel %vm7322, %v7298, %v6306
        %v7332 = vsel %vm7322, %v7299, %v6308
        %v7333 = vsel %vm7322, %v7300, %v6310
        %v7334 = vsel %vm7322, %v7301, %v6312
        %v7335 = vsel %vm7322, %v7302, %v6314
        %v7336 = vsel %vm7322, %v7303, %v6316
        %v7337 = vsel %vm7322, %v7304, %v6318
        %v7338 = vsel %vm7322, %v7305, %v6320
        %v7339 = vsel %vm7322, %v7306, %v6322
        %v7340 = vsel %vm7322, %v7307, %v6324
        %v7341 = vsel %vm7322, %v7308, %v6326
        %v7342 = vsel %vm7322, %v7309, %v6328
        %v7343 = vsel %vm7322, %v7310, %v6330
        %v7344 = vsel %vm7322, %v7311, %v6332
        %v7345 = vsel %vm7322, %v7312, %v6334
        %v7346 = vsel %vm7322, %v7313, %v6336
        %v7347 = vsel %vm7322, %v7314, %v6338
        %v7348 = vsel %vm7322, %v7315, %v6340
        %v7349 = vsel %vm7322, %v7316, %v6342
        %v7350 = vsel %vm7322, %v7317, %v6344
        %v7351 = vsel %vm7322, %v7318, %v6346
        %v7352 = vsel %vm7322, %v7319, %v6348
        %v7353 = vsel %vm7322, %v7320, %v6350
        %v7354 = vsel %vm7322, %v7321, %v6352
        %vm7355 = vcmask 179200
        %v7356 = vsel %vm7355, %v7323, %v6418
        %v7357 = vsel %vm7355, %v7324, %v6420
        %v7358 = vsel %vm7355, %v7325, %v6422
        %v7359 = vsel %vm7355, %v7326, %v6424
        %v7360 = vsel %vm7355, %v7327, %v6426
        %v7361 = vsel %vm7355, %v7328, %v6428
        %v7362 = vsel %vm7355, %v7329, %v6430
        %v7363 = vsel %vm7355, %v7330, %v6432
        %v7364 = vsel %vm7355, %v7331, %v6434
        %v7365 = vsel %vm7355, %v7332, %v6436
        %v7366 = vsel %vm7355, %v7333, %v6438
        %v7367 = vsel %vm7355, %v7334, %v6440
        %v7368 = vsel %vm7355, %v7335, %v6442
        %v7369 = vsel %vm7355, %v7336, %v6444
        %v7370 = vsel %vm7355, %v7337, %v6446
        %v7371 = vsel %vm7355, %v7338, %v6448
        %v7372 = vsel %vm7355, %v7339, %v6450
        %v7373 = vsel %vm7355, %v7340, %v6452
        %v7374 = vsel %vm7355, %v7341, %v6454
        %v7375 = vsel %vm7355, %v7342, %v6456
        %v7376 = vsel %vm7355, %v7343, %v6458
        %v7377 = vsel %vm7355, %v7344, %v6460
        %v7378 = vsel %vm7355, %v7345, %v6462
        %v7379 = vsel %vm7355, %v7346, %v6464
        %v7380 = vsel %vm7355, %v7347, %v6466
        %v7381 = vsel %vm7355, %v7348, %v6468
        %v7382 = vsel %vm7355, %v7349, %v6470
        %v7383 = vsel %vm7355, %v7350, %v6472
        %v7384 = vsel %vm7355, %v7351, %v6474
        %v7385 = vsel %vm7355, %v7352, %v6476
        %v7386 = vsel %vm7355, %v7353, %v6478
        %v7387 = vsel %vm7355, %v7354, %v6480
        %vm7388 = vcmask 195584
        %v7389 = vsel %vm7388, %v7356, %v6546
        %v7390 = vsel %vm7388, %v7357, %v6548
        %v7391 = vsel %vm7388, %v7358, %v6550
        %v7392 = vsel %vm7388, %v7359, %v6552
        %v7393 = vsel %vm7388, %v7360, %v6554
        %v7394 = vsel %vm7388, %v7361, %v6556
        %v7395 = vsel %vm7388, %v7362, %v6558
        %v7396 = vsel %vm7388, %v7363, %v6560
        %v7397 = vsel %vm7388, %v7364, %v6562
        %v7398 = vsel %vm7388, %v7365, %v6564
        %v7399 = vsel %vm7388, %v7366, %v6566
        %v7400 = vsel %vm7388, %v7367, %v6568
        %v7401 = vsel %vm7388, %v7368, %v6570
        %v7402 = vsel %vm7388, %v7369, %v6572
        %v7403 = vsel %vm7388, %v7370, %v6574
        %v7404 = vsel %vm7388, %v7371, %v6576
        %v7405 = vsel %vm7388, %v7372, %v6578
        %v7406 = vsel %vm7388, %v7373, %v6580
        %v7407 = vsel %vm7388, %v7374, %v6582
        %v7408 = vsel %vm7388, %v7375, %v6584
        %v7409 = vsel %vm7388, %v7376, %v6586
        %v7410 = vsel %vm7388, %v7377, %v6588
        %v7411 = vsel %vm7388, %v7378, %v6590
        %v7412 = vsel %vm7388, %v7379, %v6592
        %v7413 = vsel %vm7388, %v7380, %v6594
        %v7414 = vsel %vm7388, %v7381, %v6596
        %v7415 = vsel %vm7388, %v7382, %v6598
        %v7416 = vsel %vm7388, %v7383, %v6600
        %v7417 = vsel %vm7388, %v7384, %v6602
        %v7418 = vsel %vm7388, %v7385, %v6604
        %v7419 = vsel %vm7388, %v7386, %v6606
        %v7420 = vsel %vm7388, %v7387, %v6608
        %vm7421 = vcmask 211968
        %v7422 = vsel %vm7421, %v7389, %v6674
        %v7423 = vsel %vm7421, %v7390, %v6676
        %v7424 = vsel %vm7421, %v7391, %v6678
        %v7425 = vsel %vm7421, %v7392, %v6680
        %v7426 = vsel %vm7421, %v7393, %v6682
        %v7427 = vsel %vm7421, %v7394, %v6684
        %v7428 = vsel %vm7421, %v7395, %v6686
        %v7429 = vsel %vm7421, %v7396, %v6688
        %v7430 = vsel %vm7421, %v7397, %v6690
        %v7431 = vsel %vm7421, %v7398, %v6692
        %v7432 = vsel %vm7421, %v7399, %v6694
        %v7433 = vsel %vm7421, %v7400, %v6696
        %v7434 = vsel %vm7421, %v7401, %v6698
        %v7435 = vsel %vm7421, %v7402, %v6700
        %v7436 = vsel %vm7421, %v7403, %v6702
        %v7437 = vsel %vm7421, %v7404, %v6704
        %v7438 = vsel %vm7421, %v7405, %v6706
        %v7439 = vsel %vm7421, %v7406, %v6708
        %v7440 = vsel %vm7421, %v7407, %v6710
        %v7441 = vsel %vm7421, %v7408, %v6712
        %v7442 = vsel %vm7421, %v7409, %v6714
        %v7443 = vsel %vm7421, %v7410, %v6716
        %v7444 = vsel %vm7421, %v7411, %v6718
        %v7445 = vsel %vm7421, %v7412, %v6720
        %v7446 = vsel %vm7421, %v7413, %v6722
        %v7447 = vsel %vm7421, %v7414, %v6724
        %v7448 = vsel %vm7421, %v7415, %v6726
        %v7449 = vsel %vm7421, %v7416, %v6728
        %v7450 = vsel %vm7421, %v7417, %v6730
        %v7451 = vsel %vm7421, %v7418, %v6732
        %v7452 = vsel %vm7421, %v7419, %v6734
        %v7453 = vsel %vm7421, %v7420, %v6736
        %vm7454 = vcmask 228352
        %v7455 = vsel %vm7454, %v7422, %v6802
        %v7456 = vsel %vm7454, %v7423, %v6804
        %v7457 = vsel %vm7454, %v7424, %v6806
        %v7458 = vsel %vm7454, %v7425, %v6808
        %v7459 = vsel %vm7454, %v7426, %v6810
        %v7460 = vsel %vm7454, %v7427, %v6812
        %v7461 = vsel %vm7454, %v7428, %v6814
        %v7462 = vsel %vm7454, %v7429, %v6816
        %v7463 = vsel %vm7454, %v7430, %v6818
        %v7464 = vsel %vm7454, %v7431, %v6820
        %v7465 = vsel %vm7454, %v7432, %v6822
        %v7466 = vsel %vm7454, %v7433, %v6824
        %v7467 = vsel %vm7454, %v7434, %v6826
        %v7468 = vsel %vm7454, %v7435, %v6828
        %v7469 = vsel %vm7454, %v7436, %v6830
        %v7470 = vsel %vm7454, %v7437, %v6832
        %v7471 = vsel %vm7454, %v7438, %v6834
        %v7472 = vsel %vm7454, %v7439, %v6836
        %v7473 = vsel %vm7454, %v7440, %v6838
        %v7474 = vsel %vm7454, %v7441, %v6840
        %v7475 = vsel %vm7454, %v7442, %v6842
        %v7476 = vsel %vm7454, %v7443, %v6844
        %v7477 = vsel %vm7454, %v7444, %v6846
        %v7478 = vsel %vm7454, %v7445, %v6848
        %v7479 = vsel %vm7454, %v7446, %v6850
        %v7480 = vsel %vm7454, %v7447, %v6852
        %v7481 = vsel %vm7454, %v7448, %v6854
        %v7482 = vsel %vm7454, %v7449, %v6856
        %v7483 = vsel %vm7454, %v7450, %v6858
        %v7484 = vsel %vm7454, %v7451, %v6860
        %v7485 = vsel %vm7454, %v7452, %v6862
        %v7486 = vsel %vm7454, %v7453, %v6864
        %vm7487 = vcmask 244736
        %v7488 = vsel %vm7487, %v7455, %v6930
        %v7489 = vsel %vm7487, %v7456, %v6932
        %v7490 = vsel %vm7487, %v7457, %v6934
        %v7491 = vsel %vm7487, %v7458, %v6936
        %v7492 = vsel %vm7487, %v7459, %v6938
        %v7493 = vsel %vm7487, %v7460, %v6940
        %v7494 = vsel %vm7487, %v7461, %v6942
        %v7495 = vsel %vm7487, %v7462, %v6944
        %v7496 = vsel %vm7487, %v7463, %v6946
        %v7497 = vsel %vm7487, %v7464, %v6948
        %v7498 = vsel %vm7487, %v7465, %v6950
        %v7499 = vsel %vm7487, %v7466, %v6952
        %v7500 = vsel %vm7487, %v7467, %v6954
        %v7501 = vsel %vm7487, %v7468, %v6956
        %v7502 = vsel %vm7487, %v7469, %v6958
        %v7503 = vsel %vm7487, %v7470, %v6960
        %v7504 = vsel %vm7487, %v7471, %v6962
        %v7505 = vsel %vm7487, %v7472, %v6964
        %v7506 = vsel %vm7487, %v7473, %v6966
        %v7507 = vsel %vm7487, %v7474, %v6968
        %v7508 = vsel %vm7487, %v7475, %v6970
        %v7509 = vsel %vm7487, %v7476, %v6972
        %v7510 = vsel %vm7487, %v7477, %v6974
        %v7511 = vsel %vm7487, %v7478, %v6976
        %v7512 = vsel %vm7487, %v7479, %v6978
        %v7513 = vsel %vm7487, %v7480, %v6980
        %v7514 = vsel %vm7487, %v7481, %v6982
        %v7515 = vsel %vm7487, %v7482, %v6984
        %v7516 = vsel %vm7487, %v7483, %v6986
        %v7517 = vsel %vm7487, %v7484, %v6988
        %v7518 = vsel %vm7487, %v7485, %v6990
        %v7519 = vsel %vm7487, %v7486, %v6992
        %v7520 = vcombine.high %v1905, 0.0
        %v7522 = vunpack.c.l.s4 1983009808
        %v7523 = vunpack.c.0.s8 %v7522
        %v7524 = vlaneseq
        %v7525 = vshrl.u32 %v7524, 7
        %v7526 = vsub.s32 %v7523, %v7525
        %v7527 = vrot.slane %v1905, %v7526
        %v7529 = vunpack.c.l.s4 1983009808
        %v7530 = vunpack.c.0.s8 %v7529
        %v7531 = vlaneseq
        %v7532 = vshrl.u32 %v7531, 7
        %v7533 = vsub.s32 %v7530, %v7532
        %v7534 = vrot.slane %v7520, %v7533
        %v7535 = vcombine.high %v7527, 0.0
        %v7537 = vunpack.c.l.s4 1934713408
        %v7538 = vunpack.c.0.s8 %v7537
        %v7539 = vlaneseq
        %v7540 = vshrl.u32 %v7539, 7
        %v7541 = vsub.s32 %v7538, %v7540
        %v7542 = vrot.slane %v7527, %v7541
        %v7544 = vunpack.c.l.s4 1934713408
        %v7545 = vunpack.c.0.s8 %v7544
        %v7546 = vlaneseq
        %v7547 = vshrl.u32 %v7546, 7
        %v7548 = vsub.s32 %v7545, %v7547
        %v7549 = vrot.slane %v7535, %v7548
        %v7550 = vcombine.high %v7534, 0.0
        %v7552 = vunpack.c.l.s4 1934713408
        %v7553 = vunpack.c.0.s8 %v7552
        %v7554 = vlaneseq
        %v7555 = vshrl.u32 %v7554, 7
        %v7556 = vsub.s32 %v7553, %v7555
        %v7557 = vrot.slane %v7534, %v7556
        %v7559 = vunpack.c.l.s4 1934713408
        %v7560 = vunpack.c.0.s8 %v7559
        %v7561 = vlaneseq
        %v7562 = vshrl.u32 %v7561, 7
        %v7563 = vsub.s32 %v7560, %v7562
        %v7564 = vrot.slane %v7550, %v7563
        %v7565 = vcombine.high %v7542, 0.0
        %v7566 = vcombine.high %v7549, 0.0
        %v7567 = vcombine.high %v7557, 0.0
        %v7568 = vcombine.high %v7564, 0.0
        %v7569 = vcombine.high %v1906, 0.0
        %v7571 = vunpack.c.l.s4 1983009808
        %v7572 = vunpack.c.0.s8 %v7571
        %v7573 = vlaneseq
        %v7574 = vshrl.u32 %v7573, 7
        %v7575 = vsub.s32 %v7572, %v7574
        %v7576 = vrot.slane %v1906, %v7575
        %v7578 = vunpack.c.l.s4 1983009808
        %v7579 = vunpack.c.0.s8 %v7578
        %v7580 = vlaneseq
        %v7581 = vshrl.u32 %v7580, 7
        %v7582 = vsub.s32 %v7579, %v7581
        %v7583 = vrot.slane %v7569, %v7582
        %v7584 = vcombine.high %v7576, 0.0
        %v7586 = vunpack.c.l.s4 1934713408
        %v7587 = vunpack.c.0.s8 %v7586
        %v7588 = vlaneseq
        %v7589 = vshrl.u32 %v7588, 7
        %v7590 = vsub.s32 %v7587, %v7589
        %v7591 = vrot.slane %v7576, %v7590
        %v7593 = vunpack.c.l.s4 1934713408
        %v7594 = vunpack.c.0.s8 %v7593
        %v7595 = vlaneseq
        %v7596 = vshrl.u32 %v7595, 7
        %v7597 = vsub.s32 %v7594, %v7596
        %v7598 = vrot.slane %v7584, %v7597
        %v7599 = vcombine.high %v7583, 0.0
        %v7601 = vunpack.c.l.s4 1934713408
        %v7602 = vunpack.c.0.s8 %v7601
        %v7603 = vlaneseq
        %v7604 = vshrl.u32 %v7603, 7
        %v7605 = vsub.s32 %v7602, %v7604
        %v7606 = vrot.slane %v7583, %v7605
        %v7608 = vunpack.c.l.s4 1934713408
        %v7609 = vunpack.c.0.s8 %v7608
        %v7610 = vlaneseq
        %v7611 = vshrl.u32 %v7610, 7
        %v7612 = vsub.s32 %v7609, %v7611
        %v7613 = vrot.slane %v7599, %v7612
        %v7614 = vcombine.high %v7591, 0.0
        %v7615 = vcombine.high %v7598, 0.0
        %v7616 = vcombine.high %v7606, 0.0
        %v7617 = vcombine.high %v7613, 0.0
        %v7618 = vcombine.high %v1907, 0.0
        %v7620 = vunpack.c.l.s4 1983009808
        %v7621 = vunpack.c.0.s8 %v7620
        %v7622 = vlaneseq
        %v7623 = vshrl.u32 %v7622, 7
        %v7624 = vsub.s32 %v7621, %v7623
        %v7625 = vrot.slane %v1907, %v7624
        %v7627 = vunpack.c.l.s4 1983009808
        %v7628 = vunpack.c.0.s8 %v7627
        %v7629 = vlaneseq
        %v7630 = vshrl.u32 %v7629, 7
        %v7631 = vsub.s32 %v7628, %v7630
        %v7632 = vrot.slane %v7618, %v7631
        %v7633 = vcombine.high %v7625, 0.0
        %v7635 = vunpack.c.l.s4 1934713408
        %v7636 = vunpack.c.0.s8 %v7635
        %v7637 = vlaneseq
        %v7638 = vshrl.u32 %v7637, 7
        %v7639 = vsub.s32 %v7636, %v7638
        %v7640 = vrot.slane %v7625, %v7639
        %v7642 = vunpack.c.l.s4 1934713408
        %v7643 = vunpack.c.0.s8 %v7642
        %v7644 = vlaneseq
        %v7645 = vshrl.u32 %v7644, 7
        %v7646 = vsub.s32 %v7643, %v7645
        %v7647 = vrot.slane %v7633, %v7646
        %v7648 = vcombine.high %v7632, 0.0
        %v7650 = vunpack.c.l.s4 1934713408
        %v7651 = vunpack.c.0.s8 %v7650
        %v7652 = vlaneseq
        %v7653 = vshrl.u32 %v7652, 7
        %v7654 = vsub.s32 %v7651, %v7653
        %v7655 = vrot.slane %v7632, %v7654
        %v7657 = vunpack.c.l.s4 1934713408
        %v7658 = vunpack.c.0.s8 %v7657
        %v7659 = vlaneseq
        %v7660 = vshrl.u32 %v7659, 7
        %v7661 = vsub.s32 %v7658, %v7660
        %v7662 = vrot.slane %v7648, %v7661
        %v7663 = vcombine.high %v7640, 0.0
        %v7664 = vcombine.high %v7647, 0.0
        %v7665 = vcombine.high %v7655, 0.0
        %v7666 = vcombine.high %v7662, 0.0
        %v7667 = vcombine.high %v1908, 0.0
        %v7669 = vunpack.c.l.s4 1983009808
        %v7670 = vunpack.c.0.s8 %v7669
        %v7671 = vlaneseq
        %v7672 = vshrl.u32 %v7671, 7
        %v7673 = vsub.s32 %v7670, %v7672
        %v7674 = vrot.slane %v1908, %v7673
        %v7676 = vunpack.c.l.s4 1983009808
        %v7677 = vunpack.c.0.s8 %v7676
        %v7678 = vlaneseq
        %v7679 = vshrl.u32 %v7678, 7
        %v7680 = vsub.s32 %v7677, %v7679
        %v7681 = vrot.slane %v7667, %v7680
        %v7682 = vcombine.high %v7674, 0.0
        %v7684 = vunpack.c.l.s4 1934713408
        %v7685 = vunpack.c.0.s8 %v7684
        %v7686 = vlaneseq
        %v7687 = vshrl.u32 %v7686, 7
        %v7688 = vsub.s32 %v7685, %v7687
        %v7689 = vrot.slane %v7674, %v7688
        %v7691 = vunpack.c.l.s4 1934713408
        %v7692 = vunpack.c.0.s8 %v7691
        %v7693 = vlaneseq
        %v7694 = vshrl.u32 %v7693, 7
        %v7695 = vsub.s32 %v7692, %v7694
        %v7696 = vrot.slane %v7682, %v7695
        %v7697 = vcombine.high %v7681, 0.0
        %v7699 = vunpack.c.l.s4 1934713408
        %v7700 = vunpack.c.0.s8 %v7699
        %v7701 = vlaneseq
        %v7702 = vshrl.u32 %v7701, 7
        %v7703 = vsub.s32 %v7700, %v7702
        %v7704 = vrot.slane %v7681, %v7703
        %v7706 = vunpack.c.l.s4 1934713408
        %v7707 = vunpack.c.0.s8 %v7706
        %v7708 = vlaneseq
        %v7709 = vshrl.u32 %v7708, 7
        %v7710 = vsub.s32 %v7707, %v7709
        %v7711 = vrot.slane %v7697, %v7710
        %v7712 = vcombine.high %v7689, 0.0
        %v7713 = vcombine.high %v7696, 0.0
        %v7714 = vcombine.high %v7704, 0.0
        %v7715 = vcombine.high %v7711, 0.0
        %v7716 = vcombine.high %v1909, 0.0
        %v7718 = vunpack.c.l.s4 1983009808
        %v7719 = vunpack.c.0.s8 %v7718
        %v7720 = vlaneseq
        %v7721 = vshrl.u32 %v7720, 7
        %v7722 = vsub.s32 %v7719, %v7721
        %v7723 = vrot.slane %v1909, %v7722
        %v7725 = vunpack.c.l.s4 1983009808
        %v7726 = vunpack.c.0.s8 %v7725
        %v7727 = vlaneseq
        %v7728 = vshrl.u32 %v7727, 7
        %v7729 = vsub.s32 %v7726, %v7728
        %v7730 = vrot.slane %v7716, %v7729
        %v7731 = vcombine.high %v7723, 0.0
        %v7733 = vunpack.c.l.s4 1934713408
        %v7734 = vunpack.c.0.s8 %v7733
        %v7735 = vlaneseq
        %v7736 = vshrl.u32 %v7735, 7
        %v7737 = vsub.s32 %v7734, %v7736
        %v7738 = vrot.slane %v7723, %v7737
        %v7740 = vunpack.c.l.s4 1934713408
        %v7741 = vunpack.c.0.s8 %v7740
        %v7742 = vlaneseq
        %v7743 = vshrl.u32 %v7742, 7
        %v7744 = vsub.s32 %v7741, %v7743
        %v7745 = vrot.slane %v7731, %v7744
        %v7746 = vcombine.high %v7730, 0.0
        %v7748 = vunpack.c.l.s4 1934713408
        %v7749 = vunpack.c.0.s8 %v7748
        %v7750 = vlaneseq
        %v7751 = vshrl.u32 %v7750, 7
        %v7752 = vsub.s32 %v7749, %v7751
        %v7753 = vrot.slane %v7730, %v7752
        %v7755 = vunpack.c.l.s4 1934713408
        %v7756 = vunpack.c.0.s8 %v7755
        %v7757 = vlaneseq
        %v7758 = vshrl.u32 %v7757, 7
        %v7759 = vsub.s32 %v7756, %v7758
        %v7760 = vrot.slane %v7746, %v7759
        %v7761 = vcombine.high %v7738, 0.0
        %v7762 = vcombine.high %v7745, 0.0
        %v7763 = vcombine.high %v7753, 0.0
        %v7764 = vcombine.high %v7760, 0.0
        %v7765 = vcombine.high %v1910, 0.0
        %v7767 = vunpack.c.l.s4 1983009808
        %v7768 = vunpack.c.0.s8 %v7767
        %v7769 = vlaneseq
        %v7770 = vshrl.u32 %v7769, 7
        %v7771 = vsub.s32 %v7768, %v7770
        %v7772 = vrot.slane %v1910, %v7771
        %v7774 = vunpack.c.l.s4 1983009808
        %v7775 = vunpack.c.0.s8 %v7774
        %v7776 = vlaneseq
        %v7777 = vshrl.u32 %v7776, 7
        %v7778 = vsub.s32 %v7775, %v7777
        %v7779 = vrot.slane %v7765, %v7778
        %v7780 = vcombine.high %v7772, 0.0
        %v7782 = vunpack.c.l.s4 1934713408
        %v7783 = vunpack.c.0.s8 %v7782
        %v7784 = vlaneseq
        %v7785 = vshrl.u32 %v7784, 7
        %v7786 = vsub.s32 %v7783, %v7785
        %v7787 = vrot.slane %v7772, %v7786
        %v7789 = vunpack.c.l.s4 1934713408
        %v7790 = vunpack.c.0.s8 %v7789
        %v7791 = vlaneseq
        %v7792 = vshrl.u32 %v7791, 7
        %v7793 = vsub.s32 %v7790, %v7792
        %v7794 = vrot.slane %v7780, %v7793
        %v7795 = vcombine.high %v7779, 0.0
        %v7797 = vunpack.c.l.s4 1934713408
        %v7798 = vunpack.c.0.s8 %v7797
        %v7799 = vlaneseq
        %v7800 = vshrl.u32 %v7799, 7
        %v7801 = vsub.s32 %v7798, %v7800
        %v7802 = vrot.slane %v7779, %v7801
        %v7804 = vunpack.c.l.s4 1934713408
        %v7805 = vunpack.c.0.s8 %v7804
        %v7806 = vlaneseq
        %v7807 = vshrl.u32 %v7806, 7
        %v7808 = vsub.s32 %v7805, %v7807
        %v7809 = vrot.slane %v7795, %v7808
        %v7810 = vcombine.high %v7787, 0.0
        %v7811 = vcombine.high %v7794, 0.0
        %v7812 = vcombine.high %v7802, 0.0
        %v7813 = vcombine.high %v7809, 0.0
        %v7814 = vcombine.high %v1911, 0.0
        %v7816 = vunpack.c.l.s4 1983009808
        %v7817 = vunpack.c.0.s8 %v7816
        %v7818 = vlaneseq
        %v7819 = vshrl.u32 %v7818, 7
        %v7820 = vsub.s32 %v7817, %v7819
        %v7821 = vrot.slane %v1911, %v7820
        %v7823 = vunpack.c.l.s4 1983009808
        %v7824 = vunpack.c.0.s8 %v7823
        %v7825 = vlaneseq
        %v7826 = vshrl.u32 %v7825, 7
        %v7827 = vsub.s32 %v7824, %v7826
        %v7828 = vrot.slane %v7814, %v7827
        %v7829 = vcombine.high %v7821, 0.0
        %v7831 = vunpack.c.l.s4 1934713408
        %v7832 = vunpack.c.0.s8 %v7831
        %v7833 = vlaneseq
        %v7834 = vshrl.u32 %v7833, 7
        %v7835 = vsub.s32 %v7832, %v7834
        %v7836 = vrot.slane %v7821, %v7835
        %v7838 = vunpack.c.l.s4 1934713408
        %v7839 = vunpack.c.0.s8 %v7838
        %v7840 = vlaneseq
        %v7841 = vshrl.u32 %v7840, 7
        %v7842 = vsub.s32 %v7839, %v7841
        %v7843 = vrot.slane %v7829, %v7842
        %v7844 = vcombine.high %v7828, 0.0
        %v7846 = vunpack.c.l.s4 1934713408
        %v7847 = vunpack.c.0.s8 %v7846
        %v7848 = vlaneseq
        %v7849 = vshrl.u32 %v7848, 7
        %v7850 = vsub.s32 %v7847, %v7849
        %v7851 = vrot.slane %v7828, %v7850
        %v7853 = vunpack.c.l.s4 1934713408
        %v7854 = vunpack.c.0.s8 %v7853
        %v7855 = vlaneseq
        %v7856 = vshrl.u32 %v7855, 7
        %v7857 = vsub.s32 %v7854, %v7856
        %v7858 = vrot.slane %v7844, %v7857
        %v7859 = vcombine.high %v7836, 0.0
        %v7860 = vcombine.high %v7843, 0.0
        %v7861 = vcombine.high %v7851, 0.0
        %v7862 = vcombine.high %v7858, 0.0
        %v7863 = vcombine.high %v1912, 0.0
        %v7865 = vunpack.c.l.s4 1983009808
        %v7866 = vunpack.c.0.s8 %v7865
        %v7867 = vlaneseq
        %v7868 = vshrl.u32 %v7867, 7
        %v7869 = vsub.s32 %v7866, %v7868
        %v7870 = vrot.slane %v1912, %v7869
        %v7872 = vunpack.c.l.s4 1983009808
        %v7873 = vunpack.c.0.s8 %v7872
        %v7874 = vlaneseq
        %v7875 = vshrl.u32 %v7874, 7
        %v7876 = vsub.s32 %v7873, %v7875
        %v7877 = vrot.slane %v7863, %v7876
        %v7878 = vcombine.high %v7870, 0.0
        %v7880 = vunpack.c.l.s4 1934713408
        %v7881 = vunpack.c.0.s8 %v7880
        %v7882 = vlaneseq
        %v7883 = vshrl.u32 %v7882, 7
        %v7884 = vsub.s32 %v7881, %v7883
        %v7885 = vrot.slane %v7870, %v7884
        %v7887 = vunpack.c.l.s4 1934713408
        %v7888 = vunpack.c.0.s8 %v7887
        %v7889 = vlaneseq
        %v7890 = vshrl.u32 %v7889, 7
        %v7891 = vsub.s32 %v7888, %v7890
        %v7892 = vrot.slane %v7878, %v7891
        %v7893 = vcombine.high %v7877, 0.0
        %v7895 = vunpack.c.l.s4 1934713408
        %v7896 = vunpack.c.0.s8 %v7895
        %v7897 = vlaneseq
        %v7898 = vshrl.u32 %v7897, 7
        %v7899 = vsub.s32 %v7896, %v7898
        %v7900 = vrot.slane %v7877, %v7899
        %v7902 = vunpack.c.l.s4 1934713408
        %v7903 = vunpack.c.0.s8 %v7902
        %v7904 = vlaneseq
        %v7905 = vshrl.u32 %v7904, 7
        %v7906 = vsub.s32 %v7903, %v7905
        %v7907 = vrot.slane %v7893, %v7906
        %v7908 = vcombine.high %v7885, 0.0
        %v7909 = vcombine.high %v7892, 0.0
        %v7910 = vcombine.high %v7900, 0.0
        %v7911 = vcombine.high %v7907, 0.0
        %v7912 = vcombine.high %v1913, 0.0
        %v7914 = vunpack.c.l.s4 1983009808
        %v7915 = vunpack.c.0.s8 %v7914
        %v7916 = vlaneseq
        %v7917 = vshrl.u32 %v7916, 7
        %v7918 = vsub.s32 %v7915, %v7917
        %v7919 = vrot.slane %v1913, %v7918
        %v7921 = vunpack.c.l.s4 1983009808
        %v7922 = vunpack.c.0.s8 %v7921
        %v7923 = vlaneseq
        %v7924 = vshrl.u32 %v7923, 7
        %v7925 = vsub.s32 %v7922, %v7924
        %v7926 = vrot.slane %v7912, %v7925
        %v7927 = vcombine.high %v7919, 0.0
        %v7929 = vunpack.c.l.s4 1934713408
        %v7930 = vunpack.c.0.s8 %v7929
        %v7931 = vlaneseq
        %v7932 = vshrl.u32 %v7931, 7
        %v7933 = vsub.s32 %v7930, %v7932
        %v7934 = vrot.slane %v7919, %v7933
        %v7936 = vunpack.c.l.s4 1934713408
        %v7937 = vunpack.c.0.s8 %v7936
        %v7938 = vlaneseq
        %v7939 = vshrl.u32 %v7938, 7
        %v7940 = vsub.s32 %v7937, %v7939
        %v7941 = vrot.slane %v7927, %v7940
        %v7942 = vcombine.high %v7926, 0.0
        %v7944 = vunpack.c.l.s4 1934713408
        %v7945 = vunpack.c.0.s8 %v7944
        %v7946 = vlaneseq
        %v7947 = vshrl.u32 %v7946, 7
        %v7948 = vsub.s32 %v7945, %v7947
        %v7949 = vrot.slane %v7926, %v7948
        %v7951 = vunpack.c.l.s4 1934713408
        %v7952 = vunpack.c.0.s8 %v7951
        %v7953 = vlaneseq
        %v7954 = vshrl.u32 %v7953, 7
        %v7955 = vsub.s32 %v7952, %v7954
        %v7956 = vrot.slane %v7942, %v7955
        %v7957 = vcombine.high %v7934, 0.0
        %v7958 = vcombine.high %v7941, 0.0
        %v7959 = vcombine.high %v7949, 0.0
        %v7960 = vcombine.high %v7956, 0.0
        %v7961 = vcombine.high %v1914, 0.0
        %v7963 = vunpack.c.l.s4 1983009808
        %v7964 = vunpack.c.0.s8 %v7963
        %v7965 = vlaneseq
        %v7966 = vshrl.u32 %v7965, 7
        %v7967 = vsub.s32 %v7964, %v7966
        %v7968 = vrot.slane %v1914, %v7967
        %v7970 = vunpack.c.l.s4 1983009808
        %v7971 = vunpack.c.0.s8 %v7970
        %v7972 = vlaneseq
        %v7973 = vshrl.u32 %v7972, 7
        %v7974 = vsub.s32 %v7971, %v7973
        %v7975 = vrot.slane %v7961, %v7974
        %v7976 = vcombine.high %v7968, 0.0
        %v7978 = vunpack.c.l.s4 1934713408
        %v7979 = vunpack.c.0.s8 %v7978
        %v7980 = vlaneseq
        %v7981 = vshrl.u32 %v7980, 7
        %v7982 = vsub.s32 %v7979, %v7981
        %v7983 = vrot.slane %v7968, %v7982
        %v7985 = vunpack.c.l.s4 1934713408
        %v7986 = vunpack.c.0.s8 %v7985
        %v7987 = vlaneseq
        %v7988 = vshrl.u32 %v7987, 7
        %v7989 = vsub.s32 %v7986, %v7988
        %v7990 = vrot.slane %v7976, %v7989
        %v7991 = vcombine.high %v7975, 0.0
        %v7993 = vunpack.c.l.s4 1934713408
        %v7994 = vunpack.c.0.s8 %v7993
        %v7995 = vlaneseq
        %v7996 = vshrl.u32 %v7995, 7
        %v7997 = vsub.s32 %v7994, %v7996
        %v7998 = vrot.slane %v7975, %v7997
        %v8000 = vunpack.c.l.s4 1934713408
        %v8001 = vunpack.c.0.s8 %v8000
        %v8002 = vlaneseq
        %v8003 = vshrl.u32 %v8002, 7
        %v8004 = vsub.s32 %v8001, %v8003
        %v8005 = vrot.slane %v7991, %v8004
        %v8006 = vcombine.high %v7983, 0.0
        %v8007 = vcombine.high %v7990, 0.0
        %v8008 = vcombine.high %v7998, 0.0
        %v8009 = vcombine.high %v8005, 0.0
        %v8010 = vcombine.high %v1915, 0.0
        %v8012 = vunpack.c.l.s4 1983009808
        %v8013 = vunpack.c.0.s8 %v8012
        %v8014 = vlaneseq
        %v8015 = vshrl.u32 %v8014, 7
        %v8016 = vsub.s32 %v8013, %v8015
        %v8017 = vrot.slane %v1915, %v8016
        %v8019 = vunpack.c.l.s4 1983009808
        %v8020 = vunpack.c.0.s8 %v8019
        %v8021 = vlaneseq
        %v8022 = vshrl.u32 %v8021, 7
        %v8023 = vsub.s32 %v8020, %v8022
        %v8024 = vrot.slane %v8010, %v8023
        %v8025 = vcombine.high %v8017, 0.0
        %v8027 = vunpack.c.l.s4 1934713408
        %v8028 = vunpack.c.0.s8 %v8027
        %v8029 = vlaneseq
        %v8030 = vshrl.u32 %v8029, 7
        %v8031 = vsub.s32 %v8028, %v8030
        %v8032 = vrot.slane %v8017, %v8031
        %v8034 = vunpack.c.l.s4 1934713408
        %v8035 = vunpack.c.0.s8 %v8034
        %v8036 = vlaneseq
        %v8037 = vshrl.u32 %v8036, 7
        %v8038 = vsub.s32 %v8035, %v8037
        %v8039 = vrot.slane %v8025, %v8038
        %v8040 = vcombine.high %v8024, 0.0
        %v8042 = vunpack.c.l.s4 1934713408
        %v8043 = vunpack.c.0.s8 %v8042
        %v8044 = vlaneseq
        %v8045 = vshrl.u32 %v8044, 7
        %v8046 = vsub.s32 %v8043, %v8045
        %v8047 = vrot.slane %v8024, %v8046
        %v8049 = vunpack.c.l.s4 1934713408
        %v8050 = vunpack.c.0.s8 %v8049
        %v8051 = vlaneseq
        %v8052 = vshrl.u32 %v8051, 7
        %v8053 = vsub.s32 %v8050, %v8052
        %v8054 = vrot.slane %v8040, %v8053
        %v8055 = vcombine.high %v8032, 0.0
        %v8056 = vcombine.high %v8039, 0.0
        %v8057 = vcombine.high %v8047, 0.0
        %v8058 = vcombine.high %v8054, 0.0
        %v8059 = vcombine.high %v1916, 0.0
        %v8061 = vunpack.c.l.s4 1983009808
        %v8062 = vunpack.c.0.s8 %v8061
        %v8063 = vlaneseq
        %v8064 = vshrl.u32 %v8063, 7
        %v8065 = vsub.s32 %v8062, %v8064
        %v8066 = vrot.slane %v1916, %v8065
        %v8068 = vunpack.c.l.s4 1983009808
        %v8069 = vunpack.c.0.s8 %v8068
        %v8070 = vlaneseq
        %v8071 = vshrl.u32 %v8070, 7
        %v8072 = vsub.s32 %v8069, %v8071
        %v8073 = vrot.slane %v8059, %v8072
        %v8074 = vcombine.high %v8066, 0.0
        %v8076 = vunpack.c.l.s4 1934713408
        %v8077 = vunpack.c.0.s8 %v8076
        %v8078 = vlaneseq
        %v8079 = vshrl.u32 %v8078, 7
        %v8080 = vsub.s32 %v8077, %v8079
        %v8081 = vrot.slane %v8066, %v8080
        %v8083 = vunpack.c.l.s4 1934713408
        %v8084 = vunpack.c.0.s8 %v8083
        %v8085 = vlaneseq
        %v8086 = vshrl.u32 %v8085, 7
        %v8087 = vsub.s32 %v8084, %v8086
        %v8088 = vrot.slane %v8074, %v8087
        %v8089 = vcombine.high %v8073, 0.0
        %v8091 = vunpack.c.l.s4 1934713408
        %v8092 = vunpack.c.0.s8 %v8091
        %v8093 = vlaneseq
        %v8094 = vshrl.u32 %v8093, 7
        %v8095 = vsub.s32 %v8092, %v8094
        %v8096 = vrot.slane %v8073, %v8095
        %v8098 = vunpack.c.l.s4 1934713408
        %v8099 = vunpack.c.0.s8 %v8098
        %v8100 = vlaneseq
        %v8101 = vshrl.u32 %v8100, 7
        %v8102 = vsub.s32 %v8099, %v8101
        %v8103 = vrot.slane %v8089, %v8102
        %v8104 = vcombine.high %v8081, 0.0
        %v8105 = vcombine.high %v8088, 0.0
        %v8106 = vcombine.high %v8096, 0.0
        %v8107 = vcombine.high %v8103, 0.0
        %v8108 = vcombine.high %v1917, 0.0
        %v8110 = vunpack.c.l.s4 1983009808
        %v8111 = vunpack.c.0.s8 %v8110
        %v8112 = vlaneseq
        %v8113 = vshrl.u32 %v8112, 7
        %v8114 = vsub.s32 %v8111, %v8113
        %v8115 = vrot.slane %v1917, %v8114
        %v8117 = vunpack.c.l.s4 1983009808
        %v8118 = vunpack.c.0.s8 %v8117
        %v8119 = vlaneseq
        %v8120 = vshrl.u32 %v8119, 7
        %v8121 = vsub.s32 %v8118, %v8120
        %v8122 = vrot.slane %v8108, %v8121
        %v8123 = vcombine.high %v8115, 0.0
        %v8125 = vunpack.c.l.s4 1934713408
        %v8126 = vunpack.c.0.s8 %v8125
        %v8127 = vlaneseq
        %v8128 = vshrl.u32 %v8127, 7
        %v8129 = vsub.s32 %v8126, %v8128
        %v8130 = vrot.slane %v8115, %v8129
        %v8132 = vunpack.c.l.s4 1934713408
        %v8133 = vunpack.c.0.s8 %v8132
        %v8134 = vlaneseq
        %v8135 = vshrl.u32 %v8134, 7
        %v8136 = vsub.s32 %v8133, %v8135
        %v8137 = vrot.slane %v8123, %v8136
        %v8138 = vcombine.high %v8122, 0.0
        %v8140 = vunpack.c.l.s4 1934713408
        %v8141 = vunpack.c.0.s8 %v8140
        %v8142 = vlaneseq
        %v8143 = vshrl.u32 %v8142, 7
        %v8144 = vsub.s32 %v8141, %v8143
        %v8145 = vrot.slane %v8122, %v8144
        %v8147 = vunpack.c.l.s4 1934713408
        %v8148 = vunpack.c.0.s8 %v8147
        %v8149 = vlaneseq
        %v8150 = vshrl.u32 %v8149, 7
        %v8151 = vsub.s32 %v8148, %v8150
        %v8152 = vrot.slane %v8138, %v8151
        %v8153 = vcombine.high %v8130, 0.0
        %v8154 = vcombine.high %v8137, 0.0
        %v8155 = vcombine.high %v8145, 0.0
        %v8156 = vcombine.high %v8152, 0.0
        %v8157 = vcombine.high %v1918, 0.0
        %v8159 = vunpack.c.l.s4 1983009808
        %v8160 = vunpack.c.0.s8 %v8159
        %v8161 = vlaneseq
        %v8162 = vshrl.u32 %v8161, 7
        %v8163 = vsub.s32 %v8160, %v8162
        %v8164 = vrot.slane %v1918, %v8163
        %v8166 = vunpack.c.l.s4 1983009808
        %v8167 = vunpack.c.0.s8 %v8166
        %v8168 = vlaneseq
        %v8169 = vshrl.u32 %v8168, 7
        %v8170 = vsub.s32 %v8167, %v8169
        %v8171 = vrot.slane %v8157, %v8170
        %v8172 = vcombine.high %v8164, 0.0
        %v8174 = vunpack.c.l.s4 1934713408
        %v8175 = vunpack.c.0.s8 %v8174
        %v8176 = vlaneseq
        %v8177 = vshrl.u32 %v8176, 7
        %v8178 = vsub.s32 %v8175, %v8177
        %v8179 = vrot.slane %v8164, %v8178
        %v8181 = vunpack.c.l.s4 1934713408
        %v8182 = vunpack.c.0.s8 %v8181
        %v8183 = vlaneseq
        %v8184 = vshrl.u32 %v8183, 7
        %v8185 = vsub.s32 %v8182, %v8184
        %v8186 = vrot.slane %v8172, %v8185
        %v8187 = vcombine.high %v8171, 0.0
        %v8189 = vunpack.c.l.s4 1934713408
        %v8190 = vunpack.c.0.s8 %v8189
        %v8191 = vlaneseq
        %v8192 = vshrl.u32 %v8191, 7
        %v8193 = vsub.s32 %v8190, %v8192
        %v8194 = vrot.slane %v8171, %v8193
        %v8196 = vunpack.c.l.s4 1934713408
        %v8197 = vunpack.c.0.s8 %v8196
        %v8198 = vlaneseq
        %v8199 = vshrl.u32 %v8198, 7
        %v8200 = vsub.s32 %v8197, %v8199
        %v8201 = vrot.slane %v8187, %v8200
        %v8202 = vcombine.high %v8179, 0.0
        %v8203 = vcombine.high %v8186, 0.0
        %v8204 = vcombine.high %v8194, 0.0
        %v8205 = vcombine.high %v8201, 0.0
        %v8206 = vcombine.high %v1919, 0.0
        %v8208 = vunpack.c.l.s4 1983009808
        %v8209 = vunpack.c.0.s8 %v8208
        %v8210 = vlaneseq
        %v8211 = vshrl.u32 %v8210, 7
        %v8212 = vsub.s32 %v8209, %v8211
        %v8213 = vrot.slane %v1919, %v8212
        %v8215 = vunpack.c.l.s4 1983009808
        %v8216 = vunpack.c.0.s8 %v8215
        %v8217 = vlaneseq
        %v8218 = vshrl.u32 %v8217, 7
        %v8219 = vsub.s32 %v8216, %v8218
        %v8220 = vrot.slane %v8206, %v8219
        %v8221 = vcombine.high %v8213, 0.0
        %v8223 = vunpack.c.l.s4 1934713408
        %v8224 = vunpack.c.0.s8 %v8223
        %v8225 = vlaneseq
        %v8226 = vshrl.u32 %v8225, 7
        %v8227 = vsub.s32 %v8224, %v8226
        %v8228 = vrot.slane %v8213, %v8227
        %v8230 = vunpack.c.l.s4 1934713408
        %v8231 = vunpack.c.0.s8 %v8230
        %v8232 = vlaneseq
        %v8233 = vshrl.u32 %v8232, 7
        %v8234 = vsub.s32 %v8231, %v8233
        %v8235 = vrot.slane %v8221, %v8234
        %v8236 = vcombine.high %v8220, 0.0
        %v8238 = vunpack.c.l.s4 1934713408
        %v8239 = vunpack.c.0.s8 %v8238
        %v8240 = vlaneseq
        %v8241 = vshrl.u32 %v8240, 7
        %v8242 = vsub.s32 %v8239, %v8241
        %v8243 = vrot.slane %v8220, %v8242
        %v8245 = vunpack.c.l.s4 1934713408
        %v8246 = vunpack.c.0.s8 %v8245
        %v8247 = vlaneseq
        %v8248 = vshrl.u32 %v8247, 7
        %v8249 = vsub.s32 %v8246, %v8248
        %v8250 = vrot.slane %v8236, %v8249
        %v8251 = vcombine.high %v8228, 0.0
        %v8252 = vcombine.high %v8235, 0.0
        %v8253 = vcombine.high %v8243, 0.0
        %v8254 = vcombine.high %v8250, 0.0
        %v8255 = vcombine.high %v1920, 0.0
        %v8257 = vunpack.c.l.s4 1983009808
        %v8258 = vunpack.c.0.s8 %v8257
        %v8259 = vlaneseq
        %v8260 = vshrl.u32 %v8259, 7
        %v8261 = vsub.s32 %v8258, %v8260
        %v8262 = vrot.slane %v1920, %v8261
        %v8264 = vunpack.c.l.s4 1983009808
        %v8265 = vunpack.c.0.s8 %v8264
        %v8266 = vlaneseq
        %v8267 = vshrl.u32 %v8266, 7
        %v8268 = vsub.s32 %v8265, %v8267
        %v8269 = vrot.slane %v8255, %v8268
        %v8270 = vcombine.high %v8262, 0.0
        %v8272 = vunpack.c.l.s4 1934713408
        %v8273 = vunpack.c.0.s8 %v8272
        %v8274 = vlaneseq
        %v8275 = vshrl.u32 %v8274, 7
        %v8276 = vsub.s32 %v8273, %v8275
        %v8277 = vrot.slane %v8262, %v8276
        %v8279 = vunpack.c.l.s4 1934713408
        %v8280 = vunpack.c.0.s8 %v8279
        %v8281 = vlaneseq
        %v8282 = vshrl.u32 %v8281, 7
        %v8283 = vsub.s32 %v8280, %v8282
        %v8284 = vrot.slane %v8270, %v8283
        %v8285 = vcombine.high %v8269, 0.0
        %v8287 = vunpack.c.l.s4 1934713408
        %v8288 = vunpack.c.0.s8 %v8287
        %v8289 = vlaneseq
        %v8290 = vshrl.u32 %v8289, 7
        %v8291 = vsub.s32 %v8288, %v8290
        %v8292 = vrot.slane %v8269, %v8291
        %v8294 = vunpack.c.l.s4 1934713408
        %v8295 = vunpack.c.0.s8 %v8294
        %v8296 = vlaneseq
        %v8297 = vshrl.u32 %v8296, 7
        %v8298 = vsub.s32 %v8295, %v8297
        %v8299 = vrot.slane %v8285, %v8298
        %v8300 = vcombine.high %v8277, 0.0
        %v8301 = vcombine.high %v8284, 0.0
        %v8302 = vcombine.high %v8292, 0.0
        %v8303 = vcombine.high %v8299, 0.0
        %v8304 = vcombine.high %v1921, 0.0
        %v8306 = vunpack.c.l.s4 1983009808
        %v8307 = vunpack.c.0.s8 %v8306
        %v8308 = vlaneseq
        %v8309 = vshrl.u32 %v8308, 7
        %v8310 = vsub.s32 %v8307, %v8309
        %v8311 = vrot.slane %v1921, %v8310
        %v8313 = vunpack.c.l.s4 1983009808
        %v8314 = vunpack.c.0.s8 %v8313
        %v8315 = vlaneseq
        %v8316 = vshrl.u32 %v8315, 7
        %v8317 = vsub.s32 %v8314, %v8316
        %v8318 = vrot.slane %v8304, %v8317
        %v8319 = vcombine.high %v8311, 0.0
        %v8321 = vunpack.c.l.s4 1934713408
        %v8322 = vunpack.c.0.s8 %v8321
        %v8323 = vlaneseq
        %v8324 = vshrl.u32 %v8323, 7
        %v8325 = vsub.s32 %v8322, %v8324
        %v8326 = vrot.slane %v8311, %v8325
        %v8328 = vunpack.c.l.s4 1934713408
        %v8329 = vunpack.c.0.s8 %v8328
        %v8330 = vlaneseq
        %v8331 = vshrl.u32 %v8330, 7
        %v8332 = vsub.s32 %v8329, %v8331
        %v8333 = vrot.slane %v8319, %v8332
        %v8334 = vcombine.high %v8318, 0.0
        %v8336 = vunpack.c.l.s4 1934713408
        %v8337 = vunpack.c.0.s8 %v8336
        %v8338 = vlaneseq
        %v8339 = vshrl.u32 %v8338, 7
        %v8340 = vsub.s32 %v8337, %v8339
        %v8341 = vrot.slane %v8318, %v8340
        %v8343 = vunpack.c.l.s4 1934713408
        %v8344 = vunpack.c.0.s8 %v8343
        %v8345 = vlaneseq
        %v8346 = vshrl.u32 %v8345, 7
        %v8347 = vsub.s32 %v8344, %v8346
        %v8348 = vrot.slane %v8334, %v8347
        %v8349 = vcombine.high %v8326, 0.0
        %v8350 = vcombine.high %v8333, 0.0
        %v8351 = vcombine.high %v8341, 0.0
        %v8352 = vcombine.high %v8348, 0.0
        %v8353 = vcombine.high %v1922, 0.0
        %v8355 = vunpack.c.l.s4 1983009808
        %v8356 = vunpack.c.0.s8 %v8355
        %v8357 = vlaneseq
        %v8358 = vshrl.u32 %v8357, 7
        %v8359 = vsub.s32 %v8356, %v8358
        %v8360 = vrot.slane %v1922, %v8359
        %v8362 = vunpack.c.l.s4 1983009808
        %v8363 = vunpack.c.0.s8 %v8362
        %v8364 = vlaneseq
        %v8365 = vshrl.u32 %v8364, 7
        %v8366 = vsub.s32 %v8363, %v8365
        %v8367 = vrot.slane %v8353, %v8366
        %v8368 = vcombine.high %v8360, 0.0
        %v8370 = vunpack.c.l.s4 1934713408
        %v8371 = vunpack.c.0.s8 %v8370
        %v8372 = vlaneseq
        %v8373 = vshrl.u32 %v8372, 7
        %v8374 = vsub.s32 %v8371, %v8373
        %v8375 = vrot.slane %v8360, %v8374
        %v8377 = vunpack.c.l.s4 1934713408
        %v8378 = vunpack.c.0.s8 %v8377
        %v8379 = vlaneseq
        %v8380 = vshrl.u32 %v8379, 7
        %v8381 = vsub.s32 %v8378, %v8380
        %v8382 = vrot.slane %v8368, %v8381
        %v8383 = vcombine.high %v8367, 0.0
        %v8385 = vunpack.c.l.s4 1934713408
        %v8386 = vunpack.c.0.s8 %v8385
        %v8387 = vlaneseq
        %v8388 = vshrl.u32 %v8387, 7
        %v8389 = vsub.s32 %v8386, %v8388
        %v8390 = vrot.slane %v8367, %v8389
        %v8392 = vunpack.c.l.s4 1934713408
        %v8393 = vunpack.c.0.s8 %v8392
        %v8394 = vlaneseq
        %v8395 = vshrl.u32 %v8394, 7
        %v8396 = vsub.s32 %v8393, %v8395
        %v8397 = vrot.slane %v8383, %v8396
        %v8398 = vcombine.high %v8375, 0.0
        %v8399 = vcombine.high %v8382, 0.0
        %v8400 = vcombine.high %v8390, 0.0
        %v8401 = vcombine.high %v8397, 0.0
        %v8402 = vcombine.high %v1923, 0.0
        %v8404 = vunpack.c.l.s4 1983009808
        %v8405 = vunpack.c.0.s8 %v8404
        %v8406 = vlaneseq
        %v8407 = vshrl.u32 %v8406, 7
        %v8408 = vsub.s32 %v8405, %v8407
        %v8409 = vrot.slane %v1923, %v8408
        %v8411 = vunpack.c.l.s4 1983009808
        %v8412 = vunpack.c.0.s8 %v8411
        %v8413 = vlaneseq
        %v8414 = vshrl.u32 %v8413, 7
        %v8415 = vsub.s32 %v8412, %v8414
        %v8416 = vrot.slane %v8402, %v8415
        %v8417 = vcombine.high %v8409, 0.0
        %v8419 = vunpack.c.l.s4 1934713408
        %v8420 = vunpack.c.0.s8 %v8419
        %v8421 = vlaneseq
        %v8422 = vshrl.u32 %v8421, 7
        %v8423 = vsub.s32 %v8420, %v8422
        %v8424 = vrot.slane %v8409, %v8423
        %v8426 = vunpack.c.l.s4 1934713408
        %v8427 = vunpack.c.0.s8 %v8426
        %v8428 = vlaneseq
        %v8429 = vshrl.u32 %v8428, 7
        %v8430 = vsub.s32 %v8427, %v8429
        %v8431 = vrot.slane %v8417, %v8430
        %v8432 = vcombine.high %v8416, 0.0
        %v8434 = vunpack.c.l.s4 1934713408
        %v8435 = vunpack.c.0.s8 %v8434
        %v8436 = vlaneseq
        %v8437 = vshrl.u32 %v8436, 7
        %v8438 = vsub.s32 %v8435, %v8437
        %v8439 = vrot.slane %v8416, %v8438
        %v8441 = vunpack.c.l.s4 1934713408
        %v8442 = vunpack.c.0.s8 %v8441
        %v8443 = vlaneseq
        %v8444 = vshrl.u32 %v8443, 7
        %v8445 = vsub.s32 %v8442, %v8444
        %v8446 = vrot.slane %v8432, %v8445
        %v8447 = vcombine.high %v8424, 0.0
        %v8448 = vcombine.high %v8431, 0.0
        %v8449 = vcombine.high %v8439, 0.0
        %v8450 = vcombine.high %v8446, 0.0
        %v8451 = vcombine.high %v1924, 0.0
        %v8453 = vunpack.c.l.s4 1983009808
        %v8454 = vunpack.c.0.s8 %v8453
        %v8455 = vlaneseq
        %v8456 = vshrl.u32 %v8455, 7
        %v8457 = vsub.s32 %v8454, %v8456
        %v8458 = vrot.slane %v1924, %v8457
        %v8460 = vunpack.c.l.s4 1983009808
        %v8461 = vunpack.c.0.s8 %v8460
        %v8462 = vlaneseq
        %v8463 = vshrl.u32 %v8462, 7
        %v8464 = vsub.s32 %v8461, %v8463
        %v8465 = vrot.slane %v8451, %v8464
        %v8466 = vcombine.high %v8458, 0.0
        %v8468 = vunpack.c.l.s4 1934713408
        %v8469 = vunpack.c.0.s8 %v8468
        %v8470 = vlaneseq
        %v8471 = vshrl.u32 %v8470, 7
        %v8472 = vsub.s32 %v8469, %v8471
        %v8473 = vrot.slane %v8458, %v8472
        %v8475 = vunpack.c.l.s4 1934713408
        %v8476 = vunpack.c.0.s8 %v8475
        %v8477 = vlaneseq
        %v8478 = vshrl.u32 %v8477, 7
        %v8479 = vsub.s32 %v8476, %v8478
        %v8480 = vrot.slane %v8466, %v8479
        %v8481 = vcombine.high %v8465, 0.0
        %v8483 = vunpack.c.l.s4 1934713408
        %v8484 = vunpack.c.0.s8 %v8483
        %v8485 = vlaneseq
        %v8486 = vshrl.u32 %v8485, 7
        %v8487 = vsub.s32 %v8484, %v8486
        %v8488 = vrot.slane %v8465, %v8487
        %v8490 = vunpack.c.l.s4 1934713408
        %v8491 = vunpack.c.0.s8 %v8490
        %v8492 = vlaneseq
        %v8493 = vshrl.u32 %v8492, 7
        %v8494 = vsub.s32 %v8491, %v8493
        %v8495 = vrot.slane %v8481, %v8494
        %v8496 = vcombine.high %v8473, 0.0
        %v8497 = vcombine.high %v8480, 0.0
        %v8498 = vcombine.high %v8488, 0.0
        %v8499 = vcombine.high %v8495, 0.0
        %v8500 = vcombine.high %v1925, 0.0
        %v8502 = vunpack.c.l.s4 1983009808
        %v8503 = vunpack.c.0.s8 %v8502
        %v8504 = vlaneseq
        %v8505 = vshrl.u32 %v8504, 7
        %v8506 = vsub.s32 %v8503, %v8505
        %v8507 = vrot.slane %v1925, %v8506
        %v8509 = vunpack.c.l.s4 1983009808
        %v8510 = vunpack.c.0.s8 %v8509
        %v8511 = vlaneseq
        %v8512 = vshrl.u32 %v8511, 7
        %v8513 = vsub.s32 %v8510, %v8512
        %v8514 = vrot.slane %v8500, %v8513
        %v8515 = vcombine.high %v8507, 0.0
        %v8517 = vunpack.c.l.s4 1934713408
        %v8518 = vunpack.c.0.s8 %v8517
        %v8519 = vlaneseq
        %v8520 = vshrl.u32 %v8519, 7
        %v8521 = vsub.s32 %v8518, %v8520
        %v8522 = vrot.slane %v8507, %v8521
        %v8524 = vunpack.c.l.s4 1934713408
        %v8525 = vunpack.c.0.s8 %v8524
        %v8526 = vlaneseq
        %v8527 = vshrl.u32 %v8526, 7
        %v8528 = vsub.s32 %v8525, %v8527
        %v8529 = vrot.slane %v8515, %v8528
        %v8530 = vcombine.high %v8514, 0.0
        %v8532 = vunpack.c.l.s4 1934713408
        %v8533 = vunpack.c.0.s8 %v8532
        %v8534 = vlaneseq
        %v8535 = vshrl.u32 %v8534, 7
        %v8536 = vsub.s32 %v8533, %v8535
        %v8537 = vrot.slane %v8514, %v8536
        %v8539 = vunpack.c.l.s4 1934713408
        %v8540 = vunpack.c.0.s8 %v8539
        %v8541 = vlaneseq
        %v8542 = vshrl.u32 %v8541, 7
        %v8543 = vsub.s32 %v8540, %v8542
        %v8544 = vrot.slane %v8530, %v8543
        %v8545 = vcombine.high %v8522, 0.0
        %v8546 = vcombine.high %v8529, 0.0
        %v8547 = vcombine.high %v8537, 0.0
        %v8548 = vcombine.high %v8544, 0.0
        %v8549 = vcombine.high %v1926, 0.0
        %v8551 = vunpack.c.l.s4 1983009808
        %v8552 = vunpack.c.0.s8 %v8551
        %v8553 = vlaneseq
        %v8554 = vshrl.u32 %v8553, 7
        %v8555 = vsub.s32 %v8552, %v8554
        %v8556 = vrot.slane %v1926, %v8555
        %v8558 = vunpack.c.l.s4 1983009808
        %v8559 = vunpack.c.0.s8 %v8558
        %v8560 = vlaneseq
        %v8561 = vshrl.u32 %v8560, 7
        %v8562 = vsub.s32 %v8559, %v8561
        %v8563 = vrot.slane %v8549, %v8562
        %v8564 = vcombine.high %v8556, 0.0
        %v8566 = vunpack.c.l.s4 1934713408
        %v8567 = vunpack.c.0.s8 %v8566
        %v8568 = vlaneseq
        %v8569 = vshrl.u32 %v8568, 7
        %v8570 = vsub.s32 %v8567, %v8569
        %v8571 = vrot.slane %v8556, %v8570
        %v8573 = vunpack.c.l.s4 1934713408
        %v8574 = vunpack.c.0.s8 %v8573
        %v8575 = vlaneseq
        %v8576 = vshrl.u32 %v8575, 7
        %v8577 = vsub.s32 %v8574, %v8576
        %v8578 = vrot.slane %v8564, %v8577
        %v8579 = vcombine.high %v8563, 0.0
        %v8581 = vunpack.c.l.s4 1934713408
        %v8582 = vunpack.c.0.s8 %v8581
        %v8583 = vlaneseq
        %v8584 = vshrl.u32 %v8583, 7
        %v8585 = vsub.s32 %v8582, %v8584
        %v8586 = vrot.slane %v8563, %v8585
        %v8588 = vunpack.c.l.s4 1934713408
        %v8589 = vunpack.c.0.s8 %v8588
        %v8590 = vlaneseq
        %v8591 = vshrl.u32 %v8590, 7
        %v8592 = vsub.s32 %v8589, %v8591
        %v8593 = vrot.slane %v8579, %v8592
        %v8594 = vcombine.high %v8571, 0.0
        %v8595 = vcombine.high %v8578, 0.0
        %v8596 = vcombine.high %v8586, 0.0
        %v8597 = vcombine.high %v8593, 0.0
        %v8598 = vcombine.high %v1927, 0.0
        %v8600 = vunpack.c.l.s4 1983009808
        %v8601 = vunpack.c.0.s8 %v8600
        %v8602 = vlaneseq
        %v8603 = vshrl.u32 %v8602, 7
        %v8604 = vsub.s32 %v8601, %v8603
        %v8605 = vrot.slane %v1927, %v8604
        %v8607 = vunpack.c.l.s4 1983009808
        %v8608 = vunpack.c.0.s8 %v8607
        %v8609 = vlaneseq
        %v8610 = vshrl.u32 %v8609, 7
        %v8611 = vsub.s32 %v8608, %v8610
        %v8612 = vrot.slane %v8598, %v8611
        %v8613 = vcombine.high %v8605, 0.0
        %v8615 = vunpack.c.l.s4 1934713408
        %v8616 = vunpack.c.0.s8 %v8615
        %v8617 = vlaneseq
        %v8618 = vshrl.u32 %v8617, 7
        %v8619 = vsub.s32 %v8616, %v8618
        %v8620 = vrot.slane %v8605, %v8619
        %v8622 = vunpack.c.l.s4 1934713408
        %v8623 = vunpack.c.0.s8 %v8622
        %v8624 = vlaneseq
        %v8625 = vshrl.u32 %v8624, 7
        %v8626 = vsub.s32 %v8623, %v8625
        %v8627 = vrot.slane %v8613, %v8626
        %v8628 = vcombine.high %v8612, 0.0
        %v8630 = vunpack.c.l.s4 1934713408
        %v8631 = vunpack.c.0.s8 %v8630
        %v8632 = vlaneseq
        %v8633 = vshrl.u32 %v8632, 7
        %v8634 = vsub.s32 %v8631, %v8633
        %v8635 = vrot.slane %v8612, %v8634
        %v8637 = vunpack.c.l.s4 1934713408
        %v8638 = vunpack.c.0.s8 %v8637
        %v8639 = vlaneseq
        %v8640 = vshrl.u32 %v8639, 7
        %v8641 = vsub.s32 %v8638, %v8640
        %v8642 = vrot.slane %v8628, %v8641
        %v8643 = vcombine.high %v8620, 0.0
        %v8644 = vcombine.high %v8627, 0.0
        %v8645 = vcombine.high %v8635, 0.0
        %v8646 = vcombine.high %v8642, 0.0
        %v8647 = vcombine.high %v1928, 0.0
        %v8649 = vunpack.c.l.s4 1983009808
        %v8650 = vunpack.c.0.s8 %v8649
        %v8651 = vlaneseq
        %v8652 = vshrl.u32 %v8651, 7
        %v8653 = vsub.s32 %v8650, %v8652
        %v8654 = vrot.slane %v1928, %v8653
        %v8656 = vunpack.c.l.s4 1983009808
        %v8657 = vunpack.c.0.s8 %v8656
        %v8658 = vlaneseq
        %v8659 = vshrl.u32 %v8658, 7
        %v8660 = vsub.s32 %v8657, %v8659
        %v8661 = vrot.slane %v8647, %v8660
        %v8662 = vcombine.high %v8654, 0.0
        %v8664 = vunpack.c.l.s4 1934713408
        %v8665 = vunpack.c.0.s8 %v8664
        %v8666 = vlaneseq
        %v8667 = vshrl.u32 %v8666, 7
        %v8668 = vsub.s32 %v8665, %v8667
        %v8669 = vrot.slane %v8654, %v8668
        %v8671 = vunpack.c.l.s4 1934713408
        %v8672 = vunpack.c.0.s8 %v8671
        %v8673 = vlaneseq
        %v8674 = vshrl.u32 %v8673, 7
        %v8675 = vsub.s32 %v8672, %v8674
        %v8676 = vrot.slane %v8662, %v8675
        %v8677 = vcombine.high %v8661, 0.0
        %v8679 = vunpack.c.l.s4 1934713408
        %v8680 = vunpack.c.0.s8 %v8679
        %v8681 = vlaneseq
        %v8682 = vshrl.u32 %v8681, 7
        %v8683 = vsub.s32 %v8680, %v8682
        %v8684 = vrot.slane %v8661, %v8683
        %v8686 = vunpack.c.l.s4 1934713408
        %v8687 = vunpack.c.0.s8 %v8686
        %v8688 = vlaneseq
        %v8689 = vshrl.u32 %v8688, 7
        %v8690 = vsub.s32 %v8687, %v8689
        %v8691 = vrot.slane %v8677, %v8690
        %v8692 = vcombine.high %v8669, 0.0
        %v8693 = vcombine.high %v8676, 0.0
        %v8694 = vcombine.high %v8684, 0.0
        %v8695 = vcombine.high %v8691, 0.0
        %v8696 = vcombine.high %v1929, 0.0
        %v8698 = vunpack.c.l.s4 1983009808
        %v8699 = vunpack.c.0.s8 %v8698
        %v8700 = vlaneseq
        %v8701 = vshrl.u32 %v8700, 7
        %v8702 = vsub.s32 %v8699, %v8701
        %v8703 = vrot.slane %v1929, %v8702
        %v8705 = vunpack.c.l.s4 1983009808
        %v8706 = vunpack.c.0.s8 %v8705
        %v8707 = vlaneseq
        %v8708 = vshrl.u32 %v8707, 7
        %v8709 = vsub.s32 %v8706, %v8708
        %v8710 = vrot.slane %v8696, %v8709
        %v8711 = vcombine.high %v8703, 0.0
        %v8713 = vunpack.c.l.s4 1934713408
        %v8714 = vunpack.c.0.s8 %v8713
        %v8715 = vlaneseq
        %v8716 = vshrl.u32 %v8715, 7
        %v8717 = vsub.s32 %v8714, %v8716
        %v8718 = vrot.slane %v8703, %v8717
        %v8720 = vunpack.c.l.s4 1934713408
        %v8721 = vunpack.c.0.s8 %v8720
        %v8722 = vlaneseq
        %v8723 = vshrl.u32 %v8722, 7
        %v8724 = vsub.s32 %v8721, %v8723
        %v8725 = vrot.slane %v8711, %v8724
        %v8726 = vcombine.high %v8710, 0.0
        %v8728 = vunpack.c.l.s4 1934713408
        %v8729 = vunpack.c.0.s8 %v8728
        %v8730 = vlaneseq
        %v8731 = vshrl.u32 %v8730, 7
        %v8732 = vsub.s32 %v8729, %v8731
        %v8733 = vrot.slane %v8710, %v8732
        %v8735 = vunpack.c.l.s4 1934713408
        %v8736 = vunpack.c.0.s8 %v8735
        %v8737 = vlaneseq
        %v8738 = vshrl.u32 %v8737, 7
        %v8739 = vsub.s32 %v8736, %v8738
        %v8740 = vrot.slane %v8726, %v8739
        %v8741 = vcombine.high %v8718, 0.0
        %v8742 = vcombine.high %v8725, 0.0
        %v8743 = vcombine.high %v8733, 0.0
        %v8744 = vcombine.high %v8740, 0.0
        %v8745 = vcombine.high %v1930, 0.0
        %v8747 = vunpack.c.l.s4 1983009808
        %v8748 = vunpack.c.0.s8 %v8747
        %v8749 = vlaneseq
        %v8750 = vshrl.u32 %v8749, 7
        %v8751 = vsub.s32 %v8748, %v8750
        %v8752 = vrot.slane %v1930, %v8751
        %v8754 = vunpack.c.l.s4 1983009808
        %v8755 = vunpack.c.0.s8 %v8754
        %v8756 = vlaneseq
        %v8757 = vshrl.u32 %v8756, 7
        %v8758 = vsub.s32 %v8755, %v8757
        %v8759 = vrot.slane %v8745, %v8758
        %v8760 = vcombine.high %v8752, 0.0
        %v8762 = vunpack.c.l.s4 1934713408
        %v8763 = vunpack.c.0.s8 %v8762
        %v8764 = vlaneseq
        %v8765 = vshrl.u32 %v8764, 7
        %v8766 = vsub.s32 %v8763, %v8765
        %v8767 = vrot.slane %v8752, %v8766
        %v8769 = vunpack.c.l.s4 1934713408
        %v8770 = vunpack.c.0.s8 %v8769
        %v8771 = vlaneseq
        %v8772 = vshrl.u32 %v8771, 7
        %v8773 = vsub.s32 %v8770, %v8772
        %v8774 = vrot.slane %v8760, %v8773
        %v8775 = vcombine.high %v8759, 0.0
        %v8777 = vunpack.c.l.s4 1934713408
        %v8778 = vunpack.c.0.s8 %v8777
        %v8779 = vlaneseq
        %v8780 = vshrl.u32 %v8779, 7
        %v8781 = vsub.s32 %v8778, %v8780
        %v8782 = vrot.slane %v8759, %v8781
        %v8784 = vunpack.c.l.s4 1934713408
        %v8785 = vunpack.c.0.s8 %v8784
        %v8786 = vlaneseq
        %v8787 = vshrl.u32 %v8786, 7
        %v8788 = vsub.s32 %v8785, %v8787
        %v8789 = vrot.slane %v8775, %v8788
        %v8790 = vcombine.high %v8767, 0.0
        %v8791 = vcombine.high %v8774, 0.0
        %v8792 = vcombine.high %v8782, 0.0
        %v8793 = vcombine.high %v8789, 0.0
        %v8794 = vcombine.high %v1931, 0.0
        %v8796 = vunpack.c.l.s4 1983009808
        %v8797 = vunpack.c.0.s8 %v8796
        %v8798 = vlaneseq
        %v8799 = vshrl.u32 %v8798, 7
        %v8800 = vsub.s32 %v8797, %v8799
        %v8801 = vrot.slane %v1931, %v8800
        %v8803 = vunpack.c.l.s4 1983009808
        %v8804 = vunpack.c.0.s8 %v8803
        %v8805 = vlaneseq
        %v8806 = vshrl.u32 %v8805, 7
        %v8807 = vsub.s32 %v8804, %v8806
        %v8808 = vrot.slane %v8794, %v8807
        %v8809 = vcombine.high %v8801, 0.0
        %v8811 = vunpack.c.l.s4 1934713408
        %v8812 = vunpack.c.0.s8 %v8811
        %v8813 = vlaneseq
        %v8814 = vshrl.u32 %v8813, 7
        %v8815 = vsub.s32 %v8812, %v8814
        %v8816 = vrot.slane %v8801, %v8815
        %v8818 = vunpack.c.l.s4 1934713408
        %v8819 = vunpack.c.0.s8 %v8818
        %v8820 = vlaneseq
        %v8821 = vshrl.u32 %v8820, 7
        %v8822 = vsub.s32 %v8819, %v8821
        %v8823 = vrot.slane %v8809, %v8822
        %v8824 = vcombine.high %v8808, 0.0
        %v8826 = vunpack.c.l.s4 1934713408
        %v8827 = vunpack.c.0.s8 %v8826
        %v8828 = vlaneseq
        %v8829 = vshrl.u32 %v8828, 7
        %v8830 = vsub.s32 %v8827, %v8829
        %v8831 = vrot.slane %v8808, %v8830
        %v8833 = vunpack.c.l.s4 1934713408
        %v8834 = vunpack.c.0.s8 %v8833
        %v8835 = vlaneseq
        %v8836 = vshrl.u32 %v8835, 7
        %v8837 = vsub.s32 %v8834, %v8836
        %v8838 = vrot.slane %v8824, %v8837
        %v8839 = vcombine.high %v8816, 0.0
        %v8840 = vcombine.high %v8823, 0.0
        %v8841 = vcombine.high %v8831, 0.0
        %v8842 = vcombine.high %v8838, 0.0
        %v8843 = vcombine.high %v1932, 0.0
        %v8845 = vunpack.c.l.s4 1983009808
        %v8846 = vunpack.c.0.s8 %v8845
        %v8847 = vlaneseq
        %v8848 = vshrl.u32 %v8847, 7
        %v8849 = vsub.s32 %v8846, %v8848
        %v8850 = vrot.slane %v1932, %v8849
        %v8852 = vunpack.c.l.s4 1983009808
        %v8853 = vunpack.c.0.s8 %v8852
        %v8854 = vlaneseq
        %v8855 = vshrl.u32 %v8854, 7
        %v8856 = vsub.s32 %v8853, %v8855
        %v8857 = vrot.slane %v8843, %v8856
        %v8858 = vcombine.high %v8850, 0.0
        %v8860 = vunpack.c.l.s4 1934713408
        %v8861 = vunpack.c.0.s8 %v8860
        %v8862 = vlaneseq
        %v8863 = vshrl.u32 %v8862, 7
        %v8864 = vsub.s32 %v8861, %v8863
        %v8865 = vrot.slane %v8850, %v8864
        %v8867 = vunpack.c.l.s4 1934713408
        %v8868 = vunpack.c.0.s8 %v8867
        %v8869 = vlaneseq
        %v8870 = vshrl.u32 %v8869, 7
        %v8871 = vsub.s32 %v8868, %v8870
        %v8872 = vrot.slane %v8858, %v8871
        %v8873 = vcombine.high %v8857, 0.0
        %v8875 = vunpack.c.l.s4 1934713408
        %v8876 = vunpack.c.0.s8 %v8875
        %v8877 = vlaneseq
        %v8878 = vshrl.u32 %v8877, 7
        %v8879 = vsub.s32 %v8876, %v8878
        %v8880 = vrot.slane %v8857, %v8879
        %v8882 = vunpack.c.l.s4 1934713408
        %v8883 = vunpack.c.0.s8 %v8882
        %v8884 = vlaneseq
        %v8885 = vshrl.u32 %v8884, 7
        %v8886 = vsub.s32 %v8883, %v8885
        %v8887 = vrot.slane %v8873, %v8886
        %v8888 = vcombine.high %v8865, 0.0
        %v8889 = vcombine.high %v8872, 0.0
        %v8890 = vcombine.high %v8880, 0.0
        %v8891 = vcombine.high %v8887, 0.0
        %v8892 = vcombine.high %v1933, 0.0
        %v8894 = vunpack.c.l.s4 1983009808
        %v8895 = vunpack.c.0.s8 %v8894
        %v8896 = vlaneseq
        %v8897 = vshrl.u32 %v8896, 7
        %v8898 = vsub.s32 %v8895, %v8897
        %v8899 = vrot.slane %v1933, %v8898
        %v8901 = vunpack.c.l.s4 1983009808
        %v8902 = vunpack.c.0.s8 %v8901
        %v8903 = vlaneseq
        %v8904 = vshrl.u32 %v8903, 7
        %v8905 = vsub.s32 %v8902, %v8904
        %v8906 = vrot.slane %v8892, %v8905
        %v8907 = vcombine.high %v8899, 0.0
        %v8909 = vunpack.c.l.s4 1934713408
        %v8910 = vunpack.c.0.s8 %v8909
        %v8911 = vlaneseq
        %v8912 = vshrl.u32 %v8911, 7
        %v8913 = vsub.s32 %v8910, %v8912
        %v8914 = vrot.slane %v8899, %v8913
        %v8916 = vunpack.c.l.s4 1934713408
        %v8917 = vunpack.c.0.s8 %v8916
        %v8918 = vlaneseq
        %v8919 = vshrl.u32 %v8918, 7
        %v8920 = vsub.s32 %v8917, %v8919
        %v8921 = vrot.slane %v8907, %v8920
        %v8922 = vcombine.high %v8906, 0.0
        %v8924 = vunpack.c.l.s4 1934713408
        %v8925 = vunpack.c.0.s8 %v8924
        %v8926 = vlaneseq
        %v8927 = vshrl.u32 %v8926, 7
        %v8928 = vsub.s32 %v8925, %v8927
        %v8929 = vrot.slane %v8906, %v8928
        %v8931 = vunpack.c.l.s4 1934713408
        %v8932 = vunpack.c.0.s8 %v8931
        %v8933 = vlaneseq
        %v8934 = vshrl.u32 %v8933, 7
        %v8935 = vsub.s32 %v8932, %v8934
        %v8936 = vrot.slane %v8922, %v8935
        %v8937 = vcombine.high %v8914, 0.0
        %v8938 = vcombine.high %v8921, 0.0
        %v8939 = vcombine.high %v8929, 0.0
        %v8940 = vcombine.high %v8936, 0.0
        %v8941 = vcombine.high %v1934, 0.0
        %v8943 = vunpack.c.l.s4 1983009808
        %v8944 = vunpack.c.0.s8 %v8943
        %v8945 = vlaneseq
        %v8946 = vshrl.u32 %v8945, 7
        %v8947 = vsub.s32 %v8944, %v8946
        %v8948 = vrot.slane %v1934, %v8947
        %v8950 = vunpack.c.l.s4 1983009808
        %v8951 = vunpack.c.0.s8 %v8950
        %v8952 = vlaneseq
        %v8953 = vshrl.u32 %v8952, 7
        %v8954 = vsub.s32 %v8951, %v8953
        %v8955 = vrot.slane %v8941, %v8954
        %v8956 = vcombine.high %v8948, 0.0
        %v8958 = vunpack.c.l.s4 1934713408
        %v8959 = vunpack.c.0.s8 %v8958
        %v8960 = vlaneseq
        %v8961 = vshrl.u32 %v8960, 7
        %v8962 = vsub.s32 %v8959, %v8961
        %v8963 = vrot.slane %v8948, %v8962
        %v8965 = vunpack.c.l.s4 1934713408
        %v8966 = vunpack.c.0.s8 %v8965
        %v8967 = vlaneseq
        %v8968 = vshrl.u32 %v8967, 7
        %v8969 = vsub.s32 %v8966, %v8968
        %v8970 = vrot.slane %v8956, %v8969
        %v8971 = vcombine.high %v8955, 0.0
        %v8973 = vunpack.c.l.s4 1934713408
        %v8974 = vunpack.c.0.s8 %v8973
        %v8975 = vlaneseq
        %v8976 = vshrl.u32 %v8975, 7
        %v8977 = vsub.s32 %v8974, %v8976
        %v8978 = vrot.slane %v8955, %v8977
        %v8980 = vunpack.c.l.s4 1934713408
        %v8981 = vunpack.c.0.s8 %v8980
        %v8982 = vlaneseq
        %v8983 = vshrl.u32 %v8982, 7
        %v8984 = vsub.s32 %v8981, %v8983
        %v8985 = vrot.slane %v8971, %v8984
        %v8986 = vcombine.high %v8963, 0.0
        %v8987 = vcombine.high %v8970, 0.0
        %v8988 = vcombine.high %v8978, 0.0
        %v8989 = vcombine.high %v8985, 0.0
        %v8990 = vcombine.high %v1935, 0.0
        %v8992 = vunpack.c.l.s4 1983009808
        %v8993 = vunpack.c.0.s8 %v8992
        %v8994 = vlaneseq
        %v8995 = vshrl.u32 %v8994, 7
        %v8996 = vsub.s32 %v8993, %v8995
        %v8997 = vrot.slane %v1935, %v8996
        %v8999 = vunpack.c.l.s4 1983009808
        %v9000 = vunpack.c.0.s8 %v8999
        %v9001 = vlaneseq
        %v9002 = vshrl.u32 %v9001, 7
        %v9003 = vsub.s32 %v9000, %v9002
        %v9004 = vrot.slane %v8990, %v9003
        %v9005 = vcombine.high %v8997, 0.0
        %v9007 = vunpack.c.l.s4 1934713408
        %v9008 = vunpack.c.0.s8 %v9007
        %v9009 = vlaneseq
        %v9010 = vshrl.u32 %v9009, 7
        %v9011 = vsub.s32 %v9008, %v9010
        %v9012 = vrot.slane %v8997, %v9011
        %v9014 = vunpack.c.l.s4 1934713408
        %v9015 = vunpack.c.0.s8 %v9014
        %v9016 = vlaneseq
        %v9017 = vshrl.u32 %v9016, 7
        %v9018 = vsub.s32 %v9015, %v9017
        %v9019 = vrot.slane %v9005, %v9018
        %v9020 = vcombine.high %v9004, 0.0
        %v9022 = vunpack.c.l.s4 1934713408
        %v9023 = vunpack.c.0.s8 %v9022
        %v9024 = vlaneseq
        %v9025 = vshrl.u32 %v9024, 7
        %v9026 = vsub.s32 %v9023, %v9025
        %v9027 = vrot.slane %v9004, %v9026
        %v9029 = vunpack.c.l.s4 1934713408
        %v9030 = vunpack.c.0.s8 %v9029
        %v9031 = vlaneseq
        %v9032 = vshrl.u32 %v9031, 7
        %v9033 = vsub.s32 %v9030, %v9032
        %v9034 = vrot.slane %v9020, %v9033
        %v9035 = vcombine.high %v9012, 0.0
        %v9036 = vcombine.high %v9019, 0.0
        %v9037 = vcombine.high %v9027, 0.0
        %v9038 = vcombine.high %v9034, 0.0
        %v9039 = vcombine.high %v1936, 0.0
        %v9041 = vunpack.c.l.s4 1983009808
        %v9042 = vunpack.c.0.s8 %v9041
        %v9043 = vlaneseq
        %v9044 = vshrl.u32 %v9043, 7
        %v9045 = vsub.s32 %v9042, %v9044
        %v9046 = vrot.slane %v1936, %v9045
        %v9048 = vunpack.c.l.s4 1983009808
        %v9049 = vunpack.c.0.s8 %v9048
        %v9050 = vlaneseq
        %v9051 = vshrl.u32 %v9050, 7
        %v9052 = vsub.s32 %v9049, %v9051
        %v9053 = vrot.slane %v9039, %v9052
        %v9054 = vcombine.high %v9046, 0.0
        %v9056 = vunpack.c.l.s4 1934713408
        %v9057 = vunpack.c.0.s8 %v9056
        %v9058 = vlaneseq
        %v9059 = vshrl.u32 %v9058, 7
        %v9060 = vsub.s32 %v9057, %v9059
        %v9061 = vrot.slane %v9046, %v9060
        %v9063 = vunpack.c.l.s4 1934713408
        %v9064 = vunpack.c.0.s8 %v9063
        %v9065 = vlaneseq
        %v9066 = vshrl.u32 %v9065, 7
        %v9067 = vsub.s32 %v9064, %v9066
        %v9068 = vrot.slane %v9054, %v9067
        %v9069 = vcombine.high %v9053, 0.0
        %v9071 = vunpack.c.l.s4 1934713408
        %v9072 = vunpack.c.0.s8 %v9071
        %v9073 = vlaneseq
        %v9074 = vshrl.u32 %v9073, 7
        %v9075 = vsub.s32 %v9072, %v9074
        %v9076 = vrot.slane %v9053, %v9075
        %v9078 = vunpack.c.l.s4 1934713408
        %v9079 = vunpack.c.0.s8 %v9078
        %v9080 = vlaneseq
        %v9081 = vshrl.u32 %v9080, 7
        %v9082 = vsub.s32 %v9079, %v9081
        %v9083 = vrot.slane %v9069, %v9082
        %v9084 = vcombine.high %v9061, 0.0
        %v9085 = vcombine.high %v9068, 0.0
        %v9086 = vcombine.high %v9076, 0.0
        %v9087 = vcombine.high %v9083, 0.0
        %v9088 = vcombine.high %v1937, 0.0
        %v9090 = vunpack.c.l.s4 1983009808
        %v9091 = vunpack.c.0.s8 %v9090
        %v9092 = vlaneseq
        %v9093 = vshrl.u32 %v9092, 7
        %v9094 = vsub.s32 %v9091, %v9093
        %v9095 = vrot.slane %v1937, %v9094
        %v9097 = vunpack.c.l.s4 1983009808
        %v9098 = vunpack.c.0.s8 %v9097
        %v9099 = vlaneseq
        %v9100 = vshrl.u32 %v9099, 7
        %v9101 = vsub.s32 %v9098, %v9100
        %v9102 = vrot.slane %v9088, %v9101
        %v9103 = vcombine.high %v9095, 0.0
        %v9105 = vunpack.c.l.s4 1934713408
        %v9106 = vunpack.c.0.s8 %v9105
        %v9107 = vlaneseq
        %v9108 = vshrl.u32 %v9107, 7
        %v9109 = vsub.s32 %v9106, %v9108
        %v9110 = vrot.slane %v9095, %v9109
        %v9112 = vunpack.c.l.s4 1934713408
        %v9113 = vunpack.c.0.s8 %v9112
        %v9114 = vlaneseq
        %v9115 = vshrl.u32 %v9114, 7
        %v9116 = vsub.s32 %v9113, %v9115
        %v9117 = vrot.slane %v9103, %v9116
        %v9118 = vcombine.high %v9102, 0.0
        %v9120 = vunpack.c.l.s4 1934713408
        %v9121 = vunpack.c.0.s8 %v9120
        %v9122 = vlaneseq
        %v9123 = vshrl.u32 %v9122, 7
        %v9124 = vsub.s32 %v9121, %v9123
        %v9125 = vrot.slane %v9102, %v9124
        %v9127 = vunpack.c.l.s4 1934713408
        %v9128 = vunpack.c.0.s8 %v9127
        %v9129 = vlaneseq
        %v9130 = vshrl.u32 %v9129, 7
        %v9131 = vsub.s32 %v9128, %v9130
        %v9132 = vrot.slane %v9118, %v9131
        %v9133 = vcombine.high %v9110, 0.0
        %v9134 = vcombine.high %v9117, 0.0
        %v9135 = vcombine.high %v9125, 0.0
        %v9136 = vcombine.high %v9132, 0.0
        %v9137 = vcombine.high %v1938, 0.0
        %v9139 = vunpack.c.l.s4 1983009808
        %v9140 = vunpack.c.0.s8 %v9139
        %v9141 = vlaneseq
        %v9142 = vshrl.u32 %v9141, 7
        %v9143 = vsub.s32 %v9140, %v9142
        %v9144 = vrot.slane %v1938, %v9143
        %v9146 = vunpack.c.l.s4 1983009808
        %v9147 = vunpack.c.0.s8 %v9146
        %v9148 = vlaneseq
        %v9149 = vshrl.u32 %v9148, 7
        %v9150 = vsub.s32 %v9147, %v9149
        %v9151 = vrot.slane %v9137, %v9150
        %v9152 = vcombine.high %v9144, 0.0
        %v9154 = vunpack.c.l.s4 1934713408
        %v9155 = vunpack.c.0.s8 %v9154
        %v9156 = vlaneseq
        %v9157 = vshrl.u32 %v9156, 7
        %v9158 = vsub.s32 %v9155, %v9157
        %v9159 = vrot.slane %v9144, %v9158
        %v9161 = vunpack.c.l.s4 1934713408
        %v9162 = vunpack.c.0.s8 %v9161
        %v9163 = vlaneseq
        %v9164 = vshrl.u32 %v9163, 7
        %v9165 = vsub.s32 %v9162, %v9164
        %v9166 = vrot.slane %v9152, %v9165
        %v9167 = vcombine.high %v9151, 0.0
        %v9169 = vunpack.c.l.s4 1934713408
        %v9170 = vunpack.c.0.s8 %v9169
        %v9171 = vlaneseq
        %v9172 = vshrl.u32 %v9171, 7
        %v9173 = vsub.s32 %v9170, %v9172
        %v9174 = vrot.slane %v9151, %v9173
        %v9176 = vunpack.c.l.s4 1934713408
        %v9177 = vunpack.c.0.s8 %v9176
        %v9178 = vlaneseq
        %v9179 = vshrl.u32 %v9178, 7
        %v9180 = vsub.s32 %v9177, %v9179
        %v9181 = vrot.slane %v9167, %v9180
        %v9182 = vcombine.high %v9159, 0.0
        %v9183 = vcombine.high %v9166, 0.0
        %v9184 = vcombine.high %v9174, 0.0
        %v9185 = vcombine.high %v9181, 0.0
        %v9186 = vcombine.high %v1939, 0.0
        %v9188 = vunpack.c.l.s4 1983009808
        %v9189 = vunpack.c.0.s8 %v9188
        %v9190 = vlaneseq
        %v9191 = vshrl.u32 %v9190, 7
        %v9192 = vsub.s32 %v9189, %v9191
        %v9193 = vrot.slane %v1939, %v9192
        %v9195 = vunpack.c.l.s4 1983009808
        %v9196 = vunpack.c.0.s8 %v9195
        %v9197 = vlaneseq
        %v9198 = vshrl.u32 %v9197, 7
        %v9199 = vsub.s32 %v9196, %v9198
        %v9200 = vrot.slane %v9186, %v9199
        %v9201 = vcombine.high %v9193, 0.0
        %v9203 = vunpack.c.l.s4 1934713408
        %v9204 = vunpack.c.0.s8 %v9203
        %v9205 = vlaneseq
        %v9206 = vshrl.u32 %v9205, 7
        %v9207 = vsub.s32 %v9204, %v9206
        %v9208 = vrot.slane %v9193, %v9207
        %v9210 = vunpack.c.l.s4 1934713408
        %v9211 = vunpack.c.0.s8 %v9210
        %v9212 = vlaneseq
        %v9213 = vshrl.u32 %v9212, 7
        %v9214 = vsub.s32 %v9211, %v9213
        %v9215 = vrot.slane %v9201, %v9214
        %v9216 = vcombine.high %v9200, 0.0
        %v9218 = vunpack.c.l.s4 1934713408
        %v9219 = vunpack.c.0.s8 %v9218
        %v9220 = vlaneseq
        %v9221 = vshrl.u32 %v9220, 7
        %v9222 = vsub.s32 %v9219, %v9221
        %v9223 = vrot.slane %v9200, %v9222
        %v9225 = vunpack.c.l.s4 1934713408
        %v9226 = vunpack.c.0.s8 %v9225
        %v9227 = vlaneseq
        %v9228 = vshrl.u32 %v9227, 7
        %v9229 = vsub.s32 %v9226, %v9228
        %v9230 = vrot.slane %v9216, %v9229
        %v9231 = vcombine.high %v9208, 0.0
        %v9232 = vcombine.high %v9215, 0.0
        %v9233 = vcombine.high %v9223, 0.0
        %v9234 = vcombine.high %v9230, 0.0
        %v9235 = vcombine.high %v1940, 0.0
        %v9237 = vunpack.c.l.s4 1983009808
        %v9238 = vunpack.c.0.s8 %v9237
        %v9239 = vlaneseq
        %v9240 = vshrl.u32 %v9239, 7
        %v9241 = vsub.s32 %v9238, %v9240
        %v9242 = vrot.slane %v1940, %v9241
        %v9244 = vunpack.c.l.s4 1983009808
        %v9245 = vunpack.c.0.s8 %v9244
        %v9246 = vlaneseq
        %v9247 = vshrl.u32 %v9246, 7
        %v9248 = vsub.s32 %v9245, %v9247
        %v9249 = vrot.slane %v9235, %v9248
        %v9250 = vcombine.high %v9242, 0.0
        %v9252 = vunpack.c.l.s4 1934713408
        %v9253 = vunpack.c.0.s8 %v9252
        %v9254 = vlaneseq
        %v9255 = vshrl.u32 %v9254, 7
        %v9256 = vsub.s32 %v9253, %v9255
        %v9257 = vrot.slane %v9242, %v9256
        %v9259 = vunpack.c.l.s4 1934713408
        %v9260 = vunpack.c.0.s8 %v9259
        %v9261 = vlaneseq
        %v9262 = vshrl.u32 %v9261, 7
        %v9263 = vsub.s32 %v9260, %v9262
        %v9264 = vrot.slane %v9250, %v9263
        %v9265 = vcombine.high %v9249, 0.0
        %v9267 = vunpack.c.l.s4 1934713408
        %v9268 = vunpack.c.0.s8 %v9267
        %v9269 = vlaneseq
        %v9270 = vshrl.u32 %v9269, 7
        %v9271 = vsub.s32 %v9268, %v9270
        %v9272 = vrot.slane %v9249, %v9271
        %v9274 = vunpack.c.l.s4 1934713408
        %v9275 = vunpack.c.0.s8 %v9274
        %v9276 = vlaneseq
        %v9277 = vshrl.u32 %v9276, 7
        %v9278 = vsub.s32 %v9275, %v9277
        %v9279 = vrot.slane %v9265, %v9278
        %v9280 = vcombine.high %v9257, 0.0
        %v9281 = vcombine.high %v9264, 0.0
        %v9282 = vcombine.high %v9272, 0.0
        %v9283 = vcombine.high %v9279, 0.0
        %v9284 = vcombine.high %v1941, 0.0
        %v9286 = vunpack.c.l.s4 1983009808
        %v9287 = vunpack.c.0.s8 %v9286
        %v9288 = vlaneseq
        %v9289 = vshrl.u32 %v9288, 7
        %v9290 = vsub.s32 %v9287, %v9289
        %v9291 = vrot.slane %v1941, %v9290
        %v9293 = vunpack.c.l.s4 1983009808
        %v9294 = vunpack.c.0.s8 %v9293
        %v9295 = vlaneseq
        %v9296 = vshrl.u32 %v9295, 7
        %v9297 = vsub.s32 %v9294, %v9296
        %v9298 = vrot.slane %v9284, %v9297
        %v9299 = vcombine.high %v9291, 0.0
        %v9301 = vunpack.c.l.s4 1934713408
        %v9302 = vunpack.c.0.s8 %v9301
        %v9303 = vlaneseq
        %v9304 = vshrl.u32 %v9303, 7
        %v9305 = vsub.s32 %v9302, %v9304
        %v9306 = vrot.slane %v9291, %v9305
        %v9308 = vunpack.c.l.s4 1934713408
        %v9309 = vunpack.c.0.s8 %v9308
        %v9310 = vlaneseq
        %v9311 = vshrl.u32 %v9310, 7
        %v9312 = vsub.s32 %v9309, %v9311
        %v9313 = vrot.slane %v9299, %v9312
        %v9314 = vcombine.high %v9298, 0.0
        %v9316 = vunpack.c.l.s4 1934713408
        %v9317 = vunpack.c.0.s8 %v9316
        %v9318 = vlaneseq
        %v9319 = vshrl.u32 %v9318, 7
        %v9320 = vsub.s32 %v9317, %v9319
        %v9321 = vrot.slane %v9298, %v9320
        %v9323 = vunpack.c.l.s4 1934713408
        %v9324 = vunpack.c.0.s8 %v9323
        %v9325 = vlaneseq
        %v9326 = vshrl.u32 %v9325, 7
        %v9327 = vsub.s32 %v9324, %v9326
        %v9328 = vrot.slane %v9314, %v9327
        %v9329 = vcombine.high %v9306, 0.0
        %v9330 = vcombine.high %v9313, 0.0
        %v9331 = vcombine.high %v9321, 0.0
        %v9332 = vcombine.high %v9328, 0.0
        %v9333 = vcombine.high %v1942, 0.0
        %v9335 = vunpack.c.l.s4 1983009808
        %v9336 = vunpack.c.0.s8 %v9335
        %v9337 = vlaneseq
        %v9338 = vshrl.u32 %v9337, 7
        %v9339 = vsub.s32 %v9336, %v9338
        %v9340 = vrot.slane %v1942, %v9339
        %v9342 = vunpack.c.l.s4 1983009808
        %v9343 = vunpack.c.0.s8 %v9342
        %v9344 = vlaneseq
        %v9345 = vshrl.u32 %v9344, 7
        %v9346 = vsub.s32 %v9343, %v9345
        %v9347 = vrot.slane %v9333, %v9346
        %v9348 = vcombine.high %v9340, 0.0
        %v9350 = vunpack.c.l.s4 1934713408
        %v9351 = vunpack.c.0.s8 %v9350
        %v9352 = vlaneseq
        %v9353 = vshrl.u32 %v9352, 7
        %v9354 = vsub.s32 %v9351, %v9353
        %v9355 = vrot.slane %v9340, %v9354
        %v9357 = vunpack.c.l.s4 1934713408
        %v9358 = vunpack.c.0.s8 %v9357
        %v9359 = vlaneseq
        %v9360 = vshrl.u32 %v9359, 7
        %v9361 = vsub.s32 %v9358, %v9360
        %v9362 = vrot.slane %v9348, %v9361
        %v9363 = vcombine.high %v9347, 0.0
        %v9365 = vunpack.c.l.s4 1934713408
        %v9366 = vunpack.c.0.s8 %v9365
        %v9367 = vlaneseq
        %v9368 = vshrl.u32 %v9367, 7
        %v9369 = vsub.s32 %v9366, %v9368
        %v9370 = vrot.slane %v9347, %v9369
        %v9372 = vunpack.c.l.s4 1934713408
        %v9373 = vunpack.c.0.s8 %v9372
        %v9374 = vlaneseq
        %v9375 = vshrl.u32 %v9374, 7
        %v9376 = vsub.s32 %v9373, %v9375
        %v9377 = vrot.slane %v9363, %v9376
        %v9378 = vcombine.high %v9355, 0.0
        %v9379 = vcombine.high %v9362, 0.0
        %v9380 = vcombine.high %v9370, 0.0
        %v9381 = vcombine.high %v9377, 0.0
        %v9382 = vcombine.high %v1943, 0.0
        %v9384 = vunpack.c.l.s4 1983009808
        %v9385 = vunpack.c.0.s8 %v9384
        %v9386 = vlaneseq
        %v9387 = vshrl.u32 %v9386, 7
        %v9388 = vsub.s32 %v9385, %v9387
        %v9389 = vrot.slane %v1943, %v9388
        %v9391 = vunpack.c.l.s4 1983009808
        %v9392 = vunpack.c.0.s8 %v9391
        %v9393 = vlaneseq
        %v9394 = vshrl.u32 %v9393, 7
        %v9395 = vsub.s32 %v9392, %v9394
        %v9396 = vrot.slane %v9382, %v9395
        %v9397 = vcombine.high %v9389, 0.0
        %v9399 = vunpack.c.l.s4 1934713408
        %v9400 = vunpack.c.0.s8 %v9399
        %v9401 = vlaneseq
        %v9402 = vshrl.u32 %v9401, 7
        %v9403 = vsub.s32 %v9400, %v9402
        %v9404 = vrot.slane %v9389, %v9403
        %v9406 = vunpack.c.l.s4 1934713408
        %v9407 = vunpack.c.0.s8 %v9406
        %v9408 = vlaneseq
        %v9409 = vshrl.u32 %v9408, 7
        %v9410 = vsub.s32 %v9407, %v9409
        %v9411 = vrot.slane %v9397, %v9410
        %v9412 = vcombine.high %v9396, 0.0
        %v9414 = vunpack.c.l.s4 1934713408
        %v9415 = vunpack.c.0.s8 %v9414
        %v9416 = vlaneseq
        %v9417 = vshrl.u32 %v9416, 7
        %v9418 = vsub.s32 %v9415, %v9417
        %v9419 = vrot.slane %v9396, %v9418
        %v9421 = vunpack.c.l.s4 1934713408
        %v9422 = vunpack.c.0.s8 %v9421
        %v9423 = vlaneseq
        %v9424 = vshrl.u32 %v9423, 7
        %v9425 = vsub.s32 %v9422, %v9424
        %v9426 = vrot.slane %v9412, %v9425
        %v9427 = vcombine.high %v9404, 0.0
        %v9428 = vcombine.high %v9411, 0.0
        %v9429 = vcombine.high %v9419, 0.0
        %v9430 = vcombine.high %v9426, 0.0
        %v9431 = vcombine.high %v1944, 0.0
        %v9433 = vunpack.c.l.s4 1983009808
        %v9434 = vunpack.c.0.s8 %v9433
        %v9435 = vlaneseq
        %v9436 = vshrl.u32 %v9435, 7
        %v9437 = vsub.s32 %v9434, %v9436
        %v9438 = vrot.slane %v1944, %v9437
        %v9440 = vunpack.c.l.s4 1983009808
        %v9441 = vunpack.c.0.s8 %v9440
        %v9442 = vlaneseq
        %v9443 = vshrl.u32 %v9442, 7
        %v9444 = vsub.s32 %v9441, %v9443
        %v9445 = vrot.slane %v9431, %v9444
        %v9446 = vcombine.high %v9438, 0.0
        %v9448 = vunpack.c.l.s4 1934713408
        %v9449 = vunpack.c.0.s8 %v9448
        %v9450 = vlaneseq
        %v9451 = vshrl.u32 %v9450, 7
        %v9452 = vsub.s32 %v9449, %v9451
        %v9453 = vrot.slane %v9438, %v9452
        %v9455 = vunpack.c.l.s4 1934713408
        %v9456 = vunpack.c.0.s8 %v9455
        %v9457 = vlaneseq
        %v9458 = vshrl.u32 %v9457, 7
        %v9459 = vsub.s32 %v9456, %v9458
        %v9460 = vrot.slane %v9446, %v9459
        %v9461 = vcombine.high %v9445, 0.0
        %v9463 = vunpack.c.l.s4 1934713408
        %v9464 = vunpack.c.0.s8 %v9463
        %v9465 = vlaneseq
        %v9466 = vshrl.u32 %v9465, 7
        %v9467 = vsub.s32 %v9464, %v9466
        %v9468 = vrot.slane %v9445, %v9467
        %v9470 = vunpack.c.l.s4 1934713408
        %v9471 = vunpack.c.0.s8 %v9470
        %v9472 = vlaneseq
        %v9473 = vshrl.u32 %v9472, 7
        %v9474 = vsub.s32 %v9471, %v9473
        %v9475 = vrot.slane %v9461, %v9474
        %v9476 = vcombine.high %v9453, 0.0
        %v9477 = vcombine.high %v9460, 0.0
        %v9478 = vcombine.high %v9468, 0.0
        %v9479 = vcombine.high %v9475, 0.0
        %v9480 = vcombine.high %v1945, 0.0
        %v9482 = vunpack.c.l.s4 1983009808
        %v9483 = vunpack.c.0.s8 %v9482
        %v9484 = vlaneseq
        %v9485 = vshrl.u32 %v9484, 7
        %v9486 = vsub.s32 %v9483, %v9485
        %v9487 = vrot.slane %v1945, %v9486
        %v9489 = vunpack.c.l.s4 1983009808
        %v9490 = vunpack.c.0.s8 %v9489
        %v9491 = vlaneseq
        %v9492 = vshrl.u32 %v9491, 7
        %v9493 = vsub.s32 %v9490, %v9492
        %v9494 = vrot.slane %v9480, %v9493
        %v9495 = vcombine.high %v9487, 0.0
        %v9497 = vunpack.c.l.s4 1934713408
        %v9498 = vunpack.c.0.s8 %v9497
        %v9499 = vlaneseq
        %v9500 = vshrl.u32 %v9499, 7
        %v9501 = vsub.s32 %v9498, %v9500
        %v9502 = vrot.slane %v9487, %v9501
        %v9504 = vunpack.c.l.s4 1934713408
        %v9505 = vunpack.c.0.s8 %v9504
        %v9506 = vlaneseq
        %v9507 = vshrl.u32 %v9506, 7
        %v9508 = vsub.s32 %v9505, %v9507
        %v9509 = vrot.slane %v9495, %v9508
        %v9510 = vcombine.high %v9494, 0.0
        %v9512 = vunpack.c.l.s4 1934713408
        %v9513 = vunpack.c.0.s8 %v9512
        %v9514 = vlaneseq
        %v9515 = vshrl.u32 %v9514, 7
        %v9516 = vsub.s32 %v9513, %v9515
        %v9517 = vrot.slane %v9494, %v9516
        %v9519 = vunpack.c.l.s4 1934713408
        %v9520 = vunpack.c.0.s8 %v9519
        %v9521 = vlaneseq
        %v9522 = vshrl.u32 %v9521, 7
        %v9523 = vsub.s32 %v9520, %v9522
        %v9524 = vrot.slane %v9510, %v9523
        %v9525 = vcombine.high %v9502, 0.0
        %v9526 = vcombine.high %v9509, 0.0
        %v9527 = vcombine.high %v9517, 0.0
        %v9528 = vcombine.high %v9524, 0.0
        %v9529 = vcombine.high %v1946, 0.0
        %v9531 = vunpack.c.l.s4 1983009808
        %v9532 = vunpack.c.0.s8 %v9531
        %v9533 = vlaneseq
        %v9534 = vshrl.u32 %v9533, 7
        %v9535 = vsub.s32 %v9532, %v9534
        %v9536 = vrot.slane %v1946, %v9535
        %v9538 = vunpack.c.l.s4 1983009808
        %v9539 = vunpack.c.0.s8 %v9538
        %v9540 = vlaneseq
        %v9541 = vshrl.u32 %v9540, 7
        %v9542 = vsub.s32 %v9539, %v9541
        %v9543 = vrot.slane %v9529, %v9542
        %v9544 = vcombine.high %v9536, 0.0
        %v9546 = vunpack.c.l.s4 1934713408
        %v9547 = vunpack.c.0.s8 %v9546
        %v9548 = vlaneseq
        %v9549 = vshrl.u32 %v9548, 7
        %v9550 = vsub.s32 %v9547, %v9549
        %v9551 = vrot.slane %v9536, %v9550
        %v9553 = vunpack.c.l.s4 1934713408
        %v9554 = vunpack.c.0.s8 %v9553
        %v9555 = vlaneseq
        %v9556 = vshrl.u32 %v9555, 7
        %v9557 = vsub.s32 %v9554, %v9556
        %v9558 = vrot.slane %v9544, %v9557
        %v9559 = vcombine.high %v9543, 0.0
        %v9561 = vunpack.c.l.s4 1934713408
        %v9562 = vunpack.c.0.s8 %v9561
        %v9563 = vlaneseq
        %v9564 = vshrl.u32 %v9563, 7
        %v9565 = vsub.s32 %v9562, %v9564
        %v9566 = vrot.slane %v9543, %v9565
        %v9568 = vunpack.c.l.s4 1934713408
        %v9569 = vunpack.c.0.s8 %v9568
        %v9570 = vlaneseq
        %v9571 = vshrl.u32 %v9570, 7
        %v9572 = vsub.s32 %v9569, %v9571
        %v9573 = vrot.slane %v9559, %v9572
        %v9574 = vcombine.high %v9551, 0.0
        %v9575 = vcombine.high %v9558, 0.0
        %v9576 = vcombine.high %v9566, 0.0
        %v9577 = vcombine.high %v9573, 0.0
        %v9578 = vcombine.high %v1947, 0.0
        %v9580 = vunpack.c.l.s4 1983009808
        %v9581 = vunpack.c.0.s8 %v9580
        %v9582 = vlaneseq
        %v9583 = vshrl.u32 %v9582, 7
        %v9584 = vsub.s32 %v9581, %v9583
        %v9585 = vrot.slane %v1947, %v9584
        %v9587 = vunpack.c.l.s4 1983009808
        %v9588 = vunpack.c.0.s8 %v9587
        %v9589 = vlaneseq
        %v9590 = vshrl.u32 %v9589, 7
        %v9591 = vsub.s32 %v9588, %v9590
        %v9592 = vrot.slane %v9578, %v9591
        %v9593 = vcombine.high %v9585, 0.0
        %v9595 = vunpack.c.l.s4 1934713408
        %v9596 = vunpack.c.0.s8 %v9595
        %v9597 = vlaneseq
        %v9598 = vshrl.u32 %v9597, 7
        %v9599 = vsub.s32 %v9596, %v9598
        %v9600 = vrot.slane %v9585, %v9599
        %v9602 = vunpack.c.l.s4 1934713408
        %v9603 = vunpack.c.0.s8 %v9602
        %v9604 = vlaneseq
        %v9605 = vshrl.u32 %v9604, 7
        %v9606 = vsub.s32 %v9603, %v9605
        %v9607 = vrot.slane %v9593, %v9606
        %v9608 = vcombine.high %v9592, 0.0
        %v9610 = vunpack.c.l.s4 1934713408
        %v9611 = vunpack.c.0.s8 %v9610
        %v9612 = vlaneseq
        %v9613 = vshrl.u32 %v9612, 7
        %v9614 = vsub.s32 %v9611, %v9613
        %v9615 = vrot.slane %v9592, %v9614
        %v9617 = vunpack.c.l.s4 1934713408
        %v9618 = vunpack.c.0.s8 %v9617
        %v9619 = vlaneseq
        %v9620 = vshrl.u32 %v9619, 7
        %v9621 = vsub.s32 %v9618, %v9620
        %v9622 = vrot.slane %v9608, %v9621
        %v9623 = vcombine.high %v9600, 0.0
        %v9624 = vcombine.high %v9607, 0.0
        %v9625 = vcombine.high %v9615, 0.0
        %v9626 = vcombine.high %v9622, 0.0
        %v9627 = vcombine.high %v1948, 0.0
        %v9629 = vunpack.c.l.s4 1983009808
        %v9630 = vunpack.c.0.s8 %v9629
        %v9631 = vlaneseq
        %v9632 = vshrl.u32 %v9631, 7
        %v9633 = vsub.s32 %v9630, %v9632
        %v9634 = vrot.slane %v1948, %v9633
        %v9636 = vunpack.c.l.s4 1983009808
        %v9637 = vunpack.c.0.s8 %v9636
        %v9638 = vlaneseq
        %v9639 = vshrl.u32 %v9638, 7
        %v9640 = vsub.s32 %v9637, %v9639
        %v9641 = vrot.slane %v9627, %v9640
        %v9642 = vcombine.high %v9634, 0.0
        %v9644 = vunpack.c.l.s4 1934713408
        %v9645 = vunpack.c.0.s8 %v9644
        %v9646 = vlaneseq
        %v9647 = vshrl.u32 %v9646, 7
        %v9648 = vsub.s32 %v9645, %v9647
        %v9649 = vrot.slane %v9634, %v9648
        %v9651 = vunpack.c.l.s4 1934713408
        %v9652 = vunpack.c.0.s8 %v9651
        %v9653 = vlaneseq
        %v9654 = vshrl.u32 %v9653, 7
        %v9655 = vsub.s32 %v9652, %v9654
        %v9656 = vrot.slane %v9642, %v9655
        %v9657 = vcombine.high %v9641, 0.0
        %v9659 = vunpack.c.l.s4 1934713408
        %v9660 = vunpack.c.0.s8 %v9659
        %v9661 = vlaneseq
        %v9662 = vshrl.u32 %v9661, 7
        %v9663 = vsub.s32 %v9660, %v9662
        %v9664 = vrot.slane %v9641, %v9663
        %v9666 = vunpack.c.l.s4 1934713408
        %v9667 = vunpack.c.0.s8 %v9666
        %v9668 = vlaneseq
        %v9669 = vshrl.u32 %v9668, 7
        %v9670 = vsub.s32 %v9667, %v9669
        %v9671 = vrot.slane %v9657, %v9670
        %v9672 = vcombine.high %v9649, 0.0
        %v9673 = vcombine.high %v9656, 0.0
        %v9674 = vcombine.high %v9664, 0.0
        %v9675 = vcombine.high %v9671, 0.0
        %v9676 = vcombine.high %v1949, 0.0
        %v9678 = vunpack.c.l.s4 1983009808
        %v9679 = vunpack.c.0.s8 %v9678
        %v9680 = vlaneseq
        %v9681 = vshrl.u32 %v9680, 7
        %v9682 = vsub.s32 %v9679, %v9681
        %v9683 = vrot.slane %v1949, %v9682
        %v9685 = vunpack.c.l.s4 1983009808
        %v9686 = vunpack.c.0.s8 %v9685
        %v9687 = vlaneseq
        %v9688 = vshrl.u32 %v9687, 7
        %v9689 = vsub.s32 %v9686, %v9688
        %v9690 = vrot.slane %v9676, %v9689
        %v9691 = vcombine.high %v9683, 0.0
        %v9693 = vunpack.c.l.s4 1934713408
        %v9694 = vunpack.c.0.s8 %v9693
        %v9695 = vlaneseq
        %v9696 = vshrl.u32 %v9695, 7
        %v9697 = vsub.s32 %v9694, %v9696
        %v9698 = vrot.slane %v9683, %v9697
        %v9700 = vunpack.c.l.s4 1934713408
        %v9701 = vunpack.c.0.s8 %v9700
        %v9702 = vlaneseq
        %v9703 = vshrl.u32 %v9702, 7
        %v9704 = vsub.s32 %v9701, %v9703
        %v9705 = vrot.slane %v9691, %v9704
        %v9706 = vcombine.high %v9690, 0.0
        %v9708 = vunpack.c.l.s4 1934713408
        %v9709 = vunpack.c.0.s8 %v9708
        %v9710 = vlaneseq
        %v9711 = vshrl.u32 %v9710, 7
        %v9712 = vsub.s32 %v9709, %v9711
        %v9713 = vrot.slane %v9690, %v9712
        %v9715 = vunpack.c.l.s4 1934713408
        %v9716 = vunpack.c.0.s8 %v9715
        %v9717 = vlaneseq
        %v9718 = vshrl.u32 %v9717, 7
        %v9719 = vsub.s32 %v9716, %v9718
        %v9720 = vrot.slane %v9706, %v9719
        %v9721 = vcombine.high %v9698, 0.0
        %v9722 = vcombine.high %v9705, 0.0
        %v9723 = vcombine.high %v9713, 0.0
        %v9724 = vcombine.high %v9720, 0.0
        %v9725 = vcombine.high %v1950, 0.0
        %v9727 = vunpack.c.l.s4 1983009808
        %v9728 = vunpack.c.0.s8 %v9727
        %v9729 = vlaneseq
        %v9730 = vshrl.u32 %v9729, 7
        %v9731 = vsub.s32 %v9728, %v9730
        %v9732 = vrot.slane %v1950, %v9731
        %v9734 = vunpack.c.l.s4 1983009808
        %v9735 = vunpack.c.0.s8 %v9734
        %v9736 = vlaneseq
        %v9737 = vshrl.u32 %v9736, 7
        %v9738 = vsub.s32 %v9735, %v9737
        %v9739 = vrot.slane %v9725, %v9738
        %v9740 = vcombine.high %v9732, 0.0
        %v9742 = vunpack.c.l.s4 1934713408
        %v9743 = vunpack.c.0.s8 %v9742
        %v9744 = vlaneseq
        %v9745 = vshrl.u32 %v9744, 7
        %v9746 = vsub.s32 %v9743, %v9745
        %v9747 = vrot.slane %v9732, %v9746
        %v9749 = vunpack.c.l.s4 1934713408
        %v9750 = vunpack.c.0.s8 %v9749
        %v9751 = vlaneseq
        %v9752 = vshrl.u32 %v9751, 7
        %v9753 = vsub.s32 %v9750, %v9752
        %v9754 = vrot.slane %v9740, %v9753
        %v9755 = vcombine.high %v9739, 0.0
        %v9757 = vunpack.c.l.s4 1934713408
        %v9758 = vunpack.c.0.s8 %v9757
        %v9759 = vlaneseq
        %v9760 = vshrl.u32 %v9759, 7
        %v9761 = vsub.s32 %v9758, %v9760
        %v9762 = vrot.slane %v9739, %v9761
        %v9764 = vunpack.c.l.s4 1934713408
        %v9765 = vunpack.c.0.s8 %v9764
        %v9766 = vlaneseq
        %v9767 = vshrl.u32 %v9766, 7
        %v9768 = vsub.s32 %v9765, %v9767
        %v9769 = vrot.slane %v9755, %v9768
        %v9770 = vcombine.high %v9747, 0.0
        %v9771 = vcombine.high %v9754, 0.0
        %v9772 = vcombine.high %v9762, 0.0
        %v9773 = vcombine.high %v9769, 0.0
        %v9774 = vcombine.high %v1951, 0.0
        %v9776 = vunpack.c.l.s4 1983009808
        %v9777 = vunpack.c.0.s8 %v9776
        %v9778 = vlaneseq
        %v9779 = vshrl.u32 %v9778, 7
        %v9780 = vsub.s32 %v9777, %v9779
        %v9781 = vrot.slane %v1951, %v9780
        %v9783 = vunpack.c.l.s4 1983009808
        %v9784 = vunpack.c.0.s8 %v9783
        %v9785 = vlaneseq
        %v9786 = vshrl.u32 %v9785, 7
        %v9787 = vsub.s32 %v9784, %v9786
        %v9788 = vrot.slane %v9774, %v9787
        %v9789 = vcombine.high %v9781, 0.0
        %v9791 = vunpack.c.l.s4 1934713408
        %v9792 = vunpack.c.0.s8 %v9791
        %v9793 = vlaneseq
        %v9794 = vshrl.u32 %v9793, 7
        %v9795 = vsub.s32 %v9792, %v9794
        %v9796 = vrot.slane %v9781, %v9795
        %v9798 = vunpack.c.l.s4 1934713408
        %v9799 = vunpack.c.0.s8 %v9798
        %v9800 = vlaneseq
        %v9801 = vshrl.u32 %v9800, 7
        %v9802 = vsub.s32 %v9799, %v9801
        %v9803 = vrot.slane %v9789, %v9802
        %v9804 = vcombine.high %v9788, 0.0
        %v9806 = vunpack.c.l.s4 1934713408
        %v9807 = vunpack.c.0.s8 %v9806
        %v9808 = vlaneseq
        %v9809 = vshrl.u32 %v9808, 7
        %v9810 = vsub.s32 %v9807, %v9809
        %v9811 = vrot.slane %v9788, %v9810
        %v9813 = vunpack.c.l.s4 1934713408
        %v9814 = vunpack.c.0.s8 %v9813
        %v9815 = vlaneseq
        %v9816 = vshrl.u32 %v9815, 7
        %v9817 = vsub.s32 %v9814, %v9816
        %v9818 = vrot.slane %v9804, %v9817
        %v9819 = vcombine.high %v9796, 0.0
        %v9820 = vcombine.high %v9803, 0.0
        %v9821 = vcombine.high %v9811, 0.0
        %v9822 = vcombine.high %v9818, 0.0
        %v9823 = vcombine.high %v1952, 0.0
        %v9825 = vunpack.c.l.s4 1983009808
        %v9826 = vunpack.c.0.s8 %v9825
        %v9827 = vlaneseq
        %v9828 = vshrl.u32 %v9827, 7
        %v9829 = vsub.s32 %v9826, %v9828
        %v9830 = vrot.slane %v1952, %v9829
        %v9832 = vunpack.c.l.s4 1983009808
        %v9833 = vunpack.c.0.s8 %v9832
        %v9834 = vlaneseq
        %v9835 = vshrl.u32 %v9834, 7
        %v9836 = vsub.s32 %v9833, %v9835
        %v9837 = vrot.slane %v9823, %v9836
        %v9838 = vcombine.high %v9830, 0.0
        %v9840 = vunpack.c.l.s4 1934713408
        %v9841 = vunpack.c.0.s8 %v9840
        %v9842 = vlaneseq
        %v9843 = vshrl.u32 %v9842, 7
        %v9844 = vsub.s32 %v9841, %v9843
        %v9845 = vrot.slane %v9830, %v9844
        %v9847 = vunpack.c.l.s4 1934713408
        %v9848 = vunpack.c.0.s8 %v9847
        %v9849 = vlaneseq
        %v9850 = vshrl.u32 %v9849, 7
        %v9851 = vsub.s32 %v9848, %v9850
        %v9852 = vrot.slane %v9838, %v9851
        %v9853 = vcombine.high %v9837, 0.0
        %v9855 = vunpack.c.l.s4 1934713408
        %v9856 = vunpack.c.0.s8 %v9855
        %v9857 = vlaneseq
        %v9858 = vshrl.u32 %v9857, 7
        %v9859 = vsub.s32 %v9856, %v9858
        %v9860 = vrot.slane %v9837, %v9859
        %v9862 = vunpack.c.l.s4 1934713408
        %v9863 = vunpack.c.0.s8 %v9862
        %v9864 = vlaneseq
        %v9865 = vshrl.u32 %v9864, 7
        %v9866 = vsub.s32 %v9863, %v9865
        %v9867 = vrot.slane %v9853, %v9866
        %v9868 = vcombine.high %v9845, 0.0
        %v9869 = vcombine.high %v9852, 0.0
        %v9870 = vcombine.high %v9860, 0.0
        %v9871 = vcombine.high %v9867, 0.0
        %v9872 = vcombine.high %v1953, 0.0
        %v9874 = vunpack.c.l.s4 1983009808
        %v9875 = vunpack.c.0.s8 %v9874
        %v9876 = vlaneseq
        %v9877 = vshrl.u32 %v9876, 7
        %v9878 = vsub.s32 %v9875, %v9877
        %v9879 = vrot.slane %v1953, %v9878
        %v9881 = vunpack.c.l.s4 1983009808
        %v9882 = vunpack.c.0.s8 %v9881
        %v9883 = vlaneseq
        %v9884 = vshrl.u32 %v9883, 7
        %v9885 = vsub.s32 %v9882, %v9884
        %v9886 = vrot.slane %v9872, %v9885
        %v9887 = vcombine.high %v9879, 0.0
        %v9889 = vunpack.c.l.s4 1934713408
        %v9890 = vunpack.c.0.s8 %v9889
        %v9891 = vlaneseq
        %v9892 = vshrl.u32 %v9891, 7
        %v9893 = vsub.s32 %v9890, %v9892
        %v9894 = vrot.slane %v9879, %v9893
        %v9896 = vunpack.c.l.s4 1934713408
        %v9897 = vunpack.c.0.s8 %v9896
        %v9898 = vlaneseq
        %v9899 = vshrl.u32 %v9898, 7
        %v9900 = vsub.s32 %v9897, %v9899
        %v9901 = vrot.slane %v9887, %v9900
        %v9902 = vcombine.high %v9886, 0.0
        %v9904 = vunpack.c.l.s4 1934713408
        %v9905 = vunpack.c.0.s8 %v9904
        %v9906 = vlaneseq
        %v9907 = vshrl.u32 %v9906, 7
        %v9908 = vsub.s32 %v9905, %v9907
        %v9909 = vrot.slane %v9886, %v9908
        %v9911 = vunpack.c.l.s4 1934713408
        %v9912 = vunpack.c.0.s8 %v9911
        %v9913 = vlaneseq
        %v9914 = vshrl.u32 %v9913, 7
        %v9915 = vsub.s32 %v9912, %v9914
        %v9916 = vrot.slane %v9902, %v9915
        %v9917 = vcombine.high %v9894, 0.0
        %v9918 = vcombine.high %v9901, 0.0
        %v9919 = vcombine.high %v9909, 0.0
        %v9920 = vcombine.high %v9916, 0.0
        %v9921 = vcombine.high %v1954, 0.0
        %v9923 = vunpack.c.l.s4 1983009808
        %v9924 = vunpack.c.0.s8 %v9923
        %v9925 = vlaneseq
        %v9926 = vshrl.u32 %v9925, 7
        %v9927 = vsub.s32 %v9924, %v9926
        %v9928 = vrot.slane %v1954, %v9927
        %v9930 = vunpack.c.l.s4 1983009808
        %v9931 = vunpack.c.0.s8 %v9930
        %v9932 = vlaneseq
        %v9933 = vshrl.u32 %v9932, 7
        %v9934 = vsub.s32 %v9931, %v9933
        %v9935 = vrot.slane %v9921, %v9934
        %v9936 = vcombine.high %v9928, 0.0
        %v9938 = vunpack.c.l.s4 1934713408
        %v9939 = vunpack.c.0.s8 %v9938
        %v9940 = vlaneseq
        %v9941 = vshrl.u32 %v9940, 7
        %v9942 = vsub.s32 %v9939, %v9941
        %v9943 = vrot.slane %v9928, %v9942
        %v9945 = vunpack.c.l.s4 1934713408
        %v9946 = vunpack.c.0.s8 %v9945
        %v9947 = vlaneseq
        %v9948 = vshrl.u32 %v9947, 7
        %v9949 = vsub.s32 %v9946, %v9948
        %v9950 = vrot.slane %v9936, %v9949
        %v9951 = vcombine.high %v9935, 0.0
        %v9953 = vunpack.c.l.s4 1934713408
        %v9954 = vunpack.c.0.s8 %v9953
        %v9955 = vlaneseq
        %v9956 = vshrl.u32 %v9955, 7
        %v9957 = vsub.s32 %v9954, %v9956
        %v9958 = vrot.slane %v9935, %v9957
        %v9960 = vunpack.c.l.s4 1934713408
        %v9961 = vunpack.c.0.s8 %v9960
        %v9962 = vlaneseq
        %v9963 = vshrl.u32 %v9962, 7
        %v9964 = vsub.s32 %v9961, %v9963
        %v9965 = vrot.slane %v9951, %v9964
        %v9966 = vcombine.high %v9943, 0.0
        %v9967 = vcombine.high %v9950, 0.0
        %v9968 = vcombine.high %v9958, 0.0
        %v9969 = vcombine.high %v9965, 0.0
        %v9970 = vcombine.high %v1955, 0.0
        %v9972 = vunpack.c.l.s4 1983009808
        %v9973 = vunpack.c.0.s8 %v9972
        %v9974 = vlaneseq
        %v9975 = vshrl.u32 %v9974, 7
        %v9976 = vsub.s32 %v9973, %v9975
        %v9977 = vrot.slane %v1955, %v9976
        %v9979 = vunpack.c.l.s4 1983009808
        %v9980 = vunpack.c.0.s8 %v9979
        %v9981 = vlaneseq
        %v9982 = vshrl.u32 %v9981, 7
        %v9983 = vsub.s32 %v9980, %v9982
        %v9984 = vrot.slane %v9970, %v9983
        %v9985 = vcombine.high %v9977, 0.0
        %v9987 = vunpack.c.l.s4 1934713408
        %v9988 = vunpack.c.0.s8 %v9987
        %v9989 = vlaneseq
        %v9990 = vshrl.u32 %v9989, 7
        %v9991 = vsub.s32 %v9988, %v9990
        %v9992 = vrot.slane %v9977, %v9991
        %v9994 = vunpack.c.l.s4 1934713408
        %v9995 = vunpack.c.0.s8 %v9994
        %v9996 = vlaneseq
        %v9997 = vshrl.u32 %v9996, 7
        %v9998 = vsub.s32 %v9995, %v9997
        %v9999 = vrot.slane %v9985, %v9998
        %v10000 = vcombine.high %v9984, 0.0
        %v10002 = vunpack.c.l.s4 1934713408
        %v10003 = vunpack.c.0.s8 %v10002
        %v10004 = vlaneseq
        %v10005 = vshrl.u32 %v10004, 7
        %v10006 = vsub.s32 %v10003, %v10005
        %v10007 = vrot.slane %v9984, %v10006
        %v10009 = vunpack.c.l.s4 1934713408
        %v10010 = vunpack.c.0.s8 %v10009
        %v10011 = vlaneseq
        %v10012 = vshrl.u32 %v10011, 7
        %v10013 = vsub.s32 %v10010, %v10012
        %v10014 = vrot.slane %v10000, %v10013
        %v10015 = vcombine.high %v9992, 0.0
        %v10016 = vcombine.high %v9999, 0.0
        %v10017 = vcombine.high %v10007, 0.0
        %v10018 = vcombine.high %v10014, 0.0
        %v10019 = vcombine.high %v1956, 0.0
        %v10021 = vunpack.c.l.s4 1983009808
        %v10022 = vunpack.c.0.s8 %v10021
        %v10023 = vlaneseq
        %v10024 = vshrl.u32 %v10023, 7
        %v10025 = vsub.s32 %v10022, %v10024
        %v10026 = vrot.slane %v1956, %v10025
        %v10028 = vunpack.c.l.s4 1983009808
        %v10029 = vunpack.c.0.s8 %v10028
        %v10030 = vlaneseq
        %v10031 = vshrl.u32 %v10030, 7
        %v10032 = vsub.s32 %v10029, %v10031
        %v10033 = vrot.slane %v10019, %v10032
        %v10034 = vcombine.high %v10026, 0.0
        %v10036 = vunpack.c.l.s4 1934713408
        %v10037 = vunpack.c.0.s8 %v10036
        %v10038 = vlaneseq
        %v10039 = vshrl.u32 %v10038, 7
        %v10040 = vsub.s32 %v10037, %v10039
        %v10041 = vrot.slane %v10026, %v10040
        %v10043 = vunpack.c.l.s4 1934713408
        %v10044 = vunpack.c.0.s8 %v10043
        %v10045 = vlaneseq
        %v10046 = vshrl.u32 %v10045, 7
        %v10047 = vsub.s32 %v10044, %v10046
        %v10048 = vrot.slane %v10034, %v10047
        %v10049 = vcombine.high %v10033, 0.0
        %v10051 = vunpack.c.l.s4 1934713408
        %v10052 = vunpack.c.0.s8 %v10051
        %v10053 = vlaneseq
        %v10054 = vshrl.u32 %v10053, 7
        %v10055 = vsub.s32 %v10052, %v10054
        %v10056 = vrot.slane %v10033, %v10055
        %v10058 = vunpack.c.l.s4 1934713408
        %v10059 = vunpack.c.0.s8 %v10058
        %v10060 = vlaneseq
        %v10061 = vshrl.u32 %v10060, 7
        %v10062 = vsub.s32 %v10059, %v10061
        %v10063 = vrot.slane %v10049, %v10062
        %v10064 = vcombine.high %v10041, 0.0
        %v10065 = vcombine.high %v10048, 0.0
        %v10066 = vcombine.high %v10056, 0.0
        %v10067 = vcombine.high %v10063, 0.0
        %v10068 = vcombine.high %v1957, 0.0
        %v10070 = vunpack.c.l.s4 1983009808
        %v10071 = vunpack.c.0.s8 %v10070
        %v10072 = vlaneseq
        %v10073 = vshrl.u32 %v10072, 7
        %v10074 = vsub.s32 %v10071, %v10073
        %v10075 = vrot.slane %v1957, %v10074
        %v10077 = vunpack.c.l.s4 1983009808
        %v10078 = vunpack.c.0.s8 %v10077
        %v10079 = vlaneseq
        %v10080 = vshrl.u32 %v10079, 7
        %v10081 = vsub.s32 %v10078, %v10080
        %v10082 = vrot.slane %v10068, %v10081
        %v10083 = vcombine.high %v10075, 0.0
        %v10085 = vunpack.c.l.s4 1934713408
        %v10086 = vunpack.c.0.s8 %v10085
        %v10087 = vlaneseq
        %v10088 = vshrl.u32 %v10087, 7
        %v10089 = vsub.s32 %v10086, %v10088
        %v10090 = vrot.slane %v10075, %v10089
        %v10092 = vunpack.c.l.s4 1934713408
        %v10093 = vunpack.c.0.s8 %v10092
        %v10094 = vlaneseq
        %v10095 = vshrl.u32 %v10094, 7
        %v10096 = vsub.s32 %v10093, %v10095
        %v10097 = vrot.slane %v10083, %v10096
        %v10098 = vcombine.high %v10082, 0.0
        %v10100 = vunpack.c.l.s4 1934713408
        %v10101 = vunpack.c.0.s8 %v10100
        %v10102 = vlaneseq
        %v10103 = vshrl.u32 %v10102, 7
        %v10104 = vsub.s32 %v10101, %v10103
        %v10105 = vrot.slane %v10082, %v10104
        %v10107 = vunpack.c.l.s4 1934713408
        %v10108 = vunpack.c.0.s8 %v10107
        %v10109 = vlaneseq
        %v10110 = vshrl.u32 %v10109, 7
        %v10111 = vsub.s32 %v10108, %v10110
        %v10112 = vrot.slane %v10098, %v10111
        %v10113 = vcombine.high %v10090, 0.0
        %v10114 = vcombine.high %v10097, 0.0
        %v10115 = vcombine.high %v10105, 0.0
        %v10116 = vcombine.high %v10112, 0.0
        %v10117 = vcombine.high %v1958, 0.0
        %v10119 = vunpack.c.l.s4 1983009808
        %v10120 = vunpack.c.0.s8 %v10119
        %v10121 = vlaneseq
        %v10122 = vshrl.u32 %v10121, 7
        %v10123 = vsub.s32 %v10120, %v10122
        %v10124 = vrot.slane %v1958, %v10123
        %v10126 = vunpack.c.l.s4 1983009808
        %v10127 = vunpack.c.0.s8 %v10126
        %v10128 = vlaneseq
        %v10129 = vshrl.u32 %v10128, 7
        %v10130 = vsub.s32 %v10127, %v10129
        %v10131 = vrot.slane %v10117, %v10130
        %v10132 = vcombine.high %v10124, 0.0
        %v10134 = vunpack.c.l.s4 1934713408
        %v10135 = vunpack.c.0.s8 %v10134
        %v10136 = vlaneseq
        %v10137 = vshrl.u32 %v10136, 7
        %v10138 = vsub.s32 %v10135, %v10137
        %v10139 = vrot.slane %v10124, %v10138
        %v10141 = vunpack.c.l.s4 1934713408
        %v10142 = vunpack.c.0.s8 %v10141
        %v10143 = vlaneseq
        %v10144 = vshrl.u32 %v10143, 7
        %v10145 = vsub.s32 %v10142, %v10144
        %v10146 = vrot.slane %v10132, %v10145
        %v10147 = vcombine.high %v10131, 0.0
        %v10149 = vunpack.c.l.s4 1934713408
        %v10150 = vunpack.c.0.s8 %v10149
        %v10151 = vlaneseq
        %v10152 = vshrl.u32 %v10151, 7
        %v10153 = vsub.s32 %v10150, %v10152
        %v10154 = vrot.slane %v10131, %v10153
        %v10156 = vunpack.c.l.s4 1934713408
        %v10157 = vunpack.c.0.s8 %v10156
        %v10158 = vlaneseq
        %v10159 = vshrl.u32 %v10158, 7
        %v10160 = vsub.s32 %v10157, %v10159
        %v10161 = vrot.slane %v10147, %v10160
        %v10162 = vcombine.high %v10139, 0.0
        %v10163 = vcombine.high %v10146, 0.0
        %v10164 = vcombine.high %v10154, 0.0
        %v10165 = vcombine.high %v10161, 0.0
        %v10166 = vcombine.high %v1959, 0.0
        %v10168 = vunpack.c.l.s4 1983009808
        %v10169 = vunpack.c.0.s8 %v10168
        %v10170 = vlaneseq
        %v10171 = vshrl.u32 %v10170, 7
        %v10172 = vsub.s32 %v10169, %v10171
        %v10173 = vrot.slane %v1959, %v10172
        %v10175 = vunpack.c.l.s4 1983009808
        %v10176 = vunpack.c.0.s8 %v10175
        %v10177 = vlaneseq
        %v10178 = vshrl.u32 %v10177, 7
        %v10179 = vsub.s32 %v10176, %v10178
        %v10180 = vrot.slane %v10166, %v10179
        %v10181 = vcombine.high %v10173, 0.0
        %v10183 = vunpack.c.l.s4 1934713408
        %v10184 = vunpack.c.0.s8 %v10183
        %v10185 = vlaneseq
        %v10186 = vshrl.u32 %v10185, 7
        %v10187 = vsub.s32 %v10184, %v10186
        %v10188 = vrot.slane %v10173, %v10187
        %v10190 = vunpack.c.l.s4 1934713408
        %v10191 = vunpack.c.0.s8 %v10190
        %v10192 = vlaneseq
        %v10193 = vshrl.u32 %v10192, 7
        %v10194 = vsub.s32 %v10191, %v10193
        %v10195 = vrot.slane %v10181, %v10194
        %v10196 = vcombine.high %v10180, 0.0
        %v10198 = vunpack.c.l.s4 1934713408
        %v10199 = vunpack.c.0.s8 %v10198
        %v10200 = vlaneseq
        %v10201 = vshrl.u32 %v10200, 7
        %v10202 = vsub.s32 %v10199, %v10201
        %v10203 = vrot.slane %v10180, %v10202
        %v10205 = vunpack.c.l.s4 1934713408
        %v10206 = vunpack.c.0.s8 %v10205
        %v10207 = vlaneseq
        %v10208 = vshrl.u32 %v10207, 7
        %v10209 = vsub.s32 %v10206, %v10208
        %v10210 = vrot.slane %v10196, %v10209
        %v10211 = vcombine.high %v10188, 0.0
        %v10212 = vcombine.high %v10195, 0.0
        %v10213 = vcombine.high %v10203, 0.0
        %v10214 = vcombine.high %v10210, 0.0
        %v10215 = vcombine.high %v1960, 0.0
        %v10217 = vunpack.c.l.s4 1983009808
        %v10218 = vunpack.c.0.s8 %v10217
        %v10219 = vlaneseq
        %v10220 = vshrl.u32 %v10219, 7
        %v10221 = vsub.s32 %v10218, %v10220
        %v10222 = vrot.slane %v1960, %v10221
        %v10224 = vunpack.c.l.s4 1983009808
        %v10225 = vunpack.c.0.s8 %v10224
        %v10226 = vlaneseq
        %v10227 = vshrl.u32 %v10226, 7
        %v10228 = vsub.s32 %v10225, %v10227
        %v10229 = vrot.slane %v10215, %v10228
        %v10230 = vcombine.high %v10222, 0.0
        %v10232 = vunpack.c.l.s4 1934713408
        %v10233 = vunpack.c.0.s8 %v10232
        %v10234 = vlaneseq
        %v10235 = vshrl.u32 %v10234, 7
        %v10236 = vsub.s32 %v10233, %v10235
        %v10237 = vrot.slane %v10222, %v10236
        %v10239 = vunpack.c.l.s4 1934713408
        %v10240 = vunpack.c.0.s8 %v10239
        %v10241 = vlaneseq
        %v10242 = vshrl.u32 %v10241, 7
        %v10243 = vsub.s32 %v10240, %v10242
        %v10244 = vrot.slane %v10230, %v10243
        %v10245 = vcombine.high %v10229, 0.0
        %v10247 = vunpack.c.l.s4 1934713408
        %v10248 = vunpack.c.0.s8 %v10247
        %v10249 = vlaneseq
        %v10250 = vshrl.u32 %v10249, 7
        %v10251 = vsub.s32 %v10248, %v10250
        %v10252 = vrot.slane %v10229, %v10251
        %v10254 = vunpack.c.l.s4 1934713408
        %v10255 = vunpack.c.0.s8 %v10254
        %v10256 = vlaneseq
        %v10257 = vshrl.u32 %v10256, 7
        %v10258 = vsub.s32 %v10255, %v10257
        %v10259 = vrot.slane %v10245, %v10258
        %v10260 = vcombine.high %v10237, 0.0
        %v10261 = vcombine.high %v10244, 0.0
        %v10262 = vcombine.high %v10252, 0.0
        %v10263 = vcombine.high %v10259, 0.0
        %v10264 = vcombine.high %v1961, 0.0
        %v10266 = vunpack.c.l.s4 1983009808
        %v10267 = vunpack.c.0.s8 %v10266
        %v10268 = vlaneseq
        %v10269 = vshrl.u32 %v10268, 7
        %v10270 = vsub.s32 %v10267, %v10269
        %v10271 = vrot.slane %v1961, %v10270
        %v10273 = vunpack.c.l.s4 1983009808
        %v10274 = vunpack.c.0.s8 %v10273
        %v10275 = vlaneseq
        %v10276 = vshrl.u32 %v10275, 7
        %v10277 = vsub.s32 %v10274, %v10276
        %v10278 = vrot.slane %v10264, %v10277
        %v10279 = vcombine.high %v10271, 0.0
        %v10281 = vunpack.c.l.s4 1934713408
        %v10282 = vunpack.c.0.s8 %v10281
        %v10283 = vlaneseq
        %v10284 = vshrl.u32 %v10283, 7
        %v10285 = vsub.s32 %v10282, %v10284
        %v10286 = vrot.slane %v10271, %v10285
        %v10288 = vunpack.c.l.s4 1934713408
        %v10289 = vunpack.c.0.s8 %v10288
        %v10290 = vlaneseq
        %v10291 = vshrl.u32 %v10290, 7
        %v10292 = vsub.s32 %v10289, %v10291
        %v10293 = vrot.slane %v10279, %v10292
        %v10294 = vcombine.high %v10278, 0.0
        %v10296 = vunpack.c.l.s4 1934713408
        %v10297 = vunpack.c.0.s8 %v10296
        %v10298 = vlaneseq
        %v10299 = vshrl.u32 %v10298, 7
        %v10300 = vsub.s32 %v10297, %v10299
        %v10301 = vrot.slane %v10278, %v10300
        %v10303 = vunpack.c.l.s4 1934713408
        %v10304 = vunpack.c.0.s8 %v10303
        %v10305 = vlaneseq
        %v10306 = vshrl.u32 %v10305, 7
        %v10307 = vsub.s32 %v10304, %v10306
        %v10308 = vrot.slane %v10294, %v10307
        %v10309 = vcombine.high %v10286, 0.0
        %v10310 = vcombine.high %v10293, 0.0
        %v10311 = vcombine.high %v10301, 0.0
        %v10312 = vcombine.high %v10308, 0.0
        %v10313 = vcombine.high %v1962, 0.0
        %v10315 = vunpack.c.l.s4 1983009808
        %v10316 = vunpack.c.0.s8 %v10315
        %v10317 = vlaneseq
        %v10318 = vshrl.u32 %v10317, 7
        %v10319 = vsub.s32 %v10316, %v10318
        %v10320 = vrot.slane %v1962, %v10319
        %v10322 = vunpack.c.l.s4 1983009808
        %v10323 = vunpack.c.0.s8 %v10322
        %v10324 = vlaneseq
        %v10325 = vshrl.u32 %v10324, 7
        %v10326 = vsub.s32 %v10323, %v10325
        %v10327 = vrot.slane %v10313, %v10326
        %v10328 = vcombine.high %v10320, 0.0
        %v10330 = vunpack.c.l.s4 1934713408
        %v10331 = vunpack.c.0.s8 %v10330
        %v10332 = vlaneseq
        %v10333 = vshrl.u32 %v10332, 7
        %v10334 = vsub.s32 %v10331, %v10333
        %v10335 = vrot.slane %v10320, %v10334
        %v10337 = vunpack.c.l.s4 1934713408
        %v10338 = vunpack.c.0.s8 %v10337
        %v10339 = vlaneseq
        %v10340 = vshrl.u32 %v10339, 7
        %v10341 = vsub.s32 %v10338, %v10340
        %v10342 = vrot.slane %v10328, %v10341
        %v10343 = vcombine.high %v10327, 0.0
        %v10345 = vunpack.c.l.s4 1934713408
        %v10346 = vunpack.c.0.s8 %v10345
        %v10347 = vlaneseq
        %v10348 = vshrl.u32 %v10347, 7
        %v10349 = vsub.s32 %v10346, %v10348
        %v10350 = vrot.slane %v10327, %v10349
        %v10352 = vunpack.c.l.s4 1934713408
        %v10353 = vunpack.c.0.s8 %v10352
        %v10354 = vlaneseq
        %v10355 = vshrl.u32 %v10354, 7
        %v10356 = vsub.s32 %v10353, %v10355
        %v10357 = vrot.slane %v10343, %v10356
        %v10358 = vcombine.high %v10335, 0.0
        %v10359 = vcombine.high %v10342, 0.0
        %v10360 = vcombine.high %v10350, 0.0
        %v10361 = vcombine.high %v10357, 0.0
        %v10362 = vcombine.high %v1963, 0.0
        %v10364 = vunpack.c.l.s4 1983009808
        %v10365 = vunpack.c.0.s8 %v10364
        %v10366 = vlaneseq
        %v10367 = vshrl.u32 %v10366, 7
        %v10368 = vsub.s32 %v10365, %v10367
        %v10369 = vrot.slane %v1963, %v10368
        %v10371 = vunpack.c.l.s4 1983009808
        %v10372 = vunpack.c.0.s8 %v10371
        %v10373 = vlaneseq
        %v10374 = vshrl.u32 %v10373, 7
        %v10375 = vsub.s32 %v10372, %v10374
        %v10376 = vrot.slane %v10362, %v10375
        %v10377 = vcombine.high %v10369, 0.0
        %v10379 = vunpack.c.l.s4 1934713408
        %v10380 = vunpack.c.0.s8 %v10379
        %v10381 = vlaneseq
        %v10382 = vshrl.u32 %v10381, 7
        %v10383 = vsub.s32 %v10380, %v10382
        %v10384 = vrot.slane %v10369, %v10383
        %v10386 = vunpack.c.l.s4 1934713408
        %v10387 = vunpack.c.0.s8 %v10386
        %v10388 = vlaneseq
        %v10389 = vshrl.u32 %v10388, 7
        %v10390 = vsub.s32 %v10387, %v10389
        %v10391 = vrot.slane %v10377, %v10390
        %v10392 = vcombine.high %v10376, 0.0
        %v10394 = vunpack.c.l.s4 1934713408
        %v10395 = vunpack.c.0.s8 %v10394
        %v10396 = vlaneseq
        %v10397 = vshrl.u32 %v10396, 7
        %v10398 = vsub.s32 %v10395, %v10397
        %v10399 = vrot.slane %v10376, %v10398
        %v10401 = vunpack.c.l.s4 1934713408
        %v10402 = vunpack.c.0.s8 %v10401
        %v10403 = vlaneseq
        %v10404 = vshrl.u32 %v10403, 7
        %v10405 = vsub.s32 %v10402, %v10404
        %v10406 = vrot.slane %v10392, %v10405
        %v10407 = vcombine.high %v10384, 0.0
        %v10408 = vcombine.high %v10391, 0.0
        %v10409 = vcombine.high %v10399, 0.0
        %v10410 = vcombine.high %v10406, 0.0
        %v10411 = vcombine.high %v1964, 0.0
        %v10413 = vunpack.c.l.s4 1983009808
        %v10414 = vunpack.c.0.s8 %v10413
        %v10415 = vlaneseq
        %v10416 = vshrl.u32 %v10415, 7
        %v10417 = vsub.s32 %v10414, %v10416
        %v10418 = vrot.slane %v1964, %v10417
        %v10420 = vunpack.c.l.s4 1983009808
        %v10421 = vunpack.c.0.s8 %v10420
        %v10422 = vlaneseq
        %v10423 = vshrl.u32 %v10422, 7
        %v10424 = vsub.s32 %v10421, %v10423
        %v10425 = vrot.slane %v10411, %v10424
        %v10426 = vcombine.high %v10418, 0.0
        %v10428 = vunpack.c.l.s4 1934713408
        %v10429 = vunpack.c.0.s8 %v10428
        %v10430 = vlaneseq
        %v10431 = vshrl.u32 %v10430, 7
        %v10432 = vsub.s32 %v10429, %v10431
        %v10433 = vrot.slane %v10418, %v10432
        %v10435 = vunpack.c.l.s4 1934713408
        %v10436 = vunpack.c.0.s8 %v10435
        %v10437 = vlaneseq
        %v10438 = vshrl.u32 %v10437, 7
        %v10439 = vsub.s32 %v10436, %v10438
        %v10440 = vrot.slane %v10426, %v10439
        %v10441 = vcombine.high %v10425, 0.0
        %v10443 = vunpack.c.l.s4 1934713408
        %v10444 = vunpack.c.0.s8 %v10443
        %v10445 = vlaneseq
        %v10446 = vshrl.u32 %v10445, 7
        %v10447 = vsub.s32 %v10444, %v10446
        %v10448 = vrot.slane %v10425, %v10447
        %v10450 = vunpack.c.l.s4 1934713408
        %v10451 = vunpack.c.0.s8 %v10450
        %v10452 = vlaneseq
        %v10453 = vshrl.u32 %v10452, 7
        %v10454 = vsub.s32 %v10451, %v10453
        %v10455 = vrot.slane %v10441, %v10454
        %v10456 = vcombine.high %v10433, 0.0
        %v10457 = vcombine.high %v10440, 0.0
        %v10458 = vcombine.high %v10448, 0.0
        %v10459 = vcombine.high %v10455, 0.0
        %v10460 = vcombine.high %v1965, 0.0
        %v10462 = vunpack.c.l.s4 1983009808
        %v10463 = vunpack.c.0.s8 %v10462
        %v10464 = vlaneseq
        %v10465 = vshrl.u32 %v10464, 7
        %v10466 = vsub.s32 %v10463, %v10465
        %v10467 = vrot.slane %v1965, %v10466
        %v10469 = vunpack.c.l.s4 1983009808
        %v10470 = vunpack.c.0.s8 %v10469
        %v10471 = vlaneseq
        %v10472 = vshrl.u32 %v10471, 7
        %v10473 = vsub.s32 %v10470, %v10472
        %v10474 = vrot.slane %v10460, %v10473
        %v10475 = vcombine.high %v10467, 0.0
        %v10477 = vunpack.c.l.s4 1934713408
        %v10478 = vunpack.c.0.s8 %v10477
        %v10479 = vlaneseq
        %v10480 = vshrl.u32 %v10479, 7
        %v10481 = vsub.s32 %v10478, %v10480
        %v10482 = vrot.slane %v10467, %v10481
        %v10484 = vunpack.c.l.s4 1934713408
        %v10485 = vunpack.c.0.s8 %v10484
        %v10486 = vlaneseq
        %v10487 = vshrl.u32 %v10486, 7
        %v10488 = vsub.s32 %v10485, %v10487
        %v10489 = vrot.slane %v10475, %v10488
        %v10490 = vcombine.high %v10474, 0.0
        %v10492 = vunpack.c.l.s4 1934713408
        %v10493 = vunpack.c.0.s8 %v10492
        %v10494 = vlaneseq
        %v10495 = vshrl.u32 %v10494, 7
        %v10496 = vsub.s32 %v10493, %v10495
        %v10497 = vrot.slane %v10474, %v10496
        %v10499 = vunpack.c.l.s4 1934713408
        %v10500 = vunpack.c.0.s8 %v10499
        %v10501 = vlaneseq
        %v10502 = vshrl.u32 %v10501, 7
        %v10503 = vsub.s32 %v10500, %v10502
        %v10504 = vrot.slane %v10490, %v10503
        %v10505 = vcombine.high %v10482, 0.0
        %v10506 = vcombine.high %v10489, 0.0
        %v10507 = vcombine.high %v10497, 0.0
        %v10508 = vcombine.high %v10504, 0.0
        %v10509 = vcombine.high %v1966, 0.0
        %v10511 = vunpack.c.l.s4 1983009808
        %v10512 = vunpack.c.0.s8 %v10511
        %v10513 = vlaneseq
        %v10514 = vshrl.u32 %v10513, 7
        %v10515 = vsub.s32 %v10512, %v10514
        %v10516 = vrot.slane %v1966, %v10515
        %v10518 = vunpack.c.l.s4 1983009808
        %v10519 = vunpack.c.0.s8 %v10518
        %v10520 = vlaneseq
        %v10521 = vshrl.u32 %v10520, 7
        %v10522 = vsub.s32 %v10519, %v10521
        %v10523 = vrot.slane %v10509, %v10522
        %v10524 = vcombine.high %v10516, 0.0
        %v10526 = vunpack.c.l.s4 1934713408
        %v10527 = vunpack.c.0.s8 %v10526
        %v10528 = vlaneseq
        %v10529 = vshrl.u32 %v10528, 7
        %v10530 = vsub.s32 %v10527, %v10529
        %v10531 = vrot.slane %v10516, %v10530
        %v10533 = vunpack.c.l.s4 1934713408
        %v10534 = vunpack.c.0.s8 %v10533
        %v10535 = vlaneseq
        %v10536 = vshrl.u32 %v10535, 7
        %v10537 = vsub.s32 %v10534, %v10536
        %v10538 = vrot.slane %v10524, %v10537
        %v10539 = vcombine.high %v10523, 0.0
        %v10541 = vunpack.c.l.s4 1934713408
        %v10542 = vunpack.c.0.s8 %v10541
        %v10543 = vlaneseq
        %v10544 = vshrl.u32 %v10543, 7
        %v10545 = vsub.s32 %v10542, %v10544
        %v10546 = vrot.slane %v10523, %v10545
        %v10548 = vunpack.c.l.s4 1934713408
        %v10549 = vunpack.c.0.s8 %v10548
        %v10550 = vlaneseq
        %v10551 = vshrl.u32 %v10550, 7
        %v10552 = vsub.s32 %v10549, %v10551
        %v10553 = vrot.slane %v10539, %v10552
        %v10554 = vcombine.high %v10531, 0.0
        %v10555 = vcombine.high %v10538, 0.0
        %v10556 = vcombine.high %v10546, 0.0
        %v10557 = vcombine.high %v10553, 0.0
        %v10558 = vcombine.high %v1967, 0.0
        %v10560 = vunpack.c.l.s4 1983009808
        %v10561 = vunpack.c.0.s8 %v10560
        %v10562 = vlaneseq
        %v10563 = vshrl.u32 %v10562, 7
        %v10564 = vsub.s32 %v10561, %v10563
        %v10565 = vrot.slane %v1967, %v10564
        %v10567 = vunpack.c.l.s4 1983009808
        %v10568 = vunpack.c.0.s8 %v10567
        %v10569 = vlaneseq
        %v10570 = vshrl.u32 %v10569, 7
        %v10571 = vsub.s32 %v10568, %v10570
        %v10572 = vrot.slane %v10558, %v10571
        %v10573 = vcombine.high %v10565, 0.0
        %v10575 = vunpack.c.l.s4 1934713408
        %v10576 = vunpack.c.0.s8 %v10575
        %v10577 = vlaneseq
        %v10578 = vshrl.u32 %v10577, 7
        %v10579 = vsub.s32 %v10576, %v10578
        %v10580 = vrot.slane %v10565, %v10579
        %v10582 = vunpack.c.l.s4 1934713408
        %v10583 = vunpack.c.0.s8 %v10582
        %v10584 = vlaneseq
        %v10585 = vshrl.u32 %v10584, 7
        %v10586 = vsub.s32 %v10583, %v10585
        %v10587 = vrot.slane %v10573, %v10586
        %v10588 = vcombine.high %v10572, 0.0
        %v10590 = vunpack.c.l.s4 1934713408
        %v10591 = vunpack.c.0.s8 %v10590
        %v10592 = vlaneseq
        %v10593 = vshrl.u32 %v10592, 7
        %v10594 = vsub.s32 %v10591, %v10593
        %v10595 = vrot.slane %v10572, %v10594
        %v10597 = vunpack.c.l.s4 1934713408
        %v10598 = vunpack.c.0.s8 %v10597
        %v10599 = vlaneseq
        %v10600 = vshrl.u32 %v10599, 7
        %v10601 = vsub.s32 %v10598, %v10600
        %v10602 = vrot.slane %v10588, %v10601
        %v10603 = vcombine.high %v10580, 0.0
        %v10604 = vcombine.high %v10587, 0.0
        %v10605 = vcombine.high %v10595, 0.0
        %v10606 = vcombine.high %v10602, 0.0
        %v10607 = vcombine.high %v1968, 0.0
        %v10609 = vunpack.c.l.s4 1983009808
        %v10610 = vunpack.c.0.s8 %v10609
        %v10611 = vlaneseq
        %v10612 = vshrl.u32 %v10611, 7
        %v10613 = vsub.s32 %v10610, %v10612
        %v10614 = vrot.slane %v1968, %v10613
        %v10616 = vunpack.c.l.s4 1983009808
        %v10617 = vunpack.c.0.s8 %v10616
        %v10618 = vlaneseq
        %v10619 = vshrl.u32 %v10618, 7
        %v10620 = vsub.s32 %v10617, %v10619
        %v10621 = vrot.slane %v10607, %v10620
        %v10622 = vcombine.high %v10614, 0.0
        %v10624 = vunpack.c.l.s4 1934713408
        %v10625 = vunpack.c.0.s8 %v10624
        %v10626 = vlaneseq
        %v10627 = vshrl.u32 %v10626, 7
        %v10628 = vsub.s32 %v10625, %v10627
        %v10629 = vrot.slane %v10614, %v10628
        %v10631 = vunpack.c.l.s4 1934713408
        %v10632 = vunpack.c.0.s8 %v10631
        %v10633 = vlaneseq
        %v10634 = vshrl.u32 %v10633, 7
        %v10635 = vsub.s32 %v10632, %v10634
        %v10636 = vrot.slane %v10622, %v10635
        %v10637 = vcombine.high %v10621, 0.0
        %v10639 = vunpack.c.l.s4 1934713408
        %v10640 = vunpack.c.0.s8 %v10639
        %v10641 = vlaneseq
        %v10642 = vshrl.u32 %v10641, 7
        %v10643 = vsub.s32 %v10640, %v10642
        %v10644 = vrot.slane %v10621, %v10643
        %v10646 = vunpack.c.l.s4 1934713408
        %v10647 = vunpack.c.0.s8 %v10646
        %v10648 = vlaneseq
        %v10649 = vshrl.u32 %v10648, 7
        %v10650 = vsub.s32 %v10647, %v10649
        %v10651 = vrot.slane %v10637, %v10650
        %v10652 = vcombine.high %v10629, 0.0
        %v10653 = vcombine.high %v10636, 0.0
        %v10654 = vcombine.high %v10644, 0.0
        %v10655 = vcombine.high %v10651, 0.0
        %10688 = vrot.lane.b32.xlu0 %v7565, 2
        %v10689 = vpop.permute.xlu0 %10688
        %10690 = vrot.lane.b32.xlu0 %v7663, 2
        %v10691 = vpop.permute.xlu0 %10690
        %10692 = vrot.lane.b32.xlu0 %v7761, 2
        %v10693 = vpop.permute.xlu0 %10692
        %10694 = vrot.lane.b32.xlu0 %v7859, 2
        %v10695 = vpop.permute.xlu0 %10694
        %10696 = vrot.lane.b32.xlu0 %v7957, 2
        %v10697 = vpop.permute.xlu0 %10696
        %10698 = vrot.lane.b32.xlu0 %v8055, 2
        %v10699 = vpop.permute.xlu0 %10698
        %10700 = vrot.lane.b32.xlu0 %v8153, 2
        %v10701 = vpop.permute.xlu0 %10700
        %10702 = vrot.lane.b32.xlu0 %v8251, 2
        %v10703 = vpop.permute.xlu0 %10702
        %10704 = vrot.lane.b32.xlu0 %v8349, 2
        %v10705 = vpop.permute.xlu0 %10704
        %10706 = vrot.lane.b32.xlu0 %v8447, 2
        %v10707 = vpop.permute.xlu0 %10706
        %10708 = vrot.lane.b32.xlu0 %v8545, 2
        %v10709 = vpop.permute.xlu0 %10708
        %10710 = vrot.lane.b32.xlu0 %v8643, 2
        %v10711 = vpop.permute.xlu0 %10710
        %10712 = vrot.lane.b32.xlu0 %v8741, 2
        %v10713 = vpop.permute.xlu0 %10712
        %10714 = vrot.lane.b32.xlu0 %v8839, 2
        %v10715 = vpop.permute.xlu0 %10714
        %10716 = vrot.lane.b32.xlu0 %v8937, 2
        %v10717 = vpop.permute.xlu0 %10716
        %10718 = vrot.lane.b32.xlu0 %v9035, 2
        %v10719 = vpop.permute.xlu0 %10718
        %10720 = vrot.lane.b32.xlu0 %v9133, 2
        %v10721 = vpop.permute.xlu0 %10720
        %10722 = vrot.lane.b32.xlu0 %v9231, 2
        %v10723 = vpop.permute.xlu0 %10722
        %10724 = vrot.lane.b32.xlu0 %v9329, 2
        %v10725 = vpop.permute.xlu0 %10724
        %10726 = vrot.lane.b32.xlu0 %v9427, 2
        %v10727 = vpop.permute.xlu0 %10726
        %10728 = vrot.lane.b32.xlu0 %v9525, 2
        %v10729 = vpop.permute.xlu0 %10728
        %10730 = vrot.lane.b32.xlu0 %v9623, 2
        %v10731 = vpop.permute.xlu0 %10730
        %10732 = vrot.lane.b32.xlu0 %v9721, 2
        %v10733 = vpop.permute.xlu0 %10732
        %10734 = vrot.lane.b32.xlu0 %v9819, 2
        %v10735 = vpop.permute.xlu0 %10734
        %10736 = vrot.lane.b32.xlu0 %v9917, 2
        %v10737 = vpop.permute.xlu0 %10736
        %10738 = vrot.lane.b32.xlu0 %v10015, 2
        %v10739 = vpop.permute.xlu0 %10738
        %10740 = vrot.lane.b32.xlu0 %v10113, 2
        %v10741 = vpop.permute.xlu0 %10740
        %10742 = vrot.lane.b32.xlu0 %v10211, 2
        %v10743 = vpop.permute.xlu0 %10742
        %10744 = vrot.lane.b32.xlu0 %v10309, 2
        %v10745 = vpop.permute.xlu0 %10744
        %10746 = vrot.lane.b32.xlu0 %v10407, 2
        %v10747 = vpop.permute.xlu0 %10746
        %10748 = vrot.lane.b32.xlu0 %v10505, 2
        %v10749 = vpop.permute.xlu0 %10748
        %10750 = vrot.lane.b32.xlu0 %v10603, 2
        %v10751 = vpop.permute.xlu0 %10750
        %10816 = vrot.lane.b32.xlu0 %v7549, 4
        %v10817 = vpop.permute.xlu0 %10816
        %10818 = vrot.lane.b32.xlu0 %v7647, 4
        %v10819 = vpop.permute.xlu0 %10818
        %10820 = vrot.lane.b32.xlu0 %v7745, 4
        %v10821 = vpop.permute.xlu0 %10820
        %10822 = vrot.lane.b32.xlu0 %v7843, 4
        %v10823 = vpop.permute.xlu0 %10822
        %10824 = vrot.lane.b32.xlu0 %v7941, 4
        %v10825 = vpop.permute.xlu0 %10824
        %10826 = vrot.lane.b32.xlu0 %v8039, 4
        %v10827 = vpop.permute.xlu0 %10826
        %10828 = vrot.lane.b32.xlu0 %v8137, 4
        %v10829 = vpop.permute.xlu0 %10828
        %10830 = vrot.lane.b32.xlu0 %v8235, 4
        %v10831 = vpop.permute.xlu0 %10830
        %10832 = vrot.lane.b32.xlu0 %v8333, 4
        %v10833 = vpop.permute.xlu0 %10832
        %10834 = vrot.lane.b32.xlu0 %v8431, 4
        %v10835 = vpop.permute.xlu0 %10834
        %10836 = vrot.lane.b32.xlu0 %v8529, 4
        %v10837 = vpop.permute.xlu0 %10836
        %10838 = vrot.lane.b32.xlu0 %v8627, 4
        %v10839 = vpop.permute.xlu0 %10838
        %10840 = vrot.lane.b32.xlu0 %v8725, 4
        %v10841 = vpop.permute.xlu0 %10840
        %10842 = vrot.lane.b32.xlu0 %v8823, 4
        %v10843 = vpop.permute.xlu0 %10842
        %10844 = vrot.lane.b32.xlu0 %v8921, 4
        %v10845 = vpop.permute.xlu0 %10844
        %10846 = vrot.lane.b32.xlu0 %v9019, 4
        %v10847 = vpop.permute.xlu0 %10846
        %10848 = vrot.lane.b32.xlu0 %v9117, 4
        %v10849 = vpop.permute.xlu0 %10848
        %10850 = vrot.lane.b32.xlu0 %v9215, 4
        %v10851 = vpop.permute.xlu0 %10850
        %10852 = vrot.lane.b32.xlu0 %v9313, 4
        %v10853 = vpop.permute.xlu0 %10852
        %10854 = vrot.lane.b32.xlu0 %v9411, 4
        %v10855 = vpop.permute.xlu0 %10854
        %10856 = vrot.lane.b32.xlu0 %v9509, 4
        %v10857 = vpop.permute.xlu0 %10856
        %10858 = vrot.lane.b32.xlu0 %v9607, 4
        %v10859 = vpop.permute.xlu0 %10858
        %10860 = vrot.lane.b32.xlu0 %v9705, 4
        %v10861 = vpop.permute.xlu0 %10860
        %10862 = vrot.lane.b32.xlu0 %v9803, 4
        %v10863 = vpop.permute.xlu0 %10862
        %10864 = vrot.lane.b32.xlu0 %v9901, 4
        %v10865 = vpop.permute.xlu0 %10864
        %10866 = vrot.lane.b32.xlu0 %v9999, 4
        %v10867 = vpop.permute.xlu0 %10866
        %10868 = vrot.lane.b32.xlu0 %v10097, 4
        %v10869 = vpop.permute.xlu0 %10868
        %10870 = vrot.lane.b32.xlu0 %v10195, 4
        %v10871 = vpop.permute.xlu0 %10870
        %10872 = vrot.lane.b32.xlu0 %v10293, 4
        %v10873 = vpop.permute.xlu0 %10872
        %10874 = vrot.lane.b32.xlu0 %v10391, 4
        %v10875 = vpop.permute.xlu0 %10874
        %10876 = vrot.lane.b32.xlu0 %v10489, 4
        %v10877 = vpop.permute.xlu0 %10876
        %10878 = vrot.lane.b32.xlu0 %v10587, 4
        %v10879 = vpop.permute.xlu0 %10878
        %10944 = vrot.lane.b32.xlu0 %v7566, 6
        %v10945 = vpop.permute.xlu0 %10944
        %10946 = vrot.lane.b32.xlu0 %v7664, 6
        %v10947 = vpop.permute.xlu0 %10946
        %10948 = vrot.lane.b32.xlu0 %v7762, 6
        %v10949 = vpop.permute.xlu0 %10948
        %10950 = vrot.lane.b32.xlu0 %v7860, 6
        %v10951 = vpop.permute.xlu0 %10950
        %10952 = vrot.lane.b32.xlu0 %v7958, 6
        %v10953 = vpop.permute.xlu0 %10952
        %10954 = vrot.lane.b32.xlu0 %v8056, 6
        %v10955 = vpop.permute.xlu0 %10954
        %10956 = vrot.lane.b32.xlu0 %v8154, 6
        %v10957 = vpop.permute.xlu0 %10956
        %10958 = vrot.lane.b32.xlu0 %v8252, 6
        %v10959 = vpop.permute.xlu0 %10958
        %10960 = vrot.lane.b32.xlu0 %v8350, 6
        %v10961 = vpop.permute.xlu0 %10960
        %10962 = vrot.lane.b32.xlu0 %v8448, 6
        %v10963 = vpop.permute.xlu0 %10962
        %10964 = vrot.lane.b32.xlu0 %v8546, 6
        %v10965 = vpop.permute.xlu0 %10964
        %10966 = vrot.lane.b32.xlu0 %v8644, 6
        %v10967 = vpop.permute.xlu0 %10966
        %10968 = vrot.lane.b32.xlu0 %v8742, 6
        %v10969 = vpop.permute.xlu0 %10968
        %10970 = vrot.lane.b32.xlu0 %v8840, 6
        %v10971 = vpop.permute.xlu0 %10970
        %10972 = vrot.lane.b32.xlu0 %v8938, 6
        %v10973 = vpop.permute.xlu0 %10972
        %10974 = vrot.lane.b32.xlu0 %v9036, 6
        %v10975 = vpop.permute.xlu0 %10974
        %10976 = vrot.lane.b32.xlu0 %v9134, 6
        %v10977 = vpop.permute.xlu0 %10976
        %10978 = vrot.lane.b32.xlu0 %v9232, 6
        %v10979 = vpop.permute.xlu0 %10978
        %10980 = vrot.lane.b32.xlu0 %v9330, 6
        %v10981 = vpop.permute.xlu0 %10980
        %10982 = vrot.lane.b32.xlu0 %v9428, 6
        %v10983 = vpop.permute.xlu0 %10982
        %10984 = vrot.lane.b32.xlu0 %v9526, 6
        %v10985 = vpop.permute.xlu0 %10984
        %10986 = vrot.lane.b32.xlu0 %v9624, 6
        %v10987 = vpop.permute.xlu0 %10986
        %10988 = vrot.lane.b32.xlu0 %v9722, 6
        %v10989 = vpop.permute.xlu0 %10988
        %10990 = vrot.lane.b32.xlu0 %v9820, 6
        %v10991 = vpop.permute.xlu0 %10990
        %10992 = vrot.lane.b32.xlu0 %v9918, 6
        %v10993 = vpop.permute.xlu0 %10992
        %10994 = vrot.lane.b32.xlu0 %v10016, 6
        %v10995 = vpop.permute.xlu0 %10994
        %10996 = vrot.lane.b32.xlu0 %v10114, 6
        %v10997 = vpop.permute.xlu0 %10996
        %10998 = vrot.lane.b32.xlu0 %v10212, 6
        %v10999 = vpop.permute.xlu0 %10998
        %11000 = vrot.lane.b32.xlu0 %v10310, 6
        %v11001 = vpop.permute.xlu0 %11000
        %11002 = vrot.lane.b32.xlu0 %v10408, 6
        %v11003 = vpop.permute.xlu0 %11002
        %11004 = vrot.lane.b32.xlu0 %v10506, 6
        %v11005 = vpop.permute.xlu0 %11004
        %11006 = vrot.lane.b32.xlu0 %v10604, 6
        %v11007 = vpop.permute.xlu0 %11006
        %11072 = vrot.lane.b32.xlu0 %v7557, 8
        %v11073 = vpop.permute.xlu0 %11072
        %11074 = vrot.lane.b32.xlu0 %v7655, 8
        %v11075 = vpop.permute.xlu0 %11074
        %11076 = vrot.lane.b32.xlu0 %v7753, 8
        %v11077 = vpop.permute.xlu0 %11076
        %11078 = vrot.lane.b32.xlu0 %v7851, 8
        %v11079 = vpop.permute.xlu0 %11078
        %11080 = vrot.lane.b32.xlu0 %v7949, 8
        %v11081 = vpop.permute.xlu0 %11080
        %11082 = vrot.lane.b32.xlu0 %v8047, 8
        %v11083 = vpop.permute.xlu0 %11082
        %11084 = vrot.lane.b32.xlu0 %v8145, 8
        %v11085 = vpop.permute.xlu0 %11084
        %11086 = vrot.lane.b32.xlu0 %v8243, 8
        %v11087 = vpop.permute.xlu0 %11086
        %11088 = vrot.lane.b32.xlu0 %v8341, 8
        %v11089 = vpop.permute.xlu0 %11088
        %11090 = vrot.lane.b32.xlu0 %v8439, 8
        %v11091 = vpop.permute.xlu0 %11090
        %11092 = vrot.lane.b32.xlu0 %v8537, 8
        %v11093 = vpop.permute.xlu0 %11092
        %11094 = vrot.lane.b32.xlu0 %v8635, 8
        %v11095 = vpop.permute.xlu0 %11094
        %11096 = vrot.lane.b32.xlu0 %v8733, 8
        %v11097 = vpop.permute.xlu0 %11096
        %11098 = vrot.lane.b32.xlu0 %v8831, 8
        %v11099 = vpop.permute.xlu0 %11098
        %11100 = vrot.lane.b32.xlu0 %v8929, 8
        %v11101 = vpop.permute.xlu0 %11100
        %11102 = vrot.lane.b32.xlu0 %v9027, 8
        %v11103 = vpop.permute.xlu0 %11102
        %11104 = vrot.lane.b32.xlu0 %v9125, 8
        %v11105 = vpop.permute.xlu0 %11104
        %11106 = vrot.lane.b32.xlu0 %v9223, 8
        %v11107 = vpop.permute.xlu0 %11106
        %11108 = vrot.lane.b32.xlu0 %v9321, 8
        %v11109 = vpop.permute.xlu0 %11108
        %11110 = vrot.lane.b32.xlu0 %v9419, 8
        %v11111 = vpop.permute.xlu0 %11110
        %11112 = vrot.lane.b32.xlu0 %v9517, 8
        %v11113 = vpop.permute.xlu0 %11112
        %11114 = vrot.lane.b32.xlu0 %v9615, 8
        %v11115 = vpop.permute.xlu0 %11114
        %11116 = vrot.lane.b32.xlu0 %v9713, 8
        %v11117 = vpop.permute.xlu0 %11116
        %11118 = vrot.lane.b32.xlu0 %v9811, 8
        %v11119 = vpop.permute.xlu0 %11118
        %11120 = vrot.lane.b32.xlu0 %v9909, 8
        %v11121 = vpop.permute.xlu0 %11120
        %11122 = vrot.lane.b32.xlu0 %v10007, 8
        %v11123 = vpop.permute.xlu0 %11122
        %11124 = vrot.lane.b32.xlu0 %v10105, 8
        %v11125 = vpop.permute.xlu0 %11124
        %11126 = vrot.lane.b32.xlu0 %v10203, 8
        %v11127 = vpop.permute.xlu0 %11126
        %11128 = vrot.lane.b32.xlu0 %v10301, 8
        %v11129 = vpop.permute.xlu0 %11128
        %11130 = vrot.lane.b32.xlu0 %v10399, 8
        %v11131 = vpop.permute.xlu0 %11130
        %11132 = vrot.lane.b32.xlu0 %v10497, 8
        %v11133 = vpop.permute.xlu0 %11132
        %11134 = vrot.lane.b32.xlu0 %v10595, 8
        %v11135 = vpop.permute.xlu0 %11134
        %11200 = vrot.lane.b32.xlu0 %v7567, 10
        %v11201 = vpop.permute.xlu0 %11200
        %11202 = vrot.lane.b32.xlu0 %v7665, 10
        %v11203 = vpop.permute.xlu0 %11202
        %11204 = vrot.lane.b32.xlu0 %v7763, 10
        %v11205 = vpop.permute.xlu0 %11204
        %11206 = vrot.lane.b32.xlu0 %v7861, 10
        %v11207 = vpop.permute.xlu0 %11206
        %11208 = vrot.lane.b32.xlu0 %v7959, 10
        %v11209 = vpop.permute.xlu0 %11208
        %11210 = vrot.lane.b32.xlu0 %v8057, 10
        %v11211 = vpop.permute.xlu0 %11210
        %11212 = vrot.lane.b32.xlu0 %v8155, 10
        %v11213 = vpop.permute.xlu0 %11212
        %11214 = vrot.lane.b32.xlu0 %v8253, 10
        %v11215 = vpop.permute.xlu0 %11214
        %11216 = vrot.lane.b32.xlu0 %v8351, 10
        %v11217 = vpop.permute.xlu0 %11216
        %11218 = vrot.lane.b32.xlu0 %v8449, 10
        %v11219 = vpop.permute.xlu0 %11218
        %11220 = vrot.lane.b32.xlu0 %v8547, 10
        %v11221 = vpop.permute.xlu0 %11220
        %11222 = vrot.lane.b32.xlu0 %v8645, 10
        %v11223 = vpop.permute.xlu0 %11222
        %11224 = vrot.lane.b32.xlu0 %v8743, 10
        %v11225 = vpop.permute.xlu0 %11224
        %11226 = vrot.lane.b32.xlu0 %v8841, 10
        %v11227 = vpop.permute.xlu0 %11226
        %11228 = vrot.lane.b32.xlu0 %v8939, 10
        %v11229 = vpop.permute.xlu0 %11228
        %11230 = vrot.lane.b32.xlu0 %v9037, 10
        %v11231 = vpop.permute.xlu0 %11230
        %11232 = vrot.lane.b32.xlu0 %v9135, 10
        %v11233 = vpop.permute.xlu0 %11232
        %11234 = vrot.lane.b32.xlu0 %v9233, 10
        %v11235 = vpop.permute.xlu0 %11234
        %11236 = vrot.lane.b32.xlu0 %v9331, 10
        %v11237 = vpop.permute.xlu0 %11236
        %11238 = vrot.lane.b32.xlu0 %v9429, 10
        %v11239 = vpop.permute.xlu0 %11238
        %11240 = vrot.lane.b32.xlu0 %v9527, 10
        %v11241 = vpop.permute.xlu0 %11240
        %11242 = vrot.lane.b32.xlu0 %v9625, 10
        %v11243 = vpop.permute.xlu0 %11242
        %11244 = vrot.lane.b32.xlu0 %v9723, 10
        %v11245 = vpop.permute.xlu0 %11244
        %11246 = vrot.lane.b32.xlu0 %v9821, 10
        %v11247 = vpop.permute.xlu0 %11246
        %11248 = vrot.lane.b32.xlu0 %v9919, 10
        %v11249 = vpop.permute.xlu0 %11248
        %11250 = vrot.lane.b32.xlu0 %v10017, 10
        %v11251 = vpop.permute.xlu0 %11250
        %11252 = vrot.lane.b32.xlu0 %v10115, 10
        %v11253 = vpop.permute.xlu0 %11252
        %11254 = vrot.lane.b32.xlu0 %v10213, 10
        %v11255 = vpop.permute.xlu0 %11254
        %11256 = vrot.lane.b32.xlu0 %v10311, 10
        %v11257 = vpop.permute.xlu0 %11256
        %11258 = vrot.lane.b32.xlu0 %v10409, 10
        %v11259 = vpop.permute.xlu0 %11258
        %11260 = vrot.lane.b32.xlu0 %v10507, 10
        %v11261 = vpop.permute.xlu0 %11260
        %11262 = vrot.lane.b32.xlu0 %v10605, 10
        %v11263 = vpop.permute.xlu0 %11262
        %11328 = vrot.lane.b32.xlu0 %v7564, 12
        %v11329 = vpop.permute.xlu0 %11328
        %11330 = vrot.lane.b32.xlu0 %v7662, 12
        %v11331 = vpop.permute.xlu0 %11330
        %11332 = vrot.lane.b32.xlu0 %v7760, 12
        %v11333 = vpop.permute.xlu0 %11332
        %11334 = vrot.lane.b32.xlu0 %v7858, 12
        %v11335 = vpop.permute.xlu0 %11334
        %11336 = vrot.lane.b32.xlu0 %v7956, 12
        %v11337 = vpop.permute.xlu0 %11336
        %11338 = vrot.lane.b32.xlu0 %v8054, 12
        %v11339 = vpop.permute.xlu0 %11338
        %11340 = vrot.lane.b32.xlu0 %v8152, 12
        %v11341 = vpop.permute.xlu0 %11340
        %11342 = vrot.lane.b32.xlu0 %v8250, 12
        %v11343 = vpop.permute.xlu0 %11342
        %11344 = vrot.lane.b32.xlu0 %v8348, 12
        %v11345 = vpop.permute.xlu0 %11344
        %11346 = vrot.lane.b32.xlu0 %v8446, 12
        %v11347 = vpop.permute.xlu0 %11346
        %11348 = vrot.lane.b32.xlu0 %v8544, 12
        %v11349 = vpop.permute.xlu0 %11348
        %11350 = vrot.lane.b32.xlu0 %v8642, 12
        %v11351 = vpop.permute.xlu0 %11350
        %11352 = vrot.lane.b32.xlu0 %v8740, 12
        %v11353 = vpop.permute.xlu0 %11352
        %11354 = vrot.lane.b32.xlu0 %v8838, 12
        %v11355 = vpop.permute.xlu0 %11354
        %11356 = vrot.lane.b32.xlu0 %v8936, 12
        %v11357 = vpop.permute.xlu0 %11356
        %11358 = vrot.lane.b32.xlu0 %v9034, 12
        %v11359 = vpop.permute.xlu0 %11358
        %11360 = vrot.lane.b32.xlu0 %v9132, 12
        %v11361 = vpop.permute.xlu0 %11360
        %11362 = vrot.lane.b32.xlu0 %v9230, 12
        %v11363 = vpop.permute.xlu0 %11362
        %11364 = vrot.lane.b32.xlu0 %v9328, 12
        %v11365 = vpop.permute.xlu0 %11364
        %11366 = vrot.lane.b32.xlu0 %v9426, 12
        %v11367 = vpop.permute.xlu0 %11366
        %11368 = vrot.lane.b32.xlu0 %v9524, 12
        %v11369 = vpop.permute.xlu0 %11368
        %11370 = vrot.lane.b32.xlu0 %v9622, 12
        %v11371 = vpop.permute.xlu0 %11370
        %11372 = vrot.lane.b32.xlu0 %v9720, 12
        %v11373 = vpop.permute.xlu0 %11372
        %11374 = vrot.lane.b32.xlu0 %v9818, 12
        %v11375 = vpop.permute.xlu0 %11374
        %11376 = vrot.lane.b32.xlu0 %v9916, 12
        %v11377 = vpop.permute.xlu0 %11376
        %11378 = vrot.lane.b32.xlu0 %v10014, 12
        %v11379 = vpop.permute.xlu0 %11378
        %11380 = vrot.lane.b32.xlu0 %v10112, 12
        %v11381 = vpop.permute.xlu0 %11380
        %11382 = vrot.lane.b32.xlu0 %v10210, 12
        %v11383 = vpop.permute.xlu0 %11382
        %11384 = vrot.lane.b32.xlu0 %v10308, 12
        %v11385 = vpop.permute.xlu0 %11384
        %11386 = vrot.lane.b32.xlu0 %v10406, 12
        %v11387 = vpop.permute.xlu0 %11386
        %11388 = vrot.lane.b32.xlu0 %v10504, 12
        %v11389 = vpop.permute.xlu0 %11388
        %11390 = vrot.lane.b32.xlu0 %v10602, 12
        %v11391 = vpop.permute.xlu0 %11390
        %11456 = vrot.lane.b32.xlu0 %v7568, 14
        %v11457 = vpop.permute.xlu0 %11456
        %11458 = vrot.lane.b32.xlu0 %v7666, 14
        %v11459 = vpop.permute.xlu0 %11458
        %11460 = vrot.lane.b32.xlu0 %v7764, 14
        %v11461 = vpop.permute.xlu0 %11460
        %11462 = vrot.lane.b32.xlu0 %v7862, 14
        %v11463 = vpop.permute.xlu0 %11462
        %11464 = vrot.lane.b32.xlu0 %v7960, 14
        %v11465 = vpop.permute.xlu0 %11464
        %11466 = vrot.lane.b32.xlu0 %v8058, 14
        %v11467 = vpop.permute.xlu0 %11466
        %11468 = vrot.lane.b32.xlu0 %v8156, 14
        %v11469 = vpop.permute.xlu0 %11468
        %11470 = vrot.lane.b32.xlu0 %v8254, 14
        %v11471 = vpop.permute.xlu0 %11470
        %11472 = vrot.lane.b32.xlu0 %v8352, 14
        %v11473 = vpop.permute.xlu0 %11472
        %11474 = vrot.lane.b32.xlu0 %v8450, 14
        %v11475 = vpop.permute.xlu0 %11474
        %11476 = vrot.lane.b32.xlu0 %v8548, 14
        %v11477 = vpop.permute.xlu0 %11476
        %11478 = vrot.lane.b32.xlu0 %v8646, 14
        %v11479 = vpop.permute.xlu0 %11478
        %11480 = vrot.lane.b32.xlu0 %v8744, 14
        %v11481 = vpop.permute.xlu0 %11480
        %11482 = vrot.lane.b32.xlu0 %v8842, 14
        %v11483 = vpop.permute.xlu0 %11482
        %11484 = vrot.lane.b32.xlu0 %v8940, 14
        %v11485 = vpop.permute.xlu0 %11484
        %11486 = vrot.lane.b32.xlu0 %v9038, 14
        %v11487 = vpop.permute.xlu0 %11486
        %11488 = vrot.lane.b32.xlu0 %v9136, 14
        %v11489 = vpop.permute.xlu0 %11488
        %11490 = vrot.lane.b32.xlu0 %v9234, 14
        %v11491 = vpop.permute.xlu0 %11490
        %11492 = vrot.lane.b32.xlu0 %v9332, 14
        %v11493 = vpop.permute.xlu0 %11492
        %11494 = vrot.lane.b32.xlu0 %v9430, 14
        %v11495 = vpop.permute.xlu0 %11494
        %11496 = vrot.lane.b32.xlu0 %v9528, 14
        %v11497 = vpop.permute.xlu0 %11496
        %11498 = vrot.lane.b32.xlu0 %v9626, 14
        %v11499 = vpop.permute.xlu0 %11498
        %11500 = vrot.lane.b32.xlu0 %v9724, 14
        %v11501 = vpop.permute.xlu0 %11500
        %11502 = vrot.lane.b32.xlu0 %v9822, 14
        %v11503 = vpop.permute.xlu0 %11502
        %11504 = vrot.lane.b32.xlu0 %v9920, 14
        %v11505 = vpop.permute.xlu0 %11504
        %11506 = vrot.lane.b32.xlu0 %v10018, 14
        %v11507 = vpop.permute.xlu0 %11506
        %11508 = vrot.lane.b32.xlu0 %v10116, 14
        %v11509 = vpop.permute.xlu0 %11508
        %11510 = vrot.lane.b32.xlu0 %v10214, 14
        %v11511 = vpop.permute.xlu0 %11510
        %11512 = vrot.lane.b32.xlu0 %v10312, 14
        %v11513 = vpop.permute.xlu0 %11512
        %11514 = vrot.lane.b32.xlu0 %v10410, 14
        %v11515 = vpop.permute.xlu0 %11514
        %11516 = vrot.lane.b32.xlu0 %v10508, 14
        %v11517 = vpop.permute.xlu0 %11516
        %11518 = vrot.lane.b32.xlu0 %v10606, 14
        %v11519 = vpop.permute.xlu0 %11518
        %11584 = vrot.lane.b32.xlu0 %v7591, 16
        %v11585 = vpop.permute.xlu0 %11584
        %11586 = vrot.lane.b32.xlu0 %v7689, 16
        %v11587 = vpop.permute.xlu0 %11586
        %11588 = vrot.lane.b32.xlu0 %v7787, 16
        %v11589 = vpop.permute.xlu0 %11588
        %11590 = vrot.lane.b32.xlu0 %v7885, 16
        %v11591 = vpop.permute.xlu0 %11590
        %11592 = vrot.lane.b32.xlu0 %v7983, 16
        %v11593 = vpop.permute.xlu0 %11592
        %11594 = vrot.lane.b32.xlu0 %v8081, 16
        %v11595 = vpop.permute.xlu0 %11594
        %11596 = vrot.lane.b32.xlu0 %v8179, 16
        %v11597 = vpop.permute.xlu0 %11596
        %11598 = vrot.lane.b32.xlu0 %v8277, 16
        %v11599 = vpop.permute.xlu0 %11598
        %11600 = vrot.lane.b32.xlu0 %v8375, 16
        %v11601 = vpop.permute.xlu0 %11600
        %11602 = vrot.lane.b32.xlu0 %v8473, 16
        %v11603 = vpop.permute.xlu0 %11602
        %11604 = vrot.lane.b32.xlu0 %v8571, 16
        %v11605 = vpop.permute.xlu0 %11604
        %11606 = vrot.lane.b32.xlu0 %v8669, 16
        %v11607 = vpop.permute.xlu0 %11606
        %11608 = vrot.lane.b32.xlu0 %v8767, 16
        %v11609 = vpop.permute.xlu0 %11608
        %11610 = vrot.lane.b32.xlu0 %v8865, 16
        %v11611 = vpop.permute.xlu0 %11610
        %11612 = vrot.lane.b32.xlu0 %v8963, 16
        %v11613 = vpop.permute.xlu0 %11612
        %11614 = vrot.lane.b32.xlu0 %v9061, 16
        %v11615 = vpop.permute.xlu0 %11614
        %11616 = vrot.lane.b32.xlu0 %v9159, 16
        %v11617 = vpop.permute.xlu0 %11616
        %11618 = vrot.lane.b32.xlu0 %v9257, 16
        %v11619 = vpop.permute.xlu0 %11618
        %11620 = vrot.lane.b32.xlu0 %v9355, 16
        %v11621 = vpop.permute.xlu0 %11620
        %11622 = vrot.lane.b32.xlu0 %v9453, 16
        %v11623 = vpop.permute.xlu0 %11622
        %11624 = vrot.lane.b32.xlu0 %v9551, 16
        %v11625 = vpop.permute.xlu0 %11624
        %11626 = vrot.lane.b32.xlu0 %v9649, 16
        %v11627 = vpop.permute.xlu0 %11626
        %11628 = vrot.lane.b32.xlu0 %v9747, 16
        %v11629 = vpop.permute.xlu0 %11628
        %11630 = vrot.lane.b32.xlu0 %v9845, 16
        %v11631 = vpop.permute.xlu0 %11630
        %11632 = vrot.lane.b32.xlu0 %v9943, 16
        %v11633 = vpop.permute.xlu0 %11632
        %11634 = vrot.lane.b32.xlu0 %v10041, 16
        %v11635 = vpop.permute.xlu0 %11634
        %11636 = vrot.lane.b32.xlu0 %v10139, 16
        %v11637 = vpop.permute.xlu0 %11636
        %11638 = vrot.lane.b32.xlu0 %v10237, 16
        %v11639 = vpop.permute.xlu0 %11638
        %11640 = vrot.lane.b32.xlu0 %v10335, 16
        %v11641 = vpop.permute.xlu0 %11640
        %11642 = vrot.lane.b32.xlu0 %v10433, 16
        %v11643 = vpop.permute.xlu0 %11642
        %11644 = vrot.lane.b32.xlu0 %v10531, 16
        %v11645 = vpop.permute.xlu0 %11644
        %11646 = vrot.lane.b32.xlu0 %v10629, 16
        %v11647 = vpop.permute.xlu0 %11646
        %11712 = vrot.lane.b32.xlu0 %v7614, 18
        %v11713 = vpop.permute.xlu0 %11712
        %11714 = vrot.lane.b32.xlu0 %v7712, 18
        %v11715 = vpop.permute.xlu0 %11714
        %11716 = vrot.lane.b32.xlu0 %v7810, 18
        %v11717 = vpop.permute.xlu0 %11716
        %11718 = vrot.lane.b32.xlu0 %v7908, 18
        %v11719 = vpop.permute.xlu0 %11718
        %11720 = vrot.lane.b32.xlu0 %v8006, 18
        %v11721 = vpop.permute.xlu0 %11720
        %11722 = vrot.lane.b32.xlu0 %v8104, 18
        %v11723 = vpop.permute.xlu0 %11722
        %11724 = vrot.lane.b32.xlu0 %v8202, 18
        %v11725 = vpop.permute.xlu0 %11724
        %11726 = vrot.lane.b32.xlu0 %v8300, 18
        %v11727 = vpop.permute.xlu0 %11726
        %11728 = vrot.lane.b32.xlu0 %v8398, 18
        %v11729 = vpop.permute.xlu0 %11728
        %11730 = vrot.lane.b32.xlu0 %v8496, 18
        %v11731 = vpop.permute.xlu0 %11730
        %11732 = vrot.lane.b32.xlu0 %v8594, 18
        %v11733 = vpop.permute.xlu0 %11732
        %11734 = vrot.lane.b32.xlu0 %v8692, 18
        %v11735 = vpop.permute.xlu0 %11734
        %11736 = vrot.lane.b32.xlu0 %v8790, 18
        %v11737 = vpop.permute.xlu0 %11736
        %11738 = vrot.lane.b32.xlu0 %v8888, 18
        %v11739 = vpop.permute.xlu0 %11738
        %11740 = vrot.lane.b32.xlu0 %v8986, 18
        %v11741 = vpop.permute.xlu0 %11740
        %11742 = vrot.lane.b32.xlu0 %v9084, 18
        %v11743 = vpop.permute.xlu0 %11742
        %11744 = vrot.lane.b32.xlu0 %v9182, 18
        %v11745 = vpop.permute.xlu0 %11744
        %11746 = vrot.lane.b32.xlu0 %v9280, 18
        %v11747 = vpop.permute.xlu0 %11746
        %11748 = vrot.lane.b32.xlu0 %v9378, 18
        %v11749 = vpop.permute.xlu0 %11748
        %11750 = vrot.lane.b32.xlu0 %v9476, 18
        %v11751 = vpop.permute.xlu0 %11750
        %11752 = vrot.lane.b32.xlu0 %v9574, 18
        %v11753 = vpop.permute.xlu0 %11752
        %11754 = vrot.lane.b32.xlu0 %v9672, 18
        %v11755 = vpop.permute.xlu0 %11754
        %11756 = vrot.lane.b32.xlu0 %v9770, 18
        %v11757 = vpop.permute.xlu0 %11756
        %11758 = vrot.lane.b32.xlu0 %v9868, 18
        %v11759 = vpop.permute.xlu0 %11758
        %11760 = vrot.lane.b32.xlu0 %v9966, 18
        %v11761 = vpop.permute.xlu0 %11760
        %11762 = vrot.lane.b32.xlu0 %v10064, 18
        %v11763 = vpop.permute.xlu0 %11762
        %11764 = vrot.lane.b32.xlu0 %v10162, 18
        %v11765 = vpop.permute.xlu0 %11764
        %11766 = vrot.lane.b32.xlu0 %v10260, 18
        %v11767 = vpop.permute.xlu0 %11766
        %11768 = vrot.lane.b32.xlu0 %v10358, 18
        %v11769 = vpop.permute.xlu0 %11768
        %11770 = vrot.lane.b32.xlu0 %v10456, 18
        %v11771 = vpop.permute.xlu0 %11770
        %11772 = vrot.lane.b32.xlu0 %v10554, 18
        %v11773 = vpop.permute.xlu0 %11772
        %11774 = vrot.lane.b32.xlu0 %v10652, 18
        %v11775 = vpop.permute.xlu0 %11774
        %11840 = vrot.lane.b32.xlu0 %v7598, 20
        %v11841 = vpop.permute.xlu0 %11840
        %11842 = vrot.lane.b32.xlu0 %v7696, 20
        %v11843 = vpop.permute.xlu0 %11842
        %11844 = vrot.lane.b32.xlu0 %v7794, 20
        %v11845 = vpop.permute.xlu0 %11844
        %11846 = vrot.lane.b32.xlu0 %v7892, 20
        %v11847 = vpop.permute.xlu0 %11846
        %11848 = vrot.lane.b32.xlu0 %v7990, 20
        %v11849 = vpop.permute.xlu0 %11848
        %11850 = vrot.lane.b32.xlu0 %v8088, 20
        %v11851 = vpop.permute.xlu0 %11850
        %11852 = vrot.lane.b32.xlu0 %v8186, 20
        %v11853 = vpop.permute.xlu0 %11852
        %11854 = vrot.lane.b32.xlu0 %v8284, 20
        %v11855 = vpop.permute.xlu0 %11854
        %11856 = vrot.lane.b32.xlu0 %v8382, 20
        %v11857 = vpop.permute.xlu0 %11856
        %11858 = vrot.lane.b32.xlu0 %v8480, 20
        %v11859 = vpop.permute.xlu0 %11858
        %11860 = vrot.lane.b32.xlu0 %v8578, 20
        %v11861 = vpop.permute.xlu0 %11860
        %11862 = vrot.lane.b32.xlu0 %v8676, 20
        %v11863 = vpop.permute.xlu0 %11862
        %11864 = vrot.lane.b32.xlu0 %v8774, 20
        %v11865 = vpop.permute.xlu0 %11864
        %11866 = vrot.lane.b32.xlu0 %v8872, 20
        %v11867 = vpop.permute.xlu0 %11866
        %11868 = vrot.lane.b32.xlu0 %v8970, 20
        %v11869 = vpop.permute.xlu0 %11868
        %11870 = vrot.lane.b32.xlu0 %v9068, 20
        %v11871 = vpop.permute.xlu0 %11870
        %11872 = vrot.lane.b32.xlu0 %v9166, 20
        %v11873 = vpop.permute.xlu0 %11872
        %11874 = vrot.lane.b32.xlu0 %v9264, 20
        %v11875 = vpop.permute.xlu0 %11874
        %11876 = vrot.lane.b32.xlu0 %v9362, 20
        %v11877 = vpop.permute.xlu0 %11876
        %11878 = vrot.lane.b32.xlu0 %v9460, 20
        %v11879 = vpop.permute.xlu0 %11878
        %11880 = vrot.lane.b32.xlu0 %v9558, 20
        %v11881 = vpop.permute.xlu0 %11880
        %11882 = vrot.lane.b32.xlu0 %v9656, 20
        %v11883 = vpop.permute.xlu0 %11882
        %11884 = vrot.lane.b32.xlu0 %v9754, 20
        %v11885 = vpop.permute.xlu0 %11884
        %11886 = vrot.lane.b32.xlu0 %v9852, 20
        %v11887 = vpop.permute.xlu0 %11886
        %11888 = vrot.lane.b32.xlu0 %v9950, 20
        %v11889 = vpop.permute.xlu0 %11888
        %11890 = vrot.lane.b32.xlu0 %v10048, 20
        %v11891 = vpop.permute.xlu0 %11890
        %11892 = vrot.lane.b32.xlu0 %v10146, 20
        %v11893 = vpop.permute.xlu0 %11892
        %11894 = vrot.lane.b32.xlu0 %v10244, 20
        %v11895 = vpop.permute.xlu0 %11894
        %11896 = vrot.lane.b32.xlu0 %v10342, 20
        %v11897 = vpop.permute.xlu0 %11896
        %11898 = vrot.lane.b32.xlu0 %v10440, 20
        %v11899 = vpop.permute.xlu0 %11898
        %11900 = vrot.lane.b32.xlu0 %v10538, 20
        %v11901 = vpop.permute.xlu0 %11900
        %11902 = vrot.lane.b32.xlu0 %v10636, 20
        %v11903 = vpop.permute.xlu0 %11902
        %11968 = vrot.lane.b32.xlu0 %v7615, 22
        %v11969 = vpop.permute.xlu0 %11968
        %11970 = vrot.lane.b32.xlu0 %v7713, 22
        %v11971 = vpop.permute.xlu0 %11970
        %11972 = vrot.lane.b32.xlu0 %v7811, 22
        %v11973 = vpop.permute.xlu0 %11972
        %11974 = vrot.lane.b32.xlu0 %v7909, 22
        %v11975 = vpop.permute.xlu0 %11974
        %11976 = vrot.lane.b32.xlu0 %v8007, 22
        %v11977 = vpop.permute.xlu0 %11976
        %11978 = vrot.lane.b32.xlu0 %v8105, 22
        %v11979 = vpop.permute.xlu0 %11978
        %11980 = vrot.lane.b32.xlu0 %v8203, 22
        %v11981 = vpop.permute.xlu0 %11980
        %11982 = vrot.lane.b32.xlu0 %v8301, 22
        %v11983 = vpop.permute.xlu0 %11982
        %11984 = vrot.lane.b32.xlu0 %v8399, 22
        %v11985 = vpop.permute.xlu0 %11984
        %11986 = vrot.lane.b32.xlu0 %v8497, 22
        %v11987 = vpop.permute.xlu0 %11986
        %11988 = vrot.lane.b32.xlu0 %v8595, 22
        %v11989 = vpop.permute.xlu0 %11988
        %11990 = vrot.lane.b32.xlu0 %v8693, 22
        %v11991 = vpop.permute.xlu0 %11990
        %11992 = vrot.lane.b32.xlu0 %v8791, 22
        %v11993 = vpop.permute.xlu0 %11992
        %11994 = vrot.lane.b32.xlu0 %v8889, 22
        %v11995 = vpop.permute.xlu0 %11994
        %11996 = vrot.lane.b32.xlu0 %v8987, 22
        %v11997 = vpop.permute.xlu0 %11996
        %11998 = vrot.lane.b32.xlu0 %v9085, 22
        %v11999 = vpop.permute.xlu0 %11998
        %12000 = vrot.lane.b32.xlu0 %v9183, 22
        %v12001 = vpop.permute.xlu0 %12000
        %12002 = vrot.lane.b32.xlu0 %v9281, 22
        %v12003 = vpop.permute.xlu0 %12002
        %12004 = vrot.lane.b32.xlu0 %v9379, 22
        %v12005 = vpop.permute.xlu0 %12004
        %12006 = vrot.lane.b32.xlu0 %v9477, 22
        %v12007 = vpop.permute.xlu0 %12006
        %12008 = vrot.lane.b32.xlu0 %v9575, 22
        %v12009 = vpop.permute.xlu0 %12008
        %12010 = vrot.lane.b32.xlu0 %v9673, 22
        %v12011 = vpop.permute.xlu0 %12010
        %12012 = vrot.lane.b32.xlu0 %v9771, 22
        %v12013 = vpop.permute.xlu0 %12012
        %12014 = vrot.lane.b32.xlu0 %v9869, 22
        %v12015 = vpop.permute.xlu0 %12014
        %12016 = vrot.lane.b32.xlu0 %v9967, 22
        %v12017 = vpop.permute.xlu0 %12016
        %12018 = vrot.lane.b32.xlu0 %v10065, 22
        %v12019 = vpop.permute.xlu0 %12018
        %12020 = vrot.lane.b32.xlu0 %v10163, 22
        %v12021 = vpop.permute.xlu0 %12020
        %12022 = vrot.lane.b32.xlu0 %v10261, 22
        %v12023 = vpop.permute.xlu0 %12022
        %12024 = vrot.lane.b32.xlu0 %v10359, 22
        %v12025 = vpop.permute.xlu0 %12024
        %12026 = vrot.lane.b32.xlu0 %v10457, 22
        %v12027 = vpop.permute.xlu0 %12026
        %12028 = vrot.lane.b32.xlu0 %v10555, 22
        %v12029 = vpop.permute.xlu0 %12028
        %12030 = vrot.lane.b32.xlu0 %v10653, 22
        %v12031 = vpop.permute.xlu0 %12030
        %12096 = vrot.lane.b32.xlu0 %v7606, 24
        %v12097 = vpop.permute.xlu0 %12096
        %12098 = vrot.lane.b32.xlu0 %v7704, 24
        %v12099 = vpop.permute.xlu0 %12098
        %12100 = vrot.lane.b32.xlu0 %v7802, 24
        %v12101 = vpop.permute.xlu0 %12100
        %12102 = vrot.lane.b32.xlu0 %v7900, 24
        %v12103 = vpop.permute.xlu0 %12102
        %12104 = vrot.lane.b32.xlu0 %v7998, 24
        %v12105 = vpop.permute.xlu0 %12104
        %12106 = vrot.lane.b32.xlu0 %v8096, 24
        %v12107 = vpop.permute.xlu0 %12106
        %12108 = vrot.lane.b32.xlu0 %v8194, 24
        %v12109 = vpop.permute.xlu0 %12108
        %12110 = vrot.lane.b32.xlu0 %v8292, 24
        %v12111 = vpop.permute.xlu0 %12110
        %12112 = vrot.lane.b32.xlu0 %v8390, 24
        %v12113 = vpop.permute.xlu0 %12112
        %12114 = vrot.lane.b32.xlu0 %v8488, 24
        %v12115 = vpop.permute.xlu0 %12114
        %12116 = vrot.lane.b32.xlu0 %v8586, 24
        %v12117 = vpop.permute.xlu0 %12116
        %12118 = vrot.lane.b32.xlu0 %v8684, 24
        %v12119 = vpop.permute.xlu0 %12118
        %12120 = vrot.lane.b32.xlu0 %v8782, 24
        %v12121 = vpop.permute.xlu0 %12120
        %12122 = vrot.lane.b32.xlu0 %v8880, 24
        %v12123 = vpop.permute.xlu0 %12122
        %12124 = vrot.lane.b32.xlu0 %v8978, 24
        %v12125 = vpop.permute.xlu0 %12124
        %12126 = vrot.lane.b32.xlu0 %v9076, 24
        %v12127 = vpop.permute.xlu0 %12126
        %12128 = vrot.lane.b32.xlu0 %v9174, 24
        %v12129 = vpop.permute.xlu0 %12128
        %12130 = vrot.lane.b32.xlu0 %v9272, 24
        %v12131 = vpop.permute.xlu0 %12130
        %12132 = vrot.lane.b32.xlu0 %v9370, 24
        %v12133 = vpop.permute.xlu0 %12132
        %12134 = vrot.lane.b32.xlu0 %v9468, 24
        %v12135 = vpop.permute.xlu0 %12134
        %12136 = vrot.lane.b32.xlu0 %v9566, 24
        %v12137 = vpop.permute.xlu0 %12136
        %12138 = vrot.lane.b32.xlu0 %v9664, 24
        %v12139 = vpop.permute.xlu0 %12138
        %12140 = vrot.lane.b32.xlu0 %v9762, 24
        %v12141 = vpop.permute.xlu0 %12140
        %12142 = vrot.lane.b32.xlu0 %v9860, 24
        %v12143 = vpop.permute.xlu0 %12142
        %12144 = vrot.lane.b32.xlu0 %v9958, 24
        %v12145 = vpop.permute.xlu0 %12144
        %12146 = vrot.lane.b32.xlu0 %v10056, 24
        %v12147 = vpop.permute.xlu0 %12146
        %12148 = vrot.lane.b32.xlu0 %v10154, 24
        %v12149 = vpop.permute.xlu0 %12148
        %12150 = vrot.lane.b32.xlu0 %v10252, 24
        %v12151 = vpop.permute.xlu0 %12150
        %12152 = vrot.lane.b32.xlu0 %v10350, 24
        %v12153 = vpop.permute.xlu0 %12152
        %12154 = vrot.lane.b32.xlu0 %v10448, 24
        %v12155 = vpop.permute.xlu0 %12154
        %12156 = vrot.lane.b32.xlu0 %v10546, 24
        %v12157 = vpop.permute.xlu0 %12156
        %12158 = vrot.lane.b32.xlu0 %v10644, 24
        %v12159 = vpop.permute.xlu0 %12158
        %12224 = vrot.lane.b32.xlu0 %v7616, 26
        %v12225 = vpop.permute.xlu0 %12224
        %12226 = vrot.lane.b32.xlu0 %v7714, 26
        %v12227 = vpop.permute.xlu0 %12226
        %12228 = vrot.lane.b32.xlu0 %v7812, 26
        %v12229 = vpop.permute.xlu0 %12228
        %12230 = vrot.lane.b32.xlu0 %v7910, 26
        %v12231 = vpop.permute.xlu0 %12230
        %12232 = vrot.lane.b32.xlu0 %v8008, 26
        %v12233 = vpop.permute.xlu0 %12232
        %12234 = vrot.lane.b32.xlu0 %v8106, 26
        %v12235 = vpop.permute.xlu0 %12234
        %12236 = vrot.lane.b32.xlu0 %v8204, 26
        %v12237 = vpop.permute.xlu0 %12236
        %12238 = vrot.lane.b32.xlu0 %v8302, 26
        %v12239 = vpop.permute.xlu0 %12238
        %12240 = vrot.lane.b32.xlu0 %v8400, 26
        %v12241 = vpop.permute.xlu0 %12240
        %12242 = vrot.lane.b32.xlu0 %v8498, 26
        %v12243 = vpop.permute.xlu0 %12242
        %12244 = vrot.lane.b32.xlu0 %v8596, 26
        %v12245 = vpop.permute.xlu0 %12244
        %12246 = vrot.lane.b32.xlu0 %v8694, 26
        %v12247 = vpop.permute.xlu0 %12246
        %12248 = vrot.lane.b32.xlu0 %v8792, 26
        %v12249 = vpop.permute.xlu0 %12248
        %12250 = vrot.lane.b32.xlu0 %v8890, 26
        %v12251 = vpop.permute.xlu0 %12250
        %12252 = vrot.lane.b32.xlu0 %v8988, 26
        %v12253 = vpop.permute.xlu0 %12252
        %12254 = vrot.lane.b32.xlu0 %v9086, 26
        %v12255 = vpop.permute.xlu0 %12254
        %12256 = vrot.lane.b32.xlu0 %v9184, 26
        %v12257 = vpop.permute.xlu0 %12256
        %12258 = vrot.lane.b32.xlu0 %v9282, 26
        %v12259 = vpop.permute.xlu0 %12258
        %12260 = vrot.lane.b32.xlu0 %v9380, 26
        %v12261 = vpop.permute.xlu0 %12260
        %12262 = vrot.lane.b32.xlu0 %v9478, 26
        %v12263 = vpop.permute.xlu0 %12262
        %12264 = vrot.lane.b32.xlu0 %v9576, 26
        %v12265 = vpop.permute.xlu0 %12264
        %12266 = vrot.lane.b32.xlu0 %v9674, 26
        %v12267 = vpop.permute.xlu0 %12266
        %12268 = vrot.lane.b32.xlu0 %v9772, 26
        %v12269 = vpop.permute.xlu0 %12268
        %12270 = vrot.lane.b32.xlu0 %v9870, 26
        %v12271 = vpop.permute.xlu0 %12270
        %12272 = vrot.lane.b32.xlu0 %v9968, 26
        %v12273 = vpop.permute.xlu0 %12272
        %12274 = vrot.lane.b32.xlu0 %v10066, 26
        %v12275 = vpop.permute.xlu0 %12274
        %12276 = vrot.lane.b32.xlu0 %v10164, 26
        %v12277 = vpop.permute.xlu0 %12276
        %12278 = vrot.lane.b32.xlu0 %v10262, 26
        %v12279 = vpop.permute.xlu0 %12278
        %12280 = vrot.lane.b32.xlu0 %v10360, 26
        %v12281 = vpop.permute.xlu0 %12280
        %12282 = vrot.lane.b32.xlu0 %v10458, 26
        %v12283 = vpop.permute.xlu0 %12282
        %12284 = vrot.lane.b32.xlu0 %v10556, 26
        %v12285 = vpop.permute.xlu0 %12284
        %12286 = vrot.lane.b32.xlu0 %v10654, 26
        %v12287 = vpop.permute.xlu0 %12286
        %12352 = vrot.lane.b32.xlu0 %v7613, 28
        %v12353 = vpop.permute.xlu0 %12352
        %12354 = vrot.lane.b32.xlu0 %v7711, 28
        %v12355 = vpop.permute.xlu0 %12354
        %12356 = vrot.lane.b32.xlu0 %v7809, 28
        %v12357 = vpop.permute.xlu0 %12356
        %12358 = vrot.lane.b32.xlu0 %v7907, 28
        %v12359 = vpop.permute.xlu0 %12358
        %12360 = vrot.lane.b32.xlu0 %v8005, 28
        %v12361 = vpop.permute.xlu0 %12360
        %12362 = vrot.lane.b32.xlu0 %v8103, 28
        %v12363 = vpop.permute.xlu0 %12362
        %12364 = vrot.lane.b32.xlu0 %v8201, 28
        %v12365 = vpop.permute.xlu0 %12364
        %12366 = vrot.lane.b32.xlu0 %v8299, 28
        %v12367 = vpop.permute.xlu0 %12366
        %12368 = vrot.lane.b32.xlu0 %v8397, 28
        %v12369 = vpop.permute.xlu0 %12368
        %12370 = vrot.lane.b32.xlu0 %v8495, 28
        %v12371 = vpop.permute.xlu0 %12370
        %12372 = vrot.lane.b32.xlu0 %v8593, 28
        %v12373 = vpop.permute.xlu0 %12372
        %12374 = vrot.lane.b32.xlu0 %v8691, 28
        %v12375 = vpop.permute.xlu0 %12374
        %12376 = vrot.lane.b32.xlu0 %v8789, 28
        %v12377 = vpop.permute.xlu0 %12376
        %12378 = vrot.lane.b32.xlu0 %v8887, 28
        %v12379 = vpop.permute.xlu0 %12378
        %12380 = vrot.lane.b32.xlu0 %v8985, 28
        %v12381 = vpop.permute.xlu0 %12380
        %12382 = vrot.lane.b32.xlu0 %v9083, 28
        %v12383 = vpop.permute.xlu0 %12382
        %12384 = vrot.lane.b32.xlu0 %v9181, 28
        %v12385 = vpop.permute.xlu0 %12384
        %12386 = vrot.lane.b32.xlu0 %v9279, 28
        %v12387 = vpop.permute.xlu0 %12386
        %12388 = vrot.lane.b32.xlu0 %v9377, 28
        %v12389 = vpop.permute.xlu0 %12388
        %12390 = vrot.lane.b32.xlu0 %v9475, 28
        %v12391 = vpop.permute.xlu0 %12390
        %12392 = vrot.lane.b32.xlu0 %v9573, 28
        %v12393 = vpop.permute.xlu0 %12392
        %12394 = vrot.lane.b32.xlu0 %v9671, 28
        %v12395 = vpop.permute.xlu0 %12394
        %12396 = vrot.lane.b32.xlu0 %v9769, 28
        %v12397 = vpop.permute.xlu0 %12396
        %12398 = vrot.lane.b32.xlu0 %v9867, 28
        %v12399 = vpop.permute.xlu0 %12398
        %12400 = vrot.lane.b32.xlu0 %v9965, 28
        %v12401 = vpop.permute.xlu0 %12400
        %12402 = vrot.lane.b32.xlu0 %v10063, 28
        %v12403 = vpop.permute.xlu0 %12402
        %12404 = vrot.lane.b32.xlu0 %v10161, 28
        %v12405 = vpop.permute.xlu0 %12404
        %12406 = vrot.lane.b32.xlu0 %v10259, 28
        %v12407 = vpop.permute.xlu0 %12406
        %12408 = vrot.lane.b32.xlu0 %v10357, 28
        %v12409 = vpop.permute.xlu0 %12408
        %12410 = vrot.lane.b32.xlu0 %v10455, 28
        %v12411 = vpop.permute.xlu0 %12410
        %12412 = vrot.lane.b32.xlu0 %v10553, 28
        %v12413 = vpop.permute.xlu0 %12412
        %12414 = vrot.lane.b32.xlu0 %v10651, 28
        %v12415 = vpop.permute.xlu0 %12414
        %12480 = vrot.lane.b32.xlu0 %v7617, 30
        %v12481 = vpop.permute.xlu0 %12480
        %12482 = vrot.lane.b32.xlu0 %v7715, 30
        %v12483 = vpop.permute.xlu0 %12482
        %12484 = vrot.lane.b32.xlu0 %v7813, 30
        %v12485 = vpop.permute.xlu0 %12484
        %12486 = vrot.lane.b32.xlu0 %v7911, 30
        %v12487 = vpop.permute.xlu0 %12486
        %12488 = vrot.lane.b32.xlu0 %v8009, 30
        %v12489 = vpop.permute.xlu0 %12488
        %12490 = vrot.lane.b32.xlu0 %v8107, 30
        %v12491 = vpop.permute.xlu0 %12490
        %12492 = vrot.lane.b32.xlu0 %v8205, 30
        %v12493 = vpop.permute.xlu0 %12492
        %12494 = vrot.lane.b32.xlu0 %v8303, 30
        %v12495 = vpop.permute.xlu0 %12494
        %12496 = vrot.lane.b32.xlu0 %v8401, 30
        %v12497 = vpop.permute.xlu0 %12496
        %12498 = vrot.lane.b32.xlu0 %v8499, 30
        %v12499 = vpop.permute.xlu0 %12498
        %12500 = vrot.lane.b32.xlu0 %v8597, 30
        %v12501 = vpop.permute.xlu0 %12500
        %12502 = vrot.lane.b32.xlu0 %v8695, 30
        %v12503 = vpop.permute.xlu0 %12502
        %12504 = vrot.lane.b32.xlu0 %v8793, 30
        %v12505 = vpop.permute.xlu0 %12504
        %12506 = vrot.lane.b32.xlu0 %v8891, 30
        %v12507 = vpop.permute.xlu0 %12506
        %12508 = vrot.lane.b32.xlu0 %v8989, 30
        %v12509 = vpop.permute.xlu0 %12508
        %12510 = vrot.lane.b32.xlu0 %v9087, 30
        %v12511 = vpop.permute.xlu0 %12510
        %12512 = vrot.lane.b32.xlu0 %v9185, 30
        %v12513 = vpop.permute.xlu0 %12512
        %12514 = vrot.lane.b32.xlu0 %v9283, 30
        %v12515 = vpop.permute.xlu0 %12514
        %12516 = vrot.lane.b32.xlu0 %v9381, 30
        %v12517 = vpop.permute.xlu0 %12516
        %12518 = vrot.lane.b32.xlu0 %v9479, 30
        %v12519 = vpop.permute.xlu0 %12518
        %12520 = vrot.lane.b32.xlu0 %v9577, 30
        %v12521 = vpop.permute.xlu0 %12520
        %12522 = vrot.lane.b32.xlu0 %v9675, 30
        %v12523 = vpop.permute.xlu0 %12522
        %12524 = vrot.lane.b32.xlu0 %v9773, 30
        %v12525 = vpop.permute.xlu0 %12524
        %12526 = vrot.lane.b32.xlu0 %v9871, 30
        %v12527 = vpop.permute.xlu0 %12526
        %12528 = vrot.lane.b32.xlu0 %v9969, 30
        %v12529 = vpop.permute.xlu0 %12528
        %12530 = vrot.lane.b32.xlu0 %v10067, 30
        %v12531 = vpop.permute.xlu0 %12530
        %12532 = vrot.lane.b32.xlu0 %v10165, 30
        %v12533 = vpop.permute.xlu0 %12532
        %12534 = vrot.lane.b32.xlu0 %v10263, 30
        %v12535 = vpop.permute.xlu0 %12534
        %12536 = vrot.lane.b32.xlu0 %v10361, 30
        %v12537 = vpop.permute.xlu0 %12536
        %12538 = vrot.lane.b32.xlu0 %v10459, 30
        %v12539 = vpop.permute.xlu0 %12538
        %12540 = vrot.lane.b32.xlu0 %v10557, 30
        %v12541 = vpop.permute.xlu0 %12540
        %12542 = vrot.lane.b32.xlu0 %v10655, 30
        %v12543 = vpop.permute.xlu0 %12542
        %v12576 = vsel %vm7025, %v7542, %v10689
        %v12577 = vsel %vm7025, %v7640, %v10691
        %v12578 = vsel %vm7025, %v7738, %v10693
        %v12579 = vsel %vm7025, %v7836, %v10695
        %v12580 = vsel %vm7025, %v7934, %v10697
        %v12581 = vsel %vm7025, %v8032, %v10699
        %v12582 = vsel %vm7025, %v8130, %v10701
        %v12583 = vsel %vm7025, %v8228, %v10703
        %v12584 = vsel %vm7025, %v8326, %v10705
        %v12585 = vsel %vm7025, %v8424, %v10707
        %v12586 = vsel %vm7025, %v8522, %v10709
        %v12587 = vsel %vm7025, %v8620, %v10711
        %v12588 = vsel %vm7025, %v8718, %v10713
        %v12589 = vsel %vm7025, %v8816, %v10715
        %v12590 = vsel %vm7025, %v8914, %v10717
        %v12591 = vsel %vm7025, %v9012, %v10719
        %v12592 = vsel %vm7025, %v9110, %v10721
        %v12593 = vsel %vm7025, %v9208, %v10723
        %v12594 = vsel %vm7025, %v9306, %v10725
        %v12595 = vsel %vm7025, %v9404, %v10727
        %v12596 = vsel %vm7025, %v9502, %v10729
        %v12597 = vsel %vm7025, %v9600, %v10731
        %v12598 = vsel %vm7025, %v9698, %v10733
        %v12599 = vsel %vm7025, %v9796, %v10735
        %v12600 = vsel %vm7025, %v9894, %v10737
        %v12601 = vsel %vm7025, %v9992, %v10739
        %v12602 = vsel %vm7025, %v10090, %v10741
        %v12603 = vsel %vm7025, %v10188, %v10743
        %v12604 = vsel %vm7025, %v10286, %v10745
        %v12605 = vsel %vm7025, %v10384, %v10747
        %v12606 = vsel %vm7025, %v10482, %v10749
        %v12607 = vsel %vm7025, %v10580, %v10751
        %v12608 = vsel %vm7058, %v12576, %v10817
        %v12609 = vsel %vm7058, %v12577, %v10819
        %v12610 = vsel %vm7058, %v12578, %v10821
        %v12611 = vsel %vm7058, %v12579, %v10823
        %v12612 = vsel %vm7058, %v12580, %v10825
        %v12613 = vsel %vm7058, %v12581, %v10827
        %v12614 = vsel %vm7058, %v12582, %v10829
        %v12615 = vsel %vm7058, %v12583, %v10831
        %v12616 = vsel %vm7058, %v12584, %v10833
        %v12617 = vsel %vm7058, %v12585, %v10835
        %v12618 = vsel %vm7058, %v12586, %v10837
        %v12619 = vsel %vm7058, %v12587, %v10839
        %v12620 = vsel %vm7058, %v12588, %v10841
        %v12621 = vsel %vm7058, %v12589, %v10843
        %v12622 = vsel %vm7058, %v12590, %v10845
        %v12623 = vsel %vm7058, %v12591, %v10847
        %v12624 = vsel %vm7058, %v12592, %v10849
        %v12625 = vsel %vm7058, %v12593, %v10851
        %v12626 = vsel %vm7058, %v12594, %v10853
        %v12627 = vsel %vm7058, %v12595, %v10855
        %v12628 = vsel %vm7058, %v12596, %v10857
        %v12629 = vsel %vm7058, %v12597, %v10859
        %v12630 = vsel %vm7058, %v12598, %v10861
        %v12631 = vsel %vm7058, %v12599, %v10863
        %v12632 = vsel %vm7058, %v12600, %v10865
        %v12633 = vsel %vm7058, %v12601, %v10867
        %v12634 = vsel %vm7058, %v12602, %v10869
        %v12635 = vsel %vm7058, %v12603, %v10871
        %v12636 = vsel %vm7058, %v12604, %v10873
        %v12637 = vsel %vm7058, %v12605, %v10875
        %v12638 = vsel %vm7058, %v12606, %v10877
        %v12639 = vsel %vm7058, %v12607, %v10879
        %v12640 = vsel %vm7091, %v12608, %v10945
        %v12641 = vsel %vm7091, %v12609, %v10947
        %v12642 = vsel %vm7091, %v12610, %v10949
        %v12643 = vsel %vm7091, %v12611, %v10951
        %v12644 = vsel %vm7091, %v12612, %v10953
        %v12645 = vsel %vm7091, %v12613, %v10955
        %v12646 = vsel %vm7091, %v12614, %v10957
        %v12647 = vsel %vm7091, %v12615, %v10959
        %v12648 = vsel %vm7091, %v12616, %v10961
        %v12649 = vsel %vm7091, %v12617, %v10963
        %v12650 = vsel %vm7091, %v12618, %v10965
        %v12651 = vsel %vm7091, %v12619, %v10967
        %v12652 = vsel %vm7091, %v12620, %v10969
        %v12653 = vsel %vm7091, %v12621, %v10971
        %v12654 = vsel %vm7091, %v12622, %v10973
        %v12655 = vsel %vm7091, %v12623, %v10975
        %v12656 = vsel %vm7091, %v12624, %v10977
        %v12657 = vsel %vm7091, %v12625, %v10979
        %v12658 = vsel %vm7091, %v12626, %v10981
        %v12659 = vsel %vm7091, %v12627, %v10983
        %v12660 = vsel %vm7091, %v12628, %v10985
        %v12661 = vsel %vm7091, %v12629, %v10987
        %v12662 = vsel %vm7091, %v12630, %v10989
        %v12663 = vsel %vm7091, %v12631, %v10991
        %v12664 = vsel %vm7091, %v12632, %v10993
        %v12665 = vsel %vm7091, %v12633, %v10995
        %v12666 = vsel %vm7091, %v12634, %v10997
        %v12667 = vsel %vm7091, %v12635, %v10999
        %v12668 = vsel %vm7091, %v12636, %v11001
        %v12669 = vsel %vm7091, %v12637, %v11003
        %v12670 = vsel %vm7091, %v12638, %v11005
        %v12671 = vsel %vm7091, %v12639, %v11007
        %v12672 = vsel %vm7124, %v12640, %v11073
        %v12673 = vsel %vm7124, %v12641, %v11075
        %v12674 = vsel %vm7124, %v12642, %v11077
        %v12675 = vsel %vm7124, %v12643, %v11079
        %v12676 = vsel %vm7124, %v12644, %v11081
        %v12677 = vsel %vm7124, %v12645, %v11083
        %v12678 = vsel %vm7124, %v12646, %v11085
        %v12679 = vsel %vm7124, %v12647, %v11087
        %v12680 = vsel %vm7124, %v12648, %v11089
        %v12681 = vsel %vm7124, %v12649, %v11091
        %v12682 = vsel %vm7124, %v12650, %v11093
        %v12683 = vsel %vm7124, %v12651, %v11095
        %v12684 = vsel %vm7124, %v12652, %v11097
        %v12685 = vsel %vm7124, %v12653, %v11099
        %v12686 = vsel %vm7124, %v12654, %v11101
        %v12687 = vsel %vm7124, %v12655, %v11103
        %v12688 = vsel %vm7124, %v12656, %v11105
        %v12689 = vsel %vm7124, %v12657, %v11107
        %v12690 = vsel %vm7124, %v12658, %v11109
        %v12691 = vsel %vm7124, %v12659, %v11111
        %v12692 = vsel %vm7124, %v12660, %v11113
        %v12693 = vsel %vm7124, %v12661, %v11115
        %v12694 = vsel %vm7124, %v12662, %v11117
        %v12695 = vsel %vm7124, %v12663, %v11119
        %v12696 = vsel %vm7124, %v12664, %v11121
        %v12697 = vsel %vm7124, %v12665, %v11123
        %v12698 = vsel %vm7124, %v12666, %v11125
        %v12699 = vsel %vm7124, %v12667, %v11127
        %v12700 = vsel %vm7124, %v12668, %v11129
        %v12701 = vsel %vm7124, %v12669, %v11131
        %v12702 = vsel %vm7124, %v12670, %v11133
        %v12703 = vsel %vm7124, %v12671, %v11135
        %v12704 = vsel %vm7157, %v12672, %v11201
        %v12705 = vsel %vm7157, %v12673, %v11203
        %v12706 = vsel %vm7157, %v12674, %v11205
        %v12707 = vsel %vm7157, %v12675, %v11207
        %v12708 = vsel %vm7157, %v12676, %v11209
        %v12709 = vsel %vm7157, %v12677, %v11211
        %v12710 = vsel %vm7157, %v12678, %v11213
        %v12711 = vsel %vm7157, %v12679, %v11215
        %v12712 = vsel %vm7157, %v12680, %v11217
        %v12713 = vsel %vm7157, %v12681, %v11219
        %v12714 = vsel %vm7157, %v12682, %v11221
        %v12715 = vsel %vm7157, %v12683, %v11223
        %v12716 = vsel %vm7157, %v12684, %v11225
        %v12717 = vsel %vm7157, %v12685, %v11227
        %v12718 = vsel %vm7157, %v12686, %v11229
        %v12719 = vsel %vm7157, %v12687, %v11231
        %v12720 = vsel %vm7157, %v12688, %v11233
        %v12721 = vsel %vm7157, %v12689, %v11235
        %v12722 = vsel %vm7157, %v12690, %v11237
        %v12723 = vsel %vm7157, %v12691, %v11239
        %v12724 = vsel %vm7157, %v12692, %v11241
        %v12725 = vsel %vm7157, %v12693, %v11243
        %v12726 = vsel %vm7157, %v12694, %v11245
        %v12727 = vsel %vm7157, %v12695, %v11247
        %v12728 = vsel %vm7157, %v12696, %v11249
        %v12729 = vsel %vm7157, %v12697, %v11251
        %v12730 = vsel %vm7157, %v12698, %v11253
        %v12731 = vsel %vm7157, %v12699, %v11255
        %v12732 = vsel %vm7157, %v12700, %v11257
        %v12733 = vsel %vm7157, %v12701, %v11259
        %v12734 = vsel %vm7157, %v12702, %v11261
        %v12735 = vsel %vm7157, %v12703, %v11263
        %v12736 = vsel %vm7190, %v12704, %v11329
        %v12737 = vsel %vm7190, %v12705, %v11331
        %v12738 = vsel %vm7190, %v12706, %v11333
        %v12739 = vsel %vm7190, %v12707, %v11335
        %v12740 = vsel %vm7190, %v12708, %v11337
        %v12741 = vsel %vm7190, %v12709, %v11339
        %v12742 = vsel %vm7190, %v12710, %v11341
        %v12743 = vsel %vm7190, %v12711, %v11343
        %v12744 = vsel %vm7190, %v12712, %v11345
        %v12745 = vsel %vm7190, %v12713, %v11347
        %v12746 = vsel %vm7190, %v12714, %v11349
        %v12747 = vsel %vm7190, %v12715, %v11351
        %v12748 = vsel %vm7190, %v12716, %v11353
        %v12749 = vsel %vm7190, %v12717, %v11355
        %v12750 = vsel %vm7190, %v12718, %v11357
        %v12751 = vsel %vm7190, %v12719, %v11359
        %v12752 = vsel %vm7190, %v12720, %v11361
        %v12753 = vsel %vm7190, %v12721, %v11363
        %v12754 = vsel %vm7190, %v12722, %v11365
        %v12755 = vsel %vm7190, %v12723, %v11367
        %v12756 = vsel %vm7190, %v12724, %v11369
        %v12757 = vsel %vm7190, %v12725, %v11371
        %v12758 = vsel %vm7190, %v12726, %v11373
        %v12759 = vsel %vm7190, %v12727, %v11375
        %v12760 = vsel %vm7190, %v12728, %v11377
        %v12761 = vsel %vm7190, %v12729, %v11379
        %v12762 = vsel %vm7190, %v12730, %v11381
        %v12763 = vsel %vm7190, %v12731, %v11383
        %v12764 = vsel %vm7190, %v12732, %v11385
        %v12765 = vsel %vm7190, %v12733, %v11387
        %v12766 = vsel %vm7190, %v12734, %v11389
        %v12767 = vsel %vm7190, %v12735, %v11391
        %v12768 = vsel %vm7223, %v12736, %v11457
        %v12769 = vsel %vm7223, %v12737, %v11459
        %v12770 = vsel %vm7223, %v12738, %v11461
        %v12771 = vsel %vm7223, %v12739, %v11463
        %v12772 = vsel %vm7223, %v12740, %v11465
        %v12773 = vsel %vm7223, %v12741, %v11467
        %v12774 = vsel %vm7223, %v12742, %v11469
        %v12775 = vsel %vm7223, %v12743, %v11471
        %v12776 = vsel %vm7223, %v12744, %v11473
        %v12777 = vsel %vm7223, %v12745, %v11475
        %v12778 = vsel %vm7223, %v12746, %v11477
        %v12779 = vsel %vm7223, %v12747, %v11479
        %v12780 = vsel %vm7223, %v12748, %v11481
        %v12781 = vsel %vm7223, %v12749, %v11483
        %v12782 = vsel %vm7223, %v12750, %v11485
        %v12783 = vsel %vm7223, %v12751, %v11487
        %v12784 = vsel %vm7223, %v12752, %v11489
        %v12785 = vsel %vm7223, %v12753, %v11491
        %v12786 = vsel %vm7223, %v12754, %v11493
        %v12787 = vsel %vm7223, %v12755, %v11495
        %v12788 = vsel %vm7223, %v12756, %v11497
        %v12789 = vsel %vm7223, %v12757, %v11499
        %v12790 = vsel %vm7223, %v12758, %v11501
        %v12791 = vsel %vm7223, %v12759, %v11503
        %v12792 = vsel %vm7223, %v12760, %v11505
        %v12793 = vsel %vm7223, %v12761, %v11507
        %v12794 = vsel %vm7223, %v12762, %v11509
        %v12795 = vsel %vm7223, %v12763, %v11511
        %v12796 = vsel %vm7223, %v12764, %v11513
        %v12797 = vsel %vm7223, %v12765, %v11515
        %v12798 = vsel %vm7223, %v12766, %v11517
        %v12799 = vsel %vm7223, %v12767, %v11519
        %v12800 = vsel %vm7256, %v12768, %v11585
        %v12801 = vsel %vm7256, %v12769, %v11587
        %v12802 = vsel %vm7256, %v12770, %v11589
        %v12803 = vsel %vm7256, %v12771, %v11591
        %v12804 = vsel %vm7256, %v12772, %v11593
        %v12805 = vsel %vm7256, %v12773, %v11595
        %v12806 = vsel %vm7256, %v12774, %v11597
        %v12807 = vsel %vm7256, %v12775, %v11599
        %v12808 = vsel %vm7256, %v12776, %v11601
        %v12809 = vsel %vm7256, %v12777, %v11603
        %v12810 = vsel %vm7256, %v12778, %v11605
        %v12811 = vsel %vm7256, %v12779, %v11607
        %v12812 = vsel %vm7256, %v12780, %v11609
        %v12813 = vsel %vm7256, %v12781, %v11611
        %v12814 = vsel %vm7256, %v12782, %v11613
        %v12815 = vsel %vm7256, %v12783, %v11615
        %v12816 = vsel %vm7256, %v12784, %v11617
        %v12817 = vsel %vm7256, %v12785, %v11619
        %v12818 = vsel %vm7256, %v12786, %v11621
        %v12819 = vsel %vm7256, %v12787, %v11623
        %v12820 = vsel %vm7256, %v12788, %v11625
        %v12821 = vsel %vm7256, %v12789, %v11627
        %v12822 = vsel %vm7256, %v12790, %v11629
        %v12823 = vsel %vm7256, %v12791, %v11631
        %v12824 = vsel %vm7256, %v12792, %v11633
        %v12825 = vsel %vm7256, %v12793, %v11635
        %v12826 = vsel %vm7256, %v12794, %v11637
        %v12827 = vsel %vm7256, %v12795, %v11639
        %v12828 = vsel %vm7256, %v12796, %v11641
        %v12829 = vsel %vm7256, %v12797, %v11643
        %v12830 = vsel %vm7256, %v12798, %v11645
        %v12831 = vsel %vm7256, %v12799, %v11647
        %v12832 = vsel %vm7289, %v12800, %v11713
        %v12833 = vsel %vm7289, %v12801, %v11715
        %v12834 = vsel %vm7289, %v12802, %v11717
        %v12835 = vsel %vm7289, %v12803, %v11719
        %v12836 = vsel %vm7289, %v12804, %v11721
        %v12837 = vsel %vm7289, %v12805, %v11723
        %v12838 = vsel %vm7289, %v12806, %v11725
        %v12839 = vsel %vm7289, %v12807, %v11727
        %v12840 = vsel %vm7289, %v12808, %v11729
        %v12841 = vsel %vm7289, %v12809, %v11731
        %v12842 = vsel %vm7289, %v12810, %v11733
        %v12843 = vsel %vm7289, %v12811, %v11735
        %v12844 = vsel %vm7289, %v12812, %v11737
        %v12845 = vsel %vm7289, %v12813, %v11739
        %v12846 = vsel %vm7289, %v12814, %v11741
        %v12847 = vsel %vm7289, %v12815, %v11743
        %v12848 = vsel %vm7289, %v12816, %v11745
        %v12849 = vsel %vm7289, %v12817, %v11747
        %v12850 = vsel %vm7289, %v12818, %v11749
        %v12851 = vsel %vm7289, %v12819, %v11751
        %v12852 = vsel %vm7289, %v12820, %v11753
        %v12853 = vsel %vm7289, %v12821, %v11755
        %v12854 = vsel %vm7289, %v12822, %v11757
        %v12855 = vsel %vm7289, %v12823, %v11759
        %v12856 = vsel %vm7289, %v12824, %v11761
        %v12857 = vsel %vm7289, %v12825, %v11763
        %v12858 = vsel %vm7289, %v12826, %v11765
        %v12859 = vsel %vm7289, %v12827, %v11767
        %v12860 = vsel %vm7289, %v12828, %v11769
        %v12861 = vsel %vm7289, %v12829, %v11771
        %v12862 = vsel %vm7289, %v12830, %v11773
        %v12863 = vsel %vm7289, %v12831, %v11775
        %v12864 = vsel %vm7322, %v12832, %v11841
        %v12865 = vsel %vm7322, %v12833, %v11843
        %v12866 = vsel %vm7322, %v12834, %v11845
        %v12867 = vsel %vm7322, %v12835, %v11847
        %v12868 = vsel %vm7322, %v12836, %v11849
        %v12869 = vsel %vm7322, %v12837, %v11851
        %v12870 = vsel %vm7322, %v12838, %v11853
        %v12871 = vsel %vm7322, %v12839, %v11855
        %v12872 = vsel %vm7322, %v12840, %v11857
        %v12873 = vsel %vm7322, %v12841, %v11859
        %v12874 = vsel %vm7322, %v12842, %v11861
        %v12875 = vsel %vm7322, %v12843, %v11863
        %v12876 = vsel %vm7322, %v12844, %v11865
        %v12877 = vsel %vm7322, %v12845, %v11867
        %v12878 = vsel %vm7322, %v12846, %v11869
        %v12879 = vsel %vm7322, %v12847, %v11871
        %v12880 = vsel %vm7322, %v12848, %v11873
        %v12881 = vsel %vm7322, %v12849, %v11875
        %v12882 = vsel %vm7322, %v12850, %v11877
        %v12883 = vsel %vm7322, %v12851, %v11879
        %v12884 = vsel %vm7322, %v12852, %v11881
        %v12885 = vsel %vm7322, %v12853, %v11883
        %v12886 = vsel %vm7322, %v12854, %v11885
        %v12887 = vsel %vm7322, %v12855, %v11887
        %v12888 = vsel %vm7322, %v12856, %v11889
        %v12889 = vsel %vm7322, %v12857, %v11891
        %v12890 = vsel %vm7322, %v12858, %v11893
        %v12891 = vsel %vm7322, %v12859, %v11895
        %v12892 = vsel %vm7322, %v12860, %v11897
        %v12893 = vsel %vm7322, %v12861, %v11899
        %v12894 = vsel %vm7322, %v12862, %v11901
        %v12895 = vsel %vm7322, %v12863, %v11903
        %v12896 = vsel %vm7355, %v12864, %v11969
        %v12897 = vsel %vm7355, %v12865, %v11971
        %v12898 = vsel %vm7355, %v12866, %v11973
        %v12899 = vsel %vm7355, %v12867, %v11975
        %v12900 = vsel %vm7355, %v12868, %v11977
        %v12901 = vsel %vm7355, %v12869, %v11979
        %v12902 = vsel %vm7355, %v12870, %v11981
        %v12903 = vsel %vm7355, %v12871, %v11983
        %v12904 = vsel %vm7355, %v12872, %v11985
        %v12905 = vsel %vm7355, %v12873, %v11987
        %v12906 = vsel %vm7355, %v12874, %v11989
        %v12907 = vsel %vm7355, %v12875, %v11991
        %v12908 = vsel %vm7355, %v12876, %v11993
        %v12909 = vsel %vm7355, %v12877, %v11995
        %v12910 = vsel %vm7355, %v12878, %v11997
        %v12911 = vsel %vm7355, %v12879, %v11999
        %v12912 = vsel %vm7355, %v12880, %v12001
        %v12913 = vsel %vm7355, %v12881, %v12003
        %v12914 = vsel %vm7355, %v12882, %v12005
        %v12915 = vsel %vm7355, %v12883, %v12007
        %v12916 = vsel %vm7355, %v12884, %v12009
        %v12917 = vsel %vm7355, %v12885, %v12011
        %v12918 = vsel %vm7355, %v12886, %v12013
        %v12919 = vsel %vm7355, %v12887, %v12015
        %v12920 = vsel %vm7355, %v12888, %v12017
        %v12921 = vsel %vm7355, %v12889, %v12019
        %v12922 = vsel %vm7355, %v12890, %v12021
        %v12923 = vsel %vm7355, %v12891, %v12023
        %v12924 = vsel %vm7355, %v12892, %v12025
        %v12925 = vsel %vm7355, %v12893, %v12027
        %v12926 = vsel %vm7355, %v12894, %v12029
        %v12927 = vsel %vm7355, %v12895, %v12031
        %v12928 = vsel %vm7388, %v12896, %v12097
        %v12929 = vsel %vm7388, %v12897, %v12099
        %v12930 = vsel %vm7388, %v12898, %v12101
        %v12931 = vsel %vm7388, %v12899, %v12103
        %v12932 = vsel %vm7388, %v12900, %v12105
        %v12933 = vsel %vm7388, %v12901, %v12107
        %v12934 = vsel %vm7388, %v12902, %v12109
        %v12935 = vsel %vm7388, %v12903, %v12111
        %v12936 = vsel %vm7388, %v12904, %v12113
        %v12937 = vsel %vm7388, %v12905, %v12115
        %v12938 = vsel %vm7388, %v12906, %v12117
        %v12939 = vsel %vm7388, %v12907, %v12119
        %v12940 = vsel %vm7388, %v12908, %v12121
        %v12941 = vsel %vm7388, %v12909, %v12123
        %v12942 = vsel %vm7388, %v12910, %v12125
        %v12943 = vsel %vm7388, %v12911, %v12127
        %v12944 = vsel %vm7388, %v12912, %v12129
        %v12945 = vsel %vm7388, %v12913, %v12131
        %v12946 = vsel %vm7388, %v12914, %v12133
        %v12947 = vsel %vm7388, %v12915, %v12135
        %v12948 = vsel %vm7388, %v12916, %v12137
        %v12949 = vsel %vm7388, %v12917, %v12139
        %v12950 = vsel %vm7388, %v12918, %v12141
        %v12951 = vsel %vm7388, %v12919, %v12143
        %v12952 = vsel %vm7388, %v12920, %v12145
        %v12953 = vsel %vm7388, %v12921, %v12147
        %v12954 = vsel %vm7388, %v12922, %v12149
        %v12955 = vsel %vm7388, %v12923, %v12151
        %v12956 = vsel %vm7388, %v12924, %v12153
        %v12957 = vsel %vm7388, %v12925, %v12155
        %v12958 = vsel %vm7388, %v12926, %v12157
        %v12959 = vsel %vm7388, %v12927, %v12159
        %v12960 = vsel %vm7421, %v12928, %v12225
        %v12961 = vsel %vm7421, %v12929, %v12227
        %v12962 = vsel %vm7421, %v12930, %v12229
        %v12963 = vsel %vm7421, %v12931, %v12231
        %v12964 = vsel %vm7421, %v12932, %v12233
        %v12965 = vsel %vm7421, %v12933, %v12235
        %v12966 = vsel %vm7421, %v12934, %v12237
        %v12967 = vsel %vm7421, %v12935, %v12239
        %v12968 = vsel %vm7421, %v12936, %v12241
        %v12969 = vsel %vm7421, %v12937, %v12243
        %v12970 = vsel %vm7421, %v12938, %v12245
        %v12971 = vsel %vm7421, %v12939, %v12247
        %v12972 = vsel %vm7421, %v12940, %v12249
        %v12973 = vsel %vm7421, %v12941, %v12251
        %v12974 = vsel %vm7421, %v12942, %v12253
        %v12975 = vsel %vm7421, %v12943, %v12255
        %v12976 = vsel %vm7421, %v12944, %v12257
        %v12977 = vsel %vm7421, %v12945, %v12259
        %v12978 = vsel %vm7421, %v12946, %v12261
        %v12979 = vsel %vm7421, %v12947, %v12263
        %v12980 = vsel %vm7421, %v12948, %v12265
        %v12981 = vsel %vm7421, %v12949, %v12267
        %v12982 = vsel %vm7421, %v12950, %v12269
        %v12983 = vsel %vm7421, %v12951, %v12271
        %v12984 = vsel %vm7421, %v12952, %v12273
        %v12985 = vsel %vm7421, %v12953, %v12275
        %v12986 = vsel %vm7421, %v12954, %v12277
        %v12987 = vsel %vm7421, %v12955, %v12279
        %v12988 = vsel %vm7421, %v12956, %v12281
        %v12989 = vsel %vm7421, %v12957, %v12283
        %v12990 = vsel %vm7421, %v12958, %v12285
        %v12991 = vsel %vm7421, %v12959, %v12287
        %v12992 = vsel %vm7454, %v12960, %v12353
        %v12993 = vsel %vm7454, %v12961, %v12355
        %v12994 = vsel %vm7454, %v12962, %v12357
        %v12995 = vsel %vm7454, %v12963, %v12359
        %v12996 = vsel %vm7454, %v12964, %v12361
        %v12997 = vsel %vm7454, %v12965, %v12363
        %v12998 = vsel %vm7454, %v12966, %v12365
        %v12999 = vsel %vm7454, %v12967, %v12367
        %v13000 = vsel %vm7454, %v12968, %v12369
        %v13001 = vsel %vm7454, %v12969, %v12371
        %v13002 = vsel %vm7454, %v12970, %v12373
        %v13003 = vsel %vm7454, %v12971, %v12375
        %v13004 = vsel %vm7454, %v12972, %v12377
        %v13005 = vsel %vm7454, %v12973, %v12379
        %v13006 = vsel %vm7454, %v12974, %v12381
        %v13007 = vsel %vm7454, %v12975, %v12383
        %v13008 = vsel %vm7454, %v12976, %v12385
        %v13009 = vsel %vm7454, %v12977, %v12387
        %v13010 = vsel %vm7454, %v12978, %v12389
        %v13011 = vsel %vm7454, %v12979, %v12391
        %v13012 = vsel %vm7454, %v12980, %v12393
        %v13013 = vsel %vm7454, %v12981, %v12395
        %v13014 = vsel %vm7454, %v12982, %v12397
        %v13015 = vsel %vm7454, %v12983, %v12399
        %v13016 = vsel %vm7454, %v12984, %v12401
        %v13017 = vsel %vm7454, %v12985, %v12403
        %v13018 = vsel %vm7454, %v12986, %v12405
        %v13019 = vsel %vm7454, %v12987, %v12407
        %v13020 = vsel %vm7454, %v12988, %v12409
        %v13021 = vsel %vm7454, %v12989, %v12411
        %v13022 = vsel %vm7454, %v12990, %v12413
        %v13023 = vsel %vm7454, %v12991, %v12415
        %v13024 = vsel %vm7487, %v12992, %v12481
        %v13025 = vsel %vm7487, %v12993, %v12483
        %v13026 = vsel %vm7487, %v12994, %v12485
        %v13027 = vsel %vm7487, %v12995, %v12487
        %v13028 = vsel %vm7487, %v12996, %v12489
        %v13029 = vsel %vm7487, %v12997, %v12491
        %v13030 = vsel %vm7487, %v12998, %v12493
        %v13031 = vsel %vm7487, %v12999, %v12495
        %v13032 = vsel %vm7487, %v13000, %v12497
        %v13033 = vsel %vm7487, %v13001, %v12499
        %v13034 = vsel %vm7487, %v13002, %v12501
        %v13035 = vsel %vm7487, %v13003, %v12503
        %v13036 = vsel %vm7487, %v13004, %v12505
        %v13037 = vsel %vm7487, %v13005, %v12507
        %v13038 = vsel %vm7487, %v13006, %v12509
        %v13039 = vsel %vm7487, %v13007, %v12511
        %v13040 = vsel %vm7487, %v13008, %v12513
        %v13041 = vsel %vm7487, %v13009, %v12515
        %v13042 = vsel %vm7487, %v13010, %v12517
        %v13043 = vsel %vm7487, %v13011, %v12519
        %v13044 = vsel %vm7487, %v13012, %v12521
        %v13045 = vsel %vm7487, %v13013, %v12523
        %v13046 = vsel %vm7487, %v13014, %v12525
        %v13047 = vsel %vm7487, %v13015, %v12527
        %v13048 = vsel %vm7487, %v13016, %v12529
        %v13049 = vsel %vm7487, %v13017, %v12531
        %v13050 = vsel %vm7487, %v13018, %v12533
        %v13051 = vsel %vm7487, %v13019, %v12535
        %v13052 = vsel %vm7487, %v13020, %v12537
        %v13053 = vsel %vm7487, %v13021, %v12539
        %v13054 = vsel %vm7487, %v13022, %v12541
        %v13055 = vsel %vm7487, %v13023, %v12543
        %v13088 = vrot.slane %v13024, 7
        %v13089 = vrot.slane %v13025, 7
        %v13090 = vrot.slane %v13026, 7
        %v13091 = vrot.slane %v13027, 7
        %v13092 = vrot.slane %v13028, 7
        %v13093 = vrot.slane %v13029, 7
        %v13094 = vrot.slane %v13030, 7
        %v13095 = vrot.slane %v13031, 7
        %v13096 = vrot.slane %v13032, 7
        %v13097 = vrot.slane %v13033, 7
        %v13098 = vrot.slane %v13034, 7
        %v13099 = vrot.slane %v13035, 7
        %v13100 = vrot.slane %v13036, 7
        %v13101 = vrot.slane %v13037, 7
        %v13102 = vrot.slane %v13038, 7
        %v13103 = vrot.slane %v13039, 7
        %v13104 = vrot.slane %v13040, 7
        %v13105 = vrot.slane %v13041, 7
        %v13106 = vrot.slane %v13042, 7
        %v13107 = vrot.slane %v13043, 7
        %v13108 = vrot.slane %v13044, 7
        %v13109 = vrot.slane %v13045, 7
        %v13110 = vrot.slane %v13046, 7
        %v13111 = vrot.slane %v13047, 7
        %v13112 = vrot.slane %v13048, 7
        %v13113 = vrot.slane %v13049, 7
        %v13114 = vrot.slane %v13050, 7
        %v13115 = vrot.slane %v13051, 7
        %v13116 = vrot.slane %v13052, 7
        %v13117 = vrot.slane %v13053, 7
        %v13118 = vrot.slane %v13054, 7
        %v13119 = vrot.slane %v13055, 7
        %vm13152 = vcmask 1040384
        %v13153 = vsel %vm13152, %v7488, %v13088
        %v13154 = vsel %vm13152, %v7489, %v13089
        %v13155 = vsel %vm13152, %v7490, %v13090
        %v13156 = vsel %vm13152, %v7491, %v13091
        %v13157 = vsel %vm13152, %v7492, %v13092
        %v13158 = vsel %vm13152, %v7493, %v13093
        %v13159 = vsel %vm13152, %v7494, %v13094
        %v13160 = vsel %vm13152, %v7495, %v13095
        %v13161 = vsel %vm13152, %v7496, %v13096
        %v13162 = vsel %vm13152, %v7497, %v13097
        %v13163 = vsel %vm13152, %v7498, %v13098
        %v13164 = vsel %vm13152, %v7499, %v13099
        %v13165 = vsel %vm13152, %v7500, %v13100
        %v13166 = vsel %vm13152, %v7501, %v13101
        %v13167 = vsel %vm13152, %v7502, %v13102
        %v13168 = vsel %vm13152, %v7503, %v13103
        %v13169 = vsel %vm13152, %v7504, %v13104
        %v13170 = vsel %vm13152, %v7505, %v13105
        %v13171 = vsel %vm13152, %v7506, %v13106
        %v13172 = vsel %vm13152, %v7507, %v13107
        %v13173 = vsel %vm13152, %v7508, %v13108
        %v13174 = vsel %vm13152, %v7509, %v13109
        %v13175 = vsel %vm13152, %v7510, %v13110
        %v13176 = vsel %vm13152, %v7511, %v13111
        %v13177 = vsel %vm13152, %v7512, %v13112
        %v13178 = vsel %vm13152, %v7513, %v13113
        %v13179 = vsel %vm13152, %v7514, %v13114
        %v13180 = vsel %vm13152, %v7515, %v13115
        %v13181 = vsel %vm13152, %v7516, %v13116
        %v13182 = vsel %vm13152, %v7517, %v13117
        %v13183 = vsel %vm13152, %v7518, %v13118
        %v13184 = vsel %vm13152, %v7519, %v13119
        %v13185 = vld [vmem:[%s238] sm:$0xff]
        %v13186 = vld [vmem:[%s238 + $0x8] sm:$0xff]
        %v13187 = vld [vmem:[%s238 + $0x10] sm:$0xff]
        %v13188 = vld [vmem:[%s238 + $0x18] sm:$0xff]
        %v13189 = vld [vmem:[%s238 + $0x20] sm:$0xff]
        %v13190 = vld [vmem:[%s238 + $0x28] sm:$0xff]
        %v13191 = vld [vmem:[%s238 + $0x30] sm:$0xff]
        %v13192 = vld [vmem:[%s238 + $0x38] sm:$0xff]
        %v13201 = vcombine.high %v13185, %v13185
        %v13203 = vunpack.c.l.s4 1983009808
        %v13204 = vunpack.c.0.s8 %v13203
        %v13205 = vlaneseq
        %v13206 = vshrl.u32 %v13205, 7
        %v13207 = vsub.s32 %v13204, %v13206
        %v13208 = vrot.slane %v13185, %v13207
        %v13210 = vunpack.c.l.s4 1983009808
        %v13211 = vunpack.c.0.s8 %v13210
        %v13212 = vlaneseq
        %v13213 = vshrl.u32 %v13212, 7
        %v13214 = vsub.s32 %v13211, %v13213
        %v13215 = vrot.slane %v13201, %v13214
        %v13216 = vcombine.high %v13208, %v13208
        %v13217 = vcombine.high %v13215, %v13215
        %v13218 = vcombine.high %v13186, %v13186
        %v13220 = vunpack.c.l.s4 1983009808
        %v13221 = vunpack.c.0.s8 %v13220
        %v13222 = vlaneseq
        %v13223 = vshrl.u32 %v13222, 7
        %v13224 = vsub.s32 %v13221, %v13223
        %v13225 = vrot.slane %v13186, %v13224
        %v13227 = vunpack.c.l.s4 1983009808
        %v13228 = vunpack.c.0.s8 %v13227
        %v13229 = vlaneseq
        %v13230 = vshrl.u32 %v13229, 7
        %v13231 = vsub.s32 %v13228, %v13230
        %v13232 = vrot.slane %v13218, %v13231
        %v13233 = vcombine.high %v13225, %v13225
        %v13234 = vcombine.high %v13232, %v13232
        %v13235 = vcombine.high %v13187, %v13187
        %v13237 = vunpack.c.l.s4 1983009808
        %v13238 = vunpack.c.0.s8 %v13237
        %v13239 = vlaneseq
        %v13240 = vshrl.u32 %v13239, 7
        %v13241 = vsub.s32 %v13238, %v13240
        %v13242 = vrot.slane %v13187, %v13241
        %v13244 = vunpack.c.l.s4 1983009808
        %v13245 = vunpack.c.0.s8 %v13244
        %v13246 = vlaneseq
        %v13247 = vshrl.u32 %v13246, 7
        %v13248 = vsub.s32 %v13245, %v13247
        %v13249 = vrot.slane %v13235, %v13248
        %v13250 = vcombine.high %v13242, %v13242
        %v13251 = vcombine.high %v13249, %v13249
        %v13252 = vcombine.high %v13188, %v13188
        %v13254 = vunpack.c.l.s4 1983009808
        %v13255 = vunpack.c.0.s8 %v13254
        %v13256 = vlaneseq
        %v13257 = vshrl.u32 %v13256, 7
        %v13258 = vsub.s32 %v13255, %v13257
        %v13259 = vrot.slane %v13188, %v13258
        %v13261 = vunpack.c.l.s4 1983009808
        %v13262 = vunpack.c.0.s8 %v13261
        %v13263 = vlaneseq
        %v13264 = vshrl.u32 %v13263, 7
        %v13265 = vsub.s32 %v13262, %v13264
        %v13266 = vrot.slane %v13252, %v13265
        %v13267 = vcombine.high %v13259, %v13259
        %v13268 = vcombine.high %v13266, %v13266
        %v13269 = vcombine.high %v13189, %v13189
        %v13271 = vunpack.c.l.s4 1983009808
        %v13272 = vunpack.c.0.s8 %v13271
        %v13273 = vlaneseq
        %v13274 = vshrl.u32 %v13273, 7
        %v13275 = vsub.s32 %v13272, %v13274
        %v13276 = vrot.slane %v13189, %v13275
        %v13278 = vunpack.c.l.s4 1983009808
        %v13279 = vunpack.c.0.s8 %v13278
        %v13280 = vlaneseq
        %v13281 = vshrl.u32 %v13280, 7
        %v13282 = vsub.s32 %v13279, %v13281
        %v13283 = vrot.slane %v13269, %v13282
        %v13284 = vcombine.high %v13276, %v13276
        %v13285 = vcombine.high %v13283, %v13283
        %v13286 = vcombine.high %v13190, %v13190
        %v13288 = vunpack.c.l.s4 1983009808
        %v13289 = vunpack.c.0.s8 %v13288
        %v13290 = vlaneseq
        %v13291 = vshrl.u32 %v13290, 7
        %v13292 = vsub.s32 %v13289, %v13291
        %v13293 = vrot.slane %v13190, %v13292
        %v13295 = vunpack.c.l.s4 1983009808
        %v13296 = vunpack.c.0.s8 %v13295
        %v13297 = vlaneseq
        %v13298 = vshrl.u32 %v13297, 7
        %v13299 = vsub.s32 %v13296, %v13298
        %v13300 = vrot.slane %v13286, %v13299
        %v13301 = vcombine.high %v13293, %v13293
        %v13302 = vcombine.high %v13300, %v13300
        %v13303 = vcombine.high %v13191, %v13191
        %v13305 = vunpack.c.l.s4 1983009808
        %v13306 = vunpack.c.0.s8 %v13305
        %v13307 = vlaneseq
        %v13308 = vshrl.u32 %v13307, 7
        %v13309 = vsub.s32 %v13306, %v13308
        %v13310 = vrot.slane %v13191, %v13309
        %v13312 = vunpack.c.l.s4 1983009808
        %v13313 = vunpack.c.0.s8 %v13312
        %v13314 = vlaneseq
        %v13315 = vshrl.u32 %v13314, 7
        %v13316 = vsub.s32 %v13313, %v13315
        %v13317 = vrot.slane %v13303, %v13316
        %v13318 = vcombine.high %v13310, %v13310
        %v13319 = vcombine.high %v13317, %v13317
        %v13320 = vcombine.high %v13192, %v13192
        %v13322 = vunpack.c.l.s4 1983009808
        %v13323 = vunpack.c.0.s8 %v13322
        %v13324 = vlaneseq
        %v13325 = vshrl.u32 %v13324, 7
        %v13326 = vsub.s32 %v13323, %v13325
        %v13327 = vrot.slane %v13192, %v13326
        %v13329 = vunpack.c.l.s4 1983009808
        %v13330 = vunpack.c.0.s8 %v13329
        %v13331 = vlaneseq
        %v13332 = vshrl.u32 %v13331, 7
        %v13333 = vsub.s32 %v13330, %v13332
        %v13334 = vrot.slane %v13320, %v13333
        %v13335 = vcombine.high %v13327, %v13327
        %v13336 = vcombine.high %v13334, %v13334
        %v13369 = vadd.f32 %v13153, %v13208
        %v13370 = vadd.f32 %v13154, %v13216
        %v13371 = vadd.f32 %v13155, %v13215
        %v13372 = vadd.f32 %v13156, %v13217
        %v13373 = vadd.f32 %v13157, %v13225
        %v13374 = vadd.f32 %v13158, %v13233
        %v13375 = vadd.f32 %v13159, %v13232
        %v13376 = vadd.f32 %v13160, %v13234
        %v13377 = vadd.f32 %v13161, %v13242
        %v13378 = vadd.f32 %v13162, %v13250
        %v13379 = vadd.f32 %v13163, %v13249
        %v13380 = vadd.f32 %v13164, %v13251
        %v13381 = vadd.f32 %v13165, %v13259
        %v13382 = vadd.f32 %v13166, %v13267
        %v13383 = vadd.f32 %v13167, %v13266
        %v13384 = vadd.f32 %v13168, %v13268
        %v13385 = vadd.f32 %v13169, %v13276
        %v13386 = vadd.f32 %v13170, %v13284
        %v13387 = vadd.f32 %v13171, %v13283
        %v13388 = vadd.f32 %v13172, %v13285
        %v13389 = vadd.f32 %v13173, %v13293
        %v13390 = vadd.f32 %v13174, %v13301
        %v13391 = vadd.f32 %v13175, %v13300
        %v13392 = vadd.f32 %v13176, %v13302
        %v13393 = vadd.f32 %v13177, %v13310
        %v13394 = vadd.f32 %v13178, %v13318
        %v13395 = vadd.f32 %v13179, %v13317
        %v13396 = vadd.f32 %v13180, %v13319
        %v13397 = vadd.f32 %v13181, %v13327
        %v13398 = vadd.f32 %v13182, %v13335
        %v13399 = vadd.f32 %v13183, %v13334
        %v13400 = vadd.f32 %v13184, %v13336
        %v13433 = vcombine.low %v13369, %v13370
        %v13434 = vcombine.low %v13371, %v13372
        %v13436 = vunpack.c.l.s4 1983009808
        %v13437 = vunpack.c.0.s8 %v13436
        %v13438 = vlaneseq
        %v13439 = vshrl.u32 %v13438, 7
        %v13440 = vsub.s32 %v13437, %v13439
        %v13441 = vrot.slane %v13433, %v13440
        %v13443 = vunpack.c.l.s4 1983009808
        %v13444 = vunpack.c.0.s8 %v13443
        %v13445 = vlaneseq
        %v13446 = vshrl.u32 %v13445, 7
        %v13447 = vsub.s32 %v13444, %v13446
        %v13448 = vrot.slane %v13434, %v13447
        %v13449 = vcombine.low %v13441, %v13448
        %v13450 = vcombine.low %v13373, %v13374
        %v13451 = vcombine.low %v13375, %v13376
        %v13453 = vunpack.c.l.s4 1983009808
        %v13454 = vunpack.c.0.s8 %v13453
        %v13455 = vlaneseq
        %v13456 = vshrl.u32 %v13455, 7
        %v13457 = vsub.s32 %v13454, %v13456
        %v13458 = vrot.slane %v13450, %v13457
        %v13460 = vunpack.c.l.s4 1983009808
        %v13461 = vunpack.c.0.s8 %v13460
        %v13462 = vlaneseq
        %v13463 = vshrl.u32 %v13462, 7
        %v13464 = vsub.s32 %v13461, %v13463
        %v13465 = vrot.slane %v13451, %v13464
        %v13466 = vcombine.low %v13458, %v13465
        %v13467 = vcombine.low %v13377, %v13378
        %v13468 = vcombine.low %v13379, %v13380
        %v13470 = vunpack.c.l.s4 1983009808
        %v13471 = vunpack.c.0.s8 %v13470
        %v13472 = vlaneseq
        %v13473 = vshrl.u32 %v13472, 7
        %v13474 = vsub.s32 %v13471, %v13473
        %v13475 = vrot.slane %v13467, %v13474
        %v13477 = vunpack.c.l.s4 1983009808
        %v13478 = vunpack.c.0.s8 %v13477
        %v13479 = vlaneseq
        %v13480 = vshrl.u32 %v13479, 7
        %v13481 = vsub.s32 %v13478, %v13480
        %v13482 = vrot.slane %v13468, %v13481
        %v13483 = vcombine.low %v13475, %v13482
        %v13484 = vcombine.low %v13381, %v13382
        %v13485 = vcombine.low %v13383, %v13384
        %v13487 = vunpack.c.l.s4 1983009808
        %v13488 = vunpack.c.0.s8 %v13487
        %v13489 = vlaneseq
        %v13490 = vshrl.u32 %v13489, 7
        %v13491 = vsub.s32 %v13488, %v13490
        %v13492 = vrot.slane %v13484, %v13491
        %v13494 = vunpack.c.l.s4 1983009808
        %v13495 = vunpack.c.0.s8 %v13494
        %v13496 = vlaneseq
        %v13497 = vshrl.u32 %v13496, 7
        %v13498 = vsub.s32 %v13495, %v13497
        %v13499 = vrot.slane %v13485, %v13498
        %v13500 = vcombine.low %v13492, %v13499
        %v13501 = vcombine.low %v13385, %v13386
        %v13502 = vcombine.low %v13387, %v13388
        %v13504 = vunpack.c.l.s4 1983009808
        %v13505 = vunpack.c.0.s8 %v13504
        %v13506 = vlaneseq
        %v13507 = vshrl.u32 %v13506, 7
        %v13508 = vsub.s32 %v13505, %v13507
        %v13509 = vrot.slane %v13501, %v13508
        %v13511 = vunpack.c.l.s4 1983009808
        %v13512 = vunpack.c.0.s8 %v13511
        %v13513 = vlaneseq
        %v13514 = vshrl.u32 %v13513, 7
        %v13515 = vsub.s32 %v13512, %v13514
        %v13516 = vrot.slane %v13502, %v13515
        %v13517 = vcombine.low %v13509, %v13516
        %v13518 = vcombine.low %v13389, %v13390
        %v13519 = vcombine.low %v13391, %v13392
        %v13521 = vunpack.c.l.s4 1983009808
        %v13522 = vunpack.c.0.s8 %v13521
        %v13523 = vlaneseq
        %v13524 = vshrl.u32 %v13523, 7
        %v13525 = vsub.s32 %v13522, %v13524
        %v13526 = vrot.slane %v13518, %v13525
        %v13528 = vunpack.c.l.s4 1983009808
        %v13529 = vunpack.c.0.s8 %v13528
        %v13530 = vlaneseq
        %v13531 = vshrl.u32 %v13530, 7
        %v13532 = vsub.s32 %v13529, %v13531
        %v13533 = vrot.slane %v13519, %v13532
        %v13534 = vcombine.low %v13526, %v13533
        %v13535 = vcombine.low %v13393, %v13394
        %v13536 = vcombine.low %v13395, %v13396
        %v13538 = vunpack.c.l.s4 1983009808
        %v13539 = vunpack.c.0.s8 %v13538
        %v13540 = vlaneseq
        %v13541 = vshrl.u32 %v13540, 7
        %v13542 = vsub.s32 %v13539, %v13541
        %v13543 = vrot.slane %v13535, %v13542
        %v13545 = vunpack.c.l.s4 1983009808
        %v13546 = vunpack.c.0.s8 %v13545
        %v13547 = vlaneseq
        %v13548 = vshrl.u32 %v13547, 7
        %v13549 = vsub.s32 %v13546, %v13548
        %v13550 = vrot.slane %v13536, %v13549
        %v13551 = vcombine.low %v13543, %v13550
        %v13552 = vcombine.low %v13397, %v13398
        %v13553 = vcombine.low %v13399, %v13400
        %v13555 = vunpack.c.l.s4 1983009808
        %v13556 = vunpack.c.0.s8 %v13555
        %v13557 = vlaneseq
        %v13558 = vshrl.u32 %v13557, 7
        %v13559 = vsub.s32 %v13556, %v13558
        %v13560 = vrot.slane %v13552, %v13559
        %v13562 = vunpack.c.l.s4 1983009808
        %v13563 = vunpack.c.0.s8 %v13562
        %v13564 = vlaneseq
        %v13565 = vshrl.u32 %v13564, 7
        %v13566 = vsub.s32 %v13563, %v13565
        %v13567 = vrot.slane %v13553, %v13566
        %v13568 = vcombine.low %v13560, %v13567
        %vm13577 = vcmask 261120
        %13578 = vst.msk [vmem:[%s266] sm:$0xff] %vm13577, %v13449
        %13579 = vst.msk [vmem:[%s266 + $0x8] sm:$0xff] %vm13577, %v13466
        %13580 = vst.msk [vmem:[%s266 + $0x10] sm:$0xff] %vm13577, %v13483
        %13581 = vst.msk [vmem:[%s266 + $0x18] sm:$0xff] %vm13577, %v13500
        %13582 = vst.msk [vmem:[%s266 + $0x20] sm:$0xff] %vm13577, %v13517
        %13583 = vst.msk [vmem:[%s266 + $0x28] sm:$0xff] %vm13577, %v13534
        %13584 = vst.msk [vmem:[%s266 + $0x30] sm:$0xff] %vm13577, %v13551
        %13585 = vst.msk [vmem:[%s266 + $0x38] sm:$0xff] %vm13577, %v13568
        %s13586 = sand.u32 %s105, 1
        %s13587 = scalar_lea.sflag [#allocation4], %s13586
        %s13588 = sand.u32 %s105, 1
        %s13589 = smul.addr %s13588, 64
        %s13590 = scalar_lea.vmem [#allocation9], %s13589
        // Predicated region
        $region45: #{upsample_spi_add.1} parent=31 // pred_check
          %p13591 = pneg %p115
        $region46: #{upsample_spi_add.1} parent=31 // pred_check_branch
          %13593 = sbr.rel (%p13591) target = $region48
        $region47: #{upsample_spi_add.1} parent=31 // pred_region
          #allocation13 [shape = 'u32[6]{0}', space=smem, size = 0x18, scoped, tag = 'DMA stride descriptor']
          %s13594 = smul.u32 2, %s24
          %s13596 = ssub.s32 1024, 1024
          %13597 = vsyncadd %s13587, %s13596
          %s13598 = smul.addr %s13594, 128
          %s13599 = scalar_lea.hbm %s3, %s13598
          %s13601 = sshll.u32 1, 14
          %s13602 = sxor.u32 4294967295, %s13601
          %s13605 = sshll.u32 7, 18
          %s13606 = sxor.u32 4294967295, %s13605
          %s13607 = sand.u32 0, %s13606
          %s13609 = sor.u32 %s13607, 0
          %s13611 = sshll.u32 3, 24
          %s13612 = sxor.u32 4294967295, %s13611
          %s13613 = sand.u32 %s13609, %s13612
          %s13615 = sor.u32 %s13613, 0
          %s13616 = sshll.u32 %s13590, 4
          %s13617 = int_to_ptr.vmem [resolvable:$true] %s13616
          %13623 = sst [smem:[#allocation13]] 256
          %s13624 = scalar_lea.smem [#allocation13], 1
          %13625 = sst [smem:[%s13624]] 512
          %s13626 = scalar_lea.smem [#allocation13], 2
          %13627 = sst [smem:[%s13626]] 2
          %s13628 = scalar_lea.smem [#allocation13], 3
          %13629 = sst [smem:[%s13628]] 128
          %s13630 = scalar_lea.smem [#allocation13], 4
          %13631 = sst [smem:[%s13630]] 128
          %s13632 = scalar_lea.smem [#allocation13], 5
          %13633 = sst [smem:[%s13632]] 8
          %13635 = dma.general %s13617, 1024, %s13599, %s13587, [#allocation12], [#allocation13], %s13615, 0
        $region48: #{upsample_spi_add.1} parent=31 // pred_fallthru
          _
      $region32: #{upsample_spi_add.1} parent=5 // pred_fallthru
        _
      %p13636 = scmp.le.s32.totalorder 2, %s19
      // Predicated region
      $region49: #{upsample_spi_add.1} parent=5 // pred_check
        %p13637 = pneg %p13636
      $region50: #{upsample_spi_add.1} parent=5 // pred_check_branch
        %13639 = sbr.rel (%p13637) target = $region52
      $region51: #{upsample_spi_add.1} parent=5 // pred_region
        %s13640 = ssub.s32 %s19, 2
        // Predicated region
        $region53: #{upsample_spi_add.1} parent=51 // pred_check
          %p13641 = pneg %p121
        $region54: #{upsample_spi_add.1} parent=51 // pred_check_branch
          %13643 = sbr.rel (%p13641) target = $region56
        $region55: #{upsample_spi_add.1} parent=51 // pred_region
          %s13644 = sand.u32 %s106, 1
          %s13645 = scalar_lea.sflag [#allocation4], %s13644
          %s13646 = sand.u32 %s106, 1
          %s13647 = smul.addr %s13646, 64
          %s13648 = scalar_lea.vmem [#allocation9], %s13647
          %13649 = dma.done %s13645, 1024
        $region56: #{upsample_spi_add.1} parent=51 // pred_fallthru
          _
      $region52: #{upsample_spi_add.1} parent=5 // pred_fallthru
        _
    $region6: #{upsample_spi_add.1} parent=1 // loop_footer
      %s23 = sadd.s32 1, %s19
    $region7: #{upsample_spi_add.1} parent=1 // loop_footer_branch
      %18 = sbr.rel target = $region3
    $region8: #{upsample_spi_add.1} parent=1 // loop_exit
      _
    %13650 = vsyncpa [#allocation3], 1
    %s13651 = scalar_lea.sflag [#allocation3], 1
    %13652 = vsyncpa %s13651, 1
    %13653 = vsyncpa [#allocation8], 1
    %s13654 = scalar_lea.sflag [#allocation8], 1
    %13655 = vsyncpa %s13654, 1
    %13656 = vsyncpa [#allocation4], 1
    %s13657 = scalar_lea.sflag [#allocation4], 1
    %13658 = vsyncpa %s13657, 1
    %13659 = vsyncpa [#allocation5], 1
    %s13660 = scalar_lea.sflag [#allocation5], 1
    %13661 = vsyncpa %s13660, 1

</llo_original>
